<compile_context>
chip_gen: v7x
topology: tpu7x:2x2x1
jax: 0.10.0
libtpu: 0.0.40
codegen_flags: <defaults>
</compile_context>

<pallas_src>
import functools

import numpy as np
import jax
import jax.numpy as jnp
from jax.experimental import pallas as pl
from jax.experimental.pallas import tpu as pltpu

NUMBER_F = 16          # module default
HEADS = 8              # module default
FEAT = NUMBER_F // 2   # 8 = transformer dim / conv feature width
VMEM_LIMIT = 32 * 1024 * 1024   # <= v7x 64 MiB physical; fine on v5e/v6e too


# ---------------------------------------------------------------------------
# Trace-time constant operators (numpy)
# ---------------------------------------------------------------------------
def adaptive_pool_matrix(in_size, out_size):
    m = np.zeros((out_size, in_size), np.float32)
    for i in range(out_size):
        s = (i * in_size) // out_size
        e = -((-(i + 1) * in_size) // out_size)            # ceil
        m[i, s:e] = 1.0 / (e - s)
    return m


def bilinear_matrix(in_size, out_size, align_corners):
    m = np.zeros((out_size, in_size), np.float32)
    for i in range(out_size):
        if align_corners:
            src = 0.0 if out_size == 1 else i * (in_size - 1) / (out_size - 1)
        else:
            src = (i + 0.5) * in_size / out_size - 0.5
            src = min(max(src, 0.0), in_size - 1)
        lo = int(np.floor(src))
        hi = min(lo + 1, in_size - 1)
        frac = src - lo
        m[i, lo] += 1.0 - frac
        m[i, hi] += frac
    return m


def shift_matrices_T(hp, wp):
    """S_t^T (9, hp*wp, hp*wp) for a 3x3 / stride-1 / pad-1 conv on an (hp,wp)
    grid: (x @ S_t^T)[c, p] = x[c, p shifted by tap t] (0 outside)."""
    s = hp * wp
    mats = np.zeros((9, s, s), np.float32)
    t = 0
    for dy in (-1, 0, 1):
        for dx in (-1, 0, 1):
            for y in range(hp):
                for x in range(wp):
                    yy, xx = y + dy, x + dx
                    if 0 <= yy < hp and 0 <= xx < wp:
                        mats[t, yy * wp + xx, y * wp + x] = 1.0
            t += 1
    return mats


# ---------------------------------------------------------------------------
# Kernel 1: fused front end (per-batch grid)
# ---------------------------------------------------------------------------
def _front_end_kernel(cols_ref, w1_ref, b1_ref, poolp_ref, stt_ref,
                      wenc_ref, benc_ref,
                      ln1w_ref, ln1b_ref, wqkv_ref, wo_ref, bo_ref,
                      ln2w_ref, ln2b_ref, wf1_ref, bf1_ref, wf2_ref, bf2_ref,
                      wtop_ref, wbot_ref, bout_ref, o_ref, *, heads):
    dot = functools.partial(jnp.dot, preferred_element_type=jnp.float32)
    C = w1_ref.shape[0]                                      # 8
    assert C % heads == 0 and C // heads == 1, "kernel assumes head_dim == 1"

    # ---- e_conv1 + ReLU (spatial positions on lanes, channels on sublanes) ----
    y = dot(w1_ref[...], cols_ref[0]) + b1_ref[...]          # (C, Hout*Wout)
    y = jnp.maximum(y, 0.0)

    # ---- AdaptiveAvgPool2d as ONE kron-fused matmul ----
    xrd = dot(y, poolp_ref[...])                             # (C, S), S = hp*wp

    # ---- enc_conv: 3x3/pad1 conv as 9 shift-matrix taps ----
    xc = dot(wenc_ref[0], dot(xrd, stt_ref[0]))
    for t in range(1, 9):
        xc = xc + dot(wenc_ref[t], dot(xrd, stt_ref[t]))
    xc = xc + benc_ref[...]                                  # (C, S)

    # ---- transformer (depth=1), channels-first (C, S) layout ----
    def layer_norm(z, wgt, b):                               # normalize over C
        mu = jnp.mean(z, axis=0, keepdims=True)
        var = jnp.mean(jnp.square(z - mu), axis=0, keepdims=True)
        return (z - mu) * jax.lax.rsqrt(var + 1e-5) * wgt + b

    xt = xrd
    h1 = layer_norm(xt, ln1w_ref[...], ln1b_ref[...])
    qkv = dot(wqkv_ref[...], h1)                             # (3C, S)
    q, k, v = qkv[0:C], qkv[C:2 * C], qkv[2 * C:3 * C]       # (C, S) each
    scale = float(C // heads) ** -0.5
    # head_dim == 1: heads == channels; softmax reduction is on the lane axis.
    scores = (q * scale)[:, :, None] * k[:, None, :]         # (H, S, S)
    scores = scores - jnp.max(scores, axis=-1, keepdims=True)
    p = jnp.exp(scores)
    p = p * pl.reciprocal(jnp.sum(p, axis=-1, keepdims=True), approx=True)
    attn = jnp.sum(p * v[:, None, :], axis=-1)               # (C, S)
    xt = xt + dot(wo_ref[...], attn) + bo_ref[...]

    h2 = layer_norm(xt, ln2w_ref[...], ln2b_ref[...])
    # TODO(synk): PyTorch nn.GELU is erf-based; tanh approximation used here.
    f = jax.nn.gelu(dot(wf1_ref[...], h2) + bf1_ref[...], approximate=True)
    f = dot(wf2_ref[...], f) + bf2_ref[...]
    xo = xt + f                                              # (C, S) = x_out_img

    # ---- out_conv on concat([x_out_img, x_conv]) (concat folded into the two
    #      weight halves), again 9 shift-matrix taps ----
    acc = dot(wtop_ref[0], dot(xo, stt_ref[0])) + dot(wbot_ref[0], dot(xc, stt_ref[0]))
    for t in range(1, 9):
        acc = acc + dot(wtop_ref[t], dot(xo, stt_ref[t])) \
                  + dot(wbot_ref[t], dot(xc, stt_ref[t]))
    o_ref[0] = acc + bout_ref[...]                           # (24, S)


def front_end(cols1, weights, out_channels, S):
    N, K1, HW1 = cols1.shape

    def const_spec(a):
        zeros = (0,) * a.ndim
        return pl.BlockSpec(a.shape, lambda n, z=zeros: z)

    return pl.pallas_call(
        functools.partial(_front_end_kernel, heads=HEADS),
        out_shape=jax.ShapeDtypeStruct((N, out_channels, S), jnp.float32),
        grid=(N,),
        in_specs=[pl.BlockSpec((1, K1, HW1), lambda n: (n, 0, 0))]
                 + [const_spec(a) for a in weights],
        out_specs=pl.BlockSpec((1, out_channels, S), lambda n: (n, 0, 0)),
        compiler_params=pltpu.CompilerParams(
            dimension_semantics=("parallel",),
            vmem_limit_bytes=VMEM_LIMIT),
    )(cols1, *weights)


# ---------------------------------------------------------------------------
# Kernel 2: fused tail — upsample(256,256, align_corners=True) -> tanh ->
# downsample(h,w, align_corners=False).  Channel-grouped grid; the 256x256
# intermediate lives only in VMEM; fori_loop bounds its live range.
# ---------------------------------------------------------------------------
def _tail_kernel(x_ref, uh_ref, uwt_ref, dh_ref, dwt_ref, o_ref):
    dot = functools.partial(jnp.dot, preferred_element_type=jnp.float32)
    uh, uwt, dh, dwt = uh_ref[...], uwt_ref[...], dh_ref[...], dwt_ref[...]
    cg = x_ref.shape[0]

    def body(g, carry):
        t1 = dot(x_ref[g], uwt)              # (hp, mid)
        # TODO(synk): on v6e/v7x the tanh'd 256x256 map could be bf16 (EUP/VPU
        # bf16 paths); kept f32 so the same kernel stays correct/fast on v5e.
        u = jnp.tanh(dot(uh, t1))            # (mid, mid), VMEM-resident only
        t2 = dot(dh, u)                      # (out_h, mid)
        o_ref[g] = dot(t2, dwt)              # (out_h, out_w)
        return carry

    jax.lax.fori_loop(0, cg, body, 0)


def resize_tanh_resize(x_r_flat, hp, wp, out_h, out_w, mid=256):
    NC = x_r_flat.shape[0]                   # N * 24
    # Largest channel group that (a) divides NC, (b) leaves >=2 grid steps so
    # v7x's 2 TensorCores both get work, (c) keeps the double-buffered output
    # block under ~16 MiB.
    cg = 1
    for cand in range(max(NC // 2, 1), 0, -1):
        if NC % cand == 0 and cand * out_h * out_w * 4 * 2 <= 16 * 1024 * 1024:
            cg = cand
            break
    Uh = jnp.asarray(bilinear_matrix(hp, mid, align_corners=True))       # (mid, hp)
    UwT = jnp.asarray(bilinear_matrix(wp, mid, align_corners=True).T)    # (wp, mid)
    Dh = jnp.asarray(bilinear_matrix(mid, out_h, align_corners=False))   # (out_h, mid)
    DwT = jnp.asarray(bilinear_matrix(mid, out_w, align_corners=False).T)  # (mid, out_w)
    return pl.pallas_call(
        _tail_kernel,
        out_shape=jax.ShapeDtypeStruct((NC, out_h, out_w), jnp.float32),
        grid=(NC // cg,),
        in_specs=[pl.BlockSpec((cg, hp, wp), lambda i: (i, 0, 0)),
                  pl.BlockSpec((mid, hp), lambda i: (0, 0)),
                  pl.BlockSpec((wp, mid), lambda i: (0, 0)),
                  pl.BlockSpec((out_h, mid), lambda i: (0, 0)),
                  pl.BlockSpec((mid, out_w), lambda i: (0, 0))],
        out_specs=pl.BlockSpec((cg, out_h, out_w), lambda i: (i, 0, 0)),
        compiler_params=pltpu.CompilerParams(
            dimension_semantics=("parallel",),
            vmem_limit_bytes=VMEM_LIMIT),
    )(x_r_flat.astype(jnp.float32), Uh, UwT, Dh, DwT)


# ---------------------------------------------------------------------------
# Kernel 3: iterative curve enhancement + clamp.
#   img : (N, 3, HW)   r : (N, 8, 3, HW)  (pure reshape of x_r_resize — no
#   HBM transpose).  Grid over (N, HW tiles), lane-dense tiles.
# ---------------------------------------------------------------------------
def _curve_kernel(img_ref, r_ref, o_ref):
    x = img_ref[0]                           # (3, tw)
    for i in range(8):
        ri = r_ref[0, i]                     # (3, tw)
        x = x + ri * (x * x - x)
    o_ref[0] = jnp.clip(x, 0.0, 1.0)


def curve_enhance(img, x_r_resize):
    N, _, H, W = img.shape
    HW = H * W
    img2 = img.reshape(N, 3, HW).astype(jnp.float32)
    # r1..r8 = split(x_r_resize, 3, dim=1)  ->  pure reshape, NO transpose.
    r = x_r_resize.reshape(N, 8, 3, HW).astype(jnp.float32)

    tw = None
    for cand in (8192, 4096, 2048, 1024, 512, 256, 128):
        if HW % cand == 0:
            tw = cand
            break
    if tw is None:
        # TODO(synk): HW not a multiple of 128 — fall back to padding the lane
        # axis (costs one extra copy of r); not hit by common image sizes.
        tw = 512
        HWp = pl.cdiv(HW, tw) * tw
        img2 = jnp.pad(img2, ((0, 0), (0, 0), (0, HWp - HW)))
        r = jnp.pad(r, ((0, 0), (0, 0), (0, 0), (0, HWp - HW)))
    else:
        HWp = HW

    out = pl.pallas_call(
        _curve_kernel,
        out_shape=jax.ShapeDtypeStruct((N, 3, HWp), jnp.float32),
        grid=(N, HWp // tw),
        in_specs=[pl.BlockSpec((1, 3, tw), lambda n, t: (n, 0, t)),
                  pl.BlockSpec((1, 8, 3, tw), lambda n, t: (n, 0, 0, t))],
        out_specs=pl.BlockSpec((1, 3, tw), lambda n, t: (n, 0, t)),
        compiler_params=pltpu.CompilerParams(
            dimension_semantics=("parallel", "parallel"),
            vmem_limit_bytes=VMEM_LIMIT),
    )(img2, r)
    if HWp != HW:
        out = out[:, :, :HW]
    return out.reshape(N, 3, H, W)


# ---------------------------------------------------------------------------
# Parameters (deterministic synthetic init, PyTorch layout) and forward pass
# ---------------------------------------------------------------------------
def init_params(key):
    C = FEAT
    ks = jax.random.split(key, 14)

    def rnd(k, shape, scale):
        return scale * jax.random.normal(k, shape, jnp.float32)

    p = {
        # e_conv1: Conv2d(3, 8, kernel=2, stride=3, padding=1)
        'conv1_w': rnd(ks[0], (C, 3, 2, 2), 0.3),
        'conv1_b': rnd(ks[1], (C,), 0.1),
        # enc_conv: Conv2d(8, 8, 3, 1, 1)
        'enc_w': rnd(ks[2], (C, C, 3, 3), 0.2),
        'enc_b': rnd(ks[3], (C,), 0.1),
        # out_conv: Conv2d(16, 24, 3, 1, 1)
        'out_w': rnd(ks[4], (24, 2 * C, 3, 3), 0.2),
        'out_b': rnd(ks[5], (24,), 0.1),
        # Transformer(dim=8, depth=1, heads=8, mlp_dim=8)
        'ln1_w': jnp.ones((1, C), jnp.float32),
        'ln1_b': jnp.zeros((1, C), jnp.float32),
        'wqkv_t': jnp.concatenate([rnd(ks[6], (C, C), 0.3),
                                   rnd(ks[7], (C, C), 0.3),
                                   rnd(ks[8], (C, C), 0.3)], axis=1),   # (C, 3C)
        'wo_t': rnd(ks[9], (C, C), 0.3),
        'bo': jnp.zeros((1, C), jnp.float32),
        'ln2_w': jnp.ones((1, C), jnp.float32),
        'ln2_b': jnp.zeros((1, C), jnp.float32),
        'w1_t': rnd(ks[10], (C, C), 0.2),
        'b1': jnp.zeros((1, C), jnp.float32),
        'w2_t': rnd(ks[11], (C, C), 0.2),
        'b2': jnp.zeros((1, C), jnp.float32),
    }
    # NOTE: self.pos_embedding and self.maxpool exist in __init__ but are never
    # used in forward(), so they are intentionally omitted.
    return p


def forward(params, x_in, img_in=None, patch_num=4):
    if img_in is None:
        img_in = x_in
    n, c, h, w = x_in.shape
    C = FEAT
    hp, wp = h // 8, w // 8
    S = hp * wp
    # rearrange(..., h=patch_num) + cat with x_conv in the reference forward
    # only typechecks when patch_num == h // 8.
    assert patch_num == hp

    # ---- XLA glue: im2col for e_conv1 (Conv2d(3, 8, k=2, stride=3, pad=1)) ----
    xp = jnp.pad(x_in.astype(jnp.float32), ((0, 0), (0, 0), (1, 1), (1, 1)))
    hout = (h + 2 - 2) // 3 + 1
    wout = (w + 2 - 2) // 3 + 1
    taps = []
    for i in range(2):
        for j in range(2):
            taps.append(xp[:, :, i:i + 3 * (hout - 1) + 1:3,
                               j:j + 3 * (wout - 1) + 1:3])
    cols1 = jnp.stack(taps, axis=2).reshape(n, c * 4, hout * wout)   # (n,12,121)

    # ---- trace-time constant operators ----
    mh = adaptive_pool_matrix(hout, hp)
    mw = adaptive_pool_matrix(wout, wp)
    poolP = jnp.asarray(np.kron(mh, mw).T)              # (hout*wout, S)
    stt = jnp.asarray(shift_matrices_T(hp, wp))         # (9, S, S)

    # ---- weights packed for the channels-first kernel layout ----
    f32 = lambda a: jnp.asarray(a, jnp.float32)
    weights = [
        f32(params['conv1_w']).reshape(C, c * 4),                        # (8, 12)
        f32(params['conv1_b']).reshape(C, 1),
        poolP,
        stt,
        f32(params['enc_w']).transpose(2, 3, 0, 1).reshape(9, C, C),
        f32(params['enc_b']).reshape(C, 1),
        f32(params['ln1_w']).reshape(C, 1),
        f32(params['ln1_b']).reshape(C, 1),
        f32(params['wqkv_t']).T,                                         # (3C, C)
        f32(params['wo_t']).T,                                           # (C, C)
        f32(params['bo']).reshape(C, 1),
        f32(params['ln2_w']).reshape(C, 1),
        f32(params['ln2_b']).reshape(C, 1),
        f32(params['w1_t']).T,
        f32(params['b1']).reshape(C, 1),
        f32(params['w2_t']).T,
        f32(params['b2']).reshape(C, 1),
        f32(params['out_w'][:, :C]).transpose(2, 3, 0, 1).reshape(9, 24, C),
        f32(params['out_w'][:, C:]).transpose(2, 3, 0, 1).reshape(9, 24, C),
        f32(params['out_b']).reshape(24, 1),
    ]

    # ---- Kernel 1: fused front end -> x_r (n, 24, S) ----
    x_r = front_end(cols1, weights, out_channels=24, S=S)

    # ---- Kernel 2: fused tail (upsample-256 -> tanh -> downsample-(h,w)) ----
    x_r_resize = resize_tanh_resize(x_r.reshape(n * 24, hp, wp), hp, wp, h, w)
    x_r_resize = x_r_resize.reshape(n, 24, h, w)

    # ---- Kernel 3: iterative curve enhancement + clamp ----
    enhanced_image = curve_enhance(img_in, x_r_resize)
    return enhanced_image, x_r_resize


if __name__ == "__main__":
    key = jax.random.PRNGKey(0)
    kp, kx = jax.random.split(key)
    params = init_params(kp)

    # Small config consistent with the module: input 32x32 -> h//8 = 4, so the
    # model is built with patch_num=4 (constructor argument).
    H = W = 32
    PATCH_NUM = H // 8
    x_in = jax.random.uniform(kx, (2, 3, H, W), jnp.float32)

    fwd = jax.jit(functools.partial(forward, patch_num=PATCH_NUM))
    enhanced, x_r_resize = fwd(params, x_in)
    jax.block_until_ready((enhanced, x_r_resize))
    assert enhanced.shape == (2, 3, H, W)
    assert x_r_resize.shape == (2, 24, H, W)
    assert bool(jnp.all(jnp.isfinite(enhanced)))
    print("KERNEL_OK")
</pallas_src>

<mosaic_0001>
module attributes {stable_mosaic.version = 11 : i64} {
  func.func @_tail_kernel(%arg0: i32, %arg1: memref<24x4x4xf32, #tpu.memory_space<vmem>>, %arg2: memref<256x4xf32, #tpu.memory_space<vmem>>, %arg3: memref<4x256xf32, #tpu.memory_space<vmem>>, %arg4: memref<32x256xf32, #tpu.memory_space<vmem>>, %arg5: memref<256x32xf32, #tpu.memory_space<vmem>>, %arg6: memref<24x32x32xf32, #tpu.memory_space<vmem>>) attributes {dimension_semantics = [#tpu.dimension_semantics<parallel>], iteration_bounds = array<i64: 2>, scalar_prefetch = 0 : i64, scratch_operands = 0 : i64, tpu.core_type = #tpu.core_type<tc>, window_params = [{transform_indices = @transform_0, window_bounds = array<i64: 24, 4, 4>}, {pipeline_mode = #tpu.pipeline_mode<synchronous>, transform_indices = @transform_1, window_bounds = array<i64: 256, 4>}, {pipeline_mode = #tpu.pipeline_mode<synchronous>, transform_indices = @transform_2, window_bounds = array<i64: 4, 256>}, {pipeline_mode = #tpu.pipeline_mode<synchronous>, transform_indices = @transform_3, window_bounds = array<i64: 32, 256>}, {pipeline_mode = #tpu.pipeline_mode<synchronous>, transform_indices = @transform_4, window_bounds = array<i64: 256, 32>}, {transform_indices = @transform_5, window_bounds = array<i64: 24, 32, 32>}]} {
    %c0 = arith.constant 0 : index
    %c0_0 = arith.constant 0 : index
    %0 = vector.load %arg2[%c0, %c0_0] : memref<256x4xf32, #tpu.memory_space<vmem>>, vector<256x4xf32>
    %c0_1 = arith.constant 0 : index
    %c0_2 = arith.constant 0 : index
    %1 = vector.load %arg3[%c0_1, %c0_2] : memref<4x256xf32, #tpu.memory_space<vmem>>, vector<4x256xf32>
    %c0_3 = arith.constant 0 : index
    %c0_4 = arith.constant 0 : index
    %2 = vector.load %arg4[%c0_3, %c0_4] : memref<32x256xf32, #tpu.memory_space<vmem>>, vector<32x256xf32>
    %c0_5 = arith.constant 0 : index
    %c0_6 = arith.constant 0 : index
    %3 = vector.load %arg5[%c0_5, %c0_6] : memref<256x32xf32, #tpu.memory_space<vmem>>, vector<256x32xf32>
    %c0_i32 = arith.constant 0 : i32
    %c24_i32 = arith.constant 24 : i32
    %4 = arith.addi %c0_i32, %c24_i32 : i32
    %c1_i32 = arith.constant 1 : i32
    scf.for %arg7 = %c0_i32 to %4 step %c1_i32  : i32 {
      %5 = arith.index_cast %arg7 : i32 to index
      %c0_8 = arith.constant 0 : index
      %c0_9 = arith.constant 0 : index
      %6 = vector.load %arg1[%5, %c0_8, %c0_9] : memref<24x4x4xf32, #tpu.memory_space<vmem>>, vector<1x4x4xf32>
      %7 = vector.shape_cast %6 : vector<1x4x4xf32> to vector<4x4xf32>
      %cst = arith.constant dense<0.000000e+00> : vector<4x256xf32>
      %8 = tpu.matmul %7, %1, %cst {dimension_numbers = #tpu.dot_dimension_numbers<[1], [0], [0], [1], [0, 0, 1, 1], [], []>} : vector<4x4xf32>, vector<4x256xf32>, vector<4x256xf32> -> vector<4x256xf32>
      %cst_10 = arith.constant dense<0.000000e+00> : vector<256x256xf32>
      %9 = tpu.matmul %0, %8, %cst_10 {dimension_numbers = #tpu.dot_dimension_numbers<[1], [0], [0], [1], [0, 0, 1, 1], [], []>} : vector<256x4xf32>, vector<4x256xf32>, vector<256x256xf32> -> vector<256x256xf32>
      %10 = math.tanh %9 : vector<256x256xf32>
      %cst_11 = arith.constant dense<0.000000e+00> : vector<32x256xf32>
      %11 = tpu.matmul %2, %10, %cst_11 {dimension_numbers = #tpu.dot_dimension_numbers<[1], [0], [0], [1], [0, 0, 1, 1], [], []>} : vector<32x256xf32>, vector<256x256xf32>, vector<32x256xf32> -> vector<32x256xf32>
      %cst_12 = arith.constant dense<0.000000e+00> : vector<32x32xf32>
      %12 = tpu.matmul %11, %3, %cst_12 {dimension_numbers = #tpu.dot_dimension_numbers<[1], [0], [0], [1], [0, 0, 1, 1], [], []>} : vector<32x256xf32>, vector<256x32xf32>, vector<32x32xf32> -> vector<32x32xf32>
      %13 = arith.index_cast %arg7 : i32 to index
      %c0_13 = arith.constant 0 : index
      %c0_14 = arith.constant 0 : index
      %14 = vector.load %arg6[%13, %c0_13, %c0_14] : memref<24x32x32xf32, #tpu.memory_space<vmem>>, vector<1x32x32xf32>
      %15 = vector.shape_cast %14 : vector<1x32x32xf32> to vector<32x32xf32>
      %16 = vector.shape_cast %12 : vector<32x32xf32> to vector<1x32x32xf32>
      tpu.vector_store %arg6[%13, %c0_13, %c0_14], %16 {strides = array<i32>} : memref<24x32x32xf32, #tpu.memory_space<vmem>>, vector<1x32x32xf32>,
    }
    %c24_i32_7 = arith.constant 24 : i32
    return
  }
  func.func @transform_0(%arg0: i32) -> (i32, i32, i32) {
    %c0_i32 = arith.constant 0 : i32
    %c0_i32_0 = arith.constant 0 : i32
    %c0_i32_1 = arith.constant 0 : i32
    return %arg0, %c0_i32, %c0_i32_0 : i32, i32, i32
  }
  func.func @transform_1(%arg0: i32) -> (i32, i32) {
    %c0_i32 = arith.constant 0 : i32
    %c0_i32_0 = arith.constant 0 : i32
    %c0_i32_1 = arith.constant 0 : i32
    return %c0_i32, %c0_i32_0 : i32, i32
  }
  func.func @transform_2(%arg0: i32) -> (i32, i32) {
    %c0_i32 = arith.constant 0 : i32
    %c0_i32_0 = arith.constant 0 : i32
    %c0_i32_1 = arith.constant 0 : i32
    return %c0_i32, %c0_i32_0 : i32, i32
  }
  func.func @transform_3(%arg0: i32) -> (i32, i32) {
    %c0_i32 = arith.constant 0 : i32
    %c0_i32_0 = arith.constant 0 : i32
    %c0_i32_1 = arith.constant 0 : i32
    return %c0_i32, %c0_i32_0 : i32, i32
  }
  func.func @transform_4(%arg0: i32) -> (i32, i32) {
    %c0_i32 = arith.constant 0 : i32
    %c0_i32_0 = arith.constant 0 : i32
    %c0_i32_1 = arith.constant 0 : i32
    return %c0_i32, %c0_i32_0 : i32, i32
  }
  func.func @transform_5(%arg0: i32) -> (i32, i32, i32) {
    %c0_i32 = arith.constant 0 : i32
    %c0_i32_0 = arith.constant 0 : i32
    %c0_i32_1 = arith.constant 0 : i32
    return %arg0, %c0_i32, %c0_i32_0 : i32, i32, i32
  }
}

module attributes {stable_mosaic.version = 11 : i64} {
  func.func @_curve_kernel(%arg0: i32, %arg1: i32, %arg2: memref<1x3x1024xf32, #tpu.memory_space<vmem>>, %arg3: memref<1x8x3x1024xf32, #tpu.memory_space<vmem>>, %arg4: memref<1x3x1024xf32, #tpu.memory_space<vmem>>) attributes {dimension_semantics = [#tpu.dimension_semantics<parallel>, #tpu.dimension_semantics<parallel>], iteration_bounds = array<i64: 2, 1>, scalar_prefetch = 0 : i64, scratch_operands = 0 : i64, tpu.core_type = #tpu.core_type<tc>, window_params = [{transform_indices = @transform_0, window_bounds = array<i64: 1, 3, 1024>}, {transform_indices = @transform_1, window_bounds = array<i64: 1, 8, 3, 1024>}, {transform_indices = @transform_2, window_bounds = array<i64: 1, 3, 1024>}]} {
    %c0 = arith.constant 0 : index
    %c0_0 = arith.constant 0 : index
    %c0_1 = arith.constant 0 : index
    %0 = vector.load %arg2[%c0, %c0_0, %c0_1] : memref<1x3x1024xf32, #tpu.memory_space<vmem>>, vector<1x3x1024xf32>
    %1 = vector.shape_cast %0 : vector<1x3x1024xf32> to vector<3x1024xf32>
    %c0_2 = arith.constant 0 : index
    %c0_3 = arith.constant 0 : index
    %c0_4 = arith.constant 0 : index
    %c0_5 = arith.constant 0 : index
    %2 = vector.load %arg3[%c0_2, %c0_3, %c0_4, %c0_5] : memref<1x8x3x1024xf32, #tpu.memory_space<vmem>>, vector<1x1x3x1024xf32>
    %3 = vector.shape_cast %2 : vector<1x1x3x1024xf32> to vector<3x1024xf32>
    %4 = arith.mulf %1, %1 : vector<3x1024xf32>
    %5 = arith.subf %4, %1 : vector<3x1024xf32>
    %6 = arith.mulf %3, %5 : vector<3x1024xf32>
    %7 = arith.addf %1, %6 : vector<3x1024xf32>
    %c0_6 = arith.constant 0 : index
    %c1 = arith.constant 1 : index
    %c0_7 = arith.constant 0 : index
    %c0_8 = arith.constant 0 : index
    %8 = vector.load %arg3[%c0_6, %c1, %c0_7, %c0_8] : memref<1x8x3x1024xf32, #tpu.memory_space<vmem>>, vector<1x1x3x1024xf32>
    %9 = vector.shape_cast %8 : vector<1x1x3x1024xf32> to vector<3x1024xf32>
    %10 = arith.mulf %7, %7 : vector<3x1024xf32>
    %11 = arith.subf %10, %7 : vector<3x1024xf32>
    %12 = arith.mulf %9, %11 : vector<3x1024xf32>
    %13 = arith.addf %7, %12 : vector<3x1024xf32>
    %c0_9 = arith.constant 0 : index
    %c2 = arith.constant 2 : index
    %c0_10 = arith.constant 0 : index
    %c0_11 = arith.constant 0 : index
    %14 = vector.load %arg3[%c0_9, %c2, %c0_10, %c0_11] : memref<1x8x3x1024xf32, #tpu.memory_space<vmem>>, vector<1x1x3x1024xf32>
    %15 = vector.shape_cast %14 : vector<1x1x3x1024xf32> to vector<3x1024xf32>
    %16 = arith.mulf %13, %13 : vector<3x1024xf32>
    %17 = arith.subf %16, %13 : vector<3x1024xf32>
    %18 = arith.mulf %15, %17 : vector<3x1024xf32>
    %19 = arith.addf %13, %18 : vector<3x1024xf32>
    %c0_12 = arith.constant 0 : index
    %c3 = arith.constant 3 : index
    %c0_13 = arith.constant 0 : index
    %c0_14 = arith.constant 0 : index
    %20 = vector.load %arg3[%c0_12, %c3, %c0_13, %c0_14] : memref<1x8x3x1024xf32, #tpu.memory_space<vmem>>, vector<1x1x3x1024xf32>
    %21 = vector.shape_cast %20 : vector<1x1x3x1024xf32> to vector<3x1024xf32>
    %22 = arith.mulf %19, %19 : vector<3x1024xf32>
    %23 = arith.subf %22, %19 : vector<3x1024xf32>
    %24 = arith.mulf %21, %23 : vector<3x1024xf32>
    %25 = arith.addf %19, %24 : vector<3x1024xf32>
    %c0_15 = arith.constant 0 : index
    %c4 = arith.constant 4 : index
    %c0_16 = arith.constant 0 : index
    %c0_17 = arith.constant 0 : index
    %26 = vector.load %arg3[%c0_15, %c4, %c0_16, %c0_17] : memref<1x8x3x1024xf32, #tpu.memory_space<vmem>>, vector<1x1x3x1024xf32>
    %27 = vector.shape_cast %26 : vector<1x1x3x1024xf32> to vector<3x1024xf32>
    %28 = arith.mulf %25, %25 : vector<3x1024xf32>
    %29 = arith.subf %28, %25 : vector<3x1024xf32>
    %30 = arith.mulf %27, %29 : vector<3x1024xf32>
    %31 = arith.addf %25, %30 : vector<3x1024xf32>
    %c0_18 = arith.constant 0 : index
    %c5 = arith.constant 5 : index
    %c0_19 = arith.constant 0 : index
    %c0_20 = arith.constant 0 : index
    %32 = vector.load %arg3[%c0_18, %c5, %c0_19, %c0_20] : memref<1x8x3x1024xf32, #tpu.memory_space<vmem>>, vector<1x1x3x1024xf32>
    %33 = vector.shape_cast %32 : vector<1x1x3x1024xf32> to vector<3x1024xf32>
    %34 = arith.mulf %31, %31 : vector<3x1024xf32>
    %35 = arith.subf %34, %31 : vector<3x1024xf32>
    %36 = arith.mulf %33, %35 : vector<3x1024xf32>
    %37 = arith.addf %31, %36 : vector<3x1024xf32>
    %c0_21 = arith.constant 0 : index
    %c6 = arith.constant 6 : index
    %c0_22 = arith.constant 0 : index
    %c0_23 = arith.constant 0 : index
    %38 = vector.load %arg3[%c0_21, %c6, %c0_22, %c0_23] : memref<1x8x3x1024xf32, #tpu.memory_space<vmem>>, vector<1x1x3x1024xf32>
    %39 = vector.shape_cast %38 : vector<1x1x3x1024xf32> to vector<3x1024xf32>
    %40 = arith.mulf %37, %37 : vector<3x1024xf32>
    %41 = arith.subf %40, %37 : vector<3x1024xf32>
    %42 = arith.mulf %39, %41 : vector<3x1024xf32>
    %43 = arith.addf %37, %42 : vector<3x1024xf32>
    %c0_24 = arith.constant 0 : index
    %c7 = arith.constant 7 : index
    %c0_25 = arith.constant 0 : index
    %c0_26 = arith.constant 0 : index
    %44 = vector.load %arg3[%c0_24, %c7, %c0_25, %c0_26] : memref<1x8x3x1024xf32, #tpu.memory_space<vmem>>, vector<1x1x3x1024xf32>
    %45 = vector.shape_cast %44 : vector<1x1x3x1024xf32> to vector<3x1024xf32>
    %46 = arith.mulf %43, %43 : vector<3x1024xf32>
    %47 = arith.subf %46, %43 : vector<3x1024xf32>
    %48 = arith.mulf %45, %47 : vector<3x1024xf32>
    %49 = arith.addf %43, %48 : vector<3x1024xf32>
    %cst = arith.constant 0.000000e+00 : f32
    %cst_27 = arith.constant 1.000000e+00 : f32
    %50 = vector.broadcast %cst : f32 to vector<3x1024xf32>
    %51 = arith.maximumf %50, %49 : vector<3x1024xf32>
    %52 = vector.broadcast %cst_27 : f32 to vector<3x1024xf32>
    %53 = arith.minimumf %52, %51 : vector<3x1024xf32>
    %c0_28 = arith.constant 0 : index
    %c0_29 = arith.constant 0 : index
    %c0_30 = arith.constant 0 : index
    %54 = vector.load %arg4[%c0_28, %c0_29, %c0_30] : memref<1x3x1024xf32, #tpu.memory_space<vmem>>, vector<1x3x1024xf32>
    %55 = vector.shape_cast %54 : vector<1x3x1024xf32> to vector<3x1024xf32>
    %56 = vector.shape_cast %53 : vector<3x1024xf32> to vector<1x3x1024xf32>
    tpu.vector_store %arg4[%c0_28, %c0_29, %c0_30], %56 {strides = array<i32>} : memref<1x3x1024xf32, #tpu.memory_space<vmem>>, vector<1x3x1024xf32>,
    return
  }
  func.func @transform_0(%arg0: i32, %arg1: i32) -> (i32, i32, i32) {
    %c0_i32 = arith.constant 0 : i32
    %c0_i32_0 = arith.constant 0 : i32
    return %arg0, %c0_i32, %arg1 : i32, i32, i32
  }
  func.func @transform_1(%arg0: i32, %arg1: i32) -> (i32, i32, i32, i32) {
    %c0_i32 = arith.constant 0 : i32
    %c0_i32_0 = arith.constant 0 : i32
    %c0_i32_1 = arith.constant 0 : i32
    return %arg0, %c0_i32, %c0_i32_0, %arg1 : i32, i32, i32, i32
  }
  func.func @transform_2(%arg0: i32, %arg1: i32) -> (i32, i32, i32) {
    %c0_i32 = arith.constant 0 : i32
    %c0_i32_0 = arith.constant 0 : i32
    return %arg0, %c0_i32, %arg1 : i32, i32, i32
  }
}

module attributes {stable_mosaic.version = 11 : i64} {
  func.func @_front_end_kernel(%arg0: i32, %arg1: memref<1x12x121xf32, #tpu.memory_space<vmem>>, %arg2: memref<8x12xf32, #tpu.memory_space<vmem>>, %arg3: memref<8x1xf32, #tpu.memory_space<vmem>>, %arg4: memref<121x16xf32, #tpu.memory_space<vmem>>, %arg5: memref<9x16x16xf32, #tpu.memory_space<vmem>>, %arg6: memref<9x8x8xf32, #tpu.memory_space<vmem>>, %arg7: memref<8x1xf32, #tpu.memory_space<vmem>>, %arg8: memref<8x1xf32, #tpu.memory_space<vmem>>, %arg9: memref<8x1xf32, #tpu.memory_space<vmem>>, %arg10: memref<24x8xf32, #tpu.memory_space<vmem>>, %arg11: memref<8x8xf32, #tpu.memory_space<vmem>>, %arg12: memref<8x1xf32, #tpu.memory_space<vmem>>, %arg13: memref<8x1xf32, #tpu.memory_space<vmem>>, %arg14: memref<8x1xf32, #tpu.memory_space<vmem>>, %arg15: memref<8x8xf32, #tpu.memory_space<vmem>>, %arg16: memref<8x1xf32, #tpu.memory_space<vmem>>, %arg17: memref<8x8xf32, #tpu.memory_space<vmem>>, %arg18: memref<8x1xf32, #tpu.memory_space<vmem>>, %arg19: memref<9x24x8xf32, #tpu.memory_space<vmem>>, %arg20: memref<9x24x8xf32, #tpu.memory_space<vmem>>, %arg21: memref<24x1xf32, #tpu.memory_space<vmem>>, %arg22: memref<1x24x16xf32, #tpu.memory_space<vmem>>) attributes {dimension_semantics = [#tpu.dimension_semantics<parallel>], iteration_bounds = array<i64: 2>, scalar_prefetch = 0 : i64, scratch_operands = 0 : i64, tpu.core_type = #tpu.core_type<tc>, window_params = [{transform_indices = @transform_0, window_bounds = array<i64: 1, 12, 121>}, {pipeline_mode = #tpu.pipeline_mode<synchronous>, transform_indices = @transform_1, window_bounds = array<i64: 8, 12>}, {pipeline_mode = #tpu.pipeline_mode<synchronous>, transform_indices = @transform_2, window_bounds = array<i64: 8, 1>}, {pipeline_mode = #tpu.pipeline_mode<synchronous>, transform_indices = @transform_3, window_bounds = array<i64: 121, 16>}, {pipeline_mode = #tpu.pipeline_mode<synchronous>, transform_indices = @transform_4, window_bounds = array<i64: 9, 16, 16>}, {pipeline_mode = #tpu.pipeline_mode<synchronous>, transform_indices = @transform_5, window_bounds = array<i64: 9, 8, 8>}, {pipeline_mode = #tpu.pipeline_mode<synchronous>, transform_indices = @transform_6, window_bounds = array<i64: 8, 1>}, {pipeline_mode = #tpu.pipeline_mode<synchronous>, transform_indices = @transform_7, window_bounds = array<i64: 8, 1>}, {pipeline_mode = #tpu.pipeline_mode<synchronous>, transform_indices = @transform_8, window_bounds = array<i64: 8, 1>}, {pipeline_mode = #tpu.pipeline_mode<synchronous>, transform_indices = @transform_9, window_bounds = array<i64: 24, 8>}, {pipeline_mode = #tpu.pipeline_mode<synchronous>, transform_indices = @transform_10, window_bounds = array<i64: 8, 8>}, {pipeline_mode = #tpu.pipeline_mode<synchronous>, transform_indices = @transform_11, window_bounds = array<i64: 8, 1>}, {pipeline_mode = #tpu.pipeline_mode<synchronous>, transform_indices = @transform_12, window_bounds = array<i64: 8, 1>}, {pipeline_mode = #tpu.pipeline_mode<synchronous>, transform_indices = @transform_13, window_bounds = array<i64: 8, 1>}, {pipeline_mode = #tpu.pipeline_mode<synchronous>, transform_indices = @transform_14, window_bounds = array<i64: 8, 8>}, {pipeline_mode = #tpu.pipeline_mode<synchronous>, transform_indices = @transform_15, window_bounds = array<i64: 8, 1>}, {pipeline_mode = #tpu.pipeline_mode<synchronous>, transform_indices = @transform_16, window_bounds = array<i64: 8, 8>}, {pipeline_mode = #tpu.pipeline_mode<synchronous>, transform_indices = @transform_17, window_bounds = array<i64: 8, 1>}, {pipeline_mode = #tpu.pipeline_mode<synchronous>, transform_indices = @transform_18, window_bounds = array<i64: 9, 24, 8>}, {pipeline_mode = #tpu.pipeline_mode<synchronous>, transform_indices = @transform_19, window_bounds = array<i64: 9, 24, 8>}, {pipeline_mode = #tpu.pipeline_mode<synchronous>, transform_indices = @transform_20, window_bounds = array<i64: 24, 1>}, {transform_indices = @transform_21, window_bounds = array<i64: 1, 24, 16>}]} {
    %c0 = arith.constant 0 : index
    %c0_0 = arith.constant 0 : index
    %0 = vector.load %arg2[%c0, %c0_0] : memref<8x12xf32, #tpu.memory_space<vmem>>, vector<8x12xf32>
    %c0_1 = arith.constant 0 : index
    %c0_2 = arith.constant 0 : index
    %c0_3 = arith.constant 0 : index
    %1 = vector.load %arg1[%c0_1, %c0_2, %c0_3] : memref<1x12x121xf32, #tpu.memory_space<vmem>>, vector<1x12x121xf32>
    %2 = vector.shape_cast %1 : vector<1x12x121xf32> to vector<12x121xf32>
    %cst = arith.constant dense<0.000000e+00> : vector<8x121xf32>
    %3 = tpu.matmul %0, %2, %cst {dimension_numbers = #tpu.dot_dimension_numbers<[1], [0], [0], [1], [0, 0, 1, 1], [], []>} : vector<8x12xf32>, vector<12x121xf32>, vector<8x121xf32> -> vector<8x121xf32>
    %c0_4 = arith.constant 0 : index
    %c0_5 = arith.constant 0 : index
    %4 = vector.load %arg3[%c0_4, %c0_5] : memref<8x1xf32, #tpu.memory_space<vmem>>, vector<8x1xf32>
    %5 = vector.broadcast %4 : vector<8x1xf32> to vector<8x121xf32>
    %6 = arith.addf %3, %5 : vector<8x121xf32>
    %cst_6 = arith.constant 0.000000e+00 : f32
    %7 = vector.broadcast %cst_6 : f32 to vector<8x121xf32>
    %8 = arith.maximumf %6, %7 : vector<8x121xf32>
    %c0_7 = arith.constant 0 : index
    %c0_8 = arith.constant 0 : index
    %9 = vector.load %arg4[%c0_7, %c0_8] : memref<121x16xf32, #tpu.memory_space<vmem>>, vector<121x16xf32>
    %cst_9 = arith.constant dense<0.000000e+00> : vector<8x16xf32>
    %10 = tpu.matmul %8, %9, %cst_9 {dimension_numbers = #tpu.dot_dimension_numbers<[1], [0], [0], [1], [0, 0, 1, 1], [], []>} : vector<8x121xf32>, vector<121x16xf32>, vector<8x16xf32> -> vector<8x16xf32>
    %c0_10 = arith.constant 0 : index
    %c0_11 = arith.constant 0 : index
    %c0_12 = arith.constant 0 : index
    %11 = vector.load %arg6[%c0_10, %c0_11, %c0_12] : memref<9x8x8xf32, #tpu.memory_space<vmem>>, vector<1x8x8xf32>
    %12 = vector.shape_cast %11 : vector<1x8x8xf32> to vector<8x8xf32>
    %c0_13 = arith.constant 0 : index
    %c0_14 = arith.constant 0 : index
    %c0_15 = arith.constant 0 : index
    %13 = vector.load %arg5[%c0_13, %c0_14, %c0_15] : memref<9x16x16xf32, #tpu.memory_space<vmem>>, vector<1x16x16xf32>
    %14 = vector.shape_cast %13 : vector<1x16x16xf32> to vector<16x16xf32>
    %cst_16 = arith.constant dense<0.000000e+00> : vector<8x16xf32>
    %15 = tpu.matmul %10, %14, %cst_16 {dimension_numbers = #tpu.dot_dimension_numbers<[1], [0], [0], [1], [0, 0, 1, 1], [], []>} : vector<8x16xf32>, vector<16x16xf32>, vector<8x16xf32> -> vector<8x16xf32>
    %cst_17 = arith.constant dense<0.000000e+00> : vector<8x16xf32>
    %16 = tpu.matmul %12, %15, %cst_17 {dimension_numbers = #tpu.dot_dimension_numbers<[1], [0], [0], [1], [0, 0, 1, 1], [], []>} : vector<8x8xf32>, vector<8x16xf32>, vector<8x16xf32> -> vector<8x16xf32>
    %c1 = arith.constant 1 : index
    %c0_18 = arith.constant 0 : index
    %c0_19 = arith.constant 0 : index
    %17 = vector.load %arg6[%c1, %c0_18, %c0_19] : memref<9x8x8xf32, #tpu.memory_space<vmem>>, vector<1x8x8xf32>
    %18 = vector.shape_cast %17 : vector<1x8x8xf32> to vector<8x8xf32>
    %c1_20 = arith.constant 1 : index
    %c0_21 = arith.constant 0 : index
    %c0_22 = arith.constant 0 : index
    %19 = vector.load %arg5[%c1_20, %c0_21, %c0_22] : memref<9x16x16xf32, #tpu.memory_space<vmem>>, vector<1x16x16xf32>
    %20 = vector.shape_cast %19 : vector<1x16x16xf32> to vector<16x16xf32>
    %cst_23 = arith.constant dense<0.000000e+00> : vector<8x16xf32>
    %21 = tpu.matmul %10, %20, %cst_23 {dimension_numbers = #tpu.dot_dimension_numbers<[1], [0], [0], [1], [0, 0, 1, 1], [], []>} : vector<8x16xf32>, vector<16x16xf32>, vector<8x16xf32> -> vector<8x16xf32>
    %cst_24 = arith.constant dense<0.000000e+00> : vector<8x16xf32>
    %22 = tpu.matmul %18, %21, %cst_24 {dimension_numbers = #tpu.dot_dimension_numbers<[1], [0], [0], [1], [0, 0, 1, 1], [], []>} : vector<8x8xf32>, vector<8x16xf32>, vector<8x16xf32> -> vector<8x16xf32>
    %23 = arith.addf %16, %22 : vector<8x16xf32>
    %c2 = arith.constant 2 : index
    %c0_25 = arith.constant 0 : index
    %c0_26 = arith.constant 0 : index
    %24 = vector.load %arg6[%c2, %c0_25, %c0_26] : memref<9x8x8xf32, #tpu.memory_space<vmem>>, vector<1x8x8xf32>
    %25 = vector.shape_cast %24 : vector<1x8x8xf32> to vector<8x8xf32>
    %c2_27 = arith.constant 2 : index
    %c0_28 = arith.constant 0 : index
    %c0_29 = arith.constant 0 : index
    %26 = vector.load %arg5[%c2_27, %c0_28, %c0_29] : memref<9x16x16xf32, #tpu.memory_space<vmem>>, vector<1x16x16xf32>
    %27 = vector.shape_cast %26 : vector<1x16x16xf32> to vector<16x16xf32>
    %cst_30 = arith.constant dense<0.000000e+00> : vector<8x16xf32>
    %28 = tpu.matmul %10, %27, %cst_30 {dimension_numbers = #tpu.dot_dimension_numbers<[1], [0], [0], [1], [0, 0, 1, 1], [], []>} : vector<8x16xf32>, vector<16x16xf32>, vector<8x16xf32> -> vector<8x16xf32>
    %cst_31 = arith.constant dense<0.000000e+00> : vector<8x16xf32>
    %29 = tpu.matmul %25, %28, %cst_31 {dimension_numbers = #tpu.dot_dimension_numbers<[1], [0], [0], [1], [0, 0, 1, 1], [], []>} : vector<8x8xf32>, vector<8x16xf32>, vector<8x16xf32> -> vector<8x16xf32>
    %30 = arith.addf %23, %29 : vector<8x16xf32>
    %c3 = arith.constant 3 : index
    %c0_32 = arith.constant 0 : index
    %c0_33 = arith.constant 0 : index
    %31 = vector.load %arg6[%c3, %c0_32, %c0_33] : memref<9x8x8xf32, #tpu.memory_space<vmem>>, vector<1x8x8xf32>
    %32 = vector.shape_cast %31 : vector<1x8x8xf32> to vector<8x8xf32>
    %c3_34 = arith.constant 3 : index
    %c0_35 = arith.constant 0 : index
    %c0_36 = arith.constant 0 : index
    %33 = vector.load %arg5[%c3_34, %c0_35, %c0_36] : memref<9x16x16xf32, #tpu.memory_space<vmem>>, vector<1x16x16xf32>
    %34 = vector.shape_cast %33 : vector<1x16x16xf32> to vector<16x16xf32>
    %cst_37 = arith.constant dense<0.000000e+00> : vector<8x16xf32>
    %35 = tpu.matmul %10, %34, %cst_37 {dimension_numbers = #tpu.dot_dimension_numbers<[1], [0], [0], [1], [0, 0, 1, 1], [], []>} : vector<8x16xf32>, vector<16x16xf32>, vector<8x16xf32> -> vector<8x16xf32>
    %cst_38 = arith.constant dense<0.000000e+00> : vector<8x16xf32>
    %36 = tpu.matmul %32, %35, %cst_38 {dimension_numbers = #tpu.dot_dimension_numbers<[1], [0], [0], [1], [0, 0, 1, 1], [], []>} : vector<8x8xf32>, vector<8x16xf32>, vector<8x16xf32> -> vector<8x16xf32>
    %37 = arith.addf %30, %36 : vector<8x16xf32>
    %c4 = arith.constant 4 : index
    %c0_39 = arith.constant 0 : index
    %c0_40 = arith.constant 0 : index
    %38 = vector.load %arg6[%c4, %c0_39, %c0_40] : memref<9x8x8xf32, #tpu.memory_space<vmem>>, vector<1x8x8xf32>
    %39 = vector.shape_cast %38 : vector<1x8x8xf32> to vector<8x8xf32>
    %c4_41 = arith.constant 4 : index
    %c0_42 = arith.constant 0 : index
    %c0_43 = arith.constant 0 : index
    %40 = vector.load %arg5[%c4_41, %c0_42, %c0_43] : memref<9x16x16xf32, #tpu.memory_space<vmem>>, vector<1x16x16xf32>
    %41 = vector.shape_cast %40 : vector<1x16x16xf32> to vector<16x16xf32>
    %cst_44 = arith.constant dense<0.000000e+00> : vector<8x16xf32>
    %42 = tpu.matmul %10, %41, %cst_44 {dimension_numbers = #tpu.dot_dimension_numbers<[1], [0], [0], [1], [0, 0, 1, 1], [], []>} : vector<8x16xf32>, vector<16x16xf32>, vector<8x16xf32> -> vector<8x16xf32>
    %cst_45 = arith.constant dense<0.000000e+00> : vector<8x16xf32>
    %43 = tpu.matmul %39, %42, %cst_45 {dimension_numbers = #tpu.dot_dimension_numbers<[1], [0], [0], [1], [0, 0, 1, 1], [], []>} : vector<8x8xf32>, vector<8x16xf32>, vector<8x16xf32> -> vector<8x16xf32>
    %44 = arith.addf %37, %43 : vector<8x16xf32>
    %c5 = arith.constant 5 : index
    %c0_46 = arith.constant 0 : index
    %c0_47 = arith.constant 0 : index
    %45 = vector.load %arg6[%c5, %c0_46, %c0_47] : memref<9x8x8xf32, #tpu.memory_space<vmem>>, vector<1x8x8xf32>
    %46 = vector.shape_cast %45 : vector<1x8x8xf32> to vector<8x8xf32>
    %c5_48 = arith.constant 5 : index
    %c0_49 = arith.constant 0 : index
    %c0_50 = arith.constant 0 : index
    %47 = vector.load %arg5[%c5_48, %c0_49, %c0_50] : memref<9x16x16xf32, #tpu.memory_space<vmem>>, vector<1x16x16xf32>
    %48 = vector.shape_cast %47 : vector<1x16x16xf32> to vector<16x16xf32>
    %cst_51 = arith.constant dense<0.000000e+00> : vector<8x16xf32>
    %49 = tpu.matmul %10, %48, %cst_51 {dimension_numbers = #tpu.dot_dimension_numbers<[1], [0], [0], [1], [0, 0, 1, 1], [], []>} : vector<8x16xf32>, vector<16x16xf32>, vector<8x16xf32> -> vector<8x16xf32>
    %cst_52 = arith.constant dense<0.000000e+00> : vector<8x16xf32>
    %50 = tpu.matmul %46, %49, %cst_52 {dimension_numbers = #tpu.dot_dimension_numbers<[1], [0], [0], [1], [0, 0, 1, 1], [], []>} : vector<8x8xf32>, vector<8x16xf32>, vector<8x16xf32> -> vector<8x16xf32>
    %51 = arith.addf %44, %50 : vector<8x16xf32>
    %c6 = arith.constant 6 : index
    %c0_53 = arith.constant 0 : index
    %c0_54 = arith.constant 0 : index
    %52 = vector.load %arg6[%c6, %c0_53, %c0_54] : memref<9x8x8xf32, #tpu.memory_space<vmem>>, vector<1x8x8xf32>
    %53 = vector.shape_cast %52 : vector<1x8x8xf32> to vector<8x8xf32>
    %c6_55 = arith.constant 6 : index
    %c0_56 = arith.constant 0 : index
    %c0_57 = arith.constant 0 : index
    %54 = vector.load %arg5[%c6_55, %c0_56, %c0_57] : memref<9x16x16xf32, #tpu.memory_space<vmem>>, vector<1x16x16xf32>
    %55 = vector.shape_cast %54 : vector<1x16x16xf32> to vector<16x16xf32>
    %cst_58 = arith.constant dense<0.000000e+00> : vector<8x16xf32>
    %56 = tpu.matmul %10, %55, %cst_58 {dimension_numbers = #tpu.dot_dimension_numbers<[1], [0], [0], [1], [0, 0, 1, 1], [], []>} : vector<8x16xf32>, vector<16x16xf32>, vector<8x16xf32> -> vector<8x16xf32>
    %cst_59 = arith.constant dense<0.000000e+00> : vector<8x16xf32>
    %57 = tpu.matmul %53, %56, %cst_59 {dimension_numbers = #tpu.dot_dimension_numbers<[1], [0], [0], [1], [0, 0, 1, 1], [], []>} : vector<8x8xf32>, vector<8x16xf32>, vector<8x16xf32> -> vector<8x16xf32>
    %58 = arith.addf %51, %57 : vector<8x16xf32>
    %c7 = arith.constant 7 : index
    %c0_60 = arith.constant 0 : index
    %c0_61 = arith.constant 0 : index
    %59 = vector.load %arg6[%c7, %c0_60, %c0_61] : memref<9x8x8xf32, #tpu.memory_space<vmem>>, vector<1x8x8xf32>
    %60 = vector.shape_cast %59 : vector<1x8x8xf32> to vector<8x8xf32>
    %c7_62 = arith.constant 7 : index
    %c0_63 = arith.constant 0 : index
    %c0_64 = arith.constant 0 : index
    %61 = vector.load %arg5[%c7_62, %c0_63, %c0_64] : memref<9x16x16xf32, #tpu.memory_space<vmem>>, vector<1x16x16xf32>
    %62 = vector.shape_cast %61 : vector<1x16x16xf32> to vector<16x16xf32>
    %cst_65 = arith.constant dense<0.000000e+00> : vector<8x16xf32>
    %63 = tpu.matmul %10, %62, %cst_65 {dimension_numbers = #tpu.dot_dimension_numbers<[1], [0], [0], [1], [0, 0, 1, 1], [], []>} : vector<8x16xf32>, vector<16x16xf32>, vector<8x16xf32> -> vector<8x16xf32>
    %cst_66 = arith.constant dense<0.000000e+00> : vector<8x16xf32>
    %64 = tpu.matmul %60, %63, %cst_66 {dimension_numbers = #tpu.dot_dimension_numbers<[1], [0], [0], [1], [0, 0, 1, 1], [], []>} : vector<8x8xf32>, vector<8x16xf32>, vector<8x16xf32> -> vector<8x16xf32>
    %65 = arith.addf %58, %64 : vector<8x16xf32>
    %c8 = arith.constant 8 : index
    %c0_67 = arith.constant 0 : index
    %c0_68 = arith.constant 0 : index
    %66 = vector.load %arg6[%c8, %c0_67, %c0_68] : memref<9x8x8xf32, #tpu.memory_space<vmem>>, vector<1x8x8xf32>
    %67 = vector.shape_cast %66 : vector<1x8x8xf32> to vector<8x8xf32>
    %c8_69 = arith.constant 8 : index
    %c0_70 = arith.constant 0 : index
    %c0_71 = arith.constant 0 : index
    %68 = vector.load %arg5[%c8_69, %c0_70, %c0_71] : memref<9x16x16xf32, #tpu.memory_space<vmem>>, vector<1x16x16xf32>
    %69 = vector.shape_cast %68 : vector<1x16x16xf32> to vector<16x16xf32>
    %cst_72 = arith.constant dense<0.000000e+00> : vector<8x16xf32>
    %70 = tpu.matmul %10, %69, %cst_72 {dimension_numbers = #tpu.dot_dimension_numbers<[1], [0], [0], [1], [0, 0, 1, 1], [], []>} : vector<8x16xf32>, vector<16x16xf32>, vector<8x16xf32> -> vector<8x16xf32>
    %cst_73 = arith.constant dense<0.000000e+00> : vector<8x16xf32>
    %71 = tpu.matmul %67, %70, %cst_73 {dimension_numbers = #tpu.dot_dimension_numbers<[1], [0], [0], [1], [0, 0, 1, 1], [], []>} : vector<8x8xf32>, vector<8x16xf32>, vector<8x16xf32> -> vector<8x16xf32>
    %72 = arith.addf %65, %71 : vector<8x16xf32>
    %c0_74 = arith.constant 0 : index
    %c0_75 = arith.constant 0 : index
    %73 = vector.load %arg7[%c0_74, %c0_75] : memref<8x1xf32, #tpu.memory_space<vmem>>, vector<8x1xf32>
    %74 = vector.broadcast %73 : vector<8x1xf32> to vector<8x16xf32>
    %75 = arith.addf %72, %74 : vector<8x16xf32>
    %c0_76 = arith.constant 0 : index
    %c0_77 = arith.constant 0 : index
    %76 = vector.load %arg8[%c0_76, %c0_77] : memref<8x1xf32, #tpu.memory_space<vmem>>, vector<8x1xf32>
    %c0_78 = arith.constant 0 : index
    %c0_79 = arith.constant 0 : index
    %77 = vector.load %arg9[%c0_78, %c0_79] : memref<8x1xf32, #tpu.memory_space<vmem>>, vector<8x1xf32>
    %cst_80 = arith.constant dense<0.000000e+00> : vector<16xf32>
    %78 = vector.multi_reduction <add>, %10, %cst_80 [0] : vector<8x16xf32> to vector<16xf32>
    %79 = vector.shape_cast %78 : vector<16xf32> to vector<1x16xf32>
    %cst_81 = arith.constant 8.000000e+00 : f32
    %80 = vector.broadcast %cst_81 : f32 to vector<1x16xf32>
    %81 = arith.divf %79, %80 : vector<1x16xf32>
    %82 = vector.broadcast %81 : vector<1x16xf32> to vector<8x16xf32>
    %83 = arith.subf %10, %82 : vector<8x16xf32>
    %84 = arith.mulf %83, %83 : vector<8x16xf32>
    %cst_82 = arith.constant dense<0.000000e+00> : vector<16xf32>
    %85 = vector.multi_reduction <add>, %84, %cst_82 [0] : vector<8x16xf32> to vector<16xf32>
    %86 = vector.shape_cast %85 : vector<16xf32> to vector<1x16xf32>
    %cst_83 = arith.constant 8.000000e+00 : f32
    %87 = vector.broadcast %cst_83 : f32 to vector<1x16xf32>
    %88 = arith.divf %86, %87 : vector<1x16xf32>
    %89 = vector.broadcast %81 : vector<1x16xf32> to vector<8x16xf32>
    %90 = arith.subf %10, %89 : vector<8x16xf32>
    %cst_84 = arith.constant 9.99999974E-6 : f32
    %91 = vector.broadcast %cst_84 : f32 to vector<1x16xf32>
    %92 = arith.addf %88, %91 : vector<1x16xf32>
    %93 = math.rsqrt %92 : vector<1x16xf32>
    %94 = vector.broadcast %93 : vector<1x16xf32> to vector<8x16xf32>
    %95 = arith.mulf %90, %94 : vector<8x16xf32>
    %96 = vector.broadcast %76 : vector<8x1xf32> to vector<8x16xf32>
    %97 = arith.mulf %95, %96 : vector<8x16xf32>
    %98 = vector.broadcast %77 : vector<8x1xf32> to vector<8x16xf32>
    %99 = arith.addf %97, %98 : vector<8x16xf32>
    %c0_85 = arith.constant 0 : index
    %c0_86 = arith.constant 0 : index
    %100 = vector.load %arg10[%c0_85, %c0_86] : memref<24x8xf32, #tpu.memory_space<vmem>>, vector<24x8xf32>
    %cst_87 = arith.constant dense<0.000000e+00> : vector<24x16xf32>
    %101 = tpu.matmul %100, %99, %cst_87 {dimension_numbers = #tpu.dot_dimension_numbers<[1], [0], [0], [1], [0, 0, 1, 1], [], []>} : vector<24x8xf32>, vector<8x16xf32>, vector<24x16xf32> -> vector<24x16xf32>
    %102 = vector.extract_strided_slice %101 {offsets = [0, 0], sizes = [8, 16], strides = [1, 1]} : vector<24x16xf32> to vector<8x16xf32>
    %103 = vector.extract_strided_slice %101 {offsets = [8, 0], sizes = [8, 16], strides = [1, 1]} : vector<24x16xf32> to vector<8x16xf32>
    %104 = vector.extract_strided_slice %101 {offsets = [16, 0], sizes = [8, 16], strides = [1, 1]} : vector<24x16xf32> to vector<8x16xf32>
    %cst_88 = arith.constant 1.000000e+00 : f32
    %105 = vector.broadcast %cst_88 : f32 to vector<8x16xf32>
    %106 = arith.mulf %102, %105 : vector<8x16xf32>
    %107 = vector.shape_cast %106 : vector<8x16xf32> to vector<8x16x1xf32>
    %108 = vector.shape_cast %103 : vector<8x16xf32> to vector<8x1x16xf32>
    %109 = vector.broadcast %107 : vector<8x16x1xf32> to vector<8x16x16xf32>
    %110 = vector.broadcast %108 : vector<8x1x16xf32> to vector<8x16x16xf32>
    %111 = arith.mulf %109, %110 : vector<8x16x16xf32>
    %cst_89 = arith.constant dense<0xFF800000> : vector<8x16xf32>
    %112 = vector.multi_reduction <maximumf>, %111, %cst_89 [2] : vector<8x16x16xf32> to vector<8x16xf32>
    %113 = vector.shape_cast %112 : vector<8x16xf32> to vector<8x16x1xf32>
    %114 = vector.broadcast %113 : vector<8x16x1xf32> to vector<8x16x16xf32>
    %115 = arith.subf %111, %114 : vector<8x16x16xf32>
    %116 = math.exp %115 : vector<8x16x16xf32>
    %cst_90 = arith.constant dense<0.000000e+00> : vector<8x16xf32>
    %117 = vector.multi_reduction <add>, %116, %cst_90 [2] : vector<8x16x16xf32> to vector<8x16xf32>
    %118 = vector.shape_cast %117 : vector<8x16xf32> to vector<8x16x1xf32>
    %119 = tpu.reciprocal %118 {approx = true} : vector<8x16x1xf32> -> vector<8x16x1xf32>
    %120 = vector.broadcast %119 : vector<8x16x1xf32> to vector<8x16x16xf32>
    %121 = arith.mulf %116, %120 : vector<8x16x16xf32>
    %122 = vector.shape_cast %104 : vector<8x16xf32> to vector<8x1x16xf32>
    %123 = vector.broadcast %122 : vector<8x1x16xf32> to vector<8x16x16xf32>
    %124 = arith.mulf %121, %123 : vector<8x16x16xf32>
    %cst_91 = arith.constant dense<0.000000e+00> : vector<8x16xf32>
    %125 = vector.multi_reduction <add>, %124, %cst_91 [2] : vector<8x16x16xf32> to vector<8x16xf32>
    %c0_92 = arith.constant 0 : index
    %c0_93 = arith.constant 0 : index
    %126 = vector.load %arg11[%c0_92, %c0_93] : memref<8x8xf32, #tpu.memory_space<vmem>>, vector<8x8xf32>
    %cst_94 = arith.constant dense<0.000000e+00> : vector<8x16xf32>
    %127 = tpu.matmul %126, %125, %cst_94 {dimension_numbers = #tpu.dot_dimension_numbers<[1], [0], [0], [1], [0, 0, 1, 1], [], []>} : vector<8x8xf32>, vector<8x16xf32>, vector<8x16xf32> -> vector<8x16xf32>
    %128 = arith.addf %10, %127 : vector<8x16xf32>
    %c0_95 = arith.constant 0 : index
    %c0_96 = arith.constant 0 : index
    %129 = vector.load %arg12[%c0_95, %c0_96] : memref<8x1xf32, #tpu.memory_space<vmem>>, vector<8x1xf32>
    %130 = vector.broadcast %129 : vector<8x1xf32> to vector<8x16xf32>
    %131 = arith.addf %128, %130 : vector<8x16xf32>
    %c0_97 = arith.constant 0 : index
    %c0_98 = arith.constant 0 : index
    %132 = vector.load %arg13[%c0_97, %c0_98] : memref<8x1xf32, #tpu.memory_space<vmem>>, vector<8x1xf32>
    %c0_99 = arith.constant 0 : index
    %c0_100 = arith.constant 0 : index
    %133 = vector.load %arg14[%c0_99, %c0_100] : memref<8x1xf32, #tpu.memory_space<vmem>>, vector<8x1xf32>
    %cst_101 = arith.constant dense<0.000000e+00> : vector<16xf32>
    %134 = vector.multi_reduction <add>, %131, %cst_101 [0] : vector<8x16xf32> to vector<16xf32>
    %135 = vector.shape_cast %134 : vector<16xf32> to vector<1x16xf32>
    %cst_102 = arith.constant 8.000000e+00 : f32
    %136 = vector.broadcast %cst_102 : f32 to vector<1x16xf32>
    %137 = arith.divf %135, %136 : vector<1x16xf32>
    %138 = vector.broadcast %137 : vector<1x16xf32> to vector<8x16xf32>
    %139 = arith.subf %131, %138 : vector<8x16xf32>
    %140 = arith.mulf %139, %139 : vector<8x16xf32>
    %cst_103 = arith.constant dense<0.000000e+00> : vector<16xf32>
    %141 = vector.multi_reduction <add>, %140, %cst_103 [0] : vector<8x16xf32> to vector<16xf32>
    %142 = vector.shape_cast %141 : vector<16xf32> to vector<1x16xf32>
    %cst_104 = arith.constant 8.000000e+00 : f32
    %143 = vector.broadcast %cst_104 : f32 to vector<1x16xf32>
    %144 = arith.divf %142, %143 : vector<1x16xf32>
    %145 = vector.broadcast %137 : vector<1x16xf32> to vector<8x16xf32>
    %146 = arith.subf %131, %145 : vector<8x16xf32>
    %cst_105 = arith.constant 9.99999974E-6 : f32
    %147 = vector.broadcast %cst_105 : f32 to vector<1x16xf32>
    %148 = arith.addf %144, %147 : vector<1x16xf32>
    %149 = math.rsqrt %148 : vector<1x16xf32>
    %150 = vector.broadcast %149 : vector<1x16xf32> to vector<8x16xf32>
    %151 = arith.mulf %146, %150 : vector<8x16xf32>
    %152 = vector.broadcast %132 : vector<8x1xf32> to vector<8x16xf32>
    %153 = arith.mulf %151, %152 : vector<8x16xf32>
    %154 = vector.broadcast %133 : vector<8x1xf32> to vector<8x16xf32>
    %155 = arith.addf %153, %154 : vector<8x16xf32>
    %c0_106 = arith.constant 0 : index
    %c0_107 = arith.constant 0 : index
    %156 = vector.load %arg15[%c0_106, %c0_107] : memref<8x8xf32, #tpu.memory_space<vmem>>, vector<8x8xf32>
    %cst_108 = arith.constant dense<0.000000e+00> : vector<8x16xf32>
    %157 = tpu.matmul %156, %155, %cst_108 {dimension_numbers = #tpu.dot_dimension_numbers<[1], [0], [0], [1], [0, 0, 1, 1], [], []>} : vector<8x8xf32>, vector<8x16xf32>, vector<8x16xf32> -> vector<8x16xf32>
    %c0_109 = arith.constant 0 : index
    %c0_110 = arith.constant 0 : index
    %158 = vector.load %arg16[%c0_109, %c0_110] : memref<8x1xf32, #tpu.memory_space<vmem>>, vector<8x1xf32>
    %159 = vector.broadcast %158 : vector<8x1xf32> to vector<8x16xf32>
    %160 = arith.addf %157, %159 : vector<8x16xf32>
    %161 = arith.mulf %160, %160 : vector<8x16xf32>
    %162 = arith.mulf %160, %161 : vector<8x16xf32>
    %cst_111 = arith.constant 4.471500e-02 : f32
    %163 = vector.broadcast %cst_111 : f32 to vector<8x16xf32>
    %164 = arith.mulf %163, %162 : vector<8x16xf32>
    %165 = arith.addf %160, %164 : vector<8x16xf32>
    %cst_112 = arith.constant 0.797884583 : f32
    %166 = vector.broadcast %cst_112 : f32 to vector<8x16xf32>
    %167 = arith.mulf %166, %165 : vector<8x16xf32>
    %168 = math.tanh %167 : vector<8x16xf32>
    %cst_113 = arith.constant 1.000000e+00 : f32
    %169 = vector.broadcast %cst_113 : f32 to vector<8x16xf32>
    %170 = arith.addf %169, %168 : vector<8x16xf32>
    %cst_114 = arith.constant 5.000000e-01 : f32
    %171 = vector.broadcast %cst_114 : f32 to vector<8x16xf32>
    %172 = arith.mulf %171, %170 : vector<8x16xf32>
    %173 = arith.mulf %160, %172 : vector<8x16xf32>
    %c0_115 = arith.constant 0 : index
    %c0_116 = arith.constant 0 : index
    %174 = vector.load %arg17[%c0_115, %c0_116] : memref<8x8xf32, #tpu.memory_space<vmem>>, vector<8x8xf32>
    %cst_117 = arith.constant dense<0.000000e+00> : vector<8x16xf32>
    %175 = tpu.matmul %174, %173, %cst_117 {dimension_numbers = #tpu.dot_dimension_numbers<[1], [0], [0], [1], [0, 0, 1, 1], [], []>} : vector<8x8xf32>, vector<8x16xf32>, vector<8x16xf32> -> vector<8x16xf32>
    %c0_118 = arith.constant 0 : index
    %c0_119 = arith.constant 0 : index
    %176 = vector.load %arg18[%c0_118, %c0_119] : memref<8x1xf32, #tpu.memory_space<vmem>>, vector<8x1xf32>
    %177 = vector.broadcast %176 : vector<8x1xf32> to vector<8x16xf32>
    %178 = arith.addf %175, %177 : vector<8x16xf32>
    %179 = arith.addf %131, %178 : vector<8x16xf32>
    %c0_120 = arith.constant 0 : index
    %c0_121 = arith.constant 0 : index
    %c0_122 = arith.constant 0 : index
    %180 = vector.load %arg19[%c0_120, %c0_121, %c0_122] : memref<9x24x8xf32, #tpu.memory_space<vmem>>, vector<1x24x8xf32>
    %181 = vector.shape_cast %180 : vector<1x24x8xf32> to vector<24x8xf32>
    %c0_123 = arith.constant 0 : index
    %c0_124 = arith.constant 0 : index
    %c0_125 = arith.constant 0 : index
    %182 = vector.load %arg5[%c0_123, %c0_124, %c0_125] : memref<9x16x16xf32, #tpu.memory_space<vmem>>, vector<1x16x16xf32>
    %183 = vector.shape_cast %182 : vector<1x16x16xf32> to vector<16x16xf32>
    %cst_126 = arith.constant dense<0.000000e+00> : vector<8x16xf32>
    %184 = tpu.matmul %179, %183, %cst_126 {dimension_numbers = #tpu.dot_dimension_numbers<[1], [0], [0], [1], [0, 0, 1, 1], [], []>} : vector<8x16xf32>, vector<16x16xf32>, vector<8x16xf32> -> vector<8x16xf32>
    %cst_127 = arith.constant dense<0.000000e+00> : vector<24x16xf32>
    %185 = tpu.matmul %181, %184, %cst_127 {dimension_numbers = #tpu.dot_dimension_numbers<[1], [0], [0], [1], [0, 0, 1, 1], [], []>} : vector<24x8xf32>, vector<8x16xf32>, vector<24x16xf32> -> vector<24x16xf32>
    %c0_128 = arith.constant 0 : index
    %c0_129 = arith.constant 0 : index
    %c0_130 = arith.constant 0 : index
    %186 = vector.load %arg20[%c0_128, %c0_129, %c0_130] : memref<9x24x8xf32, #tpu.memory_space<vmem>>, vector<1x24x8xf32>
    %187 = vector.shape_cast %186 : vector<1x24x8xf32> to vector<24x8xf32>
    %c0_131 = arith.constant 0 : index
    %c0_132 = arith.constant 0 : index
    %c0_133 = arith.constant 0 : index
    %188 = vector.load %arg5[%c0_131, %c0_132, %c0_133] : memref<9x16x16xf32, #tpu.memory_space<vmem>>, vector<1x16x16xf32>
    %189 = vector.shape_cast %188 : vector<1x16x16xf32> to vector<16x16xf32>
    %cst_134 = arith.constant dense<0.000000e+00> : vector<8x16xf32>
    %190 = tpu.matmul %75, %189, %cst_134 {dimension_numbers = #tpu.dot_dimension_numbers<[1], [0], [0], [1], [0, 0, 1, 1], [], []>} : vector<8x16xf32>, vector<16x16xf32>, vector<8x16xf32> -> vector<8x16xf32>
    %cst_135 = arith.constant dense<0.000000e+00> : vector<24x16xf32>
    %191 = tpu.matmul %187, %190, %cst_135 {dimension_numbers = #tpu.dot_dimension_numbers<[1], [0], [0], [1], [0, 0, 1, 1], [], []>} : vector<24x8xf32>, vector<8x16xf32>, vector<24x16xf32> -> vector<24x16xf32>
    %192 = arith.addf %185, %191 : vector<24x16xf32>
    %c1_136 = arith.constant 1 : index
    %c0_137 = arith.constant 0 : index
    %c0_138 = arith.constant 0 : index
    %193 = vector.load %arg19[%c1_136, %c0_137, %c0_138] : memref<9x24x8xf32, #tpu.memory_space<vmem>>, vector<1x24x8xf32>
    %194 = vector.shape_cast %193 : vector<1x24x8xf32> to vector<24x8xf32>
    %c1_139 = arith.constant 1 : index
    %c0_140 = arith.constant 0 : index
    %c0_141 = arith.constant 0 : index
    %195 = vector.load %arg5[%c1_139, %c0_140, %c0_141] : memref<9x16x16xf32, #tpu.memory_space<vmem>>, vector<1x16x16xf32>
    %196 = vector.shape_cast %195 : vector<1x16x16xf32> to vector<16x16xf32>
    %cst_142 = arith.constant dense<0.000000e+00> : vector<8x16xf32>
    %197 = tpu.matmul %179, %196, %cst_142 {dimension_numbers = #tpu.dot_dimension_numbers<[1], [0], [0], [1], [0, 0, 1, 1], [], []>} : vector<8x16xf32>, vector<16x16xf32>, vector<8x16xf32> -> vector<8x16xf32>
    %cst_143 = arith.constant dense<0.000000e+00> : vector<24x16xf32>
    %198 = tpu.matmul %194, %197, %cst_143 {dimension_numbers = #tpu.dot_dimension_numbers<[1], [0], [0], [1], [0, 0, 1, 1], [], []>} : vector<24x8xf32>, vector<8x16xf32>, vector<24x16xf32> -> vector<24x16xf32>
    %199 = arith.addf %192, %198 : vector<24x16xf32>
    %c1_144 = arith.constant 1 : index
    %c0_145 = arith.constant 0 : index
    %c0_146 = arith.constant 0 : index
    %200 = vector.load %arg20[%c1_144, %c0_145, %c0_146] : memref<9x24x8xf32, #tpu.memory_space<vmem>>, vector<1x24x8xf32>
    %201 = vector.shape_cast %200 : vector<1x24x8xf32> to vector<24x8xf32>
    %c1_147 = arith.constant 1 : index
    %c0_148 = arith.constant 0 : index
    %c0_149 = arith.constant 0 : index
    %202 = vector.load %arg5[%c1_147, %c0_148, %c0_149] : memref<9x16x16xf32, #tpu.memory_space<vmem>>, vector<1x16x16xf32>
    %203 = vector.shape_cast %202 : vector<1x16x16xf32> to vector<16x16xf32>
    %cst_150 = arith.constant dense<0.000000e+00> : vector<8x16xf32>
    %204 = tpu.matmul %75, %203, %cst_150 {dimension_numbers = #tpu.dot_dimension_numbers<[1], [0], [0], [1], [0, 0, 1, 1], [], []>} : vector<8x16xf32>, vector<16x16xf32>, vector<8x16xf32> -> vector<8x16xf32>
    %cst_151 = arith.constant dense<0.000000e+00> : vector<24x16xf32>
    %205 = tpu.matmul %201, %204, %cst_151 {dimension_numbers = #tpu.dot_dimension_numbers<[1], [0], [0], [1], [0, 0, 1, 1], [], []>} : vector<24x8xf32>, vector<8x16xf32>, vector<24x16xf32> -> vector<24x16xf32>
    %206 = arith.addf %199, %205 : vector<24x16xf32>
    %c2_152 = arith.constant 2 : index
    %c0_153 = arith.constant 0 : index
    %c0_154 = arith.constant 0 : index
    %207 = vector.load %arg19[%c2_152, %c0_153, %c0_154] : memref<9x24x8xf32, #tpu.memory_space<vmem>>, vector<1x24x8xf32>
    %208 = vector.shape_cast %207 : vector<1x24x8xf32> to vector<24x8xf32>
    %c2_155 = arith.constant 2 : index
    %c0_156 = arith.constant 0 : index
    %c0_157 = arith.constant 0 : index
    %209 = vector.load %arg5[%c2_155, %c0_156, %c0_157] : memref<9x16x16xf32, #tpu.memory_space<vmem>>, vector<1x16x16xf32>
    %210 = vector.shape_cast %209 : vector<1x16x16xf32> to vector<16x16xf32>
    %cst_158 = arith.constant dense<0.000000e+00> : vector<8x16xf32>
    %211 = tpu.matmul %179, %210, %cst_158 {dimension_numbers = #tpu.dot_dimension_numbers<[1], [0], [0], [1], [0, 0, 1, 1], [], []>} : vector<8x16xf32>, vector<16x16xf32>, vector<8x16xf32> -> vector<8x16xf32>
    %cst_159 = arith.constant dense<0.000000e+00> : vector<24x16xf32>
    %212 = tpu.matmul %208, %211, %cst_159 {dimension_numbers = #tpu.dot_dimension_numbers<[1], [0], [0], [1], [0, 0, 1, 1], [], []>} : vector<24x8xf32>, vector<8x16xf32>, vector<24x16xf32> -> vector<24x16xf32>
    %213 = arith.addf %206, %212 : vector<24x16xf32>
    %c2_160 = arith.constant 2 : index
    %c0_161 = arith.constant 0 : index
    %c0_162 = arith.constant 0 : index
    %214 = vector.load %arg20[%c2_160, %c0_161, %c0_162] : memref<9x24x8xf32, #tpu.memory_space<vmem>>, vector<1x24x8xf32>
    %215 = vector.shape_cast %214 : vector<1x24x8xf32> to vector<24x8xf32>
    %c2_163 = arith.constant 2 : index
    %c0_164 = arith.constant 0 : index
    %c0_165 = arith.constant 0 : index
    %216 = vector.load %arg5[%c2_163, %c0_164, %c0_165] : memref<9x16x16xf32, #tpu.memory_space<vmem>>, vector<1x16x16xf32>
    %217 = vector.shape_cast %216 : vector<1x16x16xf32> to vector<16x16xf32>
    %cst_166 = arith.constant dense<0.000000e+00> : vector<8x16xf32>
    %218 = tpu.matmul %75, %217, %cst_166 {dimension_numbers = #tpu.dot_dimension_numbers<[1], [0], [0], [1], [0, 0, 1, 1], [], []>} : vector<8x16xf32>, vector<16x16xf32>, vector<8x16xf32> -> vector<8x16xf32>
    %cst_167 = arith.constant dense<0.000000e+00> : vector<24x16xf32>
    %219 = tpu.matmul %215, %218, %cst_167 {dimension_numbers = #tpu.dot_dimension_numbers<[1], [0], [0], [1], [0, 0, 1, 1], [], []>} : vector<24x8xf32>, vector<8x16xf32>, vector<24x16xf32> -> vector<24x16xf32>
    %220 = arith.addf %213, %219 : vector<24x16xf32>
    %c3_168 = arith.constant 3 : index
    %c0_169 = arith.constant 0 : index
    %c0_170 = arith.constant 0 : index
    %221 = vector.load %arg19[%c3_168, %c0_169, %c0_170] : memref<9x24x8xf32, #tpu.memory_space<vmem>>, vector<1x24x8xf32>
    %222 = vector.shape_cast %221 : vector<1x24x8xf32> to vector<24x8xf32>
    %c3_171 = arith.constant 3 : index
    %c0_172 = arith.constant 0 : index
    %c0_173 = arith.constant 0 : index
    %223 = vector.load %arg5[%c3_171, %c0_172, %c0_173] : memref<9x16x16xf32, #tpu.memory_space<vmem>>, vector<1x16x16xf32>
    %224 = vector.shape_cast %223 : vector<1x16x16xf32> to vector<16x16xf32>
    %cst_174 = arith.constant dense<0.000000e+00> : vector<8x16xf32>
    %225 = tpu.matmul %179, %224, %cst_174 {dimension_numbers = #tpu.dot_dimension_numbers<[1], [0], [0], [1], [0, 0, 1, 1], [], []>} : vector<8x16xf32>, vector<16x16xf32>, vector<8x16xf32> -> vector<8x16xf32>
    %cst_175 = arith.constant dense<0.000000e+00> : vector<24x16xf32>
    %226 = tpu.matmul %222, %225, %cst_175 {dimension_numbers = #tpu.dot_dimension_numbers<[1], [0], [0], [1], [0, 0, 1, 1], [], []>} : vector<24x8xf32>, vector<8x16xf32>, vector<24x16xf32> -> vector<24x16xf32>
    %227 = arith.addf %220, %226 : vector<24x16xf32>
    %c3_176 = arith.constant 3 : index
    %c0_177 = arith.constant 0 : index
    %c0_178 = arith.constant 0 : index
    %228 = vector.load %arg20[%c3_176, %c0_177, %c0_178] : memref<9x24x8xf32, #tpu.memory_space<vmem>>, vector<1x24x8xf32>
    %229 = vector.shape_cast %228 : vector<1x24x8xf32> to vector<24x8xf32>
    %c3_179 = arith.constant 3 : index
    %c0_180 = arith.constant 0 : index
    %c0_181 = arith.constant 0 : index
    %230 = vector.load %arg5[%c3_179, %c0_180, %c0_181] : memref<9x16x16xf32, #tpu.memory_space<vmem>>, vector<1x16x16xf32>
    %231 = vector.shape_cast %230 : vector<1x16x16xf32> to vector<16x16xf32>
    %cst_182 = arith.constant dense<0.000000e+00> : vector<8x16xf32>
    %232 = tpu.matmul %75, %231, %cst_182 {dimension_numbers = #tpu.dot_dimension_numbers<[1], [0], [0], [1], [0, 0, 1, 1], [], []>} : vector<8x16xf32>, vector<16x16xf32>, vector<8x16xf32> -> vector<8x16xf32>
    %cst_183 = arith.constant dense<0.000000e+00> : vector<24x16xf32>
    %233 = tpu.matmul %229, %232, %cst_183 {dimension_numbers = #tpu.dot_dimension_numbers<[1], [0], [0], [1], [0, 0, 1, 1], [], []>} : vector<24x8xf32>, vector<8x16xf32>, vector<24x16xf32> -> vector<24x16xf32>
    %234 = arith.addf %227, %233 : vector<24x16xf32>
    %c4_184 = arith.constant 4 : index
    %c0_185 = arith.constant 0 : index
    %c0_186 = arith.constant 0 : index
    %235 = vector.load %arg19[%c4_184, %c0_185, %c0_186] : memref<9x24x8xf32, #tpu.memory_space<vmem>>, vector<1x24x8xf32>
    %236 = vector.shape_cast %235 : vector<1x24x8xf32> to vector<24x8xf32>
    %c4_187 = arith.constant 4 : index
    %c0_188 = arith.constant 0 : index
    %c0_189 = arith.constant 0 : index
    %237 = vector.load %arg5[%c4_187, %c0_188, %c0_189] : memref<9x16x16xf32, #tpu.memory_space<vmem>>, vector<1x16x16xf32>
    %238 = vector.shape_cast %237 : vector<1x16x16xf32> to vector<16x16xf32>
    %cst_190 = arith.constant dense<0.000000e+00> : vector<8x16xf32>
    %239 = tpu.matmul %179, %238, %cst_190 {dimension_numbers = #tpu.dot_dimension_numbers<[1], [0], [0], [1], [0, 0, 1, 1], [], []>} : vector<8x16xf32>, vector<16x16xf32>, vector<8x16xf32> -> vector<8x16xf32>
    %cst_191 = arith.constant dense<0.000000e+00> : vector<24x16xf32>
    %240 = tpu.matmul %236, %239, %cst_191 {dimension_numbers = #tpu.dot_dimension_numbers<[1], [0], [0], [1], [0, 0, 1, 1], [], []>} : vector<24x8xf32>, vector<8x16xf32>, vector<24x16xf32> -> vector<24x16xf32>
    %241 = arith.addf %234, %240 : vector<24x16xf32>
    %c4_192 = arith.constant 4 : index
    %c0_193 = arith.constant 0 : index
    %c0_194 = arith.constant 0 : index
    %242 = vector.load %arg20[%c4_192, %c0_193, %c0_194] : memref<9x24x8xf32, #tpu.memory_space<vmem>>, vector<1x24x8xf32>
    %243 = vector.shape_cast %242 : vector<1x24x8xf32> to vector<24x8xf32>
    %c4_195 = arith.constant 4 : index
    %c0_196 = arith.constant 0 : index
    %c0_197 = arith.constant 0 : index
    %244 = vector.load %arg5[%c4_195, %c0_196, %c0_197] : memref<9x16x16xf32, #tpu.memory_space<vmem>>, vector<1x16x16xf32>
    %245 = vector.shape_cast %244 : vector<1x16x16xf32> to vector<16x16xf32>
    %cst_198 = arith.constant dense<0.000000e+00> : vector<8x16xf32>
    %246 = tpu.matmul %75, %245, %cst_198 {dimension_numbers = #tpu.dot_dimension_numbers<[1], [0], [0], [1], [0, 0, 1, 1], [], []>} : vector<8x16xf32>, vector<16x16xf32>, vector<8x16xf32> -> vector<8x16xf32>
    %cst_199 = arith.constant dense<0.000000e+00> : vector<24x16xf32>
    %247 = tpu.matmul %243, %246, %cst_199 {dimension_numbers = #tpu.dot_dimension_numbers<[1], [0], [0], [1], [0, 0, 1, 1], [], []>} : vector<24x8xf32>, vector<8x16xf32>, vector<24x16xf32> -> vector<24x16xf32>
    %248 = arith.addf %241, %247 : vector<24x16xf32>
    %c5_200 = arith.constant 5 : index
    %c0_201 = arith.constant 0 : index
    %c0_202 = arith.constant 0 : index
    %249 = vector.load %arg19[%c5_200, %c0_201, %c0_202] : memref<9x24x8xf32, #tpu.memory_space<vmem>>, vector<1x24x8xf32>
    %250 = vector.shape_cast %249 : vector<1x24x8xf32> to vector<24x8xf32>
    %c5_203 = arith.constant 5 : index
    %c0_204 = arith.constant 0 : index
    %c0_205 = arith.constant 0 : index
    %251 = vector.load %arg5[%c5_203, %c0_204, %c0_205] : memref<9x16x16xf32, #tpu.memory_space<vmem>>, vector<1x16x16xf32>
    %252 = vector.shape_cast %251 : vector<1x16x16xf32> to vector<16x16xf32>
    %cst_206 = arith.constant dense<0.000000e+00> : vector<8x16xf32>
    %253 = tpu.matmul %179, %252, %cst_206 {dimension_numbers = #tpu.dot_dimension_numbers<[1], [0], [0], [1], [0, 0, 1, 1], [], []>} : vector<8x16xf32>, vector<16x16xf32>, vector<8x16xf32> -> vector<8x16xf32>
    %cst_207 = arith.constant dense<0.000000e+00> : vector<24x16xf32>
    %254 = tpu.matmul %250, %253, %cst_207 {dimension_numbers = #tpu.dot_dimension_numbers<[1], [0], [0], [1], [0, 0, 1, 1], [], []>} : vector<24x8xf32>, vector<8x16xf32>, vector<24x16xf32> -> vector<24x16xf32>
    %255 = arith.addf %248, %254 : vector<24x16xf32>
    %c5_208 = arith.constant 5 : index
    %c0_209 = arith.constant 0 : index
    %c0_210 = arith.constant 0 : index
    %256 = vector.load %arg20[%c5_208, %c0_209, %c0_210] : memref<9x24x8xf32, #tpu.memory_space<vmem>>, vector<1x24x8xf32>
    %257 = vector.shape_cast %256 : vector<1x24x8xf32> to vector<24x8xf32>
    %c5_211 = arith.constant 5 : index
    %c0_212 = arith.constant 0 : index
    %c0_213 = arith.constant 0 : index
    %258 = vector.load %arg5[%c5_211, %c0_212, %c0_213] : memref<9x16x16xf32, #tpu.memory_space<vmem>>, vector<1x16x16xf32>
    %259 = vector.shape_cast %258 : vector<1x16x16xf32> to vector<16x16xf32>
    %cst_214 = arith.constant dense<0.000000e+00> : vector<8x16xf32>
    %260 = tpu.matmul %75, %259, %cst_214 {dimension_numbers = #tpu.dot_dimension_numbers<[1], [0], [0], [1], [0, 0, 1, 1], [], []>} : vector<8x16xf32>, vector<16x16xf32>, vector<8x16xf32> -> vector<8x16xf32>
    %cst_215 = arith.constant dense<0.000000e+00> : vector<24x16xf32>
    %261 = tpu.matmul %257, %260, %cst_215 {dimension_numbers = #tpu.dot_dimension_numbers<[1], [0], [0], [1], [0, 0, 1, 1], [], []>} : vector<24x8xf32>, vector<8x16xf32>, vector<24x16xf32> -> vector<24x16xf32>
    %262 = arith.addf %255, %261 : vector<24x16xf32>
    %c6_216 = arith.constant 6 : index
    %c0_217 = arith.constant 0 : index
    %c0_218 = arith.constant 0 : index
    %263 = vector.load %arg19[%c6_216, %c0_217, %c0_218] : memref<9x24x8xf32, #tpu.memory_space<vmem>>, vector<1x24x8xf32>
    %264 = vector.shape_cast %263 : vector<1x24x8xf32> to vector<24x8xf32>
    %c6_219 = arith.constant 6 : index
    %c0_220 = arith.constant 0 : index
    %c0_221 = arith.constant 0 : index
    %265 = vector.load %arg5[%c6_219, %c0_220, %c0_221] : memref<9x16x16xf32, #tpu.memory_space<vmem>>, vector<1x16x16xf32>
    %266 = vector.shape_cast %265 : vector<1x16x16xf32> to vector<16x16xf32>
    %cst_222 = arith.constant dense<0.000000e+00> : vector<8x16xf32>
    %267 = tpu.matmul %179, %266, %cst_222 {dimension_numbers = #tpu.dot_dimension_numbers<[1], [0], [0], [1], [0, 0, 1, 1], [], []>} : vector<8x16xf32>, vector<16x16xf32>, vector<8x16xf32> -> vector<8x16xf32>
    %cst_223 = arith.constant dense<0.000000e+00> : vector<24x16xf32>
    %268 = tpu.matmul %264, %267, %cst_223 {dimension_numbers = #tpu.dot_dimension_numbers<[1], [0], [0], [1], [0, 0, 1, 1], [], []>} : vector<24x8xf32>, vector<8x16xf32>, vector<24x16xf32> -> vector<24x16xf32>
    %269 = arith.addf %262, %268 : vector<24x16xf32>
    %c6_224 = arith.constant 6 : index
    %c0_225 = arith.constant 0 : index
    %c0_226 = arith.constant 0 : index
    %270 = vector.load %arg20[%c6_224, %c0_225, %c0_226] : memref<9x24x8xf32, #tpu.memory_space<vmem>>, vector<1x24x8xf32>
    %271 = vector.shape_cast %270 : vector<1x24x8xf32> to vector<24x8xf32>
    %c6_227 = arith.constant 6 : index
    %c0_228 = arith.constant 0 : index
    %c0_229 = arith.constant 0 : index
    %272 = vector.load %arg5[%c6_227, %c0_228, %c0_229] : memref<9x16x16xf32, #tpu.memory_space<vmem>>, vector<1x16x16xf32>
    %273 = vector.shape_cast %272 : vector<1x16x16xf32> to vector<16x16xf32>
    %cst_230 = arith.constant dense<0.000000e+00> : vector<8x16xf32>
    %274 = tpu.matmul %75, %273, %cst_230 {dimension_numbers = #tpu.dot_dimension_numbers<[1], [0], [0], [1], [0, 0, 1, 1], [], []>} : vector<8x16xf32>, vector<16x16xf32>, vector<8x16xf32> -> vector<8x16xf32>
    %cst_231 = arith.constant dense<0.000000e+00> : vector<24x16xf32>
    %275 = tpu.matmul %271, %274, %cst_231 {dimension_numbers = #tpu.dot_dimension_numbers<[1], [0], [0], [1], [0, 0, 1, 1], [], []>} : vector<24x8xf32>, vector<8x16xf32>, vector<24x16xf32> -> vector<24x16xf32>
    %276 = arith.addf %269, %275 : vector<24x16xf32>
    %c7_232 = arith.constant 7 : index
    %c0_233 = arith.constant 0 : index
    %c0_234 = arith.constant 0 : index
    %277 = vector.load %arg19[%c7_232, %c0_233, %c0_234] : memref<9x24x8xf32, #tpu.memory_space<vmem>>, vector<1x24x8xf32>
    %278 = vector.shape_cast %277 : vector<1x24x8xf32> to vector<24x8xf32>
    %c7_235 = arith.constant 7 : index
    %c0_236 = arith.constant 0 : index
    %c0_237 = arith.constant 0 : index
    %279 = vector.load %arg5[%c7_235, %c0_236, %c0_237] : memref<9x16x16xf32, #tpu.memory_space<vmem>>, vector<1x16x16xf32>
    %280 = vector.shape_cast %279 : vector<1x16x16xf32> to vector<16x16xf32>
    %cst_238 = arith.constant dense<0.000000e+00> : vector<8x16xf32>
    %281 = tpu.matmul %179, %280, %cst_238 {dimension_numbers = #tpu.dot_dimension_numbers<[1], [0], [0], [1], [0, 0, 1, 1], [], []>} : vector<8x16xf32>, vector<16x16xf32>, vector<8x16xf32> -> vector<8x16xf32>
    %cst_239 = arith.constant dense<0.000000e+00> : vector<24x16xf32>
    %282 = tpu.matmul %278, %281, %cst_239 {dimension_numbers = #tpu.dot_dimension_numbers<[1], [0], [0], [1], [0, 0, 1, 1], [], []>} : vector<24x8xf32>, vector<8x16xf32>, vector<24x16xf32> -> vector<24x16xf32>
    %283 = arith.addf %276, %282 : vector<24x16xf32>
    %c7_240 = arith.constant 7 : index
    %c0_241 = arith.constant 0 : index
    %c0_242 = arith.constant 0 : index
    %284 = vector.load %arg20[%c7_240, %c0_241, %c0_242] : memref<9x24x8xf32, #tpu.memory_space<vmem>>, vector<1x24x8xf32>
    %285 = vector.shape_cast %284 : vector<1x24x8xf32> to vector<24x8xf32>
    %c7_243 = arith.constant 7 : index
    %c0_244 = arith.constant 0 : index
    %c0_245 = arith.constant 0 : index
    %286 = vector.load %arg5[%c7_243, %c0_244, %c0_245] : memref<9x16x16xf32, #tpu.memory_space<vmem>>, vector<1x16x16xf32>
    %287 = vector.shape_cast %286 : vector<1x16x16xf32> to vector<16x16xf32>
    %cst_246 = arith.constant dense<0.000000e+00> : vector<8x16xf32>
    %288 = tpu.matmul %75, %287, %cst_246 {dimension_numbers = #tpu.dot_dimension_numbers<[1], [0], [0], [1], [0, 0, 1, 1], [], []>} : vector<8x16xf32>, vector<16x16xf32>, vector<8x16xf32> -> vector<8x16xf32>
    %cst_247 = arith.constant dense<0.000000e+00> : vector<24x16xf32>
    %289 = tpu.matmul %285, %288, %cst_247 {dimension_numbers = #tpu.dot_dimension_numbers<[1], [0], [0], [1], [0, 0, 1, 1], [], []>} : vector<24x8xf32>, vector<8x16xf32>, vector<24x16xf32> -> vector<24x16xf32>
    %290 = arith.addf %283, %289 : vector<24x16xf32>
    %c8_248 = arith.constant 8 : index
    %c0_249 = arith.constant 0 : index
    %c0_250 = arith.constant 0 : index
    %291 = vector.load %arg19[%c8_248, %c0_249, %c0_250] : memref<9x24x8xf32, #tpu.memory_space<vmem>>, vector<1x24x8xf32>
    %292 = vector.shape_cast %291 : vector<1x24x8xf32> to vector<24x8xf32>
    %c8_251 = arith.constant 8 : index
    %c0_252 = arith.constant 0 : index
    %c0_253 = arith.constant 0 : index
    %293 = vector.load %arg5[%c8_251, %c0_252, %c0_253] : memref<9x16x16xf32, #tpu.memory_space<vmem>>, vector<1x16x16xf32>
    %294 = vector.shape_cast %293 : vector<1x16x16xf32> to vector<16x16xf32>
    %cst_254 = arith.constant dense<0.000000e+00> : vector<8x16xf32>
    %295 = tpu.matmul %179, %294, %cst_254 {dimension_numbers = #tpu.dot_dimension_numbers<[1], [0], [0], [1], [0, 0, 1, 1], [], []>} : vector<8x16xf32>, vector<16x16xf32>, vector<8x16xf32> -> vector<8x16xf32>
    %cst_255 = arith.constant dense<0.000000e+00> : vector<24x16xf32>
    %296 = tpu.matmul %292, %295, %cst_255 {dimension_numbers = #tpu.dot_dimension_numbers<[1], [0], [0], [1], [0, 0, 1, 1], [], []>} : vector<24x8xf32>, vector<8x16xf32>, vector<24x16xf32> -> vector<24x16xf32>
    %297 = arith.addf %290, %296 : vector<24x16xf32>
    %c8_256 = arith.constant 8 : index
    %c0_257 = arith.constant 0 : index
    %c0_258 = arith.constant 0 : index
    %298 = vector.load %arg20[%c8_256, %c0_257, %c0_258] : memref<9x24x8xf32, #tpu.memory_space<vmem>>, vector<1x24x8xf32>
    %299 = vector.shape_cast %298 : vector<1x24x8xf32> to vector<24x8xf32>
    %c8_259 = arith.constant 8 : index
    %c0_260 = arith.constant 0 : index
    %c0_261 = arith.constant 0 : index
    %300 = vector.load %arg5[%c8_259, %c0_260, %c0_261] : memref<9x16x16xf32, #tpu.memory_space<vmem>>, vector<1x16x16xf32>
    %301 = vector.shape_cast %300 : vector<1x16x16xf32> to vector<16x16xf32>
    %cst_262 = arith.constant dense<0.000000e+00> : vector<8x16xf32>
    %302 = tpu.matmul %75, %301, %cst_262 {dimension_numbers = #tpu.dot_dimension_numbers<[1], [0], [0], [1], [0, 0, 1, 1], [], []>} : vector<8x16xf32>, vector<16x16xf32>, vector<8x16xf32> -> vector<8x16xf32>
    %cst_263 = arith.constant dense<0.000000e+00> : vector<24x16xf32>
    %303 = tpu.matmul %299, %302, %cst_263 {dimension_numbers = #tpu.dot_dimension_numbers<[1], [0], [0], [1], [0, 0, 1, 1], [], []>} : vector<24x8xf32>, vector<8x16xf32>, vector<24x16xf32> -> vector<24x16xf32>
    %304 = arith.addf %297, %303 : vector<24x16xf32>
    %c0_264 = arith.constant 0 : index
    %c0_265 = arith.constant 0 : index
    %305 = vector.load %arg21[%c0_264, %c0_265] : memref<24x1xf32, #tpu.memory_space<vmem>>, vector<24x1xf32>
    %306 = vector.broadcast %305 : vector<24x1xf32> to vector<24x16xf32>
    %307 = arith.addf %304, %306 : vector<24x16xf32>
    %c0_266 = arith.constant 0 : index
    %c0_267 = arith.constant 0 : index
    %c0_268 = arith.constant 0 : index
    %308 = vector.load %arg22[%c0_266, %c0_267, %c0_268] : memref<1x24x16xf32, #tpu.memory_space<vmem>>, vector<1x24x16xf32>
    %309 = vector.shape_cast %308 : vector<1x24x16xf32> to vector<24x16xf32>
    %310 = vector.shape_cast %307 : vector<24x16xf32> to vector<1x24x16xf32>
    tpu.vector_store %arg22[%c0_266, %c0_267, %c0_268], %310 {strides = array<i32>} : memref<1x24x16xf32, #tpu.memory_space<vmem>>, vector<1x24x16xf32>,
    return
  }
  func.func @transform_0(%arg0: i32) -> (i32, i32, i32) {
    %c0_i32 = arith.constant 0 : i32
    %c0_i32_0 = arith.constant 0 : i32
    %c0_i32_1 = arith.constant 0 : i32
    return %arg0, %c0_i32, %c0_i32_0 : i32, i32, i32
  }
  func.func @transform_1(%arg0: i32) -> (i32, i32) {
    %c0_i32 = arith.constant 0 : i32
    %c0_i32_0 = arith.constant 0 : i32
    %c0_i32_1 = arith.constant 0 : i32
    return %c0_i32, %c0_i32_0 : i32, i32
  }
  func.func @transform_2(%arg0: i32) -> (i32, i32) {
    %c0_i32 = arith.constant 0 : i32
    %c0_i32_0 = arith.constant 0 : i32
    %c0_i32_1 = arith.constant 0 : i32
    return %c0_i32, %c0_i32_0 : i32, i32
  }
  func.func @transform_3(%arg0: i32) -> (i32, i32) {
    %c0_i32 = arith.constant 0 : i32
    %c0_i32_0 = arith.constant 0 : i32
    %c0_i32_1 = arith.constant 0 : i32
    return %c0_i32, %c0_i32_0 : i32, i32
  }
  func.func @transform_4(%arg0: i32) -> (i32, i32, i32) {
    %c0_i32 = arith.constant 0 : i32
    %c0_i32_0 = arith.constant 0 : i32
    %c0_i32_1 = arith.constant 0 : i32
    %c0_i32_2 = arith.constant 0 : i32
    return %c0_i32, %c0_i32_0, %c0_i32_1 : i32, i32, i32
  }
  func.func @transform_5(%arg0: i32) -> (i32, i32, i32) {
    %c0_i32 = arith.constant 0 : i32
    %c0_i32_0 = arith.constant 0 : i32
    %c0_i32_1 = arith.constant 0 : i32
    %c0_i32_2 = arith.constant 0 : i32
    return %c0_i32, %c0_i32_0, %c0_i32_1 : i32, i32, i32
  }
  func.func @transform_6(%arg0: i32) -> (i32, i32) {
    %c0_i32 = arith.constant 0 : i32
    %c0_i32_0 = arith.constant 0 : i32
    %c0_i32_1 = arith.constant 0 : i32
    return %c0_i32, %c0_i32_0 : i32, i32
  }
  func.func @transform_7(%arg0: i32) -> (i32, i32) {
    %c0_i32 = arith.constant 0 : i32
    %c0_i32_0 = arith.constant 0 : i32
    %c0_i32_1 = arith.constant 0 : i32
    return %c0_i32, %c0_i32_0 : i32, i32
  }
  func.func @transform_8(%arg0: i32) -> (i32, i32) {
    %c0_i32 = arith.constant 0 : i32
    %c0_i32_0 = arith.constant 0 : i32
    %c0_i32_1 = arith.constant 0 : i32
    return %c0_i32, %c0_i32_0 : i32, i32
  }
  func.func @transform_9(%arg0: i32) -> (i32, i32) {
    %c0_i32 = arith.constant 0 : i32
    %c0_i32_0 = arith.constant 0 : i32
    %c0_i32_1 = arith.constant 0 : i32
    return %c0_i32, %c0_i32_0 : i32, i32
  }
  func.func @transform_10(%arg0: i32) -> (i32, i32) {
    %c0_i32 = arith.constant 0 : i32
    %c0_i32_0 = arith.constant 0 : i32
    %c0_i32_1 = arith.constant 0 : i32
    return %c0_i32, %c0_i32_0 : i32, i32
  }
  func.func @transform_11(%arg0: i32) -> (i32, i32) {
    %c0_i32 = arith.constant 0 : i32
    %c0_i32_0 = arith.constant 0 : i32
    %c0_i32_1 = arith.constant 0 : i32
    return %c0_i32, %c0_i32_0 : i32, i32
  }
  func.func @transform_12(%arg0: i32) -> (i32, i32) {
    %c0_i32 = arith.constant 0 : i32
    %c0_i32_0 = arith.constant 0 : i32
    %c0_i32_1 = arith.constant 0 : i32
    return %c0_i32, %c0_i32_0 : i32, i32
  }
  func.func @transform_13(%arg0: i32) -> (i32, i32) {
    %c0_i32 = arith.constant 0 : i32
    %c0_i32_0 = arith.constant 0 : i32
    %c0_i32_1 = arith.constant 0 : i32
    return %c0_i32, %c0_i32_0 : i32, i32
  }
  func.func @transform_14(%arg0: i32) -> (i32, i32) {
    %c0_i32 = arith.constant 0 : i32
    %c0_i32_0 = arith.constant 0 : i32
    %c0_i32_1 = arith.constant 0 : i32
    return %c0_i32, %c0_i32_0 : i32, i32
  }
  func.func @transform_15(%arg0: i32) -> (i32, i32) {
    %c0_i32 = arith.constant 0 : i32
    %c0_i32_0 = arith.constant 0 : i32
    %c0_i32_1 = arith.constant 0 : i32
    return %c0_i32, %c0_i32_0 : i32, i32
  }
  func.func @transform_16(%arg0: i32) -> (i32, i32) {
    %c0_i32 = arith.constant 0 : i32
    %c0_i32_0 = arith.constant 0 : i32
    %c0_i32_1 = arith.constant 0 : i32
    return %c0_i32, %c0_i32_0 : i32, i32
  }
  func.func @transform_17(%arg0: i32) -> (i32, i32) {
    %c0_i32 = arith.constant 0 : i32
    %c0_i32_0 = arith.constant 0 : i32
    %c0_i32_1 = arith.constant 0 : i32
    return %c0_i32, %c0_i32_0 : i32, i32
  }
  func.func @transform_18(%arg0: i32) -> (i32, i32, i32) {
    %c0_i32 = arith.constant 0 : i32
    %c0_i32_0 = arith.constant 0 : i32
    %c0_i32_1 = arith.constant 0 : i32
    %c0_i32_2 = arith.constant 0 : i32
    return %c0_i32, %c0_i32_0, %c0_i32_1 : i32, i32, i32
  }
  func.func @transform_19(%arg0: i32) -> (i32, i32, i32) {
    %c0_i32 = arith.constant 0 : i32
    %c0_i32_0 = arith.constant 0 : i32
    %c0_i32_1 = arith.constant 0 : i32
    %c0_i32_2 = arith.constant 0 : i32
    return %c0_i32, %c0_i32_0, %c0_i32_1 : i32, i32, i32
  }
  func.func @transform_20(%arg0: i32) -> (i32, i32) {
    %c0_i32 = arith.constant 0 : i32
    %c0_i32_0 = arith.constant 0 : i32
    %c0_i32_1 = arith.constant 0 : i32
    return %c0_i32, %c0_i32_0 : i32, i32
  }
  func.func @transform_21(%arg0: i32) -> (i32, i32, i32) {
    %c0_i32 = arith.constant 0 : i32
    %c0_i32_0 = arith.constant 0 : i32
    %c0_i32_1 = arith.constant 0 : i32
    return %arg0, %c0_i32, %c0_i32_0 : i32, i32, i32
  }
}

</mosaic_0001>

<llo_original>
// kernel: forward.5
$region0: #{forward.5}
  #allocation0 [shape = 'u32[]', space=smem, size = 0x4, offset = 0x4, fixed_abs, tag = 'smem constant byte address 0x4 - core index']
  #allocation1 [shape = 'u32[144,128]{1,0:T(1,128)}', space=vmem, size = 0x12000, scoped, tag = 'internal scratch']
  %s0 = inlined_call_operand.vmem [shape: f32[2,3,1024], index: 0, kind: input, shape index: {}]
  %s1 = inlined_call_operand.vmem [shape: f32[2,8,3,1024], index: 1, kind: input, shape index: {}]
  %s2 = inlined_call_operand.vmem [shape: f32[2,3,1024], index: 2, kind: output, shape index: {}]
  %s3 = sld [smem:[#allocation0]]
  $region41: #{forward.5} parent=0
    _
  %s5 = ssub.s32 1, %s3
  %s6 = scalar_select 0, %s5, %s3
  loop: start=0, step=1, limit=4
  $region2: #{forward.5} parent=0 // loop_pre_header
    _
  $region3: #{forward.5} parent=0 // loop_header
    %s8 = sphi 0, %s12
    %p9 = scmp.ge.s32.totalorder %s8, 4
    %s15 = sphi 0, %s27
    %s16 = sphi 0, %s23
    %s17 = sphi 0, %s15
    %s18 = sphi 0, %s16
    %s19 = sphi 0, %s17
    %s20 = sphi 0, %s18
    %s32 = sphi 0, %s34
    %s35 = sphi 0, %s32
    %s36 = sphi 0, %s35
    %s52 = sphi 0, %s36
    %s60 = sphi 0, %s62
    %s63 = sphi 0, %s60
    %s64 = sphi 0, %s63
    %s80 = sphi 0, %s64
    %s88 = sphi 0, %s90
    %s91 = sphi 0, %s88
    %s92 = sphi 0, %s91
    %s108 = sphi 0, %s92
  $region4: #{forward.5} parent=0 // loop_header_branch
    %11 = sbr.rel (%p9) target = $region8
  $region5: #{forward.5} parent=0 // loop_body
    %s13 = ssub.s32 %s8, 1
    %s14 = ssub.s32 %s8, 2
    %s21 = sadd.s32 1, %s16
    %p22 = scmp.ge.s32.totalorder %s21, 1
    %s23 = scalar_select %p22, 0, %s21
    %s24 = sadd.s32 1, %s15
    %s25 = scalar_select %p22, %s24, %s15
    %p26 = scmp.ge.s32.totalorder %s25, 2
    %s27 = scalar_select %p26, 0, %s25
    %s28 = ssub.s32 %s15, %s27
    %s29 = ssub.s32 %s16, %s23
    %s30 = sor.u32 %s28, %s29
    %p31 = scmp.eq.s32.totalorder %s30, 0
    %s33 = sadd.s32 %s32, 1
    %s34 = scalar_select %p31, %s32, %s33
    %p37 = pneg %p31
    %p38 = scmp.eq.s32.totalorder %s8, 1
    %p39 = por %p37, %p38
    %p40 = scmp.ne.s32.totalorder %s32, %s35
    %p41 = scmp.eq.s32.totalorder %s8, 0
    %p42 = por %p40, %p41
    %p43 = scmp.ne.s32.totalorder %s32, %s35
    %p44 = scmp.eq.s32.totalorder %s13, 1
    %p45 = por %p43, %p44
    %p46 = scmp.ne.s32.totalorder %s35, %s36
    %p47 = scmp.eq.s32.totalorder %s13, 0
    %p48 = por %p46, %p47
    %p49 = scmp.ne.s32.totalorder %s35, %s36
    %p50 = scmp.eq.s32.totalorder %s14, 1
    %p51 = por %p49, %p50
    %p53 = scmp.ne.s32.totalorder %s36, %s52
    %p54 = scmp.eq.s32.totalorder %s14, 0
    %p55 = por %p53, %p54
    %s56 = ssub.s32 %s15, %s27
    %s57 = ssub.s32 %s16, %s23
    %s58 = sor.u32 %s56, %s57
    %p59 = scmp.eq.s32.totalorder %s58, 0
    %s61 = sadd.s32 %s60, 1
    %s62 = scalar_select %p59, %s60, %s61
    %p65 = pneg %p59
    %p66 = scmp.eq.s32.totalorder %s8, 1
    %p67 = por %p65, %p66
    %p68 = scmp.ne.s32.totalorder %s60, %s63
    %p69 = scmp.eq.s32.totalorder %s8, 0
    %p70 = por %p68, %p69
    %p71 = scmp.ne.s32.totalorder %s60, %s63
    %p72 = scmp.eq.s32.totalorder %s13, 1
    %p73 = por %p71, %p72
    %p74 = scmp.ne.s32.totalorder %s63, %s64
    %p75 = scmp.eq.s32.totalorder %s13, 0
    %p76 = por %p74, %p75
    %p77 = scmp.ne.s32.totalorder %s63, %s64
    %p78 = scmp.eq.s32.totalorder %s14, 1
    %p79 = por %p77, %p78
    %p81 = scmp.ne.s32.totalorder %s64, %s80
    %p82 = scmp.eq.s32.totalorder %s14, 0
    %p83 = por %p81, %p82
    %s84 = ssub.s32 %s15, %s27
    %s85 = ssub.s32 %s16, %s23
    %s86 = sor.u32 %s84, %s85
    %p87 = scmp.eq.s32.totalorder %s86, 0
    %s89 = sadd.s32 %s88, 1
    %s90 = scalar_select %p87, %s88, %s89
    %p93 = pneg %p87
    %p94 = scmp.eq.s32.totalorder %s8, 1
    %p95 = por %p93, %p94
    %p96 = scmp.ne.s32.totalorder %s88, %s91
    %p97 = scmp.eq.s32.totalorder %s8, 0
    %p98 = por %p96, %p97
    %p99 = scmp.ne.s32.totalorder %s88, %s91
    %p100 = scmp.eq.s32.totalorder %s13, 1
    %p101 = por %p99, %p100
    %p102 = scmp.ne.s32.totalorder %s91, %s92
    %p103 = scmp.eq.s32.totalorder %s13, 0
    %p104 = por %p102, %p103
    %p105 = scmp.ne.s32.totalorder %s91, %s92
    %p106 = scmp.eq.s32.totalorder %s14, 1
    %p107 = por %p105, %p106
    %p109 = scmp.ne.s32.totalorder %s92, %s108
    %p110 = scmp.eq.s32.totalorder %s14, 0
    %p111 = por %p109, %p110
    %p112 = scmp.le.s32.totalorder 1, %s8
    %p113 = scmp.lt.s32.totalorder %s8, 3
    %p114 = pnand %p112, %p113
    %p115 = pneg %p114
    // Predicated region
    $region9: #{forward.5} parent=5 // pred_check
      _
    $region10: #{forward.5} parent=5 // pred_check_branch
      %117 = sbr.rel (%p114) target = $region12
    $region11: #{forward.5} parent=5 // pred_region
      %s118 = ssub.s32 %s8, 1
    $region12: #{forward.5} parent=5 // pred_fallthru
      _
    %p119 = scmp.lt.s32.totalorder %s8, 2
    // Predicated region
    $region13: #{forward.5} parent=5 // pred_check
      %p120 = pneg %p119
    $region14: #{forward.5} parent=5 // pred_check_branch
      %122 = sbr.rel (%p120) target = $region16
    $region15: #{forward.5} parent=5 // pred_region
      // Predicated region
      $region17: #{forward.5} parent=15 // pred_check
        %p123 = pneg %p42
      $region18: #{forward.5} parent=15 // pred_check_branch
        %125 = sbr.rel (%p123) target = $region20
      $region19: #{forward.5} parent=15 // pred_region
        %s126 = smul.u32 8, %s16
        %p127 = scmp.lt.s32.totalorder %s15, 1
        %s128 = scalar_select %p127, %s15, 1
        %p129 = scmp.lt.s32.totalorder %s126, 7
        %s130 = scalar_select %p129, %s126, 7
        %s131 = smul.addr %s128, 8
        %s132 = sadd.s32 %s130, %s131
        %s133 = smul.addr %s132, 4
        %s134 = scalar_lea.vmem %s0, %s133
        %s135 = smul.u32 8, %s16
      $region20: #{forward.5} parent=15 // pred_fallthru
        _
      // Predicated region
      $region21: #{forward.5} parent=15 // pred_check
        %p136 = pneg %p70
      $region22: #{forward.5} parent=15 // pred_check_branch
        %138 = sbr.rel (%p136) target = $region24
      $region23: #{forward.5} parent=15 // pred_region
        %s139 = smul.u32 8, %s16
        %p140 = scmp.lt.s32.totalorder %s15, 1
        %s141 = scalar_select %p140, %s15, 1
        %p142 = scmp.lt.s32.totalorder %s139, 7
        %s143 = scalar_select %p142, %s139, 7
        %s144 = smul.addr %s141, 64
        %s145 = sadd.s32 %s143, %s144
        %s146 = smul.addr %s145, 4
        %s147 = scalar_lea.vmem %s1, %s146
        %s148 = smul.u32 8, %s16
      $region24: #{forward.5} parent=15 // pred_fallthru
        _
    $region16: #{forward.5} parent=5 // pred_fallthru
      _
    %p149 = scmp.le.s32.totalorder 1, %s8
    %p150 = scmp.lt.s32.totalorder %s8, 3
    %p151 = pnand %p149, %p150
    %p152 = pneg %p151
    // Predicated region
    $region25: #{forward.5} parent=5 // pred_check
      _
    $region26: #{forward.5} parent=5 // pred_check_branch
      %154 = sbr.rel (%p151) target = $region28
    $region27: #{forward.5} parent=5 // pred_region
      %s155 = ssub.s32 %s8, 1
      %s156 = smul.u32 8, %s18
      %p157 = scmp.lt.s32.totalorder %s17, 1
      %s158 = scalar_select %p157, %s17, 1
      %p159 = scmp.lt.s32.totalorder %s156, 7
      %s160 = scalar_select %p159, %s156, 7
      %s161 = smul.addr %s158, 8
      %s162 = sadd.s32 %s160, %s161
      %s163 = smul.addr %s162, 4
      %s164 = scalar_lea.vmem %s0, %s163
      %p165 = pneg %p48
      %p166 = pneg %p45
      %s167 = smul.u32 8, %s18
      %p168 = scmp.lt.s32.totalorder %s17, 1
      %s169 = scalar_select %p168, %s17, 1
      %p170 = scmp.lt.s32.totalorder %s167, 7
      %s171 = scalar_select %p170, %s167, 7
      %s172 = smul.addr %s169, 64
      %s173 = sadd.s32 %s171, %s172
      %s174 = smul.addr %s173, 4
      %s175 = scalar_lea.vmem %s1, %s174
      %p176 = pneg %p76
      %p177 = pneg %p73
      %p178 = pneg %p104
      %p179 = pneg %p101
      %s180 = smul.u32 8, %s18
      %p181 = scmp.lt.s32.totalorder %s17, 1
      %s182 = scalar_select %p181, %s17, 1
      %p183 = scmp.lt.s32.totalorder %s180, 7
      %s184 = scalar_select %p183, %s180, 7
      %s185 = smul.addr %s182, 8
      %s186 = sadd.s32 %s184, %s185
      %s187 = smul.addr %s186, 4
      %s188 = scalar_lea.vmem %s2, %s187
      %s189 = smul.u32 8, %s18
      %p190 = scmp.lt.s32.totalorder %s17, 1
      %s191 = scalar_select %p190, %s17, 1
      %p192 = scmp.lt.s32.totalorder %s189, 7
      %s193 = scalar_select %p192, %s189, 7
      %s194 = smul.addr %s191, 8
      %s195 = sadd.s32 %s193, %s194
      %s196 = smul.addr %s195, 4
      %s197 = scalar_lea.vmem %s0, %s196
      %s198 = smul.u32 8, %s18
      %s199 = smul.u32 8, %s18
      %p200 = scmp.lt.s32.totalorder %s17, 1
      %s201 = scalar_select %p200, %s17, 1
      %p202 = scmp.lt.s32.totalorder %s199, 7
      %s203 = scalar_select %p202, %s199, 7
      %s204 = smul.addr %s201, 64
      %s205 = sadd.s32 %s203, %s204
      %s206 = smul.addr %s205, 4
      %s207 = scalar_lea.vmem %s1, %s206
      %s208 = smul.u32 8, %s18
      %s209 = smul.u32 8, %s18
      %p210 = scmp.lt.s32.totalorder %s17, 1
      %s211 = scalar_select %p210, %s17, 1
      %p212 = scmp.lt.s32.totalorder %s209, 7
      %s213 = scalar_select %p212, %s209, 7
      %s214 = smul.addr %s211, 8
      %s215 = sadd.s32 %s213, %s214
      %s216 = smul.addr %s215, 4
      %s217 = scalar_lea.vmem %s2, %s216
      %s218 = smul.u32 8, %s18
      %v219 = vld [vmem:[%s197] sm:$0x77]
      %v220 = vld [vmem:[%s197 + $0x8] sm:$0x77]
      %v221 = vld [vmem:[%s197 + $0x10] sm:$0x77]
      %v222 = vld [vmem:[%s197 + $0x18] sm:$0x77]
      %v223 = vld [vmem:[%s207] sm:$0x77]
      %v224 = vld [vmem:[%s207 + $0x8] sm:$0x77]
      %v225 = vld [vmem:[%s207 + $0x10] sm:$0x77]
      %v226 = vld [vmem:[%s207 + $0x18] sm:$0x77]
      %v227 = vmul.f32 %v219, %v219
      %v228 = vmul.f32 %v220, %v220
      %v229 = vmul.f32 %v221, %v221
      %v230 = vmul.f32 %v222, %v222
      %v231 = vsub.f32 %v227, %v219
      %v232 = vsub.f32 %v228, %v220
      %v233 = vsub.f32 %v229, %v221
      %v234 = vsub.f32 %v230, %v222
      %v235 = vmul.f32 %v223, %v231
      %v236 = vmul.f32 %v224, %v232
      %v237 = vmul.f32 %v225, %v233
      %v238 = vmul.f32 %v226, %v234
      %v239 = vadd.f32 %v219, %v235
      %v240 = vadd.f32 %v220, %v236
      %v241 = vadd.f32 %v221, %v237
      %v242 = vadd.f32 %v222, %v238
      %s243 = scalar_lea.vmem %s207, 32
      %v244 = vld [vmem:[%s243] sm:$0x77]
      %v245 = vld [vmem:[%s243 + $0x8] sm:$0x77]
      %v246 = vld [vmem:[%s243 + $0x10] sm:$0x77]
      %v247 = vld [vmem:[%s243 + $0x18] sm:$0x77]
      %v248 = vmul.f32 %v239, %v239
      %v249 = vmul.f32 %v240, %v240
      %v250 = vmul.f32 %v241, %v241
      %v251 = vmul.f32 %v242, %v242
      %v252 = vsub.f32 %v248, %v239
      %v253 = vsub.f32 %v249, %v240
      %v254 = vsub.f32 %v250, %v241
      %v255 = vsub.f32 %v251, %v242
      %v256 = vmul.f32 %v244, %v252
      %v257 = vmul.f32 %v245, %v253
      %v258 = vmul.f32 %v246, %v254
      %v259 = vmul.f32 %v247, %v255
      %v260 = vadd.f32 %v239, %v256
      %v261 = vadd.f32 %v240, %v257
      %v262 = vadd.f32 %v241, %v258
      %v263 = vadd.f32 %v242, %v259
      %s264 = scalar_lea.vmem %s207, 64
      %v265 = vld [vmem:[%s264] sm:$0x77]
      %v266 = vld [vmem:[%s264 + $0x8] sm:$0x77]
      %v267 = vld [vmem:[%s264 + $0x10] sm:$0x77]
      %v268 = vld [vmem:[%s264 + $0x18] sm:$0x77]
      %v269 = vmul.f32 %v260, %v260
      %v270 = vmul.f32 %v261, %v261
      %v271 = vmul.f32 %v262, %v262
      %v272 = vmul.f32 %v263, %v263
      %v273 = vsub.f32 %v269, %v260
      %v274 = vsub.f32 %v270, %v261
      %v275 = vsub.f32 %v271, %v262
      %v276 = vsub.f32 %v272, %v263
      %v277 = vmul.f32 %v265, %v273
      %v278 = vmul.f32 %v266, %v274
      %v279 = vmul.f32 %v267, %v275
      %v280 = vmul.f32 %v268, %v276
      %v281 = vadd.f32 %v260, %v277
      %v282 = vadd.f32 %v261, %v278
      %v283 = vadd.f32 %v262, %v279
      %v284 = vadd.f32 %v263, %v280
      %s285 = scalar_lea.vmem %s207, 96
      %v286 = vld [vmem:[%s285] sm:$0x77]
      %v287 = vld [vmem:[%s285 + $0x8] sm:$0x77]
      %v288 = vld [vmem:[%s285 + $0x10] sm:$0x77]
      %v289 = vld [vmem:[%s285 + $0x18] sm:$0x77]
      %v290 = vmul.f32 %v281, %v281
      %v291 = vmul.f32 %v282, %v282
      %v292 = vmul.f32 %v283, %v283
      %v293 = vmul.f32 %v284, %v284
      %v294 = vsub.f32 %v290, %v281
      %v295 = vsub.f32 %v291, %v282
      %v296 = vsub.f32 %v292, %v283
      %v297 = vsub.f32 %v293, %v284
      %v298 = vmul.f32 %v286, %v294
      %v299 = vmul.f32 %v287, %v295
      %v300 = vmul.f32 %v288, %v296
      %v301 = vmul.f32 %v289, %v297
      %v302 = vadd.f32 %v281, %v298
      %v303 = vadd.f32 %v282, %v299
      %v304 = vadd.f32 %v283, %v300
      %v305 = vadd.f32 %v284, %v301
      %s306 = scalar_lea.vmem %s207, 128
      %v307 = vld [vmem:[%s306] sm:$0x77]
      %v308 = vld [vmem:[%s306 + $0x8] sm:$0x77]
      %v309 = vld [vmem:[%s306 + $0x10] sm:$0x77]
      %v310 = vld [vmem:[%s306 + $0x18] sm:$0x77]
      %v311 = vmul.f32 %v302, %v302
      %v312 = vmul.f32 %v303, %v303
      %v313 = vmul.f32 %v304, %v304
      %v314 = vmul.f32 %v305, %v305
      %v315 = vsub.f32 %v311, %v302
      %v316 = vsub.f32 %v312, %v303
      %v317 = vsub.f32 %v313, %v304
      %v318 = vsub.f32 %v314, %v305
      %v319 = vmul.f32 %v307, %v315
      %v320 = vmul.f32 %v308, %v316
      %v321 = vmul.f32 %v309, %v317
      %v322 = vmul.f32 %v310, %v318
      %v323 = vadd.f32 %v302, %v319
      %v324 = vadd.f32 %v303, %v320
      %v325 = vadd.f32 %v304, %v321
      %v326 = vadd.f32 %v305, %v322
      %s327 = scalar_lea.vmem %s207, 160
      %v328 = vld [vmem:[%s327] sm:$0x77]
      %v329 = vld [vmem:[%s327 + $0x8] sm:$0x77]
      %v330 = vld [vmem:[%s327 + $0x10] sm:$0x77]
      %v331 = vld [vmem:[%s327 + $0x18] sm:$0x77]
      %v332 = vmul.f32 %v323, %v323
      %v333 = vmul.f32 %v324, %v324
      %v334 = vmul.f32 %v325, %v325
      %v335 = vmul.f32 %v326, %v326
      %v336 = vsub.f32 %v332, %v323
      %v337 = vsub.f32 %v333, %v324
      %v338 = vsub.f32 %v334, %v325
      %v339 = vsub.f32 %v335, %v326
      %v340 = vmul.f32 %v328, %v336
      %v341 = vmul.f32 %v329, %v337
      %v342 = vmul.f32 %v330, %v338
      %v343 = vmul.f32 %v331, %v339
      %v344 = vadd.f32 %v323, %v340
      %v345 = vadd.f32 %v324, %v341
      %v346 = vadd.f32 %v325, %v342
      %v347 = vadd.f32 %v326, %v343
      %s348 = scalar_lea.vmem %s207, 192
      %v349 = vld [vmem:[%s348] sm:$0x77]
      %v350 = vld [vmem:[%s348 + $0x8] sm:$0x77]
      %v351 = vld [vmem:[%s348 + $0x10] sm:$0x77]
      %v352 = vld [vmem:[%s348 + $0x18] sm:$0x77]
      %v353 = vmul.f32 %v344, %v344
      %v354 = vmul.f32 %v345, %v345
      %v355 = vmul.f32 %v346, %v346
      %v356 = vmul.f32 %v347, %v347
      %v357 = vsub.f32 %v353, %v344
      %v358 = vsub.f32 %v354, %v345
      %v359 = vsub.f32 %v355, %v346
      %v360 = vsub.f32 %v356, %v347
      %v361 = vmul.f32 %v349, %v357
      %v362 = vmul.f32 %v350, %v358
      %v363 = vmul.f32 %v351, %v359
      %v364 = vmul.f32 %v352, %v360
      %v365 = vadd.f32 %v344, %v361
      %v366 = vadd.f32 %v345, %v362
      %v367 = vadd.f32 %v346, %v363
      %v368 = vadd.f32 %v347, %v364
      %s369 = scalar_lea.vmem %s207, 224
      %v370 = vld [vmem:[%s369] sm:$0x77]
      %v371 = vld [vmem:[%s369 + $0x8] sm:$0x77]
      %v372 = vld [vmem:[%s369 + $0x10] sm:$0x77]
      %v373 = vld [vmem:[%s369 + $0x18] sm:$0x77]
      %v374 = vmul.f32 %v365, %v365
      %v375 = vmul.f32 %v366, %v366
      %v376 = vmul.f32 %v367, %v367
      %v377 = vmul.f32 %v368, %v368
      %v378 = vsub.f32 %v374, %v365
      %v379 = vsub.f32 %v375, %v366
      %v380 = vsub.f32 %v376, %v367
      %v381 = vsub.f32 %v377, %v368
      %v382 = vmul.f32 %v370, %v378
      %v383 = vmul.f32 %v371, %v379
      %v384 = vmul.f32 %v372, %v380
      %v385 = vmul.f32 %v373, %v381
      %v386 = vadd.f32 %v365, %v382
      %v387 = vadd.f32 %v366, %v383
      %v388 = vadd.f32 %v367, %v384
      %v389 = vadd.f32 %v368, %v385
      %v390 = vmax.f32 %v386, 0.0
      %v391 = vmax.f32 %v387, 0.0
      %v392 = vmax.f32 %v388, 0.0
      %v393 = vmax.f32 %v389, 0.0
      %v394 = vmin.f32 %v390, 1.0
      %v395 = vmin.f32 %v391, 1.0
      %v396 = vmin.f32 %v392, 1.0
      %v397 = vmin.f32 %v393, 1.0
      %398 = vst [vmem:[%s217] sm:$0x77] %v394
      %399 = vst [vmem:[%s217 + $0x8] sm:$0x77] %v395
      %400 = vst [vmem:[%s217 + $0x10] sm:$0x77] %v396
      %401 = vst [vmem:[%s217 + $0x18] sm:$0x77] %v397
      %s402 = smul.u32 8, %s18
      %p403 = scmp.lt.s32.totalorder %s17, 1
      %s404 = scalar_select %p403, %s17, 1
      %p405 = scmp.lt.s32.totalorder %s402, 7
      %s406 = scalar_select %p405, %s402, 7
      %s407 = smul.addr %s404, 8
      %s408 = sadd.s32 %s406, %s407
      %s409 = smul.addr %s408, 4
      %s410 = scalar_lea.vmem %s2, %s409
      // Predicated region
      $region29: #{forward.5} parent=27 // pred_check
        %p411 = pneg %p101
      $region30: #{forward.5} parent=27 // pred_check_branch
        %413 = sbr.rel (%p411) target = $region32
      $region31: #{forward.5} parent=27 // pred_region
        %s414 = smul.u32 8, %s18
      $region32: #{forward.5} parent=27 // pred_fallthru
        _
    $region28: #{forward.5} parent=5 // pred_fallthru
      _
    %p415 = scmp.le.s32.totalorder 2, %s8
    // Predicated region
    $region33: #{forward.5} parent=5 // pred_check
      %p416 = pneg %p415
    $region34: #{forward.5} parent=5 // pred_check_branch
      %418 = sbr.rel (%p416) target = $region36
    $region35: #{forward.5} parent=5 // pred_region
      %s419 = ssub.s32 %s8, 2
      // Predicated region
      $region37: #{forward.5} parent=35 // pred_check
        %p420 = pneg %p107
      $region38: #{forward.5} parent=35 // pred_check_branch
        %422 = sbr.rel (%p420) target = $region40
      $region39: #{forward.5} parent=35 // pred_region
        %s423 = smul.u32 8, %s20
        %p424 = scmp.lt.s32.totalorder %s19, 1
        %s425 = scalar_select %p424, %s19, 1
        %p426 = scmp.lt.s32.totalorder %s423, 7
        %s427 = scalar_select %p426, %s423, 7
        %s428 = smul.addr %s425, 8
        %s429 = sadd.s32 %s427, %s428
        %s430 = smul.addr %s429, 4
        %s431 = scalar_lea.vmem %s2, %s430
      $region40: #{forward.5} parent=35 // pred_fallthru
        _
    $region36: #{forward.5} parent=5 // pred_fallthru
      _
  $region6: #{forward.5} parent=0 // loop_footer
    %s12 = sadd.s32 1, %s8
  $region7: #{forward.5} parent=0 // loop_footer_branch
    %7 = sbr.rel target = $region3
  $region8: #{forward.5} parent=0 // loop_exit
    _

// kernel: forward.4
$region0: #{forward.4}
  #allocation0 [shape = 'u32[]', space=smem, size = 0x4, offset = 0x4, fixed_abs, tag = 'smem constant byte address 0x4 - core index']
  #allocation1 [shape = 'u32[144,128]{1,0:T(1,128)}', space=vmem, size = 0x12000, scoped, tag = 'internal scratch']
  %s0 = inlined_call_operand.vmem [shape: f32[48,4,4], index: 0, kind: input, shape index: {}]
  %s1 = inlined_call_operand.vmem [shape: f32[256,4], index: 1, kind: input, shape index: {}]
  %s2 = inlined_call_operand.vmem [shape: f32[4,256], index: 2, kind: input, shape index: {}]
  %s3 = inlined_call_operand.vmem [shape: f32[32,256], index: 3, kind: input, shape index: {}]
  %s4 = inlined_call_operand.vmem [shape: f32[256,32], index: 4, kind: input, shape index: {}]
  %s5 = inlined_call_operand.vmem [shape: f32[48,32,32], index: 5, kind: output, shape index: {}]
  %s6 = sld [smem:[#allocation0]]
  $region60: #{forward.4} parent=0
    _
  %s8 = ssub.s32 1, %s6
  %s9 = scalar_select 0, %s8, %s6
  loop: start=0, step=1, limit=4
  $region2: #{forward.4} parent=0 // loop_pre_header
    _
  $region3: #{forward.4} parent=0 // loop_header
    %s11 = sphi 0, %s15
    %p12 = scmp.ge.s32.totalorder %s11, 4
    %s21 = sphi 0, %s23
    %s24 = sphi 0, %s21
    %s25 = sphi 0, %s24
    %s41 = sphi 0, %s25
    %s45 = sphi 0, %s45
    %s47 = sphi 0, %s45
    %s48 = sphi 0, %s47
    %s62 = sphi 0, %s48
    %s66 = sphi 0, %s66
    %s68 = sphi 0, %s66
    %s69 = sphi 0, %s68
    %s83 = sphi 0, %s69
    %s87 = sphi 0, %s87
    %s89 = sphi 0, %s87
    %s90 = sphi 0, %s89
    %s104 = sphi 0, %s90
    %s108 = sphi 0, %s108
    %s110 = sphi 0, %s108
    %s111 = sphi 0, %s110
    %s125 = sphi 0, %s111
    %s131 = sphi 0, %s133
    %s134 = sphi 0, %s131
    %s135 = sphi 0, %s134
    %s151 = sphi 0, %s135
  $region4: #{forward.4} parent=0 // loop_header_branch
    %14 = sbr.rel (%p12) target = $region8
  $region5: #{forward.4} parent=0 // loop_body
    %s16 = ssub.s32 %s11, 1
    %s17 = ssub.s32 %s11, 2
    %s18 = sadd.s32 %s11, 1
    %s19 = ssub.s32 %s11, %s18
    %p20 = scmp.eq.s32.totalorder %s19, 0
    %s22 = sadd.s32 %s21, 1
    %s23 = scalar_select %p20, %s21, %s22
    %p26 = pneg %p20
    %p27 = scmp.eq.s32.totalorder %s11, 1
    %p28 = por %p26, %p27
    %p29 = scmp.ne.s32.totalorder %s21, %s24
    %p30 = scmp.eq.s32.totalorder %s11, 0
    %p31 = por %p29, %p30
    %p32 = scmp.ne.s32.totalorder %s21, %s24
    %p33 = scmp.eq.s32.totalorder %s16, 1
    %p34 = por %p32, %p33
    %p35 = scmp.ne.s32.totalorder %s24, %s25
    %p36 = scmp.eq.s32.totalorder %s16, 0
    %p37 = por %p35, %p36
    %p38 = scmp.ne.s32.totalorder %s24, %s25
    %p39 = scmp.eq.s32.totalorder %s17, 1
    %p40 = por %p38, %p39
    %p42 = scmp.ne.s32.totalorder %s25, %s41
    %p43 = scmp.eq.s32.totalorder %s17, 0
    %p44 = por %p42, %p43
    %s46 = sadd.s32 %s45, 1
    %p49 = scmp.eq.s32.totalorder %s11, 1
    %p50 = scmp.ne.s32.totalorder %s45, %s47
    %p51 = scmp.eq.s32.totalorder %s11, 0
    %p52 = por %p50, %p51
    %p53 = scmp.ne.s32.totalorder %s45, %s47
    %p54 = scmp.eq.s32.totalorder %s16, 1
    %p55 = por %p53, %p54
    %p56 = scmp.ne.s32.totalorder %s47, %s48
    %p57 = scmp.eq.s32.totalorder %s16, 0
    %p58 = por %p56, %p57
    %p59 = scmp.ne.s32.totalorder %s47, %s48
    %p60 = scmp.eq.s32.totalorder %s17, 1
    %p61 = por %p59, %p60
    %p63 = scmp.ne.s32.totalorder %s48, %s62
    %p64 = scmp.eq.s32.totalorder %s17, 0
    %p65 = por %p63, %p64
    %s67 = sadd.s32 %s66, 1
    %p70 = scmp.eq.s32.totalorder %s11, 1
    %p71 = scmp.ne.s32.totalorder %s66, %s68
    %p72 = scmp.eq.s32.totalorder %s11, 0
    %p73 = por %p71, %p72
    %p74 = scmp.ne.s32.totalorder %s66, %s68
    %p75 = scmp.eq.s32.totalorder %s16, 1
    %p76 = por %p74, %p75
    %p77 = scmp.ne.s32.totalorder %s68, %s69
    %p78 = scmp.eq.s32.totalorder %s16, 0
    %p79 = por %p77, %p78
    %p80 = scmp.ne.s32.totalorder %s68, %s69
    %p81 = scmp.eq.s32.totalorder %s17, 1
    %p82 = por %p80, %p81
    %p84 = scmp.ne.s32.totalorder %s69, %s83
    %p85 = scmp.eq.s32.totalorder %s17, 0
    %p86 = por %p84, %p85
    %s88 = sadd.s32 %s87, 1
    %p91 = scmp.eq.s32.totalorder %s11, 1
    %p92 = scmp.ne.s32.totalorder %s87, %s89
    %p93 = scmp.eq.s32.totalorder %s11, 0
    %p94 = por %p92, %p93
    %p95 = scmp.ne.s32.totalorder %s87, %s89
    %p96 = scmp.eq.s32.totalorder %s16, 1
    %p97 = por %p95, %p96
    %p98 = scmp.ne.s32.totalorder %s89, %s90
    %p99 = scmp.eq.s32.totalorder %s16, 0
    %p100 = por %p98, %p99
    %p101 = scmp.ne.s32.totalorder %s89, %s90
    %p102 = scmp.eq.s32.totalorder %s17, 1
    %p103 = por %p101, %p102
    %p105 = scmp.ne.s32.totalorder %s90, %s104
    %p106 = scmp.eq.s32.totalorder %s17, 0
    %p107 = por %p105, %p106
    %s109 = sadd.s32 %s108, 1
    %p112 = scmp.eq.s32.totalorder %s11, 1
    %p113 = scmp.ne.s32.totalorder %s108, %s110
    %p114 = scmp.eq.s32.totalorder %s11, 0
    %p115 = por %p113, %p114
    %p116 = scmp.ne.s32.totalorder %s108, %s110
    %p117 = scmp.eq.s32.totalorder %s16, 1
    %p118 = por %p116, %p117
    %p119 = scmp.ne.s32.totalorder %s110, %s111
    %p120 = scmp.eq.s32.totalorder %s16, 0
    %p121 = por %p119, %p120
    %p122 = scmp.ne.s32.totalorder %s110, %s111
    %p123 = scmp.eq.s32.totalorder %s17, 1
    %p124 = por %p122, %p123
    %p126 = scmp.ne.s32.totalorder %s111, %s125
    %p127 = scmp.eq.s32.totalorder %s17, 0
    %p128 = por %p126, %p127
    %s129 = ssub.s32 %s11, %s18
    %p130 = scmp.eq.s32.totalorder %s129, 0
    %s132 = sadd.s32 %s131, 1
    %s133 = scalar_select %p130, %s131, %s132
    %p136 = pneg %p130
    %p137 = scmp.eq.s32.totalorder %s11, 1
    %p138 = por %p136, %p137
    %p139 = scmp.ne.s32.totalorder %s131, %s134
    %p140 = scmp.eq.s32.totalorder %s11, 0
    %p141 = por %p139, %p140
    %p142 = scmp.ne.s32.totalorder %s131, %s134
    %p143 = scmp.eq.s32.totalorder %s16, 1
    %p144 = por %p142, %p143
    %p145 = scmp.ne.s32.totalorder %s134, %s135
    %p146 = scmp.eq.s32.totalorder %s16, 0
    %p147 = por %p145, %p146
    %p148 = scmp.ne.s32.totalorder %s134, %s135
    %p149 = scmp.eq.s32.totalorder %s17, 1
    %p150 = por %p148, %p149
    %p152 = scmp.ne.s32.totalorder %s135, %s151
    %p153 = scmp.eq.s32.totalorder %s17, 0
    %p154 = por %p152, %p153
    %p155 = scmp.le.s32.totalorder 1, %s11
    %p156 = scmp.lt.s32.totalorder %s11, 3
    %p157 = pnand %p155, %p156
    %p158 = pneg %p157
    // Predicated region
    $region9: #{forward.4} parent=5 // pred_check
      _
    $region10: #{forward.4} parent=5 // pred_check_branch
      %160 = sbr.rel (%p157) target = $region12
    $region11: #{forward.4} parent=5 // pred_region
      %s161 = ssub.s32 %s11, 1
      // Predicated region
      $region13: #{forward.4} parent=11 // pred_check
        %p162 = pneg %p58
      $region14: #{forward.4} parent=11 // pred_check_branch
        %164 = sbr.rel (%p162) target = $region16
      $region15: #{forward.4} parent=11 // pred_region
        _
      $region16: #{forward.4} parent=11 // pred_fallthru
        _
      // Predicated region
      $region17: #{forward.4} parent=11 // pred_check
        %p165 = pneg %p79
      $region18: #{forward.4} parent=11 // pred_check_branch
        %167 = sbr.rel (%p165) target = $region20
      $region19: #{forward.4} parent=11 // pred_region
        _
      $region20: #{forward.4} parent=11 // pred_fallthru
        _
      // Predicated region
      $region21: #{forward.4} parent=11 // pred_check
        %p168 = pneg %p100
      $region22: #{forward.4} parent=11 // pred_check_branch
        %170 = sbr.rel (%p168) target = $region24
      $region23: #{forward.4} parent=11 // pred_region
        _
      $region24: #{forward.4} parent=11 // pred_fallthru
        _
      // Predicated region
      $region25: #{forward.4} parent=11 // pred_check
        %p171 = pneg %p121
      $region26: #{forward.4} parent=11 // pred_check_branch
        %173 = sbr.rel (%p171) target = $region28
      $region27: #{forward.4} parent=11 // pred_region
        _
      $region28: #{forward.4} parent=11 // pred_fallthru
        _
    $region12: #{forward.4} parent=5 // pred_fallthru
      _
    %p174 = scmp.lt.s32.totalorder %s11, 2
    // Predicated region
    $region29: #{forward.4} parent=5 // pred_check
      %p175 = pneg %p174
    $region30: #{forward.4} parent=5 // pred_check_branch
      %177 = sbr.rel (%p175) target = $region32
    $region31: #{forward.4} parent=5 // pred_region
      // Predicated region
      $region33: #{forward.4} parent=31 // pred_check
        %p178 = pneg %p31
      $region34: #{forward.4} parent=31 // pred_check_branch
        %180 = sbr.rel (%p178) target = $region36
      $region35: #{forward.4} parent=31 // pred_region
        %s181 = smul.u32 24, %s11
        %p182 = scmp.lt.s32.totalorder %s181, 47
        %s183 = scalar_select %p182, %s181, 47
        %s184 = smul.addr %s183, 4
        %s185 = scalar_lea.vmem %s0, %s184
        %s186 = smul.u32 24, %s11
      $region36: #{forward.4} parent=31 // pred_fallthru
        _
    $region32: #{forward.4} parent=5 // pred_fallthru
      _
    %p187 = scmp.le.s32.totalorder 1, %s11
    %p188 = scmp.lt.s32.totalorder %s11, 3
    %p189 = pnand %p187, %p188
    %p190 = pneg %p189
    // Predicated region
    $region37: #{forward.4} parent=5 // pred_check
      _
    $region38: #{forward.4} parent=5 // pred_check_branch
      %192 = sbr.rel (%p189) target = $region40
    $region39: #{forward.4} parent=5 // pred_region
      %s193 = ssub.s32 %s11, 1
      %s194 = smul.u32 24, %s16
      %p195 = scmp.lt.s32.totalorder %s194, 47
      %s196 = scalar_select %p195, %s194, 47
      %s197 = smul.addr %s196, 4
      %s198 = scalar_lea.vmem %s0, %s197
      %p199 = pneg %p37
      %p200 = pneg %p34
      %p201 = pneg %p58
      %p202 = pneg %p55
      %p203 = pneg %p79
      %p204 = pneg %p76
      %p205 = pneg %p100
      %p206 = pneg %p97
      %p207 = pneg %p121
      %p208 = pneg %p118
      %p209 = pneg %p147
      %p210 = pneg %p144
      %s211 = smul.u32 24, %s16
      %p212 = scmp.lt.s32.totalorder %s211, 47
      %s213 = scalar_select %p212, %s211, 47
      %s214 = smul.addr %s213, 4
      %s215 = smul.addr %s214, 8
      %s216 = scalar_lea.vmem %s5, %s215
      %s217 = smul.u32 24, %s16
      %p218 = scmp.lt.s32.totalorder %s217, 47
      %s219 = scalar_select %p218, %s217, 47
      %s220 = smul.addr %s219, 4
      %s221 = scalar_lea.vmem %s0, %s220
      %s222 = smul.u32 24, %s16
      %s223 = smul.u32 24, %s16
      %p224 = scmp.lt.s32.totalorder %s223, 47
      %s225 = scalar_select %p224, %s223, 47
      %s226 = smul.addr %s225, 4
      %s227 = smul.addr %s226, 8
      %s228 = scalar_lea.vmem %s5, %s227
      %s229 = smul.u32 24, %s16
      %v230 = vld [vmem:[%s1] sm:$0xff]
      %v231 = vld [vmem:[%s1 + $0x8] sm:$0xff]
      %v232 = vld [vmem:[%s1 + $0x10] sm:$0xff]
      %v233 = vld [vmem:[%s1 + $0x18] sm:$0xff]
      %v234 = vld [vmem:[%s1 + $0x20] sm:$0xff]
      %v235 = vld [vmem:[%s1 + $0x28] sm:$0xff]
      %v236 = vld [vmem:[%s1 + $0x30] sm:$0xff]
      %v237 = vld [vmem:[%s1 + $0x38] sm:$0xff]
      %v238 = vld [vmem:[%s1 + $0x40] sm:$0xff]
      %v239 = vld [vmem:[%s1 + $0x48] sm:$0xff]
      %v240 = vld [vmem:[%s1 + $0x50] sm:$0xff]
      %v241 = vld [vmem:[%s1 + $0x58] sm:$0xff]
      %v242 = vld [vmem:[%s1 + $0x60] sm:$0xff]
      %v243 = vld [vmem:[%s1 + $0x68] sm:$0xff]
      %v244 = vld [vmem:[%s1 + $0x70] sm:$0xff]
      %v245 = vld [vmem:[%s1 + $0x78] sm:$0xff]
      %v246 = vld [vmem:[%s1 + $0x80] sm:$0xff]
      %v247 = vld [vmem:[%s1 + $0x88] sm:$0xff]
      %v248 = vld [vmem:[%s1 + $0x90] sm:$0xff]
      %v249 = vld [vmem:[%s1 + $0x98] sm:$0xff]
      %v250 = vld [vmem:[%s1 + $0xa0] sm:$0xff]
      %v251 = vld [vmem:[%s1 + $0xa8] sm:$0xff]
      %v252 = vld [vmem:[%s1 + $0xb0] sm:$0xff]
      %v253 = vld [vmem:[%s1 + $0xb8] sm:$0xff]
      %v254 = vld [vmem:[%s1 + $0xc0] sm:$0xff]
      %v255 = vld [vmem:[%s1 + $0xc8] sm:$0xff]
      %v256 = vld [vmem:[%s1 + $0xd0] sm:$0xff]
      %v257 = vld [vmem:[%s1 + $0xd8] sm:$0xff]
      %v258 = vld [vmem:[%s1 + $0xe0] sm:$0xff]
      %v259 = vld [vmem:[%s1 + $0xe8] sm:$0xff]
      %v260 = vld [vmem:[%s1 + $0xf0] sm:$0xff]
      %v261 = vld [vmem:[%s1 + $0xf8] sm:$0xff]
      %v262 = vld [vmem:[%s2] sm:$0xff]
      %v263 = vld [vmem:[%s3] sm:$0xff]
      %v264 = vld [vmem:[%s3 + $0x8] sm:$0xff]
      %v265 = vld [vmem:[%s3 + $0x10] sm:$0xff]
      %v266 = vld [vmem:[%s3 + $0x18] sm:$0xff]
      %v267 = vld [vmem:[%s3 + $0x20] sm:$0xff]
      %v268 = vld [vmem:[%s3 + $0x28] sm:$0xff]
      %v269 = vld [vmem:[%s3 + $0x30] sm:$0xff]
      %v270 = vld [vmem:[%s3 + $0x38] sm:$0xff]
      %v271 = vld [vmem:[%s4] sm:$0xff]
      %v272 = vld [vmem:[%s4 + $0x8] sm:$0xff]
      %v273 = vld [vmem:[%s4 + $0x10] sm:$0xff]
      %v274 = vld [vmem:[%s4 + $0x18] sm:$0xff]
      %v275 = vld [vmem:[%s4 + $0x20] sm:$0xff]
      %v276 = vld [vmem:[%s4 + $0x28] sm:$0xff]
      %v277 = vld [vmem:[%s4 + $0x30] sm:$0xff]
      %v278 = vld [vmem:[%s4 + $0x38] sm:$0xff]
      %v279 = vld [vmem:[%s4 + $0x40] sm:$0xff]
      %v280 = vld [vmem:[%s4 + $0x48] sm:$0xff]
      %v281 = vld [vmem:[%s4 + $0x50] sm:$0xff]
      %v282 = vld [vmem:[%s4 + $0x58] sm:$0xff]
      %v283 = vld [vmem:[%s4 + $0x60] sm:$0xff]
      %v284 = vld [vmem:[%s4 + $0x68] sm:$0xff]
      %v285 = vld [vmem:[%s4 + $0x70] sm:$0xff]
      %v286 = vld [vmem:[%s4 + $0x78] sm:$0xff]
      %v287 = vld [vmem:[%s4 + $0x80] sm:$0xff]
      %v288 = vld [vmem:[%s4 + $0x88] sm:$0xff]
      %v289 = vld [vmem:[%s4 + $0x90] sm:$0xff]
      %v290 = vld [vmem:[%s4 + $0x98] sm:$0xff]
      %v291 = vld [vmem:[%s4 + $0xa0] sm:$0xff]
      %v292 = vld [vmem:[%s4 + $0xa8] sm:$0xff]
      %v293 = vld [vmem:[%s4 + $0xb0] sm:$0xff]
      %v294 = vld [vmem:[%s4 + $0xb8] sm:$0xff]
      %v295 = vld [vmem:[%s4 + $0xc0] sm:$0xff]
      %v296 = vld [vmem:[%s4 + $0xc8] sm:$0xff]
      %v297 = vld [vmem:[%s4 + $0xd0] sm:$0xff]
      %v298 = vld [vmem:[%s4 + $0xd8] sm:$0xff]
      %v299 = vld [vmem:[%s4 + $0xe0] sm:$0xff]
      %v300 = vld [vmem:[%s4 + $0xe8] sm:$0xff]
      %v301 = vld [vmem:[%s4 + $0xf0] sm:$0xff]
      %v302 = vld [vmem:[%s4 + $0xf8] sm:$0xff]
      loop: start=0, step=1, limit=24
      $region41: #{forward.4} parent=39 // loop_pre_header
        _
      $region42: #{forward.4} parent=39 // loop_header
        %s304 = sphi 0, %s308
        %p305 = scmp.ge.s32.totalorder %s304, 24
      $region43: #{forward.4} parent=39 // loop_header_branch
        %307 = sbr.rel (%p305) target = $region47
      $region44: #{forward.4} parent=39 // loop_body
        %s309 = smul.u32 %s304, 4
        %s310 = scalar_lea.vmem %s221, %s309
        %v311 = vld [vmem:[%s310] sm:$0xf]
        %v313 = vcombine.high %v262, %v262
        %vm314 = vcmask 31744
        %v316 = vsel %vm314, %v311, 0
        %vm318 = vcmask 1043456
        %v319 = vsel %vm318, %v262, 0
        %v321 = vsel %vm318, %v313, 0
        %323 = vmatprep.subr.mxu0 %v321
        %324 = vmatpush1.msra.mxu0 %v319
        %325 = vmatprep.subr.mxu0 0.0
        %326 = vmatpush1.msra.mxu0 0.0
        %327 = vmatprep.subr.mxu0 0.0
        %328 = vmatpush1.msra.mxu0 0.0
        %329 = vmatprep.subr.mxu0 0.0
        %330 = vmatpush1.msra.mxu0 0.0
        %331 = vmatprep.subr.mxu0 0.0
        %332 = vmatpush1.msra.mxu0 0.0
        %333 = vmatprep.subr.mxu0 0.0
        %334 = vmatpush1.msra.mxu0 0.0
        %335 = vmatprep.subr.mxu0 0.0
        %336 = vmatpush1.msra.mxu0 0.0
        %337 = vmatprep.subr.mxu0 0.0
        %338 = vmatpush1.msra.mxu0 0.0
        %339 = vmatprep.subr.mxu0 0.0
        %340 = vmatpush1.msra.mxu0 0.0
        %341 = vmatprep.subr.mxu0 0.0
        %342 = vmatpush1.msra.mxu0 0.0
        %343 = vmatprep.subr.mxu0 0.0
        %344 = vmatpush1.msra.mxu0 0.0
        %345 = vmatprep.subr.mxu0 0.0
        %346 = vmatpush1.msra.mxu0 0.0
        %347 = vmatprep.subr.mxu0 0.0
        %348 = vmatpush1.msra.mxu0 0.0
        %349 = vmatprep.subr.mxu0 0.0
        %350 = vmatpush1.msra.mxu0 0.0
        %351 = vmatprep.subr.mxu0 0.0
        %352 = vmatpush1.msra.mxu0 0.0
        %353 = vmatprep.subr.mxu0 0.0
        %354 = vmatpush1.msra.mxu0 0.0
        %355 = vmatprep.subr.mxu0 0.0
        %356 = vmatpush1.msra.mxu0 0.0
        %357 = vmatprep.subr.mxu0 0.0
        %358 = vmatpush1.msra.mxu0 0.0
        %359 = vmatprep.subr.mxu0 0.0
        %360 = vmatpush1.msra.mxu0 0.0
        %361 = vmatprep.subr.mxu0 0.0
        %362 = vmatpush1.msra.mxu0 0.0
        %363 = vmatprep.subr.mxu0 0.0
        %364 = vmatpush1.msra.mxu0 0.0
        %365 = vmatprep.subr.mxu0 0.0
        %366 = vmatpush1.msra.mxu0 0.0
        %367 = vmatprep.subr.mxu0 0.0
        %368 = vmatpush1.msra.mxu0 0.0
        %369 = vmatprep.subr.mxu0 0.0
        %370 = vmatpush1.msra.mxu0 0.0
        %371 = vmatprep.subr.mxu0 0.0
        %372 = vmatpush1.msra.mxu0 0.0
        %373 = vmatprep.subr.mxu0 0.0
        %374 = vmatpush1.msra.mxu0 0.0
        %375 = vmatprep.subr.mxu0 0.0
        %376 = vmatpush1.msra.mxu0 0.0
        %377 = vmatprep.subr.mxu0 0.0
        %378 = vmatpush1.msra.mxu0 0.0
        %379 = vmatprep.subr.mxu0 0.0
        %380 = vmatpush1.msra.mxu0 0.0
        %381 = vmatprep.subr.mxu0 0.0
        %382 = vmatpush1.msra.mxu0 0.0
        %383 = vmatprep.subr.mxu0 0.0
        %384 = vmatpush1.msra.mxu0 0.0
        %385 = vmatprep.subr.mxu0 0.0
        %386 = vmatpush1.msra.mxu0 0.0
        %387 = vmatprep.mubr.f32.mxu0 0.0
        %388 = vmatmul.mubr.f32.gmra.mrb[0].mxu0 %v316
        %v389 = vpop.f32.mrb[0].mxu0
        %v390 = vadd.f32 0.0, %v389
        %v391 = vpop.f32.mrb[0].mxu0
        %v392 = vadd.f32 0.0, %v391
        %393 = vdwg.mxu0
        %v395 = vsel %vm314, %v230, 0
        %v398 = vsel %vm314, %v231, 0
        %v401 = vsel %vm314, %v232, 0
        %v404 = vsel %vm314, %v233, 0
        %v407 = vsel %vm314, %v234, 0
        %v410 = vsel %vm314, %v235, 0
        %v413 = vsel %vm314, %v236, 0
        %v416 = vsel %vm314, %v237, 0
        %v419 = vsel %vm314, %v238, 0
        %v422 = vsel %vm314, %v239, 0
        %v425 = vsel %vm314, %v240, 0
        %v428 = vsel %vm314, %v241, 0
        %v431 = vsel %vm314, %v242, 0
        %v434 = vsel %vm314, %v243, 0
        %v437 = vsel %vm314, %v244, 0
        %v440 = vsel %vm314, %v245, 0
        %v443 = vsel %vm314, %v246, 0
        %v446 = vsel %vm314, %v247, 0
        %v449 = vsel %vm314, %v248, 0
        %v452 = vsel %vm314, %v249, 0
        %v455 = vsel %vm314, %v250, 0
        %v458 = vsel %vm314, %v251, 0
        %v461 = vsel %vm314, %v252, 0
        %v464 = vsel %vm314, %v253, 0
        %v467 = vsel %vm314, %v254, 0
        %v470 = vsel %vm314, %v255, 0
        %v473 = vsel %vm314, %v256, 0
        %v476 = vsel %vm314, %v257, 0
        %v479 = vsel %vm314, %v258, 0
        %v482 = vsel %vm314, %v259, 0
        %v485 = vsel %vm314, %v260, 0
        %v488 = vsel %vm314, %v261, 0
        %v491 = vsel %vm318, %v390, 0
        %v494 = vsel %vm318, %v392, 0
        %496 = vmatprep.subr.mxu0 %v494
        %497 = vmatpush1.msra.mxu0 %v491
        %498 = vmatprep.subr.mxu0 0.0
        %499 = vmatpush1.msra.mxu0 0.0
        %500 = vmatprep.subr.mxu0 0.0
        %501 = vmatpush1.msra.mxu0 0.0
        %502 = vmatprep.subr.mxu0 0.0
        %503 = vmatpush1.msra.mxu0 0.0
        %504 = vmatprep.subr.mxu0 0.0
        %505 = vmatpush1.msra.mxu0 0.0
        %506 = vmatprep.subr.mxu0 0.0
        %507 = vmatpush1.msra.mxu0 0.0
        %508 = vmatprep.subr.mxu0 0.0
        %509 = vmatpush1.msra.mxu0 0.0
        %510 = vmatprep.subr.mxu0 0.0
        %511 = vmatpush1.msra.mxu0 0.0
        %512 = vmatprep.subr.mxu0 0.0
        %513 = vmatpush1.msra.mxu0 0.0
        %514 = vmatprep.subr.mxu0 0.0
        %515 = vmatpush1.msra.mxu0 0.0
        %516 = vmatprep.subr.mxu0 0.0
        %517 = vmatpush1.msra.mxu0 0.0
        %518 = vmatprep.subr.mxu0 0.0
        %519 = vmatpush1.msra.mxu0 0.0
        %520 = vmatprep.subr.mxu0 0.0
        %521 = vmatpush1.msra.mxu0 0.0
        %522 = vmatprep.subr.mxu0 0.0
        %523 = vmatpush1.msra.mxu0 0.0
        %524 = vmatprep.subr.mxu0 0.0
        %525 = vmatpush1.msra.mxu0 0.0
        %526 = vmatprep.subr.mxu0 0.0
        %527 = vmatpush1.msra.mxu0 0.0
        %528 = vmatprep.subr.mxu0 0.0
        %529 = vmatpush1.msra.mxu0 0.0
        %530 = vmatprep.subr.mxu0 0.0
        %531 = vmatpush1.msra.mxu0 0.0
        %532 = vmatprep.subr.mxu0 0.0
        %533 = vmatpush1.msra.mxu0 0.0
        %534 = vmatprep.subr.mxu0 0.0
        %535 = vmatpush1.msra.mxu0 0.0
        %536 = vmatprep.subr.mxu0 0.0
        %537 = vmatpush1.msra.mxu0 0.0
        %538 = vmatprep.subr.mxu0 0.0
        %539 = vmatpush1.msra.mxu0 0.0
        %540 = vmatprep.subr.mxu0 0.0
        %541 = vmatpush1.msra.mxu0 0.0
        %542 = vmatprep.subr.mxu0 0.0
        %543 = vmatpush1.msra.mxu0 0.0
        %544 = vmatprep.subr.mxu0 0.0
        %545 = vmatpush1.msra.mxu0 0.0
        %546 = vmatprep.subr.mxu0 0.0
        %547 = vmatpush1.msra.mxu0 0.0
        %548 = vmatprep.subr.mxu0 0.0
        %549 = vmatpush1.msra.mxu0 0.0
        %550 = vmatprep.subr.mxu0 0.0
        %551 = vmatpush1.msra.mxu0 0.0
        %552 = vmatprep.subr.mxu0 0.0
        %553 = vmatpush1.msra.mxu0 0.0
        %554 = vmatprep.subr.mxu0 0.0
        %555 = vmatpush1.msra.mxu0 0.0
        %556 = vmatprep.subr.mxu0 0.0
        %557 = vmatpush1.msra.mxu0 0.0
        %558 = vmatprep.subr.mxu0 0.0
        %559 = vmatpush1.msra.mxu0 0.0
        %560 = vmatprep.mubr.f32.mxu0 0.0
        %561 = vmatmul.mubr.f32.gmra.mrb[0].mxu0 %v395
        %v562 = vpop.f32.mrb[0].mxu0
        %v563 = vadd.f32 0.0, %v562
        %v564 = vpop.f32.mrb[0].mxu0
        %v565 = vadd.f32 0.0, %v564
        %566 = vmatprep.mubr.f32.mxu0 0.0
        %567 = vmatmul.mubr.f32.gmra.mrb[0].mxu0 %v398
        %v568 = vpop.f32.mrb[0].mxu0
        %v569 = vadd.f32 0.0, %v568
        %v570 = vpop.f32.mrb[0].mxu0
        %v571 = vadd.f32 0.0, %v570
        %572 = vmatprep.mubr.f32.mxu0 0.0
        %573 = vmatmul.mubr.f32.gmra.mrb[0].mxu0 %v401
        %v574 = vpop.f32.mrb[0].mxu0
        %v575 = vadd.f32 0.0, %v574
        %v576 = vpop.f32.mrb[0].mxu0
        %v577 = vadd.f32 0.0, %v576
        %578 = vmatprep.mubr.f32.mxu0 0.0
        %579 = vmatmul.mubr.f32.gmra.mrb[0].mxu0 %v404
        %v580 = vpop.f32.mrb[0].mxu0
        %v581 = vadd.f32 0.0, %v580
        %v582 = vpop.f32.mrb[0].mxu0
        %v583 = vadd.f32 0.0, %v582
        %584 = vmatprep.mubr.f32.mxu0 0.0
        %585 = vmatmul.mubr.f32.gmra.mrb[0].mxu0 %v407
        %v586 = vpop.f32.mrb[0].mxu0
        %v587 = vadd.f32 0.0, %v586
        %v588 = vpop.f32.mrb[0].mxu0
        %v589 = vadd.f32 0.0, %v588
        %590 = vmatprep.mubr.f32.mxu0 0.0
        %591 = vmatmul.mubr.f32.gmra.mrb[0].mxu0 %v410
        %v592 = vpop.f32.mrb[0].mxu0
        %v593 = vadd.f32 0.0, %v592
        %v594 = vpop.f32.mrb[0].mxu0
        %v595 = vadd.f32 0.0, %v594
        %596 = vmatprep.mubr.f32.mxu0 0.0
        %597 = vmatmul.mubr.f32.gmra.mrb[0].mxu0 %v413
        %v598 = vpop.f32.mrb[0].mxu0
        %v599 = vadd.f32 0.0, %v598
        %v600 = vpop.f32.mrb[0].mxu0
        %v601 = vadd.f32 0.0, %v600
        %602 = vmatprep.mubr.f32.mxu0 0.0
        %603 = vmatmul.mubr.f32.gmra.mrb[0].mxu0 %v416
        %v604 = vpop.f32.mrb[0].mxu0
        %v605 = vadd.f32 0.0, %v604
        %v606 = vpop.f32.mrb[0].mxu0
        %v607 = vadd.f32 0.0, %v606
        %608 = vmatprep.mubr.f32.mxu0 0.0
        %609 = vmatmul.mubr.f32.gmra.mrb[0].mxu0 %v419
        %v610 = vpop.f32.mrb[0].mxu0
        %v611 = vadd.f32 0.0, %v610
        %v612 = vpop.f32.mrb[0].mxu0
        %v613 = vadd.f32 0.0, %v612
        %614 = vmatprep.mubr.f32.mxu0 0.0
        %615 = vmatmul.mubr.f32.gmra.mrb[0].mxu0 %v422
        %v616 = vpop.f32.mrb[0].mxu0
        %v617 = vadd.f32 0.0, %v616
        %v618 = vpop.f32.mrb[0].mxu0
        %v619 = vadd.f32 0.0, %v618
        %620 = vmatprep.mubr.f32.mxu0 0.0
        %621 = vmatmul.mubr.f32.gmra.mrb[0].mxu0 %v425
        %v622 = vpop.f32.mrb[0].mxu0
        %v623 = vadd.f32 0.0, %v622
        %v624 = vpop.f32.mrb[0].mxu0
        %v625 = vadd.f32 0.0, %v624
        %626 = vmatprep.mubr.f32.mxu0 0.0
        %627 = vmatmul.mubr.f32.gmra.mrb[0].mxu0 %v428
        %v628 = vpop.f32.mrb[0].mxu0
        %v629 = vadd.f32 0.0, %v628
        %v630 = vpop.f32.mrb[0].mxu0
        %v631 = vadd.f32 0.0, %v630
        %632 = vmatprep.mubr.f32.mxu0 0.0
        %633 = vmatmul.mubr.f32.gmra.mrb[0].mxu0 %v431
        %v634 = vpop.f32.mrb[0].mxu0
        %v635 = vadd.f32 0.0, %v634
        %v636 = vpop.f32.mrb[0].mxu0
        %v637 = vadd.f32 0.0, %v636
        %638 = vmatprep.mubr.f32.mxu0 0.0
        %639 = vmatmul.mubr.f32.gmra.mrb[0].mxu0 %v434
        %v640 = vpop.f32.mrb[0].mxu0
        %v641 = vadd.f32 0.0, %v640
        %v642 = vpop.f32.mrb[0].mxu0
        %v643 = vadd.f32 0.0, %v642
        %644 = vmatprep.mubr.f32.mxu0 0.0
        %645 = vmatmul.mubr.f32.gmra.mrb[0].mxu0 %v437
        %v646 = vpop.f32.mrb[0].mxu0
        %v647 = vadd.f32 0.0, %v646
        %v648 = vpop.f32.mrb[0].mxu0
        %v649 = vadd.f32 0.0, %v648
        %650 = vmatprep.mubr.f32.mxu0 0.0
        %651 = vmatmul.mubr.f32.gmra.mrb[0].mxu0 %v440
        %v652 = vpop.f32.mrb[0].mxu0
        %v653 = vadd.f32 0.0, %v652
        %v654 = vpop.f32.mrb[0].mxu0
        %v655 = vadd.f32 0.0, %v654
        %656 = vmatprep.mubr.f32.mxu0 0.0
        %657 = vmatmul.mubr.f32.gmra.mrb[0].mxu0 %v443
        %v658 = vpop.f32.mrb[0].mxu0
        %v659 = vadd.f32 0.0, %v658
        %v660 = vpop.f32.mrb[0].mxu0
        %v661 = vadd.f32 0.0, %v660
        %662 = vmatprep.mubr.f32.mxu0 0.0
        %663 = vmatmul.mubr.f32.gmra.mrb[0].mxu0 %v446
        %v664 = vpop.f32.mrb[0].mxu0
        %v665 = vadd.f32 0.0, %v664
        %v666 = vpop.f32.mrb[0].mxu0
        %v667 = vadd.f32 0.0, %v666
        %668 = vmatprep.mubr.f32.mxu0 0.0
        %669 = vmatmul.mubr.f32.gmra.mrb[0].mxu0 %v449
        %v670 = vpop.f32.mrb[0].mxu0
        %v671 = vadd.f32 0.0, %v670
        %v672 = vpop.f32.mrb[0].mxu0
        %v673 = vadd.f32 0.0, %v672
        %674 = vmatprep.mubr.f32.mxu0 0.0
        %675 = vmatmul.mubr.f32.gmra.mrb[0].mxu0 %v452
        %v676 = vpop.f32.mrb[0].mxu0
        %v677 = vadd.f32 0.0, %v676
        %v678 = vpop.f32.mrb[0].mxu0
        %v679 = vadd.f32 0.0, %v678
        %680 = vmatprep.mubr.f32.mxu0 0.0
        %681 = vmatmul.mubr.f32.gmra.mrb[0].mxu0 %v455
        %v682 = vpop.f32.mrb[0].mxu0
        %v683 = vadd.f32 0.0, %v682
        %v684 = vpop.f32.mrb[0].mxu0
        %v685 = vadd.f32 0.0, %v684
        %686 = vmatprep.mubr.f32.mxu0 0.0
        %687 = vmatmul.mubr.f32.gmra.mrb[0].mxu0 %v458
        %v688 = vpop.f32.mrb[0].mxu0
        %v689 = vadd.f32 0.0, %v688
        %v690 = vpop.f32.mrb[0].mxu0
        %v691 = vadd.f32 0.0, %v690
        %692 = vmatprep.mubr.f32.mxu0 0.0
        %693 = vmatmul.mubr.f32.gmra.mrb[0].mxu0 %v461
        %v694 = vpop.f32.mrb[0].mxu0
        %v695 = vadd.f32 0.0, %v694
        %v696 = vpop.f32.mrb[0].mxu0
        %v697 = vadd.f32 0.0, %v696
        %698 = vmatprep.mubr.f32.mxu0 0.0
        %699 = vmatmul.mubr.f32.gmra.mrb[0].mxu0 %v464
        %v700 = vpop.f32.mrb[0].mxu0
        %v701 = vadd.f32 0.0, %v700
        %v702 = vpop.f32.mrb[0].mxu0
        %v703 = vadd.f32 0.0, %v702
        %704 = vmatprep.mubr.f32.mxu0 0.0
        %705 = vmatmul.mubr.f32.gmra.mrb[0].mxu0 %v467
        %v706 = vpop.f32.mrb[0].mxu0
        %v707 = vadd.f32 0.0, %v706
        %v708 = vpop.f32.mrb[0].mxu0
        %v709 = vadd.f32 0.0, %v708
        %710 = vmatprep.mubr.f32.mxu0 0.0
        %711 = vmatmul.mubr.f32.gmra.mrb[0].mxu0 %v470
        %v712 = vpop.f32.mrb[0].mxu0
        %v713 = vadd.f32 0.0, %v712
        %v714 = vpop.f32.mrb[0].mxu0
        %v715 = vadd.f32 0.0, %v714
        %716 = vmatprep.mubr.f32.mxu0 0.0
        %717 = vmatmul.mubr.f32.gmra.mrb[0].mxu0 %v473
        %v718 = vpop.f32.mrb[0].mxu0
        %v719 = vadd.f32 0.0, %v718
        %v720 = vpop.f32.mrb[0].mxu0
        %v721 = vadd.f32 0.0, %v720
        %722 = vmatprep.mubr.f32.mxu0 0.0
        %723 = vmatmul.mubr.f32.gmra.mrb[0].mxu0 %v476
        %v724 = vpop.f32.mrb[0].mxu0
        %v725 = vadd.f32 0.0, %v724
        %v726 = vpop.f32.mrb[0].mxu0
        %v727 = vadd.f32 0.0, %v726
        %728 = vmatprep.mubr.f32.mxu0 0.0
        %729 = vmatmul.mubr.f32.gmra.mrb[0].mxu0 %v479
        %v730 = vpop.f32.mrb[0].mxu0
        %v731 = vadd.f32 0.0, %v730
        %v732 = vpop.f32.mrb[0].mxu0
        %v733 = vadd.f32 0.0, %v732
        %734 = vmatprep.mubr.f32.mxu0 0.0
        %735 = vmatmul.mubr.f32.gmra.mrb[0].mxu0 %v482
        %v736 = vpop.f32.mrb[0].mxu0
        %v737 = vadd.f32 0.0, %v736
        %v738 = vpop.f32.mrb[0].mxu0
        %v739 = vadd.f32 0.0, %v738
        %740 = vmatprep.mubr.f32.mxu0 0.0
        %741 = vmatmul.mubr.f32.gmra.mrb[0].mxu0 %v485
        %v742 = vpop.f32.mrb[0].mxu0
        %v743 = vadd.f32 0.0, %v742
        %v744 = vpop.f32.mrb[0].mxu0
        %v745 = vadd.f32 0.0, %v744
        %746 = vmatprep.mubr.f32.mxu0 0.0
        %747 = vmatmul.mubr.f32.gmra.mrb[0].mxu0 %v488
        %v748 = vpop.f32.mrb[0].mxu0
        %v749 = vadd.f32 0.0, %v748
        %v750 = vpop.f32.mrb[0].mxu0
        %v751 = vadd.f32 0.0, %v750
        %752 = vdwg.mxu0
        %v753 = vtanh.pop %v563
        %v754 = vtanh.pop %v565
        %v755 = vtanh.pop %v569
        %v756 = vtanh.pop %v571
        %v757 = vtanh.pop %v575
        %v758 = vtanh.pop %v577
        %v759 = vtanh.pop %v581
        %v760 = vtanh.pop %v583
        %v761 = vtanh.pop %v587
        %v762 = vtanh.pop %v589
        %v763 = vtanh.pop %v593
        %v764 = vtanh.pop %v595
        %v765 = vtanh.pop %v599
        %v766 = vtanh.pop %v601
        %v767 = vtanh.pop %v605
        %v768 = vtanh.pop %v607
        %v769 = vtanh.pop %v611
        %v770 = vtanh.pop %v613
        %v771 = vtanh.pop %v617
        %v772 = vtanh.pop %v619
        %v773 = vtanh.pop %v623
        %v774 = vtanh.pop %v625
        %v775 = vtanh.pop %v629
        %v776 = vtanh.pop %v631
        %v777 = vtanh.pop %v635
        %v778 = vtanh.pop %v637
        %v779 = vtanh.pop %v641
        %v780 = vtanh.pop %v643
        %v781 = vtanh.pop %v647
        %v782 = vtanh.pop %v649
        %v783 = vtanh.pop %v653
        %v784 = vtanh.pop %v655
        %v785 = vtanh.pop %v659
        %v786 = vtanh.pop %v661
        %v787 = vtanh.pop %v665
        %v788 = vtanh.pop %v667
        %v789 = vtanh.pop %v671
        %v790 = vtanh.pop %v673
        %v791 = vtanh.pop %v677
        %v792 = vtanh.pop %v679
        %v793 = vtanh.pop %v683
        %v794 = vtanh.pop %v685
        %v795 = vtanh.pop %v689
        %v796 = vtanh.pop %v691
        %v797 = vtanh.pop %v695
        %v798 = vtanh.pop %v697
        %v799 = vtanh.pop %v701
        %v800 = vtanh.pop %v703
        %v801 = vtanh.pop %v707
        %v802 = vtanh.pop %v709
        %v803 = vtanh.pop %v713
        %v804 = vtanh.pop %v715
        %v805 = vtanh.pop %v719
        %v806 = vtanh.pop %v721
        %v807 = vtanh.pop %v725
        %v808 = vtanh.pop %v727
        %v809 = vtanh.pop %v731
        %v810 = vtanh.pop %v733
        %v811 = vtanh.pop %v737
        %v812 = vtanh.pop %v739
        %v813 = vtanh.pop %v743
        %v814 = vtanh.pop %v745
        %v815 = vtanh.pop %v749
        %v816 = vtanh.pop %v751
        %817 = vmatprep.subr.mxu0 %v754
        %818 = vmatpush1.msra.mxu0 %v753
        %819 = vmatprep.subr.mxu0 %v756
        %820 = vmatpush1.msra.mxu0 %v755
        %821 = vmatprep.subr.mxu0 %v758
        %822 = vmatpush1.msra.mxu0 %v757
        %823 = vmatprep.subr.mxu0 %v760
        %824 = vmatpush1.msra.mxu0 %v759
        %825 = vmatprep.subr.mxu0 %v762
        %826 = vmatpush1.msra.mxu0 %v761
        %827 = vmatprep.subr.mxu0 %v764
        %828 = vmatpush1.msra.mxu0 %v763
        %829 = vmatprep.subr.mxu0 %v766
        %830 = vmatpush1.msra.mxu0 %v765
        %831 = vmatprep.subr.mxu0 %v768
        %832 = vmatpush1.msra.mxu0 %v767
        %833 = vmatprep.subr.mxu0 %v770
        %834 = vmatpush1.msra.mxu0 %v769
        %835 = vmatprep.subr.mxu0 %v772
        %836 = vmatpush1.msra.mxu0 %v771
        %837 = vmatprep.subr.mxu0 %v774
        %838 = vmatpush1.msra.mxu0 %v773
        %839 = vmatprep.subr.mxu0 %v776
        %840 = vmatpush1.msra.mxu0 %v775
        %841 = vmatprep.subr.mxu0 %v778
        %842 = vmatpush1.msra.mxu0 %v777
        %843 = vmatprep.subr.mxu0 %v780
        %844 = vmatpush1.msra.mxu0 %v779
        %845 = vmatprep.subr.mxu0 %v782
        %846 = vmatpush1.msra.mxu0 %v781
        %847 = vmatprep.subr.mxu0 %v784
        %848 = vmatpush1.msra.mxu0 %v783
        %849 = vmatprep.subr.mxu0 %v786
        %850 = vmatpush1.msra.mxu0 %v785
        %851 = vmatprep.subr.mxu0 %v788
        %852 = vmatpush1.msra.mxu0 %v787
        %853 = vmatprep.subr.mxu0 %v790
        %854 = vmatpush1.msra.mxu0 %v789
        %855 = vmatprep.subr.mxu0 %v792
        %856 = vmatpush1.msra.mxu0 %v791
        %857 = vmatprep.subr.mxu0 %v794
        %858 = vmatpush1.msra.mxu0 %v793
        %859 = vmatprep.subr.mxu0 %v796
        %860 = vmatpush1.msra.mxu0 %v795
        %861 = vmatprep.subr.mxu0 %v798
        %862 = vmatpush1.msra.mxu0 %v797
        %863 = vmatprep.subr.mxu0 %v800
        %864 = vmatpush1.msra.mxu0 %v799
        %865 = vmatprep.subr.mxu0 %v802
        %866 = vmatpush1.msra.mxu0 %v801
        %867 = vmatprep.subr.mxu0 %v804
        %868 = vmatpush1.msra.mxu0 %v803
        %869 = vmatprep.subr.mxu0 %v806
        %870 = vmatpush1.msra.mxu0 %v805
        %871 = vmatprep.subr.mxu0 %v808
        %872 = vmatpush1.msra.mxu0 %v807
        %873 = vmatprep.subr.mxu0 %v810
        %874 = vmatpush1.msra.mxu0 %v809
        %875 = vmatprep.subr.mxu0 %v812
        %876 = vmatpush1.msra.mxu0 %v811
        %877 = vmatprep.subr.mxu0 %v814
        %878 = vmatpush1.msra.mxu0 %v813
        %879 = vmatprep.subr.mxu0 %v816
        %880 = vmatpush1.msra.mxu0 %v815
        %881 = vmatprep.mubr.f32.mxu0 %v264
        %882 = vmatmul.mubr.f32.gmra.mrb[0].mxu0 %v263
        %v883 = vpop.f32.mrb[0].mxu0
        %v884 = vadd.f32 0.0, %v883
        %v885 = vpop.f32.mrb[0].mxu0
        %v886 = vadd.f32 0.0, %v885
        %887 = vmatprep.mubr.f32.mxu0 %v266
        %888 = vmatmul.mubr.f32.gmra.mrb[0].mxu0 %v265
        %v889 = vpop.f32.mrb[0].mxu0
        %v890 = vadd.f32 0.0, %v889
        %v891 = vpop.f32.mrb[0].mxu0
        %v892 = vadd.f32 0.0, %v891
        %893 = vmatprep.mubr.f32.mxu0 %v268
        %894 = vmatmul.mubr.f32.gmra.mrb[0].mxu0 %v267
        %v895 = vpop.f32.mrb[0].mxu0
        %v896 = vadd.f32 0.0, %v895
        %v897 = vpop.f32.mrb[0].mxu0
        %v898 = vadd.f32 0.0, %v897
        %899 = vmatprep.mubr.f32.mxu0 %v270
        %900 = vmatmul.mubr.f32.gmra.mrb[0].mxu0 %v269
        %v901 = vpop.f32.mrb[0].mxu0
        %v902 = vadd.f32 0.0, %v901
        %v903 = vpop.f32.mrb[0].mxu0
        %v904 = vadd.f32 0.0, %v903
        %905 = vdwg.mxu0
        %906 = vmatprep.subr.mxu0 0.0
        %907 = vmatpush1.msra.mxu0 %v271
        %908 = vmatprep.subr.mxu0 0.0
        %909 = vmatpush1.msra.mxu0 %v272
        %910 = vmatprep.subr.mxu0 0.0
        %911 = vmatpush1.msra.mxu0 %v273
        %912 = vmatprep.subr.mxu0 0.0
        %913 = vmatpush1.msra.mxu0 %v274
        %914 = vmatprep.subr.mxu0 0.0
        %915 = vmatpush1.msra.mxu0 %v275
        %916 = vmatprep.subr.mxu0 0.0
        %917 = vmatpush1.msra.mxu0 %v276
        %918 = vmatprep.subr.mxu0 0.0
        %919 = vmatpush1.msra.mxu0 %v277
        %920 = vmatprep.subr.mxu0 0.0
        %921 = vmatpush1.msra.mxu0 %v278
        %922 = vmatprep.subr.mxu0 0.0
        %923 = vmatpush1.msra.mxu0 %v279
        %924 = vmatprep.subr.mxu0 0.0
        %925 = vmatpush1.msra.mxu0 %v280
        %926 = vmatprep.subr.mxu0 0.0
        %927 = vmatpush1.msra.mxu0 %v281
        %928 = vmatprep.subr.mxu0 0.0
        %929 = vmatpush1.msra.mxu0 %v282
        %930 = vmatprep.subr.mxu0 0.0
        %931 = vmatpush1.msra.mxu0 %v283
        %932 = vmatprep.subr.mxu0 0.0
        %933 = vmatpush1.msra.mxu0 %v284
        %934 = vmatprep.subr.mxu0 0.0
        %935 = vmatpush1.msra.mxu0 %v285
        %936 = vmatprep.subr.mxu0 0.0
        %937 = vmatpush1.msra.mxu0 %v286
        %938 = vmatprep.subr.mxu0 0.0
        %939 = vmatpush1.msra.mxu0 %v287
        %940 = vmatprep.subr.mxu0 0.0
        %941 = vmatpush1.msra.mxu0 %v288
        %942 = vmatprep.subr.mxu0 0.0
        %943 = vmatpush1.msra.mxu0 %v289
        %944 = vmatprep.subr.mxu0 0.0
        %945 = vmatpush1.msra.mxu0 %v290
        %946 = vmatprep.subr.mxu0 0.0
        %947 = vmatpush1.msra.mxu0 %v291
        %948 = vmatprep.subr.mxu0 0.0
        %949 = vmatpush1.msra.mxu0 %v292
        %950 = vmatprep.subr.mxu0 0.0
        %951 = vmatpush1.msra.mxu0 %v293
        %952 = vmatprep.subr.mxu0 0.0
        %953 = vmatpush1.msra.mxu0 %v294
        %954 = vmatprep.subr.mxu0 0.0
        %955 = vmatpush1.msra.mxu0 %v295
        %956 = vmatprep.subr.mxu0 0.0
        %957 = vmatpush1.msra.mxu0 %v296
        %958 = vmatprep.subr.mxu0 0.0
        %959 = vmatpush1.msra.mxu0 %v297
        %960 = vmatprep.subr.mxu0 0.0
        %961 = vmatpush1.msra.mxu0 %v298
        %962 = vmatprep.subr.mxu0 0.0
        %963 = vmatpush1.msra.mxu0 %v299
        %964 = vmatprep.subr.mxu0 0.0
        %965 = vmatpush1.msra.mxu0 %v300
        %966 = vmatprep.subr.mxu0 0.0
        %967 = vmatpush1.msra.mxu0 %v301
        %968 = vmatprep.subr.mxu0 0.0
        %969 = vmatpush1.msra.mxu0 %v302
        %970 = vmatprep.mubr.f32.mxu0 %v886
        %971 = vmatmul.mubr.f32.gmra.mrb[0].mxu0 %v884
        %v972 = vpop.f32.mrb[0].mxu0
        %v973 = vadd.f32 0.0, %v972
        %v974 = vpop.f32.mrb[0].mxu0
        %975 = vmatprep.mubr.f32.mxu0 %v892
        %976 = vmatmul.mubr.f32.gmra.mrb[0].mxu0 %v890
        %v977 = vpop.f32.mrb[0].mxu0
        %v978 = vadd.f32 0.0, %v977
        %v979 = vpop.f32.mrb[0].mxu0
        %980 = vmatprep.mubr.f32.mxu0 %v898
        %981 = vmatmul.mubr.f32.gmra.mrb[0].mxu0 %v896
        %v982 = vpop.f32.mrb[0].mxu0
        %v983 = vadd.f32 0.0, %v982
        %v984 = vpop.f32.mrb[0].mxu0
        %985 = vmatprep.mubr.f32.mxu0 %v904
        %986 = vmatmul.mubr.f32.gmra.mrb[0].mxu0 %v902
        %v987 = vpop.f32.mrb[0].mxu0
        %v988 = vadd.f32 0.0, %v987
        %v989 = vpop.f32.mrb[0].mxu0
        %990 = vdwg.mxu0
        %s991 = smul.u32 %s304, 32
        %s992 = scalar_lea.vmem %s228, %s991
        %vm993 = vcmask 261120
        %994 = vst.msk [vmem:[%s992] sm:$0xff] %vm993, %v973
        %995 = vst.msk [vmem:[%s992 + $0x8] sm:$0xff] %vm993, %v978
        %996 = vst.msk [vmem:[%s992 + $0x10] sm:$0xff] %vm993, %v983
        %997 = vst.msk [vmem:[%s992 + $0x18] sm:$0xff] %vm993, %v988
      $region45: #{forward.4} parent=39 // loop_footer
        %s308 = sadd.s32 1, %s304
      $region46: #{forward.4} parent=39 // loop_footer_branch
        %303 = sbr.rel target = $region42
      $region47: #{forward.4} parent=39 // loop_exit
        _
      %s998 = smul.u32 24, %s16
      %p999 = scmp.lt.s32.totalorder %s998, 47
      %s1000 = scalar_select %p999, %s998, 47
      %s1001 = smul.addr %s1000, 4
      %s1002 = smul.addr %s1001, 8
      %s1003 = scalar_lea.vmem %s5, %s1002
      // Predicated region
      $region48: #{forward.4} parent=39 // pred_check
        %p1004 = pneg %p144
      $region49: #{forward.4} parent=39 // pred_check_branch
        %1006 = sbr.rel (%p1004) target = $region51
      $region50: #{forward.4} parent=39 // pred_region
        %s1007 = smul.u32 24, %s16
      $region51: #{forward.4} parent=39 // pred_fallthru
        _
    $region40: #{forward.4} parent=5 // pred_fallthru
      _
    %p1008 = scmp.le.s32.totalorder 2, %s11
    // Predicated region
    $region52: #{forward.4} parent=5 // pred_check
      %p1009 = pneg %p1008
    $region53: #{forward.4} parent=5 // pred_check_branch
      %1011 = sbr.rel (%p1009) target = $region55
    $region54: #{forward.4} parent=5 // pred_region
      %s1012 = ssub.s32 %s11, 2
      // Predicated region
      $region56: #{forward.4} parent=54 // pred_check
        %p1013 = pneg %p150
      $region57: #{forward.4} parent=54 // pred_check_branch
        %1015 = sbr.rel (%p1013) target = $region59
      $region58: #{forward.4} parent=54 // pred_region
        %s1016 = smul.u32 24, %s17
        %p1017 = scmp.lt.s32.totalorder %s1016, 47
        %s1018 = scalar_select %p1017, %s1016, 47
        %s1019 = smul.addr %s1018, 4
        %s1020 = smul.addr %s1019, 8
        %s1021 = scalar_lea.vmem %s5, %s1020
      $region59: #{forward.4} parent=54 // pred_fallthru
        _
    $region55: #{forward.4} parent=5 // pred_fallthru
      _
  $region6: #{forward.4} parent=0 // loop_footer
    %s15 = sadd.s32 1, %s11
  $region7: #{forward.4} parent=0 // loop_footer_branch
    %10 = sbr.rel target = $region3
  $region8: #{forward.4} parent=0 // loop_exit
    _

// kernel: forward.3
$region0: #{forward.3}
  #allocation0 [shape = 'u32[]', space=smem, size = 0x4, offset = 0x4, fixed_abs, tag = 'smem constant byte address 0x4 - core index']
  #allocation1 [shape = 'u32[144,128]{1,0:T(1,128)}', space=vmem, size = 0x12000, scoped, tag = 'internal scratch']
  %s0 = inlined_call_operand.vmem [shape: f32[2,12,121], index: 0, kind: input, shape index: {}]
  %s1 = inlined_call_operand.vmem [shape: f32[8,12], index: 1, kind: input, shape index: {}]
  %s2 = inlined_call_operand.vmem [shape: f32[8,1], index: 2, kind: input, shape index: {}]
  %s3 = inlined_call_operand.vmem [shape: f32[121,16], index: 3, kind: input, shape index: {}]
  %s4 = inlined_call_operand.vmem [shape: f32[9,16,16], index: 4, kind: input, shape index: {}]
  %s5 = inlined_call_operand.vmem [shape: f32[9,8,8], index: 5, kind: input, shape index: {}]
  %s6 = inlined_call_operand.vmem [shape: f32[8,1], index: 6, kind: input, shape index: {}]
  %s7 = inlined_call_operand.vmem [shape: f32[8,1], index: 7, kind: input, shape index: {}]
  %s8 = inlined_call_operand.vmem [shape: f32[8,1], index: 8, kind: input, shape index: {}]
  %s9 = inlined_call_operand.vmem [shape: f32[24,8], index: 9, kind: input, shape index: {}]
  %s10 = inlined_call_operand.vmem [shape: f32[8,8], index: 10, kind: input, shape index: {}]
  %s11 = inlined_call_operand.vmem [shape: f32[8,1], index: 11, kind: input, shape index: {}]
  %s12 = inlined_call_operand.vmem [shape: f32[8,1], index: 12, kind: input, shape index: {}]
  %s13 = inlined_call_operand.vmem [shape: f32[8,1], index: 13, kind: input, shape index: {}]
  %s14 = inlined_call_operand.vmem [shape: f32[8,8], index: 14, kind: input, shape index: {}]
  %s15 = inlined_call_operand.vmem [shape: f32[8,1], index: 15, kind: input, shape index: {}]
  %s16 = inlined_call_operand.vmem [shape: f32[8,8], index: 16, kind: input, shape index: {}]
  %s17 = inlined_call_operand.vmem [shape: f32[8,1], index: 17, kind: input, shape index: {}]
  %s18 = inlined_call_operand.vmem [shape: f32[9,24,8], index: 18, kind: input, shape index: {}]
  %s19 = inlined_call_operand.vmem [shape: f32[9,24,8], index: 19, kind: input, shape index: {}]
  %s20 = inlined_call_operand.vmem [shape: f32[24,1], index: 20, kind: input, shape index: {}]
  %s21 = inlined_call_operand.vmem [shape: f32[2,24,16], index: 21, kind: output, shape index: {}]
  %s22 = sld [smem:[#allocation0]]
  $region117: #{forward.3} parent=0
    _
  %s24 = ssub.s32 1, %s22
  %s25 = scalar_select 0, %s24, %s22
  loop: start=0, step=1, limit=4
  $region2: #{forward.3} parent=0 // loop_pre_header
    _
  $region3: #{forward.3} parent=0 // loop_header
    %s27 = sphi 0, %s31
    %p28 = scmp.ge.s32.totalorder %s27, 4
    %s37 = sphi 0, %s39
    %s40 = sphi 0, %s37
    %s41 = sphi 0, %s40
    %s57 = sphi 0, %s41
    %s61 = sphi 0, %s61
    %s63 = sphi 0, %s61
    %s64 = sphi 0, %s63
    %s78 = sphi 0, %s64
    %s82 = sphi 0, %s82
    %s84 = sphi 0, %s82
    %s85 = sphi 0, %s84
    %s99 = sphi 0, %s85
    %s103 = sphi 0, %s103
    %s105 = sphi 0, %s103
    %s106 = sphi 0, %s105
    %s120 = sphi 0, %s106
    %s124 = sphi 0, %s124
    %s126 = sphi 0, %s124
    %s127 = sphi 0, %s126
    %s141 = sphi 0, %s127
    %s145 = sphi 0, %s145
    %s147 = sphi 0, %s145
    %s148 = sphi 0, %s147
    %s162 = sphi 0, %s148
    %s166 = sphi 0, %s166
    %s168 = sphi 0, %s166
    %s169 = sphi 0, %s168
    %s183 = sphi 0, %s169
    %s187 = sphi 0, %s187
    %s189 = sphi 0, %s187
    %s190 = sphi 0, %s189
    %s204 = sphi 0, %s190
    %s208 = sphi 0, %s208
    %s210 = sphi 0, %s208
    %s211 = sphi 0, %s210
    %s225 = sphi 0, %s211
    %s229 = sphi 0, %s229
    %s231 = sphi 0, %s229
    %s232 = sphi 0, %s231
    %s246 = sphi 0, %s232
    %s250 = sphi 0, %s250
    %s252 = sphi 0, %s250
    %s253 = sphi 0, %s252
    %s267 = sphi 0, %s253
    %s271 = sphi 0, %s271
    %s273 = sphi 0, %s271
    %s274 = sphi 0, %s273
    %s288 = sphi 0, %s274
    %s292 = sphi 0, %s292
    %s294 = sphi 0, %s292
    %s295 = sphi 0, %s294
    %s309 = sphi 0, %s295
    %s313 = sphi 0, %s313
    %s315 = sphi 0, %s313
    %s316 = sphi 0, %s315
    %s330 = sphi 0, %s316
    %s334 = sphi 0, %s334
    %s336 = sphi 0, %s334
    %s337 = sphi 0, %s336
    %s351 = sphi 0, %s337
    %s355 = sphi 0, %s355
    %s357 = sphi 0, %s355
    %s358 = sphi 0, %s357
    %s372 = sphi 0, %s358
    %s376 = sphi 0, %s376
    %s378 = sphi 0, %s376
    %s379 = sphi 0, %s378
    %s393 = sphi 0, %s379
    %s397 = sphi 0, %s397
    %s399 = sphi 0, %s397
    %s400 = sphi 0, %s399
    %s414 = sphi 0, %s400
    %s418 = sphi 0, %s418
    %s420 = sphi 0, %s418
    %s421 = sphi 0, %s420
    %s435 = sphi 0, %s421
    %s439 = sphi 0, %s439
    %s441 = sphi 0, %s439
    %s442 = sphi 0, %s441
    %s456 = sphi 0, %s442
    %s460 = sphi 0, %s460
    %s462 = sphi 0, %s460
    %s463 = sphi 0, %s462
    %s477 = sphi 0, %s463
    %s483 = sphi 0, %s485
    %s486 = sphi 0, %s483
    %s487 = sphi 0, %s486
    %s503 = sphi 0, %s487
  $region4: #{forward.3} parent=0 // loop_header_branch
    %30 = sbr.rel (%p28) target = $region8
  $region5: #{forward.3} parent=0 // loop_body
    %s32 = ssub.s32 %s27, 1
    %s33 = ssub.s32 %s27, 2
    %s34 = sadd.s32 %s27, 1
    %s35 = ssub.s32 %s27, %s34
    %p36 = scmp.eq.s32.totalorder %s35, 0
    %s38 = sadd.s32 %s37, 1
    %s39 = scalar_select %p36, %s37, %s38
    %p42 = pneg %p36
    %p43 = scmp.eq.s32.totalorder %s27, 1
    %p44 = por %p42, %p43
    %p45 = scmp.ne.s32.totalorder %s37, %s40
    %p46 = scmp.eq.s32.totalorder %s27, 0
    %p47 = por %p45, %p46
    %p48 = scmp.ne.s32.totalorder %s37, %s40
    %p49 = scmp.eq.s32.totalorder %s32, 1
    %p50 = por %p48, %p49
    %p51 = scmp.ne.s32.totalorder %s40, %s41
    %p52 = scmp.eq.s32.totalorder %s32, 0
    %p53 = por %p51, %p52
    %p54 = scmp.ne.s32.totalorder %s40, %s41
    %p55 = scmp.eq.s32.totalorder %s33, 1
    %p56 = por %p54, %p55
    %p58 = scmp.ne.s32.totalorder %s41, %s57
    %p59 = scmp.eq.s32.totalorder %s33, 0
    %p60 = por %p58, %p59
    %s62 = sadd.s32 %s61, 1
    %p65 = scmp.eq.s32.totalorder %s27, 1
    %p66 = scmp.ne.s32.totalorder %s61, %s63
    %p67 = scmp.eq.s32.totalorder %s27, 0
    %p68 = por %p66, %p67
    %p69 = scmp.ne.s32.totalorder %s61, %s63
    %p70 = scmp.eq.s32.totalorder %s32, 1
    %p71 = por %p69, %p70
    %p72 = scmp.ne.s32.totalorder %s63, %s64
    %p73 = scmp.eq.s32.totalorder %s32, 0
    %p74 = por %p72, %p73
    %p75 = scmp.ne.s32.totalorder %s63, %s64
    %p76 = scmp.eq.s32.totalorder %s33, 1
    %p77 = por %p75, %p76
    %p79 = scmp.ne.s32.totalorder %s64, %s78
    %p80 = scmp.eq.s32.totalorder %s33, 0
    %p81 = por %p79, %p80
    %s83 = sadd.s32 %s82, 1
    %p86 = scmp.eq.s32.totalorder %s27, 1
    %p87 = scmp.ne.s32.totalorder %s82, %s84
    %p88 = scmp.eq.s32.totalorder %s27, 0
    %p89 = por %p87, %p88
    %p90 = scmp.ne.s32.totalorder %s82, %s84
    %p91 = scmp.eq.s32.totalorder %s32, 1
    %p92 = por %p90, %p91
    %p93 = scmp.ne.s32.totalorder %s84, %s85
    %p94 = scmp.eq.s32.totalorder %s32, 0
    %p95 = por %p93, %p94
    %p96 = scmp.ne.s32.totalorder %s84, %s85
    %p97 = scmp.eq.s32.totalorder %s33, 1
    %p98 = por %p96, %p97
    %p100 = scmp.ne.s32.totalorder %s85, %s99
    %p101 = scmp.eq.s32.totalorder %s33, 0
    %p102 = por %p100, %p101
    %s104 = sadd.s32 %s103, 1
    %p107 = scmp.eq.s32.totalorder %s27, 1
    %p108 = scmp.ne.s32.totalorder %s103, %s105
    %p109 = scmp.eq.s32.totalorder %s27, 0
    %p110 = por %p108, %p109
    %p111 = scmp.ne.s32.totalorder %s103, %s105
    %p112 = scmp.eq.s32.totalorder %s32, 1
    %p113 = por %p111, %p112
    %p114 = scmp.ne.s32.totalorder %s105, %s106
    %p115 = scmp.eq.s32.totalorder %s32, 0
    %p116 = por %p114, %p115
    %p117 = scmp.ne.s32.totalorder %s105, %s106
    %p118 = scmp.eq.s32.totalorder %s33, 1
    %p119 = por %p117, %p118
    %p121 = scmp.ne.s32.totalorder %s106, %s120
    %p122 = scmp.eq.s32.totalorder %s33, 0
    %p123 = por %p121, %p122
    %s125 = sadd.s32 %s124, 1
    %p128 = scmp.eq.s32.totalorder %s27, 1
    %p129 = scmp.ne.s32.totalorder %s124, %s126
    %p130 = scmp.eq.s32.totalorder %s27, 0
    %p131 = por %p129, %p130
    %p132 = scmp.ne.s32.totalorder %s124, %s126
    %p133 = scmp.eq.s32.totalorder %s32, 1
    %p134 = por %p132, %p133
    %p135 = scmp.ne.s32.totalorder %s126, %s127
    %p136 = scmp.eq.s32.totalorder %s32, 0
    %p137 = por %p135, %p136
    %p138 = scmp.ne.s32.totalorder %s126, %s127
    %p139 = scmp.eq.s32.totalorder %s33, 1
    %p140 = por %p138, %p139
    %p142 = scmp.ne.s32.totalorder %s127, %s141
    %p143 = scmp.eq.s32.totalorder %s33, 0
    %p144 = por %p142, %p143
    %s146 = sadd.s32 %s145, 1
    %p149 = scmp.eq.s32.totalorder %s27, 1
    %p150 = scmp.ne.s32.totalorder %s145, %s147
    %p151 = scmp.eq.s32.totalorder %s27, 0
    %p152 = por %p150, %p151
    %p153 = scmp.ne.s32.totalorder %s145, %s147
    %p154 = scmp.eq.s32.totalorder %s32, 1
    %p155 = por %p153, %p154
    %p156 = scmp.ne.s32.totalorder %s147, %s148
    %p157 = scmp.eq.s32.totalorder %s32, 0
    %p158 = por %p156, %p157
    %p159 = scmp.ne.s32.totalorder %s147, %s148
    %p160 = scmp.eq.s32.totalorder %s33, 1
    %p161 = por %p159, %p160
    %p163 = scmp.ne.s32.totalorder %s148, %s162
    %p164 = scmp.eq.s32.totalorder %s33, 0
    %p165 = por %p163, %p164
    %s167 = sadd.s32 %s166, 1
    %p170 = scmp.eq.s32.totalorder %s27, 1
    %p171 = scmp.ne.s32.totalorder %s166, %s168
    %p172 = scmp.eq.s32.totalorder %s27, 0
    %p173 = por %p171, %p172
    %p174 = scmp.ne.s32.totalorder %s166, %s168
    %p175 = scmp.eq.s32.totalorder %s32, 1
    %p176 = por %p174, %p175
    %p177 = scmp.ne.s32.totalorder %s168, %s169
    %p178 = scmp.eq.s32.totalorder %s32, 0
    %p179 = por %p177, %p178
    %p180 = scmp.ne.s32.totalorder %s168, %s169
    %p181 = scmp.eq.s32.totalorder %s33, 1
    %p182 = por %p180, %p181
    %p184 = scmp.ne.s32.totalorder %s169, %s183
    %p185 = scmp.eq.s32.totalorder %s33, 0
    %p186 = por %p184, %p185
    %s188 = sadd.s32 %s187, 1
    %p191 = scmp.eq.s32.totalorder %s27, 1
    %p192 = scmp.ne.s32.totalorder %s187, %s189
    %p193 = scmp.eq.s32.totalorder %s27, 0
    %p194 = por %p192, %p193
    %p195 = scmp.ne.s32.totalorder %s187, %s189
    %p196 = scmp.eq.s32.totalorder %s32, 1
    %p197 = por %p195, %p196
    %p198 = scmp.ne.s32.totalorder %s189, %s190
    %p199 = scmp.eq.s32.totalorder %s32, 0
    %p200 = por %p198, %p199
    %p201 = scmp.ne.s32.totalorder %s189, %s190
    %p202 = scmp.eq.s32.totalorder %s33, 1
    %p203 = por %p201, %p202
    %p205 = scmp.ne.s32.totalorder %s190, %s204
    %p206 = scmp.eq.s32.totalorder %s33, 0
    %p207 = por %p205, %p206
    %s209 = sadd.s32 %s208, 1
    %p212 = scmp.eq.s32.totalorder %s27, 1
    %p213 = scmp.ne.s32.totalorder %s208, %s210
    %p214 = scmp.eq.s32.totalorder %s27, 0
    %p215 = por %p213, %p214
    %p216 = scmp.ne.s32.totalorder %s208, %s210
    %p217 = scmp.eq.s32.totalorder %s32, 1
    %p218 = por %p216, %p217
    %p219 = scmp.ne.s32.totalorder %s210, %s211
    %p220 = scmp.eq.s32.totalorder %s32, 0
    %p221 = por %p219, %p220
    %p222 = scmp.ne.s32.totalorder %s210, %s211
    %p223 = scmp.eq.s32.totalorder %s33, 1
    %p224 = por %p222, %p223
    %p226 = scmp.ne.s32.totalorder %s211, %s225
    %p227 = scmp.eq.s32.totalorder %s33, 0
    %p228 = por %p226, %p227
    %s230 = sadd.s32 %s229, 1
    %p233 = scmp.eq.s32.totalorder %s27, 1
    %p234 = scmp.ne.s32.totalorder %s229, %s231
    %p235 = scmp.eq.s32.totalorder %s27, 0
    %p236 = por %p234, %p235
    %p237 = scmp.ne.s32.totalorder %s229, %s231
    %p238 = scmp.eq.s32.totalorder %s32, 1
    %p239 = por %p237, %p238
    %p240 = scmp.ne.s32.totalorder %s231, %s232
    %p241 = scmp.eq.s32.totalorder %s32, 0
    %p242 = por %p240, %p241
    %p243 = scmp.ne.s32.totalorder %s231, %s232
    %p244 = scmp.eq.s32.totalorder %s33, 1
    %p245 = por %p243, %p244
    %p247 = scmp.ne.s32.totalorder %s232, %s246
    %p248 = scmp.eq.s32.totalorder %s33, 0
    %p249 = por %p247, %p248
    %s251 = sadd.s32 %s250, 1
    %p254 = scmp.eq.s32.totalorder %s27, 1
    %p255 = scmp.ne.s32.totalorder %s250, %s252
    %p256 = scmp.eq.s32.totalorder %s27, 0
    %p257 = por %p255, %p256
    %p258 = scmp.ne.s32.totalorder %s250, %s252
    %p259 = scmp.eq.s32.totalorder %s32, 1
    %p260 = por %p258, %p259
    %p261 = scmp.ne.s32.totalorder %s252, %s253
    %p262 = scmp.eq.s32.totalorder %s32, 0
    %p263 = por %p261, %p262
    %p264 = scmp.ne.s32.totalorder %s252, %s253
    %p265 = scmp.eq.s32.totalorder %s33, 1
    %p266 = por %p264, %p265
    %p268 = scmp.ne.s32.totalorder %s253, %s267
    %p269 = scmp.eq.s32.totalorder %s33, 0
    %p270 = por %p268, %p269
    %s272 = sadd.s32 %s271, 1
    %p275 = scmp.eq.s32.totalorder %s27, 1
    %p276 = scmp.ne.s32.totalorder %s271, %s273
    %p277 = scmp.eq.s32.totalorder %s27, 0
    %p278 = por %p276, %p277
    %p279 = scmp.ne.s32.totalorder %s271, %s273
    %p280 = scmp.eq.s32.totalorder %s32, 1
    %p281 = por %p279, %p280
    %p282 = scmp.ne.s32.totalorder %s273, %s274
    %p283 = scmp.eq.s32.totalorder %s32, 0
    %p284 = por %p282, %p283
    %p285 = scmp.ne.s32.totalorder %s273, %s274
    %p286 = scmp.eq.s32.totalorder %s33, 1
    %p287 = por %p285, %p286
    %p289 = scmp.ne.s32.totalorder %s274, %s288
    %p290 = scmp.eq.s32.totalorder %s33, 0
    %p291 = por %p289, %p290
    %s293 = sadd.s32 %s292, 1
    %p296 = scmp.eq.s32.totalorder %s27, 1
    %p297 = scmp.ne.s32.totalorder %s292, %s294
    %p298 = scmp.eq.s32.totalorder %s27, 0
    %p299 = por %p297, %p298
    %p300 = scmp.ne.s32.totalorder %s292, %s294
    %p301 = scmp.eq.s32.totalorder %s32, 1
    %p302 = por %p300, %p301
    %p303 = scmp.ne.s32.totalorder %s294, %s295
    %p304 = scmp.eq.s32.totalorder %s32, 0
    %p305 = por %p303, %p304
    %p306 = scmp.ne.s32.totalorder %s294, %s295
    %p307 = scmp.eq.s32.totalorder %s33, 1
    %p308 = por %p306, %p307
    %p310 = scmp.ne.s32.totalorder %s295, %s309
    %p311 = scmp.eq.s32.totalorder %s33, 0
    %p312 = por %p310, %p311
    %s314 = sadd.s32 %s313, 1
    %p317 = scmp.eq.s32.totalorder %s27, 1
    %p318 = scmp.ne.s32.totalorder %s313, %s315
    %p319 = scmp.eq.s32.totalorder %s27, 0
    %p320 = por %p318, %p319
    %p321 = scmp.ne.s32.totalorder %s313, %s315
    %p322 = scmp.eq.s32.totalorder %s32, 1
    %p323 = por %p321, %p322
    %p324 = scmp.ne.s32.totalorder %s315, %s316
    %p325 = scmp.eq.s32.totalorder %s32, 0
    %p326 = por %p324, %p325
    %p327 = scmp.ne.s32.totalorder %s315, %s316
    %p328 = scmp.eq.s32.totalorder %s33, 1
    %p329 = por %p327, %p328
    %p331 = scmp.ne.s32.totalorder %s316, %s330
    %p332 = scmp.eq.s32.totalorder %s33, 0
    %p333 = por %p331, %p332
    %s335 = sadd.s32 %s334, 1
    %p338 = scmp.eq.s32.totalorder %s27, 1
    %p339 = scmp.ne.s32.totalorder %s334, %s336
    %p340 = scmp.eq.s32.totalorder %s27, 0
    %p341 = por %p339, %p340
    %p342 = scmp.ne.s32.totalorder %s334, %s336
    %p343 = scmp.eq.s32.totalorder %s32, 1
    %p344 = por %p342, %p343
    %p345 = scmp.ne.s32.totalorder %s336, %s337
    %p346 = scmp.eq.s32.totalorder %s32, 0
    %p347 = por %p345, %p346
    %p348 = scmp.ne.s32.totalorder %s336, %s337
    %p349 = scmp.eq.s32.totalorder %s33, 1
    %p350 = por %p348, %p349
    %p352 = scmp.ne.s32.totalorder %s337, %s351
    %p353 = scmp.eq.s32.totalorder %s33, 0
    %p354 = por %p352, %p353
    %s356 = sadd.s32 %s355, 1
    %p359 = scmp.eq.s32.totalorder %s27, 1
    %p360 = scmp.ne.s32.totalorder %s355, %s357
    %p361 = scmp.eq.s32.totalorder %s27, 0
    %p362 = por %p360, %p361
    %p363 = scmp.ne.s32.totalorder %s355, %s357
    %p364 = scmp.eq.s32.totalorder %s32, 1
    %p365 = por %p363, %p364
    %p366 = scmp.ne.s32.totalorder %s357, %s358
    %p367 = scmp.eq.s32.totalorder %s32, 0
    %p368 = por %p366, %p367
    %p369 = scmp.ne.s32.totalorder %s357, %s358
    %p370 = scmp.eq.s32.totalorder %s33, 1
    %p371 = por %p369, %p370
    %p373 = scmp.ne.s32.totalorder %s358, %s372
    %p374 = scmp.eq.s32.totalorder %s33, 0
    %p375 = por %p373, %p374
    %s377 = sadd.s32 %s376, 1
    %p380 = scmp.eq.s32.totalorder %s27, 1
    %p381 = scmp.ne.s32.totalorder %s376, %s378
    %p382 = scmp.eq.s32.totalorder %s27, 0
    %p383 = por %p381, %p382
    %p384 = scmp.ne.s32.totalorder %s376, %s378
    %p385 = scmp.eq.s32.totalorder %s32, 1
    %p386 = por %p384, %p385
    %p387 = scmp.ne.s32.totalorder %s378, %s379
    %p388 = scmp.eq.s32.totalorder %s32, 0
    %p389 = por %p387, %p388
    %p390 = scmp.ne.s32.totalorder %s378, %s379
    %p391 = scmp.eq.s32.totalorder %s33, 1
    %p392 = por %p390, %p391
    %p394 = scmp.ne.s32.totalorder %s379, %s393
    %p395 = scmp.eq.s32.totalorder %s33, 0
    %p396 = por %p394, %p395
    %s398 = sadd.s32 %s397, 1
    %p401 = scmp.eq.s32.totalorder %s27, 1
    %p402 = scmp.ne.s32.totalorder %s397, %s399
    %p403 = scmp.eq.s32.totalorder %s27, 0
    %p404 = por %p402, %p403
    %p405 = scmp.ne.s32.totalorder %s397, %s399
    %p406 = scmp.eq.s32.totalorder %s32, 1
    %p407 = por %p405, %p406
    %p408 = scmp.ne.s32.totalorder %s399, %s400
    %p409 = scmp.eq.s32.totalorder %s32, 0
    %p410 = por %p408, %p409
    %p411 = scmp.ne.s32.totalorder %s399, %s400
    %p412 = scmp.eq.s32.totalorder %s33, 1
    %p413 = por %p411, %p412
    %p415 = scmp.ne.s32.totalorder %s400, %s414
    %p416 = scmp.eq.s32.totalorder %s33, 0
    %p417 = por %p415, %p416
    %s419 = sadd.s32 %s418, 1
    %p422 = scmp.eq.s32.totalorder %s27, 1
    %p423 = scmp.ne.s32.totalorder %s418, %s420
    %p424 = scmp.eq.s32.totalorder %s27, 0
    %p425 = por %p423, %p424
    %p426 = scmp.ne.s32.totalorder %s418, %s420
    %p427 = scmp.eq.s32.totalorder %s32, 1
    %p428 = por %p426, %p427
    %p429 = scmp.ne.s32.totalorder %s420, %s421
    %p430 = scmp.eq.s32.totalorder %s32, 0
    %p431 = por %p429, %p430
    %p432 = scmp.ne.s32.totalorder %s420, %s421
    %p433 = scmp.eq.s32.totalorder %s33, 1
    %p434 = por %p432, %p433
    %p436 = scmp.ne.s32.totalorder %s421, %s435
    %p437 = scmp.eq.s32.totalorder %s33, 0
    %p438 = por %p436, %p437
    %s440 = sadd.s32 %s439, 1
    %p443 = scmp.eq.s32.totalorder %s27, 1
    %p444 = scmp.ne.s32.totalorder %s439, %s441
    %p445 = scmp.eq.s32.totalorder %s27, 0
    %p446 = por %p444, %p445
    %p447 = scmp.ne.s32.totalorder %s439, %s441
    %p448 = scmp.eq.s32.totalorder %s32, 1
    %p449 = por %p447, %p448
    %p450 = scmp.ne.s32.totalorder %s441, %s442
    %p451 = scmp.eq.s32.totalorder %s32, 0
    %p452 = por %p450, %p451
    %p453 = scmp.ne.s32.totalorder %s441, %s442
    %p454 = scmp.eq.s32.totalorder %s33, 1
    %p455 = por %p453, %p454
    %p457 = scmp.ne.s32.totalorder %s442, %s456
    %p458 = scmp.eq.s32.totalorder %s33, 0
    %p459 = por %p457, %p458
    %s461 = sadd.s32 %s460, 1
    %p464 = scmp.eq.s32.totalorder %s27, 1
    %p465 = scmp.ne.s32.totalorder %s460, %s462
    %p466 = scmp.eq.s32.totalorder %s27, 0
    %p467 = por %p465, %p466
    %p468 = scmp.ne.s32.totalorder %s460, %s462
    %p469 = scmp.eq.s32.totalorder %s32, 1
    %p470 = por %p468, %p469
    %p471 = scmp.ne.s32.totalorder %s462, %s463
    %p472 = scmp.eq.s32.totalorder %s32, 0
    %p473 = por %p471, %p472
    %p474 = scmp.ne.s32.totalorder %s462, %s463
    %p475 = scmp.eq.s32.totalorder %s33, 1
    %p476 = por %p474, %p475
    %p478 = scmp.ne.s32.totalorder %s463, %s477
    %p479 = scmp.eq.s32.totalorder %s33, 0
    %p480 = por %p478, %p479
    %s481 = ssub.s32 %s27, %s34
    %p482 = scmp.eq.s32.totalorder %s481, 0
    %s484 = sadd.s32 %s483, 1
    %s485 = scalar_select %p482, %s483, %s484
    %p488 = pneg %p482
    %p489 = scmp.eq.s32.totalorder %s27, 1
    %p490 = por %p488, %p489
    %p491 = scmp.ne.s32.totalorder %s483, %s486
    %p492 = scmp.eq.s32.totalorder %s27, 0
    %p493 = por %p491, %p492
    %p494 = scmp.ne.s32.totalorder %s483, %s486
    %p495 = scmp.eq.s32.totalorder %s32, 1
    %p496 = por %p494, %p495
    %p497 = scmp.ne.s32.totalorder %s486, %s487
    %p498 = scmp.eq.s32.totalorder %s32, 0
    %p499 = por %p497, %p498
    %p500 = scmp.ne.s32.totalorder %s486, %s487
    %p501 = scmp.eq.s32.totalorder %s33, 1
    %p502 = por %p500, %p501
    %p504 = scmp.ne.s32.totalorder %s487, %s503
    %p505 = scmp.eq.s32.totalorder %s33, 0
    %p506 = por %p504, %p505
    %p507 = scmp.le.s32.totalorder 1, %s27
    %p508 = scmp.lt.s32.totalorder %s27, 3
    %p509 = pnand %p507, %p508
    %p510 = pneg %p509
    // Predicated region
    $region9: #{forward.3} parent=5 // pred_check
      _
    $region10: #{forward.3} parent=5 // pred_check_branch
      %512 = sbr.rel (%p509) target = $region12
    $region11: #{forward.3} parent=5 // pred_region
      %s513 = ssub.s32 %s27, 1
      // Predicated region
      $region13: #{forward.3} parent=11 // pred_check
        %p514 = pneg %p74
      $region14: #{forward.3} parent=11 // pred_check_branch
        %516 = sbr.rel (%p514) target = $region16
      $region15: #{forward.3} parent=11 // pred_region
        _
      $region16: #{forward.3} parent=11 // pred_fallthru
        _
      // Predicated region
      $region17: #{forward.3} parent=11 // pred_check
        %p517 = pneg %p95
      $region18: #{forward.3} parent=11 // pred_check_branch
        %519 = sbr.rel (%p517) target = $region20
      $region19: #{forward.3} parent=11 // pred_region
        _
      $region20: #{forward.3} parent=11 // pred_fallthru
        _
      // Predicated region
      $region21: #{forward.3} parent=11 // pred_check
        %p520 = pneg %p116
      $region22: #{forward.3} parent=11 // pred_check_branch
        %522 = sbr.rel (%p520) target = $region24
      $region23: #{forward.3} parent=11 // pred_region
        _
      $region24: #{forward.3} parent=11 // pred_fallthru
        _
      // Predicated region
      $region25: #{forward.3} parent=11 // pred_check
        %p523 = pneg %p137
      $region26: #{forward.3} parent=11 // pred_check_branch
        %525 = sbr.rel (%p523) target = $region28
      $region27: #{forward.3} parent=11 // pred_region
        _
      $region28: #{forward.3} parent=11 // pred_fallthru
        _
      // Predicated region
      $region29: #{forward.3} parent=11 // pred_check
        %p526 = pneg %p158
      $region30: #{forward.3} parent=11 // pred_check_branch
        %528 = sbr.rel (%p526) target = $region32
      $region31: #{forward.3} parent=11 // pred_region
        _
      $region32: #{forward.3} parent=11 // pred_fallthru
        _
      // Predicated region
      $region33: #{forward.3} parent=11 // pred_check
        %p529 = pneg %p179
      $region34: #{forward.3} parent=11 // pred_check_branch
        %531 = sbr.rel (%p529) target = $region36
      $region35: #{forward.3} parent=11 // pred_region
        _
      $region36: #{forward.3} parent=11 // pred_fallthru
        _
      // Predicated region
      $region37: #{forward.3} parent=11 // pred_check
        %p532 = pneg %p200
      $region38: #{forward.3} parent=11 // pred_check_branch
        %534 = sbr.rel (%p532) target = $region40
      $region39: #{forward.3} parent=11 // pred_region
        _
      $region40: #{forward.3} parent=11 // pred_fallthru
        _
      // Predicated region
      $region41: #{forward.3} parent=11 // pred_check
        %p535 = pneg %p221
      $region42: #{forward.3} parent=11 // pred_check_branch
        %537 = sbr.rel (%p535) target = $region44
      $region43: #{forward.3} parent=11 // pred_region
        _
      $region44: #{forward.3} parent=11 // pred_fallthru
        _
      // Predicated region
      $region45: #{forward.3} parent=11 // pred_check
        %p538 = pneg %p242
      $region46: #{forward.3} parent=11 // pred_check_branch
        %540 = sbr.rel (%p538) target = $region48
      $region47: #{forward.3} parent=11 // pred_region
        _
      $region48: #{forward.3} parent=11 // pred_fallthru
        _
      // Predicated region
      $region49: #{forward.3} parent=11 // pred_check
        %p541 = pneg %p263
      $region50: #{forward.3} parent=11 // pred_check_branch
        %543 = sbr.rel (%p541) target = $region52
      $region51: #{forward.3} parent=11 // pred_region
        _
      $region52: #{forward.3} parent=11 // pred_fallthru
        _
      // Predicated region
      $region53: #{forward.3} parent=11 // pred_check
        %p544 = pneg %p284
      $region54: #{forward.3} parent=11 // pred_check_branch
        %546 = sbr.rel (%p544) target = $region56
      $region55: #{forward.3} parent=11 // pred_region
        _
      $region56: #{forward.3} parent=11 // pred_fallthru
        _
      // Predicated region
      $region57: #{forward.3} parent=11 // pred_check
        %p547 = pneg %p305
      $region58: #{forward.3} parent=11 // pred_check_branch
        %549 = sbr.rel (%p547) target = $region60
      $region59: #{forward.3} parent=11 // pred_region
        _
      $region60: #{forward.3} parent=11 // pred_fallthru
        _
      // Predicated region
      $region61: #{forward.3} parent=11 // pred_check
        %p550 = pneg %p326
      $region62: #{forward.3} parent=11 // pred_check_branch
        %552 = sbr.rel (%p550) target = $region64
      $region63: #{forward.3} parent=11 // pred_region
        _
      $region64: #{forward.3} parent=11 // pred_fallthru
        _
      // Predicated region
      $region65: #{forward.3} parent=11 // pred_check
        %p553 = pneg %p347
      $region66: #{forward.3} parent=11 // pred_check_branch
        %555 = sbr.rel (%p553) target = $region68
      $region67: #{forward.3} parent=11 // pred_region
        _
      $region68: #{forward.3} parent=11 // pred_fallthru
        _
      // Predicated region
      $region69: #{forward.3} parent=11 // pred_check
        %p556 = pneg %p368
      $region70: #{forward.3} parent=11 // pred_check_branch
        %558 = sbr.rel (%p556) target = $region72
      $region71: #{forward.3} parent=11 // pred_region
        _
      $region72: #{forward.3} parent=11 // pred_fallthru
        _
      // Predicated region
      $region73: #{forward.3} parent=11 // pred_check
        %p559 = pneg %p389
      $region74: #{forward.3} parent=11 // pred_check_branch
        %561 = sbr.rel (%p559) target = $region76
      $region75: #{forward.3} parent=11 // pred_region
        _
      $region76: #{forward.3} parent=11 // pred_fallthru
        _
      // Predicated region
      $region77: #{forward.3} parent=11 // pred_check
        %p562 = pneg %p410
      $region78: #{forward.3} parent=11 // pred_check_branch
        %564 = sbr.rel (%p562) target = $region80
      $region79: #{forward.3} parent=11 // pred_region
        _
      $region80: #{forward.3} parent=11 // pred_fallthru
        _
      // Predicated region
      $region81: #{forward.3} parent=11 // pred_check
        %p565 = pneg %p431
      $region82: #{forward.3} parent=11 // pred_check_branch
        %567 = sbr.rel (%p565) target = $region84
      $region83: #{forward.3} parent=11 // pred_region
        _
      $region84: #{forward.3} parent=11 // pred_fallthru
        _
      // Predicated region
      $region85: #{forward.3} parent=11 // pred_check
        %p568 = pneg %p452
      $region86: #{forward.3} parent=11 // pred_check_branch
        %570 = sbr.rel (%p568) target = $region88
      $region87: #{forward.3} parent=11 // pred_region
        _
      $region88: #{forward.3} parent=11 // pred_fallthru
        _
      // Predicated region
      $region89: #{forward.3} parent=11 // pred_check
        %p571 = pneg %p473
      $region90: #{forward.3} parent=11 // pred_check_branch
        %573 = sbr.rel (%p571) target = $region92
      $region91: #{forward.3} parent=11 // pred_region
        _
      $region92: #{forward.3} parent=11 // pred_fallthru
        _
    $region12: #{forward.3} parent=5 // pred_fallthru
      _
    %p574 = scmp.lt.s32.totalorder %s27, 2
    // Predicated region
    $region93: #{forward.3} parent=5 // pred_check
      %p575 = pneg %p574
    $region94: #{forward.3} parent=5 // pred_check_branch
      %577 = sbr.rel (%p575) target = $region96
    $region95: #{forward.3} parent=5 // pred_region
      // Predicated region
      $region97: #{forward.3} parent=95 // pred_check
        %p578 = pneg %p47
      $region98: #{forward.3} parent=95 // pred_check_branch
        %580 = sbr.rel (%p578) target = $region100
      $region99: #{forward.3} parent=95 // pred_region
        %p581 = scmp.lt.s32.totalorder %s27, 1
        %s582 = scalar_select %p581, %s27, 1
        %s583 = smul.addr %s582, 2
        %s584 = smul.addr %s583, 8
        %s585 = scalar_lea.vmem %s0, %s584
      $region100: #{forward.3} parent=95 // pred_fallthru
        _
    $region96: #{forward.3} parent=5 // pred_fallthru
      _
    %p586 = scmp.le.s32.totalorder 1, %s27
    %p587 = scmp.lt.s32.totalorder %s27, 3
    %p588 = pnand %p586, %p587
    %p589 = pneg %p588
    // Predicated region
    $region101: #{forward.3} parent=5 // pred_check
      _
    $region102: #{forward.3} parent=5 // pred_check_branch
      %591 = sbr.rel (%p588) target = $region104
    $region103: #{forward.3} parent=5 // pred_region
      %s592 = ssub.s32 %s27, 1
      %p593 = scmp.lt.s32.totalorder %s32, 1
      %s594 = scalar_select %p593, %s32, 1
      %s595 = smul.addr %s594, 2
      %s596 = smul.addr %s595, 8
      %s597 = scalar_lea.vmem %s0, %s596
      %p598 = pneg %p53
      %p599 = pneg %p50
      %p600 = pneg %p74
      %p601 = pneg %p71
      %p602 = pneg %p95
      %p603 = pneg %p92
      %p604 = pneg %p116
      %p605 = pneg %p113
      %p606 = pneg %p137
      %p607 = pneg %p134
      %p608 = pneg %p158
      %p609 = pneg %p155
      %p610 = pneg %p179
      %p611 = pneg %p176
      %p612 = pneg %p200
      %p613 = pneg %p197
      %p614 = pneg %p221
      %p615 = pneg %p218
      %p616 = pneg %p242
      %p617 = pneg %p239
      %p618 = pneg %p263
      %p619 = pneg %p260
      %p620 = pneg %p284
      %p621 = pneg %p281
      %p622 = pneg %p305
      %p623 = pneg %p302
      %p624 = pneg %p326
      %p625 = pneg %p323
      %p626 = pneg %p347
      %p627 = pneg %p344
      %p628 = pneg %p368
      %p629 = pneg %p365
      %p630 = pneg %p389
      %p631 = pneg %p386
      %p632 = pneg %p410
      %p633 = pneg %p407
      %p634 = pneg %p431
      %p635 = pneg %p428
      %p636 = pneg %p452
      %p637 = pneg %p449
      %p638 = pneg %p473
      %p639 = pneg %p470
      %p640 = pneg %p499
      %p641 = pneg %p496
      %p642 = scmp.lt.s32.totalorder %s32, 1
      %s643 = scalar_select %p642, %s32, 1
      %s644 = smul.addr %s643, 3
      %s645 = smul.addr %s644, 8
      %s646 = scalar_lea.vmem %s21, %s645
      %p647 = scmp.lt.s32.totalorder %s32, 1
      %s648 = scalar_select %p647, %s32, 1
      %s649 = smul.addr %s648, 2
      %s650 = smul.addr %s649, 8
      %s651 = scalar_lea.vmem %s0, %s650
      %p652 = scmp.lt.s32.totalorder %s32, 1
      %s653 = scalar_select %p652, %s32, 1
      %s654 = smul.addr %s653, 3
      %s655 = smul.addr %s654, 8
      %s656 = scalar_lea.vmem %s21, %s655
      %v657 = vld [vmem:[%s1] sm:$0xff]
      %v658 = vld [vmem:[%s651] sm:$0xff]
      %v659 = vld [vmem:[%s651 + $0x8] sm:$0xf]
      %v660 = vld [vmem:[%s2] sm:$0xff]
      %662 = vset.pattern.permute.xlu0 0
      %663 = vperm.xlu0 %662, %v660
      %v664 = vpop.permute.xlu0 %663
      %vm666 = vcmask 97280
      %v668 = vsel %vm666, %v657, 0
      %vm670 = vcmask 1043456
      %v672 = vsel %vm670, %v659, 0
      %674 = vmatprep.subr.mxu0 0.0
      %675 = vmatpush1.msra.mxu0 %v658
      %676 = vmatprep.subr.mxu0 0.0
      %677 = vmatpush1.msra.mxu0 %v672
      %678 = vmatprep.subr.mxu0 0.0
      %679 = vmatpush1.msra.mxu0 0.0
      %680 = vmatprep.subr.mxu0 0.0
      %681 = vmatpush1.msra.mxu0 0.0
      %682 = vmatprep.subr.mxu0 0.0
      %683 = vmatpush1.msra.mxu0 0.0
      %684 = vmatprep.subr.mxu0 0.0
      %685 = vmatpush1.msra.mxu0 0.0
      %686 = vmatprep.subr.mxu0 0.0
      %687 = vmatpush1.msra.mxu0 0.0
      %688 = vmatprep.subr.mxu0 0.0
      %689 = vmatpush1.msra.mxu0 0.0
      %690 = vmatprep.subr.mxu0 0.0
      %691 = vmatpush1.msra.mxu0 0.0
      %692 = vmatprep.subr.mxu0 0.0
      %693 = vmatpush1.msra.mxu0 0.0
      %694 = vmatprep.subr.mxu0 0.0
      %695 = vmatpush1.msra.mxu0 0.0
      %696 = vmatprep.subr.mxu0 0.0
      %697 = vmatpush1.msra.mxu0 0.0
      %698 = vmatprep.subr.mxu0 0.0
      %699 = vmatpush1.msra.mxu0 0.0
      %700 = vmatprep.subr.mxu0 0.0
      %701 = vmatpush1.msra.mxu0 0.0
      %702 = vmatprep.subr.mxu0 0.0
      %703 = vmatpush1.msra.mxu0 0.0
      %704 = vmatprep.subr.mxu0 0.0
      %705 = vmatpush1.msra.mxu0 0.0
      %706 = vmatprep.subr.mxu0 0.0
      %707 = vmatpush1.msra.mxu0 0.0
      %708 = vmatprep.subr.mxu0 0.0
      %709 = vmatpush1.msra.mxu0 0.0
      %710 = vmatprep.subr.mxu0 0.0
      %711 = vmatpush1.msra.mxu0 0.0
      %712 = vmatprep.subr.mxu0 0.0
      %713 = vmatpush1.msra.mxu0 0.0
      %714 = vmatprep.subr.mxu0 0.0
      %715 = vmatpush1.msra.mxu0 0.0
      %716 = vmatprep.subr.mxu0 0.0
      %717 = vmatpush1.msra.mxu0 0.0
      %718 = vmatprep.subr.mxu0 0.0
      %719 = vmatpush1.msra.mxu0 0.0
      %720 = vmatprep.subr.mxu0 0.0
      %721 = vmatpush1.msra.mxu0 0.0
      %722 = vmatprep.subr.mxu0 0.0
      %723 = vmatpush1.msra.mxu0 0.0
      %724 = vmatprep.subr.mxu0 0.0
      %725 = vmatpush1.msra.mxu0 0.0
      %726 = vmatprep.subr.mxu0 0.0
      %727 = vmatpush1.msra.mxu0 0.0
      %728 = vmatprep.subr.mxu0 0.0
      %729 = vmatpush1.msra.mxu0 0.0
      %730 = vmatprep.subr.mxu0 0.0
      %731 = vmatpush1.msra.mxu0 0.0
      %732 = vmatprep.subr.mxu0 0.0
      %733 = vmatpush1.msra.mxu0 0.0
      %734 = vmatprep.subr.mxu0 0.0
      %735 = vmatpush1.msra.mxu0 0.0
      %736 = vmatprep.subr.mxu0 0.0
      %737 = vmatpush1.msra.mxu0 0.0
      %738 = vmatprep.mubr.f32.mxu0 0.0
      %739 = vmatmul.mubr.f32.gmra.mrb[0].mxu0 %v668
      %v740 = vpop.f32.mrb[0].mxu0
      %v741 = vadd.f32 %v664, %v740
      %v742 = vpop.f32.mrb[0].mxu0
      %743 = vdwg.mxu0
      %v744 = vmax.f32 %v741, 0.0
      %v745 = vld [vmem:[%s3] sm:$0xff]
      %v746 = vld [vmem:[%s3 + $0x8] sm:$0xff]
      %v747 = vld [vmem:[%s3 + $0x10] sm:$0xff]
      %v748 = vld [vmem:[%s3 + $0x18] sm:$0xff]
      %v749 = vld [vmem:[%s3 + $0x20] sm:$0xff]
      %v750 = vld [vmem:[%s3 + $0x28] sm:$0xff]
      %v751 = vld [vmem:[%s3 + $0x30] sm:$0xff]
      %v752 = vld [vmem:[%s3 + $0x38] sm:$0xff]
      %v753 = vld [vmem:[%s3 + $0x40] sm:$0xff]
      %v754 = vld [vmem:[%s3 + $0x48] sm:$0xff]
      %v755 = vld [vmem:[%s3 + $0x50] sm:$0xff]
      %v756 = vld [vmem:[%s3 + $0x58] sm:$0xff]
      %v757 = vld [vmem:[%s3 + $0x60] sm:$0xff]
      %v758 = vld [vmem:[%s3 + $0x68] sm:$0xff]
      %v759 = vld [vmem:[%s3 + $0x70] sm:$0xff]
      %v760 = vld [vmem:[%s3 + $0x78] sm:$0x1]
      %vm761 = vcmask 990208
      %v763 = vsel %vm761, %v744, 0
      %vm765 = vcmask 1040384
      %v767 = vsel %vm765, %v760, 0
      %769 = vmatprep.subr.mxu0 0.0
      %770 = vmatpush1.msra.mxu0 %v745
      %771 = vmatprep.subr.mxu0 0.0
      %772 = vmatpush1.msra.mxu0 %v746
      %773 = vmatprep.subr.mxu0 0.0
      %774 = vmatpush1.msra.mxu0 %v747
      %775 = vmatprep.subr.mxu0 0.0
      %776 = vmatpush1.msra.mxu0 %v748
      %777 = vmatprep.subr.mxu0 0.0
      %778 = vmatpush1.msra.mxu0 %v749
      %779 = vmatprep.subr.mxu0 0.0
      %780 = vmatpush1.msra.mxu0 %v750
      %781 = vmatprep.subr.mxu0 0.0
      %782 = vmatpush1.msra.mxu0 %v751
      %783 = vmatprep.subr.mxu0 0.0
      %784 = vmatpush1.msra.mxu0 %v752
      %785 = vmatprep.subr.mxu0 0.0
      %786 = vmatpush1.msra.mxu0 %v753
      %787 = vmatprep.subr.mxu0 0.0
      %788 = vmatpush1.msra.mxu0 %v754
      %789 = vmatprep.subr.mxu0 0.0
      %790 = vmatpush1.msra.mxu0 %v755
      %791 = vmatprep.subr.mxu0 0.0
      %792 = vmatpush1.msra.mxu0 %v756
      %793 = vmatprep.subr.mxu0 0.0
      %794 = vmatpush1.msra.mxu0 %v757
      %795 = vmatprep.subr.mxu0 0.0
      %796 = vmatpush1.msra.mxu0 %v758
      %797 = vmatprep.subr.mxu0 0.0
      %798 = vmatpush1.msra.mxu0 %v759
      %799 = vmatprep.subr.mxu0 0.0
      %800 = vmatpush1.msra.mxu0 %v767
      %801 = vmatprep.subr.mxu0 0.0
      %802 = vmatpush1.msra.mxu0 0.0
      %803 = vmatprep.subr.mxu0 0.0
      %804 = vmatpush1.msra.mxu0 0.0
      %805 = vmatprep.subr.mxu0 0.0
      %806 = vmatpush1.msra.mxu0 0.0
      %807 = vmatprep.subr.mxu0 0.0
      %808 = vmatpush1.msra.mxu0 0.0
      %809 = vmatprep.subr.mxu0 0.0
      %810 = vmatpush1.msra.mxu0 0.0
      %811 = vmatprep.subr.mxu0 0.0
      %812 = vmatpush1.msra.mxu0 0.0
      %813 = vmatprep.subr.mxu0 0.0
      %814 = vmatpush1.msra.mxu0 0.0
      %815 = vmatprep.subr.mxu0 0.0
      %816 = vmatpush1.msra.mxu0 0.0
      %817 = vmatprep.subr.mxu0 0.0
      %818 = vmatpush1.msra.mxu0 0.0
      %819 = vmatprep.subr.mxu0 0.0
      %820 = vmatpush1.msra.mxu0 0.0
      %821 = vmatprep.subr.mxu0 0.0
      %822 = vmatpush1.msra.mxu0 0.0
      %823 = vmatprep.subr.mxu0 0.0
      %824 = vmatpush1.msra.mxu0 0.0
      %825 = vmatprep.subr.mxu0 0.0
      %826 = vmatpush1.msra.mxu0 0.0
      %827 = vmatprep.subr.mxu0 0.0
      %828 = vmatpush1.msra.mxu0 0.0
      %829 = vmatprep.subr.mxu0 0.0
      %830 = vmatpush1.msra.mxu0 0.0
      %831 = vmatprep.subr.mxu0 0.0
      %832 = vmatpush1.msra.mxu0 0.0
      %833 = vmatprep.mubr.f32.mxu0 0.0
      %834 = vmatmul.mubr.f32.gmra.mrb[0].mxu0 %v763
      %v835 = vpop.f32.mrb[0].mxu0
      %v836 = vadd.f32 0.0, %v835
      %v837 = vpop.f32.mrb[0].mxu0
      %838 = vdwg.mxu0
      %v839 = vld [vmem:[%s5] sm:$0xff]
      %v840 = vld [vmem:[%s4] sm:$0xff]
      %v841 = vld [vmem:[%s4 + $0x8] sm:$0xff]
      %vm842 = vcmask 130048
      %v844 = vsel %vm842, %v836, 0
      %846 = vmatprep.subr.mxu0 0.0
      %847 = vmatpush1.msra.mxu0 %v840
      %848 = vmatprep.subr.mxu0 0.0
      %849 = vmatpush1.msra.mxu0 %v841
      %850 = vmatprep.subr.mxu0 0.0
      %851 = vmatpush1.msra.mxu0 0.0
      %852 = vmatprep.subr.mxu0 0.0
      %853 = vmatpush1.msra.mxu0 0.0
      %854 = vmatprep.subr.mxu0 0.0
      %855 = vmatpush1.msra.mxu0 0.0
      %856 = vmatprep.subr.mxu0 0.0
      %857 = vmatpush1.msra.mxu0 0.0
      %858 = vmatprep.subr.mxu0 0.0
      %859 = vmatpush1.msra.mxu0 0.0
      %860 = vmatprep.subr.mxu0 0.0
      %861 = vmatpush1.msra.mxu0 0.0
      %862 = vmatprep.subr.mxu0 0.0
      %863 = vmatpush1.msra.mxu0 0.0
      %864 = vmatprep.subr.mxu0 0.0
      %865 = vmatpush1.msra.mxu0 0.0
      %866 = vmatprep.subr.mxu0 0.0
      %867 = vmatpush1.msra.mxu0 0.0
      %868 = vmatprep.subr.mxu0 0.0
      %869 = vmatpush1.msra.mxu0 0.0
      %870 = vmatprep.subr.mxu0 0.0
      %871 = vmatpush1.msra.mxu0 0.0
      %872 = vmatprep.subr.mxu0 0.0
      %873 = vmatpush1.msra.mxu0 0.0
      %874 = vmatprep.subr.mxu0 0.0
      %875 = vmatpush1.msra.mxu0 0.0
      %876 = vmatprep.subr.mxu0 0.0
      %877 = vmatpush1.msra.mxu0 0.0
      %878 = vmatprep.subr.mxu0 0.0
      %879 = vmatpush1.msra.mxu0 0.0
      %880 = vmatprep.subr.mxu0 0.0
      %881 = vmatpush1.msra.mxu0 0.0
      %882 = vmatprep.subr.mxu0 0.0
      %883 = vmatpush1.msra.mxu0 0.0
      %884 = vmatprep.subr.mxu0 0.0
      %885 = vmatpush1.msra.mxu0 0.0
      %886 = vmatprep.subr.mxu0 0.0
      %887 = vmatpush1.msra.mxu0 0.0
      %888 = vmatprep.subr.mxu0 0.0
      %889 = vmatpush1.msra.mxu0 0.0
      %890 = vmatprep.subr.mxu0 0.0
      %891 = vmatpush1.msra.mxu0 0.0
      %892 = vmatprep.subr.mxu0 0.0
      %893 = vmatpush1.msra.mxu0 0.0
      %894 = vmatprep.subr.mxu0 0.0
      %895 = vmatpush1.msra.mxu0 0.0
      %896 = vmatprep.subr.mxu0 0.0
      %897 = vmatpush1.msra.mxu0 0.0
      %898 = vmatprep.subr.mxu0 0.0
      %899 = vmatpush1.msra.mxu0 0.0
      %900 = vmatprep.subr.mxu0 0.0
      %901 = vmatpush1.msra.mxu0 0.0
      %902 = vmatprep.subr.mxu0 0.0
      %903 = vmatpush1.msra.mxu0 0.0
      %904 = vmatprep.subr.mxu0 0.0
      %905 = vmatpush1.msra.mxu0 0.0
      %906 = vmatprep.subr.mxu0 0.0
      %907 = vmatpush1.msra.mxu0 0.0
      %908 = vmatprep.subr.mxu0 0.0
      %909 = vmatpush1.msra.mxu0 0.0
      %910 = vmatprep.mubr.f32.mxu0 0.0
      %911 = vmatmul.mubr.f32.gmra.mrb[0].mxu0 %v844
      %v912 = vpop.f32.mrb[0].mxu0
      %v913 = vadd.f32 0.0, %v912
      %v914 = vpop.f32.mrb[0].mxu0
      %915 = vdwg.mxu0
      %s916 = scalar_lea.vmem %s5, 8
      %v917 = vld [vmem:[%s916] sm:$0xff]
      %s918 = scalar_lea.vmem %s4, 16
      %v919 = vld [vmem:[%s918] sm:$0xff]
      %v920 = vld [vmem:[%s918 + $0x8] sm:$0xff]
      %921 = vmatprep.subr.mxu0 0.0
      %922 = vmatpush1.msra.mxu0 %v919
      %923 = vmatprep.subr.mxu0 0.0
      %924 = vmatpush1.msra.mxu0 %v920
      %925 = vmatprep.subr.mxu0 0.0
      %926 = vmatpush1.msra.mxu0 0.0
      %927 = vmatprep.subr.mxu0 0.0
      %928 = vmatpush1.msra.mxu0 0.0
      %929 = vmatprep.subr.mxu0 0.0
      %930 = vmatpush1.msra.mxu0 0.0
      %931 = vmatprep.subr.mxu0 0.0
      %932 = vmatpush1.msra.mxu0 0.0
      %933 = vmatprep.subr.mxu0 0.0
      %934 = vmatpush1.msra.mxu0 0.0
      %935 = vmatprep.subr.mxu0 0.0
      %936 = vmatpush1.msra.mxu0 0.0
      %937 = vmatprep.subr.mxu0 0.0
      %938 = vmatpush1.msra.mxu0 0.0
      %939 = vmatprep.subr.mxu0 0.0
      %940 = vmatpush1.msra.mxu0 0.0
      %941 = vmatprep.subr.mxu0 0.0
      %942 = vmatpush1.msra.mxu0 0.0
      %943 = vmatprep.subr.mxu0 0.0
      %944 = vmatpush1.msra.mxu0 0.0
      %945 = vmatprep.subr.mxu0 0.0
      %946 = vmatpush1.msra.mxu0 0.0
      %947 = vmatprep.subr.mxu0 0.0
      %948 = vmatpush1.msra.mxu0 0.0
      %949 = vmatprep.subr.mxu0 0.0
      %950 = vmatpush1.msra.mxu0 0.0
      %951 = vmatprep.subr.mxu0 0.0
      %952 = vmatpush1.msra.mxu0 0.0
      %953 = vmatprep.subr.mxu0 0.0
      %954 = vmatpush1.msra.mxu0 0.0
      %955 = vmatprep.subr.mxu0 0.0
      %956 = vmatpush1.msra.mxu0 0.0
      %957 = vmatprep.subr.mxu0 0.0
      %958 = vmatpush1.msra.mxu0 0.0
      %959 = vmatprep.subr.mxu0 0.0
      %960 = vmatpush1.msra.mxu0 0.0
      %961 = vmatprep.subr.mxu0 0.0
      %962 = vmatpush1.msra.mxu0 0.0
      %963 = vmatprep.subr.mxu0 0.0
      %964 = vmatpush1.msra.mxu0 0.0
      %965 = vmatprep.subr.mxu0 0.0
      %966 = vmatpush1.msra.mxu0 0.0
      %967 = vmatprep.subr.mxu0 0.0
      %968 = vmatpush1.msra.mxu0 0.0
      %969 = vmatprep.subr.mxu0 0.0
      %970 = vmatpush1.msra.mxu0 0.0
      %971 = vmatprep.subr.mxu0 0.0
      %972 = vmatpush1.msra.mxu0 0.0
      %973 = vmatprep.subr.mxu0 0.0
      %974 = vmatpush1.msra.mxu0 0.0
      %975 = vmatprep.subr.mxu0 0.0
      %976 = vmatpush1.msra.mxu0 0.0
      %977 = vmatprep.subr.mxu0 0.0
      %978 = vmatpush1.msra.mxu0 0.0
      %979 = vmatprep.subr.mxu0 0.0
      %980 = vmatpush1.msra.mxu0 0.0
      %981 = vmatprep.subr.mxu0 0.0
      %982 = vmatpush1.msra.mxu0 0.0
      %983 = vmatprep.subr.mxu0 0.0
      %984 = vmatpush1.msra.mxu0 0.0
      %985 = vmatprep.mubr.f32.mxu0 0.0
      %986 = vmatmul.mubr.f32.gmra.mrb[0].mxu0 %v844
      %v987 = vpop.f32.mrb[0].mxu0
      %v988 = vadd.f32 0.0, %v987
      %v989 = vpop.f32.mrb[0].mxu0
      %990 = vdwg.mxu0
      %vm991 = vcmask 64512
      %v993 = vsel %vm991, %v917, 0
      %995 = vmatprep.subr.mxu0 0.0
      %996 = vmatpush1.msra.mxu0 %v988
      %997 = vmatprep.subr.mxu0 0.0
      %998 = vmatpush1.msra.mxu0 0.0
      %999 = vmatprep.subr.mxu0 0.0
      %1000 = vmatpush1.msra.mxu0 0.0
      %1001 = vmatprep.subr.mxu0 0.0
      %1002 = vmatpush1.msra.mxu0 0.0
      %1003 = vmatprep.subr.mxu0 0.0
      %1004 = vmatpush1.msra.mxu0 0.0
      %1005 = vmatprep.subr.mxu0 0.0
      %1006 = vmatpush1.msra.mxu0 0.0
      %1007 = vmatprep.subr.mxu0 0.0
      %1008 = vmatpush1.msra.mxu0 0.0
      %1009 = vmatprep.subr.mxu0 0.0
      %1010 = vmatpush1.msra.mxu0 0.0
      %1011 = vmatprep.subr.mxu0 0.0
      %1012 = vmatpush1.msra.mxu0 0.0
      %1013 = vmatprep.subr.mxu0 0.0
      %1014 = vmatpush1.msra.mxu0 0.0
      %1015 = vmatprep.subr.mxu0 0.0
      %1016 = vmatpush1.msra.mxu0 0.0
      %1017 = vmatprep.subr.mxu0 0.0
      %1018 = vmatpush1.msra.mxu0 0.0
      %1019 = vmatprep.subr.mxu0 0.0
      %1020 = vmatpush1.msra.mxu0 0.0
      %1021 = vmatprep.subr.mxu0 0.0
      %1022 = vmatpush1.msra.mxu0 0.0
      %1023 = vmatprep.subr.mxu0 0.0
      %1024 = vmatpush1.msra.mxu0 0.0
      %1025 = vmatprep.subr.mxu0 0.0
      %1026 = vmatpush1.msra.mxu0 0.0
      %1027 = vmatprep.subr.mxu0 0.0
      %1028 = vmatpush1.msra.mxu0 0.0
      %1029 = vmatprep.subr.mxu0 0.0
      %1030 = vmatpush1.msra.mxu0 0.0
      %1031 = vmatprep.subr.mxu0 0.0
      %1032 = vmatpush1.msra.mxu0 0.0
      %1033 = vmatprep.subr.mxu0 0.0
      %1034 = vmatpush1.msra.mxu0 0.0
      %1035 = vmatprep.subr.mxu0 0.0
      %1036 = vmatpush1.msra.mxu0 0.0
      %1037 = vmatprep.subr.mxu0 0.0
      %1038 = vmatpush1.msra.mxu0 0.0
      %1039 = vmatprep.subr.mxu0 0.0
      %1040 = vmatpush1.msra.mxu0 0.0
      %1041 = vmatprep.subr.mxu0 0.0
      %1042 = vmatpush1.msra.mxu0 0.0
      %1043 = vmatprep.subr.mxu0 0.0
      %1044 = vmatpush1.msra.mxu0 0.0
      %1045 = vmatprep.subr.mxu0 0.0
      %1046 = vmatpush1.msra.mxu0 0.0
      %1047 = vmatprep.subr.mxu0 0.0
      %1048 = vmatpush1.msra.mxu0 0.0
      %1049 = vmatprep.subr.mxu0 0.0
      %1050 = vmatpush1.msra.mxu0 0.0
      %1051 = vmatprep.subr.mxu0 0.0
      %1052 = vmatpush1.msra.mxu0 0.0
      %1053 = vmatprep.subr.mxu0 0.0
      %1054 = vmatpush1.msra.mxu0 0.0
      %1055 = vmatprep.subr.mxu0 0.0
      %1056 = vmatpush1.msra.mxu0 0.0
      %1057 = vmatprep.subr.mxu0 0.0
      %1058 = vmatpush1.msra.mxu0 0.0
      %1059 = vmatprep.mubr.f32.mxu0 0.0
      %1060 = vmatmul.mubr.f32.gmra.mrb[0].mxu0 %v993
      %v1061 = vpop.f32.mrb[0].mxu0
      %v1062 = vadd.f32 0.0, %v1061
      %v1063 = vpop.f32.mrb[0].mxu0
      %1064 = vdwg.mxu0
      %v1066 = vsel %vm991, %v839, 0
      %1068 = vmatprep.subr.mxu0 0.0
      %1069 = vmatpush1.msra.mxu0 %v913
      %1070 = vmatprep.subr.mxu0 0.0
      %1071 = vmatpush1.msra.mxu0 0.0
      %1072 = vmatprep.subr.mxu0 0.0
      %1073 = vmatpush1.msra.mxu0 0.0
      %1074 = vmatprep.subr.mxu0 0.0
      %1075 = vmatpush1.msra.mxu0 0.0
      %1076 = vmatprep.subr.mxu0 0.0
      %1077 = vmatpush1.msra.mxu0 0.0
      %1078 = vmatprep.subr.mxu0 0.0
      %1079 = vmatpush1.msra.mxu0 0.0
      %1080 = vmatprep.subr.mxu0 0.0
      %1081 = vmatpush1.msra.mxu0 0.0
      %1082 = vmatprep.subr.mxu0 0.0
      %1083 = vmatpush1.msra.mxu0 0.0
      %1084 = vmatprep.subr.mxu0 0.0
      %1085 = vmatpush1.msra.mxu0 0.0
      %1086 = vmatprep.subr.mxu0 0.0
      %1087 = vmatpush1.msra.mxu0 0.0
      %1088 = vmatprep.subr.mxu0 0.0
      %1089 = vmatpush1.msra.mxu0 0.0
      %1090 = vmatprep.subr.mxu0 0.0
      %1091 = vmatpush1.msra.mxu0 0.0
      %1092 = vmatprep.subr.mxu0 0.0
      %1093 = vmatpush1.msra.mxu0 0.0
      %1094 = vmatprep.subr.mxu0 0.0
      %1095 = vmatpush1.msra.mxu0 0.0
      %1096 = vmatprep.subr.mxu0 0.0
      %1097 = vmatpush1.msra.mxu0 0.0
      %1098 = vmatprep.subr.mxu0 0.0
      %1099 = vmatpush1.msra.mxu0 0.0
      %1100 = vmatprep.subr.mxu0 0.0
      %1101 = vmatpush1.msra.mxu0 0.0
      %1102 = vmatprep.subr.mxu0 0.0
      %1103 = vmatpush1.msra.mxu0 0.0
      %1104 = vmatprep.subr.mxu0 0.0
      %1105 = vmatpush1.msra.mxu0 0.0
      %1106 = vmatprep.subr.mxu0 0.0
      %1107 = vmatpush1.msra.mxu0 0.0
      %1108 = vmatprep.subr.mxu0 0.0
      %1109 = vmatpush1.msra.mxu0 0.0
      %1110 = vmatprep.subr.mxu0 0.0
      %1111 = vmatpush1.msra.mxu0 0.0
      %1112 = vmatprep.subr.mxu0 0.0
      %1113 = vmatpush1.msra.mxu0 0.0
      %1114 = vmatprep.subr.mxu0 0.0
      %1115 = vmatpush1.msra.mxu0 0.0
      %1116 = vmatprep.subr.mxu0 0.0
      %1117 = vmatpush1.msra.mxu0 0.0
      %1118 = vmatprep.subr.mxu0 0.0
      %1119 = vmatpush1.msra.mxu0 0.0
      %1120 = vmatprep.subr.mxu0 0.0
      %1121 = vmatpush1.msra.mxu0 0.0
      %1122 = vmatprep.subr.mxu0 0.0
      %1123 = vmatpush1.msra.mxu0 0.0
      %1124 = vmatprep.subr.mxu0 0.0
      %1125 = vmatpush1.msra.mxu0 0.0
      %1126 = vmatprep.subr.mxu0 0.0
      %1127 = vmatpush1.msra.mxu0 0.0
      %1128 = vmatprep.subr.mxu0 0.0
      %1129 = vmatpush1.msra.mxu0 0.0
      %1130 = vmatprep.subr.mxu0 0.0
      %1131 = vmatpush1.msra.mxu0 0.0
      %1132 = vmatprep.mubr.f32.mxu0 0.0
      %1133 = vmatmul.mubr.f32.gmra.mrb[0].mxu0 %v1066
      %v1134 = vpop.f32.mrb[0].mxu0
      %v1135 = vadd.f32 %v1062, %v1134
      %v1136 = vpop.f32.mrb[0].mxu0
      %1137 = vdwg.mxu0
      %s1138 = scalar_lea.vmem %s5, 16
      %v1139 = vld [vmem:[%s1138] sm:$0xff]
      %s1140 = scalar_lea.vmem %s4, 32
      %v1141 = vld [vmem:[%s1140] sm:$0xff]
      %v1142 = vld [vmem:[%s1140 + $0x8] sm:$0xff]
      %1143 = vmatprep.subr.mxu0 0.0
      %1144 = vmatpush1.msra.mxu0 %v1141
      %1145 = vmatprep.subr.mxu0 0.0
      %1146 = vmatpush1.msra.mxu0 %v1142
      %1147 = vmatprep.subr.mxu0 0.0
      %1148 = vmatpush1.msra.mxu0 0.0
      %1149 = vmatprep.subr.mxu0 0.0
      %1150 = vmatpush1.msra.mxu0 0.0
      %1151 = vmatprep.subr.mxu0 0.0
      %1152 = vmatpush1.msra.mxu0 0.0
      %1153 = vmatprep.subr.mxu0 0.0
      %1154 = vmatpush1.msra.mxu0 0.0
      %1155 = vmatprep.subr.mxu0 0.0
      %1156 = vmatpush1.msra.mxu0 0.0
      %1157 = vmatprep.subr.mxu0 0.0
      %1158 = vmatpush1.msra.mxu0 0.0
      %1159 = vmatprep.subr.mxu0 0.0
      %1160 = vmatpush1.msra.mxu0 0.0
      %1161 = vmatprep.subr.mxu0 0.0
      %1162 = vmatpush1.msra.mxu0 0.0
      %1163 = vmatprep.subr.mxu0 0.0
      %1164 = vmatpush1.msra.mxu0 0.0
      %1165 = vmatprep.subr.mxu0 0.0
      %1166 = vmatpush1.msra.mxu0 0.0
      %1167 = vmatprep.subr.mxu0 0.0
      %1168 = vmatpush1.msra.mxu0 0.0
      %1169 = vmatprep.subr.mxu0 0.0
      %1170 = vmatpush1.msra.mxu0 0.0
      %1171 = vmatprep.subr.mxu0 0.0
      %1172 = vmatpush1.msra.mxu0 0.0
      %1173 = vmatprep.subr.mxu0 0.0
      %1174 = vmatpush1.msra.mxu0 0.0
      %1175 = vmatprep.subr.mxu0 0.0
      %1176 = vmatpush1.msra.mxu0 0.0
      %1177 = vmatprep.subr.mxu0 0.0
      %1178 = vmatpush1.msra.mxu0 0.0
      %1179 = vmatprep.subr.mxu0 0.0
      %1180 = vmatpush1.msra.mxu0 0.0
      %1181 = vmatprep.subr.mxu0 0.0
      %1182 = vmatpush1.msra.mxu0 0.0
      %1183 = vmatprep.subr.mxu0 0.0
      %1184 = vmatpush1.msra.mxu0 0.0
      %1185 = vmatprep.subr.mxu0 0.0
      %1186 = vmatpush1.msra.mxu0 0.0
      %1187 = vmatprep.subr.mxu0 0.0
      %1188 = vmatpush1.msra.mxu0 0.0
      %1189 = vmatprep.subr.mxu0 0.0
      %1190 = vmatpush1.msra.mxu0 0.0
      %1191 = vmatprep.subr.mxu0 0.0
      %1192 = vmatpush1.msra.mxu0 0.0
      %1193 = vmatprep.subr.mxu0 0.0
      %1194 = vmatpush1.msra.mxu0 0.0
      %1195 = vmatprep.subr.mxu0 0.0
      %1196 = vmatpush1.msra.mxu0 0.0
      %1197 = vmatprep.subr.mxu0 0.0
      %1198 = vmatpush1.msra.mxu0 0.0
      %1199 = vmatprep.subr.mxu0 0.0
      %1200 = vmatpush1.msra.mxu0 0.0
      %1201 = vmatprep.subr.mxu0 0.0
      %1202 = vmatpush1.msra.mxu0 0.0
      %1203 = vmatprep.subr.mxu0 0.0
      %1204 = vmatpush1.msra.mxu0 0.0
      %1205 = vmatprep.subr.mxu0 0.0
      %1206 = vmatpush1.msra.mxu0 0.0
      %1207 = vmatprep.mubr.f32.mxu0 0.0
      %1208 = vmatmul.mubr.f32.gmra.mrb[0].mxu0 %v844
      %v1209 = vpop.f32.mrb[0].mxu0
      %v1210 = vadd.f32 0.0, %v1209
      %v1211 = vpop.f32.mrb[0].mxu0
      %1212 = vdwg.mxu0
      %v1214 = vsel %vm991, %v1139, 0
      %1216 = vmatprep.subr.mxu0 0.0
      %1217 = vmatpush1.msra.mxu0 %v1210
      %1218 = vmatprep.subr.mxu0 0.0
      %1219 = vmatpush1.msra.mxu0 0.0
      %1220 = vmatprep.subr.mxu0 0.0
      %1221 = vmatpush1.msra.mxu0 0.0
      %1222 = vmatprep.subr.mxu0 0.0
      %1223 = vmatpush1.msra.mxu0 0.0
      %1224 = vmatprep.subr.mxu0 0.0
      %1225 = vmatpush1.msra.mxu0 0.0
      %1226 = vmatprep.subr.mxu0 0.0
      %1227 = vmatpush1.msra.mxu0 0.0
      %1228 = vmatprep.subr.mxu0 0.0
      %1229 = vmatpush1.msra.mxu0 0.0
      %1230 = vmatprep.subr.mxu0 0.0
      %1231 = vmatpush1.msra.mxu0 0.0
      %1232 = vmatprep.subr.mxu0 0.0
      %1233 = vmatpush1.msra.mxu0 0.0
      %1234 = vmatprep.subr.mxu0 0.0
      %1235 = vmatpush1.msra.mxu0 0.0
      %1236 = vmatprep.subr.mxu0 0.0
      %1237 = vmatpush1.msra.mxu0 0.0
      %1238 = vmatprep.subr.mxu0 0.0
      %1239 = vmatpush1.msra.mxu0 0.0
      %1240 = vmatprep.subr.mxu0 0.0
      %1241 = vmatpush1.msra.mxu0 0.0
      %1242 = vmatprep.subr.mxu0 0.0
      %1243 = vmatpush1.msra.mxu0 0.0
      %1244 = vmatprep.subr.mxu0 0.0
      %1245 = vmatpush1.msra.mxu0 0.0
      %1246 = vmatprep.subr.mxu0 0.0
      %1247 = vmatpush1.msra.mxu0 0.0
      %1248 = vmatprep.subr.mxu0 0.0
      %1249 = vmatpush1.msra.mxu0 0.0
      %1250 = vmatprep.subr.mxu0 0.0
      %1251 = vmatpush1.msra.mxu0 0.0
      %1252 = vmatprep.subr.mxu0 0.0
      %1253 = vmatpush1.msra.mxu0 0.0
      %1254 = vmatprep.subr.mxu0 0.0
      %1255 = vmatpush1.msra.mxu0 0.0
      %1256 = vmatprep.subr.mxu0 0.0
      %1257 = vmatpush1.msra.mxu0 0.0
      %1258 = vmatprep.subr.mxu0 0.0
      %1259 = vmatpush1.msra.mxu0 0.0
      %1260 = vmatprep.subr.mxu0 0.0
      %1261 = vmatpush1.msra.mxu0 0.0
      %1262 = vmatprep.subr.mxu0 0.0
      %1263 = vmatpush1.msra.mxu0 0.0
      %1264 = vmatprep.subr.mxu0 0.0
      %1265 = vmatpush1.msra.mxu0 0.0
      %1266 = vmatprep.subr.mxu0 0.0
      %1267 = vmatpush1.msra.mxu0 0.0
      %1268 = vmatprep.subr.mxu0 0.0
      %1269 = vmatpush1.msra.mxu0 0.0
      %1270 = vmatprep.subr.mxu0 0.0
      %1271 = vmatpush1.msra.mxu0 0.0
      %1272 = vmatprep.subr.mxu0 0.0
      %1273 = vmatpush1.msra.mxu0 0.0
      %1274 = vmatprep.subr.mxu0 0.0
      %1275 = vmatpush1.msra.mxu0 0.0
      %1276 = vmatprep.subr.mxu0 0.0
      %1277 = vmatpush1.msra.mxu0 0.0
      %1278 = vmatprep.subr.mxu0 0.0
      %1279 = vmatpush1.msra.mxu0 0.0
      %1280 = vmatprep.mubr.f32.mxu0 0.0
      %1281 = vmatmul.mubr.f32.gmra.mrb[0].mxu0 %v1214
      %v1282 = vpop.f32.mrb[0].mxu0
      %v1283 = vadd.f32 0.0, %v1282
      %v1284 = vpop.f32.mrb[0].mxu0
      %1285 = vdwg.mxu0
      %v1286 = vadd.f32 %v1135, %v1283
      %s1287 = scalar_lea.vmem %s5, 24
      %v1288 = vld [vmem:[%s1287] sm:$0xff]
      %s1289 = scalar_lea.vmem %s4, 48
      %v1290 = vld [vmem:[%s1289] sm:$0xff]
      %v1291 = vld [vmem:[%s1289 + $0x8] sm:$0xff]
      %1292 = vmatprep.subr.mxu0 0.0
      %1293 = vmatpush1.msra.mxu0 %v1290
      %1294 = vmatprep.subr.mxu0 0.0
      %1295 = vmatpush1.msra.mxu0 %v1291
      %1296 = vmatprep.subr.mxu0 0.0
      %1297 = vmatpush1.msra.mxu0 0.0
      %1298 = vmatprep.subr.mxu0 0.0
      %1299 = vmatpush1.msra.mxu0 0.0
      %1300 = vmatprep.subr.mxu0 0.0
      %1301 = vmatpush1.msra.mxu0 0.0
      %1302 = vmatprep.subr.mxu0 0.0
      %1303 = vmatpush1.msra.mxu0 0.0
      %1304 = vmatprep.subr.mxu0 0.0
      %1305 = vmatpush1.msra.mxu0 0.0
      %1306 = vmatprep.subr.mxu0 0.0
      %1307 = vmatpush1.msra.mxu0 0.0
      %1308 = vmatprep.subr.mxu0 0.0
      %1309 = vmatpush1.msra.mxu0 0.0
      %1310 = vmatprep.subr.mxu0 0.0
      %1311 = vmatpush1.msra.mxu0 0.0
      %1312 = vmatprep.subr.mxu0 0.0
      %1313 = vmatpush1.msra.mxu0 0.0
      %1314 = vmatprep.subr.mxu0 0.0
      %1315 = vmatpush1.msra.mxu0 0.0
      %1316 = vmatprep.subr.mxu0 0.0
      %1317 = vmatpush1.msra.mxu0 0.0
      %1318 = vmatprep.subr.mxu0 0.0
      %1319 = vmatpush1.msra.mxu0 0.0
      %1320 = vmatprep.subr.mxu0 0.0
      %1321 = vmatpush1.msra.mxu0 0.0
      %1322 = vmatprep.subr.mxu0 0.0
      %1323 = vmatpush1.msra.mxu0 0.0
      %1324 = vmatprep.subr.mxu0 0.0
      %1325 = vmatpush1.msra.mxu0 0.0
      %1326 = vmatprep.subr.mxu0 0.0
      %1327 = vmatpush1.msra.mxu0 0.0
      %1328 = vmatprep.subr.mxu0 0.0
      %1329 = vmatpush1.msra.mxu0 0.0
      %1330 = vmatprep.subr.mxu0 0.0
      %1331 = vmatpush1.msra.mxu0 0.0
      %1332 = vmatprep.subr.mxu0 0.0
      %1333 = vmatpush1.msra.mxu0 0.0
      %1334 = vmatprep.subr.mxu0 0.0
      %1335 = vmatpush1.msra.mxu0 0.0
      %1336 = vmatprep.subr.mxu0 0.0
      %1337 = vmatpush1.msra.mxu0 0.0
      %1338 = vmatprep.subr.mxu0 0.0
      %1339 = vmatpush1.msra.mxu0 0.0
      %1340 = vmatprep.subr.mxu0 0.0
      %1341 = vmatpush1.msra.mxu0 0.0
      %1342 = vmatprep.subr.mxu0 0.0
      %1343 = vmatpush1.msra.mxu0 0.0
      %1344 = vmatprep.subr.mxu0 0.0
      %1345 = vmatpush1.msra.mxu0 0.0
      %1346 = vmatprep.subr.mxu0 0.0
      %1347 = vmatpush1.msra.mxu0 0.0
      %1348 = vmatprep.subr.mxu0 0.0
      %1349 = vmatpush1.msra.mxu0 0.0
      %1350 = vmatprep.subr.mxu0 0.0
      %1351 = vmatpush1.msra.mxu0 0.0
      %1352 = vmatprep.subr.mxu0 0.0
      %1353 = vmatpush1.msra.mxu0 0.0
      %1354 = vmatprep.subr.mxu0 0.0
      %1355 = vmatpush1.msra.mxu0 0.0
      %1356 = vmatprep.mubr.f32.mxu0 0.0
      %1357 = vmatmul.mubr.f32.gmra.mrb[0].mxu0 %v844
      %v1358 = vpop.f32.mrb[0].mxu0
      %v1359 = vadd.f32 0.0, %v1358
      %v1360 = vpop.f32.mrb[0].mxu0
      %1361 = vdwg.mxu0
      %v1363 = vsel %vm991, %v1288, 0
      %1365 = vmatprep.subr.mxu0 0.0
      %1366 = vmatpush1.msra.mxu0 %v1359
      %1367 = vmatprep.subr.mxu0 0.0
      %1368 = vmatpush1.msra.mxu0 0.0
      %1369 = vmatprep.subr.mxu0 0.0
      %1370 = vmatpush1.msra.mxu0 0.0
      %1371 = vmatprep.subr.mxu0 0.0
      %1372 = vmatpush1.msra.mxu0 0.0
      %1373 = vmatprep.subr.mxu0 0.0
      %1374 = vmatpush1.msra.mxu0 0.0
      %1375 = vmatprep.subr.mxu0 0.0
      %1376 = vmatpush1.msra.mxu0 0.0
      %1377 = vmatprep.subr.mxu0 0.0
      %1378 = vmatpush1.msra.mxu0 0.0
      %1379 = vmatprep.subr.mxu0 0.0
      %1380 = vmatpush1.msra.mxu0 0.0
      %1381 = vmatprep.subr.mxu0 0.0
      %1382 = vmatpush1.msra.mxu0 0.0
      %1383 = vmatprep.subr.mxu0 0.0
      %1384 = vmatpush1.msra.mxu0 0.0
      %1385 = vmatprep.subr.mxu0 0.0
      %1386 = vmatpush1.msra.mxu0 0.0
      %1387 = vmatprep.subr.mxu0 0.0
      %1388 = vmatpush1.msra.mxu0 0.0
      %1389 = vmatprep.subr.mxu0 0.0
      %1390 = vmatpush1.msra.mxu0 0.0
      %1391 = vmatprep.subr.mxu0 0.0
      %1392 = vmatpush1.msra.mxu0 0.0
      %1393 = vmatprep.subr.mxu0 0.0
      %1394 = vmatpush1.msra.mxu0 0.0
      %1395 = vmatprep.subr.mxu0 0.0
      %1396 = vmatpush1.msra.mxu0 0.0
      %1397 = vmatprep.subr.mxu0 0.0
      %1398 = vmatpush1.msra.mxu0 0.0
      %1399 = vmatprep.subr.mxu0 0.0
      %1400 = vmatpush1.msra.mxu0 0.0
      %1401 = vmatprep.subr.mxu0 0.0
      %1402 = vmatpush1.msra.mxu0 0.0
      %1403 = vmatprep.subr.mxu0 0.0
      %1404 = vmatpush1.msra.mxu0 0.0
      %1405 = vmatprep.subr.mxu0 0.0
      %1406 = vmatpush1.msra.mxu0 0.0
      %1407 = vmatprep.subr.mxu0 0.0
      %1408 = vmatpush1.msra.mxu0 0.0
      %1409 = vmatprep.subr.mxu0 0.0
      %1410 = vmatpush1.msra.mxu0 0.0
      %1411 = vmatprep.subr.mxu0 0.0
      %1412 = vmatpush1.msra.mxu0 0.0
      %1413 = vmatprep.subr.mxu0 0.0
      %1414 = vmatpush1.msra.mxu0 0.0
      %1415 = vmatprep.subr.mxu0 0.0
      %1416 = vmatpush1.msra.mxu0 0.0
      %1417 = vmatprep.subr.mxu0 0.0
      %1418 = vmatpush1.msra.mxu0 0.0
      %1419 = vmatprep.subr.mxu0 0.0
      %1420 = vmatpush1.msra.mxu0 0.0
      %1421 = vmatprep.subr.mxu0 0.0
      %1422 = vmatpush1.msra.mxu0 0.0
      %1423 = vmatprep.subr.mxu0 0.0
      %1424 = vmatpush1.msra.mxu0 0.0
      %1425 = vmatprep.subr.mxu0 0.0
      %1426 = vmatpush1.msra.mxu0 0.0
      %1427 = vmatprep.subr.mxu0 0.0
      %1428 = vmatpush1.msra.mxu0 0.0
      %1429 = vmatprep.mubr.f32.mxu0 0.0
      %1430 = vmatmul.mubr.f32.gmra.mrb[0].mxu0 %v1363
      %v1431 = vpop.f32.mrb[0].mxu0
      %v1432 = vadd.f32 0.0, %v1431
      %v1433 = vpop.f32.mrb[0].mxu0
      %1434 = vdwg.mxu0
      %v1435 = vadd.f32 %v1286, %v1432
      %s1436 = scalar_lea.vmem %s5, 32
      %v1437 = vld [vmem:[%s1436] sm:$0xff]
      %s1438 = scalar_lea.vmem %s4, 64
      %v1439 = vld [vmem:[%s1438] sm:$0xff]
      %v1440 = vld [vmem:[%s1438 + $0x8] sm:$0xff]
      %1441 = vmatprep.subr.mxu0 0.0
      %1442 = vmatpush1.msra.mxu0 %v1439
      %1443 = vmatprep.subr.mxu0 0.0
      %1444 = vmatpush1.msra.mxu0 %v1440
      %1445 = vmatprep.subr.mxu0 0.0
      %1446 = vmatpush1.msra.mxu0 0.0
      %1447 = vmatprep.subr.mxu0 0.0
      %1448 = vmatpush1.msra.mxu0 0.0
      %1449 = vmatprep.subr.mxu0 0.0
      %1450 = vmatpush1.msra.mxu0 0.0
      %1451 = vmatprep.subr.mxu0 0.0
      %1452 = vmatpush1.msra.mxu0 0.0
      %1453 = vmatprep.subr.mxu0 0.0
      %1454 = vmatpush1.msra.mxu0 0.0
      %1455 = vmatprep.subr.mxu0 0.0
      %1456 = vmatpush1.msra.mxu0 0.0
      %1457 = vmatprep.subr.mxu0 0.0
      %1458 = vmatpush1.msra.mxu0 0.0
      %1459 = vmatprep.subr.mxu0 0.0
      %1460 = vmatpush1.msra.mxu0 0.0
      %1461 = vmatprep.subr.mxu0 0.0
      %1462 = vmatpush1.msra.mxu0 0.0
      %1463 = vmatprep.subr.mxu0 0.0
      %1464 = vmatpush1.msra.mxu0 0.0
      %1465 = vmatprep.subr.mxu0 0.0
      %1466 = vmatpush1.msra.mxu0 0.0
      %1467 = vmatprep.subr.mxu0 0.0
      %1468 = vmatpush1.msra.mxu0 0.0
      %1469 = vmatprep.subr.mxu0 0.0
      %1470 = vmatpush1.msra.mxu0 0.0
      %1471 = vmatprep.subr.mxu0 0.0
      %1472 = vmatpush1.msra.mxu0 0.0
      %1473 = vmatprep.subr.mxu0 0.0
      %1474 = vmatpush1.msra.mxu0 0.0
      %1475 = vmatprep.subr.mxu0 0.0
      %1476 = vmatpush1.msra.mxu0 0.0
      %1477 = vmatprep.subr.mxu0 0.0
      %1478 = vmatpush1.msra.mxu0 0.0
      %1479 = vmatprep.subr.mxu0 0.0
      %1480 = vmatpush1.msra.mxu0 0.0
      %1481 = vmatprep.subr.mxu0 0.0
      %1482 = vmatpush1.msra.mxu0 0.0
      %1483 = vmatprep.subr.mxu0 0.0
      %1484 = vmatpush1.msra.mxu0 0.0
      %1485 = vmatprep.subr.mxu0 0.0
      %1486 = vmatpush1.msra.mxu0 0.0
      %1487 = vmatprep.subr.mxu0 0.0
      %1488 = vmatpush1.msra.mxu0 0.0
      %1489 = vmatprep.subr.mxu0 0.0
      %1490 = vmatpush1.msra.mxu0 0.0
      %1491 = vmatprep.subr.mxu0 0.0
      %1492 = vmatpush1.msra.mxu0 0.0
      %1493 = vmatprep.subr.mxu0 0.0
      %1494 = vmatpush1.msra.mxu0 0.0
      %1495 = vmatprep.subr.mxu0 0.0
      %1496 = vmatpush1.msra.mxu0 0.0
      %1497 = vmatprep.subr.mxu0 0.0
      %1498 = vmatpush1.msra.mxu0 0.0
      %1499 = vmatprep.subr.mxu0 0.0
      %1500 = vmatpush1.msra.mxu0 0.0
      %1501 = vmatprep.subr.mxu0 0.0
      %1502 = vmatpush1.msra.mxu0 0.0
      %1503 = vmatprep.subr.mxu0 0.0
      %1504 = vmatpush1.msra.mxu0 0.0
      %1505 = vmatprep.mubr.f32.mxu0 0.0
      %1506 = vmatmul.mubr.f32.gmra.mrb[0].mxu0 %v844
      %v1507 = vpop.f32.mrb[0].mxu0
      %v1508 = vadd.f32 0.0, %v1507
      %v1509 = vpop.f32.mrb[0].mxu0
      %1510 = vdwg.mxu0
      %v1512 = vsel %vm991, %v1437, 0
      %1514 = vmatprep.subr.mxu0 0.0
      %1515 = vmatpush1.msra.mxu0 %v1508
      %1516 = vmatprep.subr.mxu0 0.0
      %1517 = vmatpush1.msra.mxu0 0.0
      %1518 = vmatprep.subr.mxu0 0.0
      %1519 = vmatpush1.msra.mxu0 0.0
      %1520 = vmatprep.subr.mxu0 0.0
      %1521 = vmatpush1.msra.mxu0 0.0
      %1522 = vmatprep.subr.mxu0 0.0
      %1523 = vmatpush1.msra.mxu0 0.0
      %1524 = vmatprep.subr.mxu0 0.0
      %1525 = vmatpush1.msra.mxu0 0.0
      %1526 = vmatprep.subr.mxu0 0.0
      %1527 = vmatpush1.msra.mxu0 0.0
      %1528 = vmatprep.subr.mxu0 0.0
      %1529 = vmatpush1.msra.mxu0 0.0
      %1530 = vmatprep.subr.mxu0 0.0
      %1531 = vmatpush1.msra.mxu0 0.0
      %1532 = vmatprep.subr.mxu0 0.0
      %1533 = vmatpush1.msra.mxu0 0.0
      %1534 = vmatprep.subr.mxu0 0.0
      %1535 = vmatpush1.msra.mxu0 0.0
      %1536 = vmatprep.subr.mxu0 0.0
      %1537 = vmatpush1.msra.mxu0 0.0
      %1538 = vmatprep.subr.mxu0 0.0
      %1539 = vmatpush1.msra.mxu0 0.0
      %1540 = vmatprep.subr.mxu0 0.0
      %1541 = vmatpush1.msra.mxu0 0.0
      %1542 = vmatprep.subr.mxu0 0.0
      %1543 = vmatpush1.msra.mxu0 0.0
      %1544 = vmatprep.subr.mxu0 0.0
      %1545 = vmatpush1.msra.mxu0 0.0
      %1546 = vmatprep.subr.mxu0 0.0
      %1547 = vmatpush1.msra.mxu0 0.0
      %1548 = vmatprep.subr.mxu0 0.0
      %1549 = vmatpush1.msra.mxu0 0.0
      %1550 = vmatprep.subr.mxu0 0.0
      %1551 = vmatpush1.msra.mxu0 0.0
      %1552 = vmatprep.subr.mxu0 0.0
      %1553 = vmatpush1.msra.mxu0 0.0
      %1554 = vmatprep.subr.mxu0 0.0
      %1555 = vmatpush1.msra.mxu0 0.0
      %1556 = vmatprep.subr.mxu0 0.0
      %1557 = vmatpush1.msra.mxu0 0.0
      %1558 = vmatprep.subr.mxu0 0.0
      %1559 = vmatpush1.msra.mxu0 0.0
      %1560 = vmatprep.subr.mxu0 0.0
      %1561 = vmatpush1.msra.mxu0 0.0
      %1562 = vmatprep.subr.mxu0 0.0
      %1563 = vmatpush1.msra.mxu0 0.0
      %1564 = vmatprep.subr.mxu0 0.0
      %1565 = vmatpush1.msra.mxu0 0.0
      %1566 = vmatprep.subr.mxu0 0.0
      %1567 = vmatpush1.msra.mxu0 0.0
      %1568 = vmatprep.subr.mxu0 0.0
      %1569 = vmatpush1.msra.mxu0 0.0
      %1570 = vmatprep.subr.mxu0 0.0
      %1571 = vmatpush1.msra.mxu0 0.0
      %1572 = vmatprep.subr.mxu0 0.0
      %1573 = vmatpush1.msra.mxu0 0.0
      %1574 = vmatprep.subr.mxu0 0.0
      %1575 = vmatpush1.msra.mxu0 0.0
      %1576 = vmatprep.subr.mxu0 0.0
      %1577 = vmatpush1.msra.mxu0 0.0
      %1578 = vmatprep.mubr.f32.mxu0 0.0
      %1579 = vmatmul.mubr.f32.gmra.mrb[0].mxu0 %v1512
      %v1580 = vpop.f32.mrb[0].mxu0
      %v1581 = vadd.f32 0.0, %v1580
      %v1582 = vpop.f32.mrb[0].mxu0
      %1583 = vdwg.mxu0
      %v1584 = vadd.f32 %v1435, %v1581
      %s1585 = scalar_lea.vmem %s5, 40
      %v1586 = vld [vmem:[%s1585] sm:$0xff]
      %s1587 = scalar_lea.vmem %s4, 80
      %v1588 = vld [vmem:[%s1587] sm:$0xff]
      %v1589 = vld [vmem:[%s1587 + $0x8] sm:$0xff]
      %1590 = vmatprep.subr.mxu0 0.0
      %1591 = vmatpush1.msra.mxu0 %v1588
      %1592 = vmatprep.subr.mxu0 0.0
      %1593 = vmatpush1.msra.mxu0 %v1589
      %1594 = vmatprep.subr.mxu0 0.0
      %1595 = vmatpush1.msra.mxu0 0.0
      %1596 = vmatprep.subr.mxu0 0.0
      %1597 = vmatpush1.msra.mxu0 0.0
      %1598 = vmatprep.subr.mxu0 0.0
      %1599 = vmatpush1.msra.mxu0 0.0
      %1600 = vmatprep.subr.mxu0 0.0
      %1601 = vmatpush1.msra.mxu0 0.0
      %1602 = vmatprep.subr.mxu0 0.0
      %1603 = vmatpush1.msra.mxu0 0.0
      %1604 = vmatprep.subr.mxu0 0.0
      %1605 = vmatpush1.msra.mxu0 0.0
      %1606 = vmatprep.subr.mxu0 0.0
      %1607 = vmatpush1.msra.mxu0 0.0
      %1608 = vmatprep.subr.mxu0 0.0
      %1609 = vmatpush1.msra.mxu0 0.0
      %1610 = vmatprep.subr.mxu0 0.0
      %1611 = vmatpush1.msra.mxu0 0.0
      %1612 = vmatprep.subr.mxu0 0.0
      %1613 = vmatpush1.msra.mxu0 0.0
      %1614 = vmatprep.subr.mxu0 0.0
      %1615 = vmatpush1.msra.mxu0 0.0
      %1616 = vmatprep.subr.mxu0 0.0
      %1617 = vmatpush1.msra.mxu0 0.0
      %1618 = vmatprep.subr.mxu0 0.0
      %1619 = vmatpush1.msra.mxu0 0.0
      %1620 = vmatprep.subr.mxu0 0.0
      %1621 = vmatpush1.msra.mxu0 0.0
      %1622 = vmatprep.subr.mxu0 0.0
      %1623 = vmatpush1.msra.mxu0 0.0
      %1624 = vmatprep.subr.mxu0 0.0
      %1625 = vmatpush1.msra.mxu0 0.0
      %1626 = vmatprep.subr.mxu0 0.0
      %1627 = vmatpush1.msra.mxu0 0.0
      %1628 = vmatprep.subr.mxu0 0.0
      %1629 = vmatpush1.msra.mxu0 0.0
      %1630 = vmatprep.subr.mxu0 0.0
      %1631 = vmatpush1.msra.mxu0 0.0
      %1632 = vmatprep.subr.mxu0 0.0
      %1633 = vmatpush1.msra.mxu0 0.0
      %1634 = vmatprep.subr.mxu0 0.0
      %1635 = vmatpush1.msra.mxu0 0.0
      %1636 = vmatprep.subr.mxu0 0.0
      %1637 = vmatpush1.msra.mxu0 0.0
      %1638 = vmatprep.subr.mxu0 0.0
      %1639 = vmatpush1.msra.mxu0 0.0
      %1640 = vmatprep.subr.mxu0 0.0
      %1641 = vmatpush1.msra.mxu0 0.0
      %1642 = vmatprep.subr.mxu0 0.0
      %1643 = vmatpush1.msra.mxu0 0.0
      %1644 = vmatprep.subr.mxu0 0.0
      %1645 = vmatpush1.msra.mxu0 0.0
      %1646 = vmatprep.subr.mxu0 0.0
      %1647 = vmatpush1.msra.mxu0 0.0
      %1648 = vmatprep.subr.mxu0 0.0
      %1649 = vmatpush1.msra.mxu0 0.0
      %1650 = vmatprep.subr.mxu0 0.0
      %1651 = vmatpush1.msra.mxu0 0.0
      %1652 = vmatprep.subr.mxu0 0.0
      %1653 = vmatpush1.msra.mxu0 0.0
      %1654 = vmatprep.mubr.f32.mxu0 0.0
      %1655 = vmatmul.mubr.f32.gmra.mrb[0].mxu0 %v844
      %v1656 = vpop.f32.mrb[0].mxu0
      %v1657 = vadd.f32 0.0, %v1656
      %v1658 = vpop.f32.mrb[0].mxu0
      %1659 = vdwg.mxu0
      %v1661 = vsel %vm991, %v1586, 0
      %1663 = vmatprep.subr.mxu0 0.0
      %1664 = vmatpush1.msra.mxu0 %v1657
      %1665 = vmatprep.subr.mxu0 0.0
      %1666 = vmatpush1.msra.mxu0 0.0
      %1667 = vmatprep.subr.mxu0 0.0
      %1668 = vmatpush1.msra.mxu0 0.0
      %1669 = vmatprep.subr.mxu0 0.0
      %1670 = vmatpush1.msra.mxu0 0.0
      %1671 = vmatprep.subr.mxu0 0.0
      %1672 = vmatpush1.msra.mxu0 0.0
      %1673 = vmatprep.subr.mxu0 0.0
      %1674 = vmatpush1.msra.mxu0 0.0
      %1675 = vmatprep.subr.mxu0 0.0
      %1676 = vmatpush1.msra.mxu0 0.0
      %1677 = vmatprep.subr.mxu0 0.0
      %1678 = vmatpush1.msra.mxu0 0.0
      %1679 = vmatprep.subr.mxu0 0.0
      %1680 = vmatpush1.msra.mxu0 0.0
      %1681 = vmatprep.subr.mxu0 0.0
      %1682 = vmatpush1.msra.mxu0 0.0
      %1683 = vmatprep.subr.mxu0 0.0
      %1684 = vmatpush1.msra.mxu0 0.0
      %1685 = vmatprep.subr.mxu0 0.0
      %1686 = vmatpush1.msra.mxu0 0.0
      %1687 = vmatprep.subr.mxu0 0.0
      %1688 = vmatpush1.msra.mxu0 0.0
      %1689 = vmatprep.subr.mxu0 0.0
      %1690 = vmatpush1.msra.mxu0 0.0
      %1691 = vmatprep.subr.mxu0 0.0
      %1692 = vmatpush1.msra.mxu0 0.0
      %1693 = vmatprep.subr.mxu0 0.0
      %1694 = vmatpush1.msra.mxu0 0.0
      %1695 = vmatprep.subr.mxu0 0.0
      %1696 = vmatpush1.msra.mxu0 0.0
      %1697 = vmatprep.subr.mxu0 0.0
      %1698 = vmatpush1.msra.mxu0 0.0
      %1699 = vmatprep.subr.mxu0 0.0
      %1700 = vmatpush1.msra.mxu0 0.0
      %1701 = vmatprep.subr.mxu0 0.0
      %1702 = vmatpush1.msra.mxu0 0.0
      %1703 = vmatprep.subr.mxu0 0.0
      %1704 = vmatpush1.msra.mxu0 0.0
      %1705 = vmatprep.subr.mxu0 0.0
      %1706 = vmatpush1.msra.mxu0 0.0
      %1707 = vmatprep.subr.mxu0 0.0
      %1708 = vmatpush1.msra.mxu0 0.0
      %1709 = vmatprep.subr.mxu0 0.0
      %1710 = vmatpush1.msra.mxu0 0.0
      %1711 = vmatprep.subr.mxu0 0.0
      %1712 = vmatpush1.msra.mxu0 0.0
      %1713 = vmatprep.subr.mxu0 0.0
      %1714 = vmatpush1.msra.mxu0 0.0
      %1715 = vmatprep.subr.mxu0 0.0
      %1716 = vmatpush1.msra.mxu0 0.0
      %1717 = vmatprep.subr.mxu0 0.0
      %1718 = vmatpush1.msra.mxu0 0.0
      %1719 = vmatprep.subr.mxu0 0.0
      %1720 = vmatpush1.msra.mxu0 0.0
      %1721 = vmatprep.subr.mxu0 0.0
      %1722 = vmatpush1.msra.mxu0 0.0
      %1723 = vmatprep.subr.mxu0 0.0
      %1724 = vmatpush1.msra.mxu0 0.0
      %1725 = vmatprep.subr.mxu0 0.0
      %1726 = vmatpush1.msra.mxu0 0.0
      %1727 = vmatprep.mubr.f32.mxu0 0.0
      %1728 = vmatmul.mubr.f32.gmra.mrb[0].mxu0 %v1661
      %v1729 = vpop.f32.mrb[0].mxu0
      %v1730 = vadd.f32 0.0, %v1729
      %v1731 = vpop.f32.mrb[0].mxu0
      %1732 = vdwg.mxu0
      %v1733 = vadd.f32 %v1584, %v1730
      %s1734 = scalar_lea.vmem %s5, 48
      %v1735 = vld [vmem:[%s1734] sm:$0xff]
      %s1736 = scalar_lea.vmem %s4, 96
      %v1737 = vld [vmem:[%s1736] sm:$0xff]
      %v1738 = vld [vmem:[%s1736 + $0x8] sm:$0xff]
      %1739 = vmatprep.subr.mxu0 0.0
      %1740 = vmatpush1.msra.mxu0 %v1737
      %1741 = vmatprep.subr.mxu0 0.0
      %1742 = vmatpush1.msra.mxu0 %v1738
      %1743 = vmatprep.subr.mxu0 0.0
      %1744 = vmatpush1.msra.mxu0 0.0
      %1745 = vmatprep.subr.mxu0 0.0
      %1746 = vmatpush1.msra.mxu0 0.0
      %1747 = vmatprep.subr.mxu0 0.0
      %1748 = vmatpush1.msra.mxu0 0.0
      %1749 = vmatprep.subr.mxu0 0.0
      %1750 = vmatpush1.msra.mxu0 0.0
      %1751 = vmatprep.subr.mxu0 0.0
      %1752 = vmatpush1.msra.mxu0 0.0
      %1753 = vmatprep.subr.mxu0 0.0
      %1754 = vmatpush1.msra.mxu0 0.0
      %1755 = vmatprep.subr.mxu0 0.0
      %1756 = vmatpush1.msra.mxu0 0.0
      %1757 = vmatprep.subr.mxu0 0.0
      %1758 = vmatpush1.msra.mxu0 0.0
      %1759 = vmatprep.subr.mxu0 0.0
      %1760 = vmatpush1.msra.mxu0 0.0
      %1761 = vmatprep.subr.mxu0 0.0
      %1762 = vmatpush1.msra.mxu0 0.0
      %1763 = vmatprep.subr.mxu0 0.0
      %1764 = vmatpush1.msra.mxu0 0.0
      %1765 = vmatprep.subr.mxu0 0.0
      %1766 = vmatpush1.msra.mxu0 0.0
      %1767 = vmatprep.subr.mxu0 0.0
      %1768 = vmatpush1.msra.mxu0 0.0
      %1769 = vmatprep.subr.mxu0 0.0
      %1770 = vmatpush1.msra.mxu0 0.0
      %1771 = vmatprep.subr.mxu0 0.0
      %1772 = vmatpush1.msra.mxu0 0.0
      %1773 = vmatprep.subr.mxu0 0.0
      %1774 = vmatpush1.msra.mxu0 0.0
      %1775 = vmatprep.subr.mxu0 0.0
      %1776 = vmatpush1.msra.mxu0 0.0
      %1777 = vmatprep.subr.mxu0 0.0
      %1778 = vmatpush1.msra.mxu0 0.0
      %1779 = vmatprep.subr.mxu0 0.0
      %1780 = vmatpush1.msra.mxu0 0.0
      %1781 = vmatprep.subr.mxu0 0.0
      %1782 = vmatpush1.msra.mxu0 0.0
      %1783 = vmatprep.subr.mxu0 0.0
      %1784 = vmatpush1.msra.mxu0 0.0
      %1785 = vmatprep.subr.mxu0 0.0
      %1786 = vmatpush1.msra.mxu0 0.0
      %1787 = vmatprep.subr.mxu0 0.0
      %1788 = vmatpush1.msra.mxu0 0.0
      %1789 = vmatprep.subr.mxu0 0.0
      %1790 = vmatpush1.msra.mxu0 0.0
      %1791 = vmatprep.subr.mxu0 0.0
      %1792 = vmatpush1.msra.mxu0 0.0
      %1793 = vmatprep.subr.mxu0 0.0
      %1794 = vmatpush1.msra.mxu0 0.0
      %1795 = vmatprep.subr.mxu0 0.0
      %1796 = vmatpush1.msra.mxu0 0.0
      %1797 = vmatprep.subr.mxu0 0.0
      %1798 = vmatpush1.msra.mxu0 0.0
      %1799 = vmatprep.subr.mxu0 0.0
      %1800 = vmatpush1.msra.mxu0 0.0
      %1801 = vmatprep.subr.mxu0 0.0
      %1802 = vmatpush1.msra.mxu0 0.0
      %1803 = vmatprep.mubr.f32.mxu0 0.0
      %1804 = vmatmul.mubr.f32.gmra.mrb[0].mxu0 %v844
      %v1805 = vpop.f32.mrb[0].mxu0
      %v1806 = vadd.f32 0.0, %v1805
      %v1807 = vpop.f32.mrb[0].mxu0
      %1808 = vdwg.mxu0
      %v1810 = vsel %vm991, %v1735, 0
      %1812 = vmatprep.subr.mxu0 0.0
      %1813 = vmatpush1.msra.mxu0 %v1806
      %1814 = vmatprep.subr.mxu0 0.0
      %1815 = vmatpush1.msra.mxu0 0.0
      %1816 = vmatprep.subr.mxu0 0.0
      %1817 = vmatpush1.msra.mxu0 0.0
      %1818 = vmatprep.subr.mxu0 0.0
      %1819 = vmatpush1.msra.mxu0 0.0
      %1820 = vmatprep.subr.mxu0 0.0
      %1821 = vmatpush1.msra.mxu0 0.0
      %1822 = vmatprep.subr.mxu0 0.0
      %1823 = vmatpush1.msra.mxu0 0.0
      %1824 = vmatprep.subr.mxu0 0.0
      %1825 = vmatpush1.msra.mxu0 0.0
      %1826 = vmatprep.subr.mxu0 0.0
      %1827 = vmatpush1.msra.mxu0 0.0
      %1828 = vmatprep.subr.mxu0 0.0
      %1829 = vmatpush1.msra.mxu0 0.0
      %1830 = vmatprep.subr.mxu0 0.0
      %1831 = vmatpush1.msra.mxu0 0.0
      %1832 = vmatprep.subr.mxu0 0.0
      %1833 = vmatpush1.msra.mxu0 0.0
      %1834 = vmatprep.subr.mxu0 0.0
      %1835 = vmatpush1.msra.mxu0 0.0
      %1836 = vmatprep.subr.mxu0 0.0
      %1837 = vmatpush1.msra.mxu0 0.0
      %1838 = vmatprep.subr.mxu0 0.0
      %1839 = vmatpush1.msra.mxu0 0.0
      %1840 = vmatprep.subr.mxu0 0.0
      %1841 = vmatpush1.msra.mxu0 0.0
      %1842 = vmatprep.subr.mxu0 0.0
      %1843 = vmatpush1.msra.mxu0 0.0
      %1844 = vmatprep.subr.mxu0 0.0
      %1845 = vmatpush1.msra.mxu0 0.0
      %1846 = vmatprep.subr.mxu0 0.0
      %1847 = vmatpush1.msra.mxu0 0.0
      %1848 = vmatprep.subr.mxu0 0.0
      %1849 = vmatpush1.msra.mxu0 0.0
      %1850 = vmatprep.subr.mxu0 0.0
      %1851 = vmatpush1.msra.mxu0 0.0
      %1852 = vmatprep.subr.mxu0 0.0
      %1853 = vmatpush1.msra.mxu0 0.0
      %1854 = vmatprep.subr.mxu0 0.0
      %1855 = vmatpush1.msra.mxu0 0.0
      %1856 = vmatprep.subr.mxu0 0.0
      %1857 = vmatpush1.msra.mxu0 0.0
      %1858 = vmatprep.subr.mxu0 0.0
      %1859 = vmatpush1.msra.mxu0 0.0
      %1860 = vmatprep.subr.mxu0 0.0
      %1861 = vmatpush1.msra.mxu0 0.0
      %1862 = vmatprep.subr.mxu0 0.0
      %1863 = vmatpush1.msra.mxu0 0.0
      %1864 = vmatprep.subr.mxu0 0.0
      %1865 = vmatpush1.msra.mxu0 0.0
      %1866 = vmatprep.subr.mxu0 0.0
      %1867 = vmatpush1.msra.mxu0 0.0
      %1868 = vmatprep.subr.mxu0 0.0
      %1869 = vmatpush1.msra.mxu0 0.0
      %1870 = vmatprep.subr.mxu0 0.0
      %1871 = vmatpush1.msra.mxu0 0.0
      %1872 = vmatprep.subr.mxu0 0.0
      %1873 = vmatpush1.msra.mxu0 0.0
      %1874 = vmatprep.subr.mxu0 0.0
      %1875 = vmatpush1.msra.mxu0 0.0
      %1876 = vmatprep.mubr.f32.mxu0 0.0
      %1877 = vmatmul.mubr.f32.gmra.mrb[0].mxu0 %v1810
      %v1878 = vpop.f32.mrb[0].mxu0
      %v1879 = vadd.f32 0.0, %v1878
      %v1880 = vpop.f32.mrb[0].mxu0
      %1881 = vdwg.mxu0
      %v1882 = vadd.f32 %v1733, %v1879
      %s1883 = scalar_lea.vmem %s5, 56
      %v1884 = vld [vmem:[%s1883] sm:$0xff]
      %s1885 = scalar_lea.vmem %s4, 112
      %v1886 = vld [vmem:[%s1885] sm:$0xff]
      %v1887 = vld [vmem:[%s1885 + $0x8] sm:$0xff]
      %1888 = vmatprep.subr.mxu0 0.0
      %1889 = vmatpush1.msra.mxu0 %v1886
      %1890 = vmatprep.subr.mxu0 0.0
      %1891 = vmatpush1.msra.mxu0 %v1887
      %1892 = vmatprep.subr.mxu0 0.0
      %1893 = vmatpush1.msra.mxu0 0.0
      %1894 = vmatprep.subr.mxu0 0.0
      %1895 = vmatpush1.msra.mxu0 0.0
      %1896 = vmatprep.subr.mxu0 0.0
      %1897 = vmatpush1.msra.mxu0 0.0
      %1898 = vmatprep.subr.mxu0 0.0
      %1899 = vmatpush1.msra.mxu0 0.0
      %1900 = vmatprep.subr.mxu0 0.0
      %1901 = vmatpush1.msra.mxu0 0.0
      %1902 = vmatprep.subr.mxu0 0.0
      %1903 = vmatpush1.msra.mxu0 0.0
      %1904 = vmatprep.subr.mxu0 0.0
      %1905 = vmatpush1.msra.mxu0 0.0
      %1906 = vmatprep.subr.mxu0 0.0
      %1907 = vmatpush1.msra.mxu0 0.0
      %1908 = vmatprep.subr.mxu0 0.0
      %1909 = vmatpush1.msra.mxu0 0.0
      %1910 = vmatprep.subr.mxu0 0.0
      %1911 = vmatpush1.msra.mxu0 0.0
      %1912 = vmatprep.subr.mxu0 0.0
      %1913 = vmatpush1.msra.mxu0 0.0
      %1914 = vmatprep.subr.mxu0 0.0
      %1915 = vmatpush1.msra.mxu0 0.0
      %1916 = vmatprep.subr.mxu0 0.0
      %1917 = vmatpush1.msra.mxu0 0.0
      %1918 = vmatprep.subr.mxu0 0.0
      %1919 = vmatpush1.msra.mxu0 0.0
      %1920 = vmatprep.subr.mxu0 0.0
      %1921 = vmatpush1.msra.mxu0 0.0
      %1922 = vmatprep.subr.mxu0 0.0
      %1923 = vmatpush1.msra.mxu0 0.0
      %1924 = vmatprep.subr.mxu0 0.0
      %1925 = vmatpush1.msra.mxu0 0.0
      %1926 = vmatprep.subr.mxu0 0.0
      %1927 = vmatpush1.msra.mxu0 0.0
      %1928 = vmatprep.subr.mxu0 0.0
      %1929 = vmatpush1.msra.mxu0 0.0
      %1930 = vmatprep.subr.mxu0 0.0
      %1931 = vmatpush1.msra.mxu0 0.0
      %1932 = vmatprep.subr.mxu0 0.0
      %1933 = vmatpush1.msra.mxu0 0.0
      %1934 = vmatprep.subr.mxu0 0.0
      %1935 = vmatpush1.msra.mxu0 0.0
      %1936 = vmatprep.subr.mxu0 0.0
      %1937 = vmatpush1.msra.mxu0 0.0
      %1938 = vmatprep.subr.mxu0 0.0
      %1939 = vmatpush1.msra.mxu0 0.0
      %1940 = vmatprep.subr.mxu0 0.0
      %1941 = vmatpush1.msra.mxu0 0.0
      %1942 = vmatprep.subr.mxu0 0.0
      %1943 = vmatpush1.msra.mxu0 0.0
      %1944 = vmatprep.subr.mxu0 0.0
      %1945 = vmatpush1.msra.mxu0 0.0
      %1946 = vmatprep.subr.mxu0 0.0
      %1947 = vmatpush1.msra.mxu0 0.0
      %1948 = vmatprep.subr.mxu0 0.0
      %1949 = vmatpush1.msra.mxu0 0.0
      %1950 = vmatprep.subr.mxu0 0.0
      %1951 = vmatpush1.msra.mxu0 0.0
      %1952 = vmatprep.mubr.f32.mxu0 0.0
      %1953 = vmatmul.mubr.f32.gmra.mrb[0].mxu0 %v844
      %v1954 = vpop.f32.mrb[0].mxu0
      %v1955 = vadd.f32 0.0, %v1954
      %v1956 = vpop.f32.mrb[0].mxu0
      %1957 = vdwg.mxu0
      %v1959 = vsel %vm991, %v1884, 0
      %1961 = vmatprep.subr.mxu0 0.0
      %1962 = vmatpush1.msra.mxu0 %v1955
      %1963 = vmatprep.subr.mxu0 0.0
      %1964 = vmatpush1.msra.mxu0 0.0
      %1965 = vmatprep.subr.mxu0 0.0
      %1966 = vmatpush1.msra.mxu0 0.0
      %1967 = vmatprep.subr.mxu0 0.0
      %1968 = vmatpush1.msra.mxu0 0.0
      %1969 = vmatprep.subr.mxu0 0.0
      %1970 = vmatpush1.msra.mxu0 0.0
      %1971 = vmatprep.subr.mxu0 0.0
      %1972 = vmatpush1.msra.mxu0 0.0
      %1973 = vmatprep.subr.mxu0 0.0
      %1974 = vmatpush1.msra.mxu0 0.0
      %1975 = vmatprep.subr.mxu0 0.0
      %1976 = vmatpush1.msra.mxu0 0.0
      %1977 = vmatprep.subr.mxu0 0.0
      %1978 = vmatpush1.msra.mxu0 0.0
      %1979 = vmatprep.subr.mxu0 0.0
      %1980 = vmatpush1.msra.mxu0 0.0
      %1981 = vmatprep.subr.mxu0 0.0
      %1982 = vmatpush1.msra.mxu0 0.0
      %1983 = vmatprep.subr.mxu0 0.0
      %1984 = vmatpush1.msra.mxu0 0.0
      %1985 = vmatprep.subr.mxu0 0.0
      %1986 = vmatpush1.msra.mxu0 0.0
      %1987 = vmatprep.subr.mxu0 0.0
      %1988 = vmatpush1.msra.mxu0 0.0
      %1989 = vmatprep.subr.mxu0 0.0
      %1990 = vmatpush1.msra.mxu0 0.0
      %1991 = vmatprep.subr.mxu0 0.0
      %1992 = vmatpush1.msra.mxu0 0.0
      %1993 = vmatprep.subr.mxu0 0.0
      %1994 = vmatpush1.msra.mxu0 0.0
      %1995 = vmatprep.subr.mxu0 0.0
      %1996 = vmatpush1.msra.mxu0 0.0
      %1997 = vmatprep.subr.mxu0 0.0
      %1998 = vmatpush1.msra.mxu0 0.0
      %1999 = vmatprep.subr.mxu0 0.0
      %2000 = vmatpush1.msra.mxu0 0.0
      %2001 = vmatprep.subr.mxu0 0.0
      %2002 = vmatpush1.msra.mxu0 0.0
      %2003 = vmatprep.subr.mxu0 0.0
      %2004 = vmatpush1.msra.mxu0 0.0
      %2005 = vmatprep.subr.mxu0 0.0
      %2006 = vmatpush1.msra.mxu0 0.0
      %2007 = vmatprep.subr.mxu0 0.0
      %2008 = vmatpush1.msra.mxu0 0.0
      %2009 = vmatprep.subr.mxu0 0.0
      %2010 = vmatpush1.msra.mxu0 0.0
      %2011 = vmatprep.subr.mxu0 0.0
      %2012 = vmatpush1.msra.mxu0 0.0
      %2013 = vmatprep.subr.mxu0 0.0
      %2014 = vmatpush1.msra.mxu0 0.0
      %2015 = vmatprep.subr.mxu0 0.0
      %2016 = vmatpush1.msra.mxu0 0.0
      %2017 = vmatprep.subr.mxu0 0.0
      %2018 = vmatpush1.msra.mxu0 0.0
      %2019 = vmatprep.subr.mxu0 0.0
      %2020 = vmatpush1.msra.mxu0 0.0
      %2021 = vmatprep.subr.mxu0 0.0
      %2022 = vmatpush1.msra.mxu0 0.0
      %2023 = vmatprep.subr.mxu0 0.0
      %2024 = vmatpush1.msra.mxu0 0.0
      %2025 = vmatprep.mubr.f32.mxu0 0.0
      %2026 = vmatmul.mubr.f32.gmra.mrb[0].mxu0 %v1959
      %v2027 = vpop.f32.mrb[0].mxu0
      %v2028 = vadd.f32 0.0, %v2027
      %v2029 = vpop.f32.mrb[0].mxu0
      %2030 = vdwg.mxu0
      %v2031 = vadd.f32 %v1882, %v2028
      %s2032 = scalar_lea.vmem %s5, 64
      %v2033 = vld [vmem:[%s2032] sm:$0xff]
      %s2034 = scalar_lea.vmem %s4, 128
      %v2035 = vld [vmem:[%s2034] sm:$0xff]
      %v2036 = vld [vmem:[%s2034 + $0x8] sm:$0xff]
      %2037 = vmatprep.subr.mxu0 0.0
      %2038 = vmatpush1.msra.mxu0 %v2035
      %2039 = vmatprep.subr.mxu0 0.0
      %2040 = vmatpush1.msra.mxu0 %v2036
      %2041 = vmatprep.subr.mxu0 0.0
      %2042 = vmatpush1.msra.mxu0 0.0
      %2043 = vmatprep.subr.mxu0 0.0
      %2044 = vmatpush1.msra.mxu0 0.0
      %2045 = vmatprep.subr.mxu0 0.0
      %2046 = vmatpush1.msra.mxu0 0.0
      %2047 = vmatprep.subr.mxu0 0.0
      %2048 = vmatpush1.msra.mxu0 0.0
      %2049 = vmatprep.subr.mxu0 0.0
      %2050 = vmatpush1.msra.mxu0 0.0
      %2051 = vmatprep.subr.mxu0 0.0
      %2052 = vmatpush1.msra.mxu0 0.0
      %2053 = vmatprep.subr.mxu0 0.0
      %2054 = vmatpush1.msra.mxu0 0.0
      %2055 = vmatprep.subr.mxu0 0.0
      %2056 = vmatpush1.msra.mxu0 0.0
      %2057 = vmatprep.subr.mxu0 0.0
      %2058 = vmatpush1.msra.mxu0 0.0
      %2059 = vmatprep.subr.mxu0 0.0
      %2060 = vmatpush1.msra.mxu0 0.0
      %2061 = vmatprep.subr.mxu0 0.0
      %2062 = vmatpush1.msra.mxu0 0.0
      %2063 = vmatprep.subr.mxu0 0.0
      %2064 = vmatpush1.msra.mxu0 0.0
      %2065 = vmatprep.subr.mxu0 0.0
      %2066 = vmatpush1.msra.mxu0 0.0
      %2067 = vmatprep.subr.mxu0 0.0
      %2068 = vmatpush1.msra.mxu0 0.0
      %2069 = vmatprep.subr.mxu0 0.0
      %2070 = vmatpush1.msra.mxu0 0.0
      %2071 = vmatprep.subr.mxu0 0.0
      %2072 = vmatpush1.msra.mxu0 0.0
      %2073 = vmatprep.subr.mxu0 0.0
      %2074 = vmatpush1.msra.mxu0 0.0
      %2075 = vmatprep.subr.mxu0 0.0
      %2076 = vmatpush1.msra.mxu0 0.0
      %2077 = vmatprep.subr.mxu0 0.0
      %2078 = vmatpush1.msra.mxu0 0.0
      %2079 = vmatprep.subr.mxu0 0.0
      %2080 = vmatpush1.msra.mxu0 0.0
      %2081 = vmatprep.subr.mxu0 0.0
      %2082 = vmatpush1.msra.mxu0 0.0
      %2083 = vmatprep.subr.mxu0 0.0
      %2084 = vmatpush1.msra.mxu0 0.0
      %2085 = vmatprep.subr.mxu0 0.0
      %2086 = vmatpush1.msra.mxu0 0.0
      %2087 = vmatprep.subr.mxu0 0.0
      %2088 = vmatpush1.msra.mxu0 0.0
      %2089 = vmatprep.subr.mxu0 0.0
      %2090 = vmatpush1.msra.mxu0 0.0
      %2091 = vmatprep.subr.mxu0 0.0
      %2092 = vmatpush1.msra.mxu0 0.0
      %2093 = vmatprep.subr.mxu0 0.0
      %2094 = vmatpush1.msra.mxu0 0.0
      %2095 = vmatprep.subr.mxu0 0.0
      %2096 = vmatpush1.msra.mxu0 0.0
      %2097 = vmatprep.subr.mxu0 0.0
      %2098 = vmatpush1.msra.mxu0 0.0
      %2099 = vmatprep.subr.mxu0 0.0
      %2100 = vmatpush1.msra.mxu0 0.0
      %2101 = vmatprep.mubr.f32.mxu0 0.0
      %2102 = vmatmul.mubr.f32.gmra.mrb[0].mxu0 %v844
      %v2103 = vpop.f32.mrb[0].mxu0
      %v2104 = vadd.f32 0.0, %v2103
      %v2105 = vpop.f32.mrb[0].mxu0
      %2106 = vdwg.mxu0
      %v2108 = vsel %vm991, %v2033, 0
      %2110 = vmatprep.subr.mxu0 0.0
      %2111 = vmatpush1.msra.mxu0 %v2104
      %2112 = vmatprep.subr.mxu0 0.0
      %2113 = vmatpush1.msra.mxu0 0.0
      %2114 = vmatprep.subr.mxu0 0.0
      %2115 = vmatpush1.msra.mxu0 0.0
      %2116 = vmatprep.subr.mxu0 0.0
      %2117 = vmatpush1.msra.mxu0 0.0
      %2118 = vmatprep.subr.mxu0 0.0
      %2119 = vmatpush1.msra.mxu0 0.0
      %2120 = vmatprep.subr.mxu0 0.0
      %2121 = vmatpush1.msra.mxu0 0.0
      %2122 = vmatprep.subr.mxu0 0.0
      %2123 = vmatpush1.msra.mxu0 0.0
      %2124 = vmatprep.subr.mxu0 0.0
      %2125 = vmatpush1.msra.mxu0 0.0
      %2126 = vmatprep.subr.mxu0 0.0
      %2127 = vmatpush1.msra.mxu0 0.0
      %2128 = vmatprep.subr.mxu0 0.0
      %2129 = vmatpush1.msra.mxu0 0.0
      %2130 = vmatprep.subr.mxu0 0.0
      %2131 = vmatpush1.msra.mxu0 0.0
      %2132 = vmatprep.subr.mxu0 0.0
      %2133 = vmatpush1.msra.mxu0 0.0
      %2134 = vmatprep.subr.mxu0 0.0
      %2135 = vmatpush1.msra.mxu0 0.0
      %2136 = vmatprep.subr.mxu0 0.0
      %2137 = vmatpush1.msra.mxu0 0.0
      %2138 = vmatprep.subr.mxu0 0.0
      %2139 = vmatpush1.msra.mxu0 0.0
      %2140 = vmatprep.subr.mxu0 0.0
      %2141 = vmatpush1.msra.mxu0 0.0
      %2142 = vmatprep.subr.mxu0 0.0
      %2143 = vmatpush1.msra.mxu0 0.0
      %2144 = vmatprep.subr.mxu0 0.0
      %2145 = vmatpush1.msra.mxu0 0.0
      %2146 = vmatprep.subr.mxu0 0.0
      %2147 = vmatpush1.msra.mxu0 0.0
      %2148 = vmatprep.subr.mxu0 0.0
      %2149 = vmatpush1.msra.mxu0 0.0
      %2150 = vmatprep.subr.mxu0 0.0
      %2151 = vmatpush1.msra.mxu0 0.0
      %2152 = vmatprep.subr.mxu0 0.0
      %2153 = vmatpush1.msra.mxu0 0.0
      %2154 = vmatprep.subr.mxu0 0.0
      %2155 = vmatpush1.msra.mxu0 0.0
      %2156 = vmatprep.subr.mxu0 0.0
      %2157 = vmatpush1.msra.mxu0 0.0
      %2158 = vmatprep.subr.mxu0 0.0
      %2159 = vmatpush1.msra.mxu0 0.0
      %2160 = vmatprep.subr.mxu0 0.0
      %2161 = vmatpush1.msra.mxu0 0.0
      %2162 = vmatprep.subr.mxu0 0.0
      %2163 = vmatpush1.msra.mxu0 0.0
      %2164 = vmatprep.subr.mxu0 0.0
      %2165 = vmatpush1.msra.mxu0 0.0
      %2166 = vmatprep.subr.mxu0 0.0
      %2167 = vmatpush1.msra.mxu0 0.0
      %2168 = vmatprep.subr.mxu0 0.0
      %2169 = vmatpush1.msra.mxu0 0.0
      %2170 = vmatprep.subr.mxu0 0.0
      %2171 = vmatpush1.msra.mxu0 0.0
      %2172 = vmatprep.subr.mxu0 0.0
      %2173 = vmatpush1.msra.mxu0 0.0
      %2174 = vmatprep.mubr.f32.mxu0 0.0
      %2175 = vmatmul.mubr.f32.gmra.mrb[0].mxu0 %v2108
      %v2176 = vpop.f32.mrb[0].mxu0
      %v2177 = vadd.f32 0.0, %v2176
      %v2178 = vpop.f32.mrb[0].mxu0
      %2179 = vdwg.mxu0
      %v2180 = vadd.f32 %v2031, %v2177
      %v2181 = vld [vmem:[%s6] sm:$0xff]
      %2183 = vset.pattern.permute.xlu0 0
      %2184 = vperm.xlu0 %2183, %v2181
      %v2185 = vpop.permute.xlu0 %2184
      %v2187 = vadd.f32 %v2180, %v2185
      %v2188 = vld [vmem:[%s7] sm:$0xff]
      %v2189 = vld [vmem:[%s8] sm:$0xff]
      %v2190 = vsel %vm842, %v836, 0.0
      %v2191 = vrot.slane %v2190, 4
      %v2192 = vadd.f32 %v2190, %v2191
      %v2193 = vrot.slane %v2192, 2
      %v2194 = vadd.f32 %v2192, %v2193
      %v2195 = vrot.slane %v2194, 1
      %v2196 = vadd.f32 %v2194, %v2195
      %v2197 = vrcp.pop 8.0
      %v2198 = vmul.f32 %v2196, %v2197
      %v2199 = vsub.f32 %v836, %v2198
      %v2200 = vmul.f32 %v2199, %v2199
      %v2201 = vsel %vm842, %v2200, 0.0
      %v2202 = vrot.slane %v2201, 4
      %v2203 = vadd.f32 %v2201, %v2202
      %v2204 = vrot.slane %v2203, 2
      %v2205 = vadd.f32 %v2203, %v2204
      %v2206 = vrot.slane %v2205, 1
      %v2207 = vadd.f32 %v2205, %v2206
      %v2208 = vmul.f32 %v2207, %v2197
      %v2209 = vadd.f32 %v2208, 1e-05
      %v2210 = vrsqrt.pop %v2209
      %v2211 = vmul.f32 %v2199, %v2210
      %2213 = vset.pattern.permute.xlu0 0
      %2214 = vperm.xlu0 %2213, %v2188
      %v2215 = vpop.permute.xlu0 %2214
      %v2217 = vmul.f32 %v2211, %v2215
      %2219 = vset.pattern.permute.xlu0 0
      %2220 = vperm.xlu0 %2219, %v2189
      %v2221 = vpop.permute.xlu0 %2220
      %v2223 = vadd.f32 %v2217, %v2221
      %v2224 = vld [vmem:[%s9] sm:$0xff]
      %v2225 = vld [vmem:[%s9 + $0x8] sm:$0xff]
      %v2226 = vld [vmem:[%s9 + $0x10] sm:$0xff]
      %v2228 = vsel %vm991, %v2224, 0
      %v2231 = vsel %vm991, %v2225, 0
      %v2234 = vsel %vm991, %v2226, 0
      %2236 = vmatprep.subr.mxu0 0.0
      %2237 = vmatpush1.msra.mxu0 %v2223
      %2238 = vmatprep.subr.mxu0 0.0
      %2239 = vmatpush1.msra.mxu0 0.0
      %2240 = vmatprep.subr.mxu0 0.0
      %2241 = vmatpush1.msra.mxu0 0.0
      %2242 = vmatprep.subr.mxu0 0.0
      %2243 = vmatpush1.msra.mxu0 0.0
      %2244 = vmatprep.subr.mxu0 0.0
      %2245 = vmatpush1.msra.mxu0 0.0
      %2246 = vmatprep.subr.mxu0 0.0
      %2247 = vmatpush1.msra.mxu0 0.0
      %2248 = vmatprep.subr.mxu0 0.0
      %2249 = vmatpush1.msra.mxu0 0.0
      %2250 = vmatprep.subr.mxu0 0.0
      %2251 = vmatpush1.msra.mxu0 0.0
      %2252 = vmatprep.subr.mxu0 0.0
      %2253 = vmatpush1.msra.mxu0 0.0
      %2254 = vmatprep.subr.mxu0 0.0
      %2255 = vmatpush1.msra.mxu0 0.0
      %2256 = vmatprep.subr.mxu0 0.0
      %2257 = vmatpush1.msra.mxu0 0.0
      %2258 = vmatprep.subr.mxu0 0.0
      %2259 = vmatpush1.msra.mxu0 0.0
      %2260 = vmatprep.subr.mxu0 0.0
      %2261 = vmatpush1.msra.mxu0 0.0
      %2262 = vmatprep.subr.mxu0 0.0
      %2263 = vmatpush1.msra.mxu0 0.0
      %2264 = vmatprep.subr.mxu0 0.0
      %2265 = vmatpush1.msra.mxu0 0.0
      %2266 = vmatprep.subr.mxu0 0.0
      %2267 = vmatpush1.msra.mxu0 0.0
      %2268 = vmatprep.subr.mxu0 0.0
      %2269 = vmatpush1.msra.mxu0 0.0
      %2270 = vmatprep.subr.mxu0 0.0
      %2271 = vmatpush1.msra.mxu0 0.0
      %2272 = vmatprep.subr.mxu0 0.0
      %2273 = vmatpush1.msra.mxu0 0.0
      %2274 = vmatprep.subr.mxu0 0.0
      %2275 = vmatpush1.msra.mxu0 0.0
      %2276 = vmatprep.subr.mxu0 0.0
      %2277 = vmatpush1.msra.mxu0 0.0
      %2278 = vmatprep.subr.mxu0 0.0
      %2279 = vmatpush1.msra.mxu0 0.0
      %2280 = vmatprep.subr.mxu0 0.0
      %2281 = vmatpush1.msra.mxu0 0.0
      %2282 = vmatprep.subr.mxu0 0.0
      %2283 = vmatpush1.msra.mxu0 0.0
      %2284 = vmatprep.subr.mxu0 0.0
      %2285 = vmatpush1.msra.mxu0 0.0
      %2286 = vmatprep.subr.mxu0 0.0
      %2287 = vmatpush1.msra.mxu0 0.0
      %2288 = vmatprep.subr.mxu0 0.0
      %2289 = vmatpush1.msra.mxu0 0.0
      %2290 = vmatprep.subr.mxu0 0.0
      %2291 = vmatpush1.msra.mxu0 0.0
      %2292 = vmatprep.subr.mxu0 0.0
      %2293 = vmatpush1.msra.mxu0 0.0
      %2294 = vmatprep.subr.mxu0 0.0
      %2295 = vmatpush1.msra.mxu0 0.0
      %2296 = vmatprep.subr.mxu0 0.0
      %2297 = vmatpush1.msra.mxu0 0.0
      %2298 = vmatprep.subr.mxu0 0.0
      %2299 = vmatpush1.msra.mxu0 0.0
      %2300 = vmatprep.mubr.f32.mxu0 0.0
      %2301 = vmatmul.mubr.f32.gmra.mrb[0].mxu0 %v2228
      %v2302 = vpop.f32.mrb[0].mxu0
      %v2303 = vadd.f32 0.0, %v2302
      %v2304 = vpop.f32.mrb[0].mxu0
      %2305 = vmatprep.mubr.f32.mxu0 0.0
      %2306 = vmatmul.mubr.f32.gmra.mrb[0].mxu0 %v2231
      %v2307 = vpop.f32.mrb[0].mxu0
      %v2308 = vadd.f32 0.0, %v2307
      %v2309 = vpop.f32.mrb[0].mxu0
      %2310 = vmatprep.mubr.f32.mxu0 0.0
      %2311 = vmatmul.mubr.f32.gmra.mrb[0].mxu0 %v2234
      %v2312 = vpop.f32.mrb[0].mxu0
      %v2313 = vadd.f32 0.0, %v2312
      %v2314 = vpop.f32.mrb[0].mxu0
      %2315 = vdwg.mxu0
      %v2316 = vlaneseq
      %v2317 = vshrl.u32 %v2316, 7
      %v2318 = vsub.s32 0, %v2317
      %v2319 = vrot.slane %v2303, %v2318
      %2321 = vbcast.lane.b32.xlu0 %v2319, 256
      %v2322 = vpop.permute.xlu0 %2321
      %s2324 = sor.u32 256, 8
      %2325 = vbcast.lane.b32.xlu0 %v2319, %s2324
      %v2326 = vpop.permute.xlu0 %2325
      %v2327 = vlaneseq
      %v2328 = vshrl.u32 %v2327, 7
      %v2329 = vsub.s32 1, %v2328
      %v2330 = vrot.slane %v2303, %v2329
      %2332 = vbcast.lane.b32.xlu0 %v2330, 256
      %v2333 = vpop.permute.xlu0 %2332
      %s2335 = sor.u32 256, 8
      %2336 = vbcast.lane.b32.xlu0 %v2330, %s2335
      %v2337 = vpop.permute.xlu0 %2336
      %v2338 = vlaneseq
      %v2339 = vshrl.u32 %v2338, 7
      %v2340 = vsub.s32 2, %v2339
      %v2341 = vrot.slane %v2303, %v2340
      %2343 = vbcast.lane.b32.xlu0 %v2341, 256
      %v2344 = vpop.permute.xlu0 %2343
      %s2346 = sor.u32 256, 8
      %2347 = vbcast.lane.b32.xlu0 %v2341, %s2346
      %v2348 = vpop.permute.xlu0 %2347
      %v2349 = vlaneseq
      %v2350 = vshrl.u32 %v2349, 7
      %v2351 = vsub.s32 3, %v2350
      %v2352 = vrot.slane %v2303, %v2351
      %2354 = vbcast.lane.b32.xlu0 %v2352, 256
      %v2355 = vpop.permute.xlu0 %2354
      %s2357 = sor.u32 256, 8
      %2358 = vbcast.lane.b32.xlu0 %v2352, %s2357
      %v2359 = vpop.permute.xlu0 %2358
      %v2360 = vlaneseq
      %v2361 = vshrl.u32 %v2360, 7
      %v2362 = vsub.s32 4, %v2361
      %v2363 = vrot.slane %v2303, %v2362
      %2365 = vbcast.lane.b32.xlu0 %v2363, 256
      %v2366 = vpop.permute.xlu0 %2365
      %s2368 = sor.u32 256, 8
      %2369 = vbcast.lane.b32.xlu0 %v2363, %s2368
      %v2370 = vpop.permute.xlu0 %2369
      %v2371 = vlaneseq
      %v2372 = vshrl.u32 %v2371, 7
      %v2373 = vsub.s32 5, %v2372
      %v2374 = vrot.slane %v2303, %v2373
      %2376 = vbcast.lane.b32.xlu0 %v2374, 256
      %v2377 = vpop.permute.xlu0 %2376
      %s2379 = sor.u32 256, 8
      %2380 = vbcast.lane.b32.xlu0 %v2374, %s2379
      %v2381 = vpop.permute.xlu0 %2380
      %v2382 = vlaneseq
      %v2383 = vshrl.u32 %v2382, 7
      %v2384 = vsub.s32 6, %v2383
      %v2385 = vrot.slane %v2303, %v2384
      %2387 = vbcast.lane.b32.xlu0 %v2385, 256
      %v2388 = vpop.permute.xlu0 %2387
      %s2390 = sor.u32 256, 8
      %2391 = vbcast.lane.b32.xlu0 %v2385, %s2390
      %v2392 = vpop.permute.xlu0 %2391
      %v2393 = vlaneseq
      %v2394 = vshrl.u32 %v2393, 7
      %v2395 = vsub.s32 7, %v2394
      %v2396 = vrot.slane %v2303, %v2395
      %2398 = vbcast.lane.b32.xlu0 %v2396, 256
      %v2399 = vpop.permute.xlu0 %2398
      %s2401 = sor.u32 256, 8
      %2402 = vbcast.lane.b32.xlu0 %v2396, %s2401
      %v2403 = vpop.permute.xlu0 %2402
      %v2405 = vcombine.high %v2308, %v2308
      %v2407 = vunpack.c.l.s4 1966171168
      %v2408 = vunpack.c.0.s8 %v2407
      %v2409 = vlaneseq
      %v2410 = vshrl.u32 %v2409, 7
      %v2411 = vsub.s32 %v2408, %v2410
      %v2412 = vrot.slane %v2308, %v2411
      %v2414 = vunpack.c.l.s4 1966171168
      %v2415 = vunpack.c.0.s8 %v2414
      %v2416 = vlaneseq
      %v2417 = vshrl.u32 %v2416, 7
      %v2418 = vsub.s32 %v2415, %v2417
      %v2419 = vrot.slane %v2405, %v2418
      %v2420 = vcombine.high %v2412, %v2412
      %v2421 = vcombine.high %v2419, %v2419
      %v2423 = vunpack.c.l.s4 1966171168
      %v2424 = vunpack.c.0.s8 %v2423
      %v2425 = vlaneseq
      %v2426 = vshrl.u32 %v2425, 7
      %v2427 = vsub.s32 %v2424, %v2426
      %v2428 = vrot.slane %v2412, %v2427
      %v2430 = vunpack.c.l.s4 1966171168
      %v2431 = vunpack.c.0.s8 %v2430
      %v2432 = vlaneseq
      %v2433 = vshrl.u32 %v2432, 7
      %v2434 = vsub.s32 %v2431, %v2433
      %v2435 = vrot.slane %v2419, %v2434
      %v2437 = vunpack.c.l.s4 1966171168
      %v2438 = vunpack.c.0.s8 %v2437
      %v2439 = vlaneseq
      %v2440 = vshrl.u32 %v2439, 7
      %v2441 = vsub.s32 %v2438, %v2440
      %v2442 = vrot.slane %v2420, %v2441
      %v2444 = vunpack.c.l.s4 1966171168
      %v2445 = vunpack.c.0.s8 %v2444
      %v2446 = vlaneseq
      %v2447 = vshrl.u32 %v2446, 7
      %v2448 = vsub.s32 %v2445, %v2447
      %v2449 = vrot.slane %v2421, %v2448
      %v2450 = vcombine.high %v2428, %v2428
      %v2451 = vcombine.high %v2435, %v2435
      %v2452 = vcombine.high %v2442, %v2442
      %v2453 = vcombine.high %v2449, %v2449
      %v2454 = vlaneseq
      %v2455 = vshrl.u32 %v2454, 7
      %v2456 = vsub.s32 0, %v2455
      %v2457 = vrot.slane %v2428, %v2456
      %v2458 = vlaneseq
      %v2459 = vshrl.u32 %v2458, 7
      %v2460 = vsub.s32 0, %v2459
      %v2461 = vrot.slane %v2442, %v2460
      %v2462 = vlaneseq
      %v2463 = vshrl.u32 %v2462, 7
      %v2464 = vsub.s32 0, %v2463
      %v2465 = vrot.slane %v2450, %v2464
      %v2466 = vlaneseq
      %v2467 = vshrl.u32 %v2466, 7
      %v2468 = vsub.s32 0, %v2467
      %v2469 = vrot.slane %v2452, %v2468
      %v2470 = vlaneseq
      %v2471 = vshrl.u32 %v2470, 7
      %v2472 = vsub.s32 0, %v2471
      %v2473 = vrot.slane %v2435, %v2472
      %v2474 = vlaneseq
      %v2475 = vshrl.u32 %v2474, 7
      %v2476 = vsub.s32 0, %v2475
      %v2477 = vrot.slane %v2449, %v2476
      %v2478 = vlaneseq
      %v2479 = vshrl.u32 %v2478, 7
      %v2480 = vsub.s32 0, %v2479
      %v2481 = vrot.slane %v2451, %v2480
      %v2482 = vlaneseq
      %v2483 = vshrl.u32 %v2482, 7
      %v2484 = vsub.s32 0, %v2483
      %v2485 = vrot.slane %v2453, %v2484
      %v2494 = vmul.f32 %v2322, %v2457
      %v2495 = vmul.f32 %v2326, %v2457
      %v2496 = vmul.f32 %v2333, %v2461
      %v2497 = vmul.f32 %v2337, %v2461
      %v2498 = vmul.f32 %v2344, %v2465
      %v2499 = vmul.f32 %v2348, %v2465
      %v2500 = vmul.f32 %v2355, %v2469
      %v2501 = vmul.f32 %v2359, %v2469
      %v2502 = vmul.f32 %v2366, %v2473
      %v2503 = vmul.f32 %v2370, %v2473
      %v2504 = vmul.f32 %v2377, %v2477
      %v2505 = vmul.f32 %v2381, %v2477
      %v2506 = vmul.f32 %v2388, %v2481
      %v2507 = vmul.f32 %v2392, %v2481
      %v2508 = vmul.f32 %v2399, %v2485
      %v2509 = vmul.f32 %v2403, %v2485
      %v2510 = vsel %vm842, %v2494, -inf
      %2511 = vmax.xlane.f32.xlu0 %v2510
      %v2512 = vpop.xlane.xlu0 %2511
      %v2513 = vsel %vm842, %v2495, -inf
      %2514 = vmax.xlane.f32.xlu0 %v2513
      %v2515 = vpop.xlane.xlu0 %2514
      %v2516 = vsel %vm842, %v2496, -inf
      %2517 = vmax.xlane.f32.xlu0 %v2516
      %v2518 = vpop.xlane.xlu0 %2517
      %v2519 = vsel %vm842, %v2497, -inf
      %2520 = vmax.xlane.f32.xlu0 %v2519
      %v2521 = vpop.xlane.xlu0 %2520
      %v2522 = vsel %vm842, %v2498, -inf
      %2523 = vmax.xlane.f32.xlu0 %v2522
      %v2524 = vpop.xlane.xlu0 %2523
      %v2525 = vsel %vm842, %v2499, -inf
      %2526 = vmax.xlane.f32.xlu0 %v2525
      %v2527 = vpop.xlane.xlu0 %2526
      %v2528 = vsel %vm842, %v2500, -inf
      %2529 = vmax.xlane.f32.xlu0 %v2528
      %v2530 = vpop.xlane.xlu0 %2529
      %v2531 = vsel %vm842, %v2501, -inf
      %2532 = vmax.xlane.f32.xlu0 %v2531
      %v2533 = vpop.xlane.xlu0 %2532
      %v2534 = vsel %vm842, %v2502, -inf
      %2535 = vmax.xlane.f32.xlu0 %v2534
      %v2536 = vpop.xlane.xlu0 %2535
      %v2537 = vsel %vm842, %v2503, -inf
      %2538 = vmax.xlane.f32.xlu0 %v2537
      %v2539 = vpop.xlane.xlu0 %2538
      %v2540 = vsel %vm842, %v2504, -inf
      %2541 = vmax.xlane.f32.xlu0 %v2540
      %v2542 = vpop.xlane.xlu0 %2541
      %v2543 = vsel %vm842, %v2505, -inf
      %2544 = vmax.xlane.f32.xlu0 %v2543
      %v2545 = vpop.xlane.xlu0 %2544
      %v2546 = vsel %vm842, %v2506, -inf
      %2547 = vmax.xlane.f32.xlu0 %v2546
      %v2548 = vpop.xlane.xlu0 %2547
      %v2549 = vsel %vm842, %v2507, -inf
      %2550 = vmax.xlane.f32.xlu0 %v2549
      %v2551 = vpop.xlane.xlu0 %2550
      %v2552 = vsel %vm842, %v2508, -inf
      %2553 = vmax.xlane.f32.xlu0 %v2552
      %v2554 = vpop.xlane.xlu0 %2553
      %v2555 = vsel %vm842, %v2509, -inf
      %2556 = vmax.xlane.f32.xlu0 %v2555
      %v2557 = vpop.xlane.xlu0 %2556
      %v2558 = vsub.f32 %v2494, %v2512
      %v2559 = vsub.f32 %v2495, %v2515
      %v2560 = vsub.f32 %v2496, %v2518
      %v2561 = vsub.f32 %v2497, %v2521
      %v2562 = vsub.f32 %v2498, %v2524
      %v2563 = vsub.f32 %v2499, %v2527
      %v2564 = vsub.f32 %v2500, %v2530
      %v2565 = vsub.f32 %v2501, %v2533
      %v2566 = vsub.f32 %v2502, %v2536
      %v2567 = vsub.f32 %v2503, %v2539
      %v2568 = vsub.f32 %v2504, %v2542
      %v2569 = vsub.f32 %v2505, %v2545
      %v2570 = vsub.f32 %v2506, %v2548
      %v2571 = vsub.f32 %v2507, %v2551
      %v2572 = vsub.f32 %v2508, %v2554
      %v2573 = vsub.f32 %v2509, %v2557
      %v2574 = vmul.f32 %v2558, 1.442695
      %v2575 = vpow.pop %v2574
      %v2576 = vmul.f32 %v2559, 1.442695
      %v2577 = vpow.pop %v2576
      %v2578 = vmul.f32 %v2560, 1.442695
      %v2579 = vpow.pop %v2578
      %v2580 = vmul.f32 %v2561, 1.442695
      %v2581 = vpow.pop %v2580
      %v2582 = vmul.f32 %v2562, 1.442695
      %v2583 = vpow.pop %v2582
      %v2584 = vmul.f32 %v2563, 1.442695
      %v2585 = vpow.pop %v2584
      %v2586 = vmul.f32 %v2564, 1.442695
      %v2587 = vpow.pop %v2586
      %v2588 = vmul.f32 %v2565, 1.442695
      %v2589 = vpow.pop %v2588
      %v2590 = vmul.f32 %v2566, 1.442695
      %v2591 = vpow.pop %v2590
      %v2592 = vmul.f32 %v2567, 1.442695
      %v2593 = vpow.pop %v2592
      %v2594 = vmul.f32 %v2568, 1.442695
      %v2595 = vpow.pop %v2594
      %v2596 = vmul.f32 %v2569, 1.442695
      %v2597 = vpow.pop %v2596
      %v2598 = vmul.f32 %v2570, 1.442695
      %v2599 = vpow.pop %v2598
      %v2600 = vmul.f32 %v2571, 1.442695
      %v2601 = vpow.pop %v2600
      %v2602 = vmul.f32 %v2572, 1.442695
      %v2603 = vpow.pop %v2602
      %v2604 = vmul.f32 %v2573, 1.442695
      %v2605 = vpow.pop %v2604
      %v2606 = vsel %vm842, %v2575, 0.0
      %2607 = vadd.xlane.f32.xlu0 %v2606
      %v2608 = vpop.xlane.xlu0 %2607
      %v2609 = vsel %vm842, %v2577, 0.0
      %2610 = vadd.xlane.f32.xlu0 %v2609
      %v2611 = vpop.xlane.xlu0 %2610
      %v2612 = vsel %vm842, %v2579, 0.0
      %2613 = vadd.xlane.f32.xlu0 %v2612
      %v2614 = vpop.xlane.xlu0 %2613
      %v2615 = vsel %vm842, %v2581, 0.0
      %2616 = vadd.xlane.f32.xlu0 %v2615
      %v2617 = vpop.xlane.xlu0 %2616
      %v2618 = vsel %vm842, %v2583, 0.0
      %2619 = vadd.xlane.f32.xlu0 %v2618
      %v2620 = vpop.xlane.xlu0 %2619
      %v2621 = vsel %vm842, %v2585, 0.0
      %2622 = vadd.xlane.f32.xlu0 %v2621
      %v2623 = vpop.xlane.xlu0 %2622
      %v2624 = vsel %vm842, %v2587, 0.0
      %2625 = vadd.xlane.f32.xlu0 %v2624
      %v2626 = vpop.xlane.xlu0 %2625
      %v2627 = vsel %vm842, %v2589, 0.0
      %2628 = vadd.xlane.f32.xlu0 %v2627
      %v2629 = vpop.xlane.xlu0 %2628
      %v2630 = vsel %vm842, %v2591, 0.0
      %2631 = vadd.xlane.f32.xlu0 %v2630
      %v2632 = vpop.xlane.xlu0 %2631
      %v2633 = vsel %vm842, %v2593, 0.0
      %2634 = vadd.xlane.f32.xlu0 %v2633
      %v2635 = vpop.xlane.xlu0 %2634
      %v2636 = vsel %vm842, %v2595, 0.0
      %2637 = vadd.xlane.f32.xlu0 %v2636
      %v2638 = vpop.xlane.xlu0 %2637
      %v2639 = vsel %vm842, %v2597, 0.0
      %2640 = vadd.xlane.f32.xlu0 %v2639
      %v2641 = vpop.xlane.xlu0 %2640
      %v2642 = vsel %vm842, %v2599, 0.0
      %2643 = vadd.xlane.f32.xlu0 %v2642
      %v2644 = vpop.xlane.xlu0 %2643
      %v2645 = vsel %vm842, %v2601, 0.0
      %2646 = vadd.xlane.f32.xlu0 %v2645
      %v2647 = vpop.xlane.xlu0 %2646
      %v2648 = vsel %vm842, %v2603, 0.0
      %2649 = vadd.xlane.f32.xlu0 %v2648
      %v2650 = vpop.xlane.xlu0 %2649
      %v2651 = vsel %vm842, %v2605, 0.0
      %2652 = vadd.xlane.f32.xlu0 %v2651
      %v2653 = vpop.xlane.xlu0 %2652
      %v2654 = vrcp.pop %v2608
      %v2655 = vrcp.pop %v2611
      %v2656 = vrcp.pop %v2614
      %v2657 = vrcp.pop %v2617
      %v2658 = vrcp.pop %v2620
      %v2659 = vrcp.pop %v2623
      %v2660 = vrcp.pop %v2626
      %v2661 = vrcp.pop %v2629
      %v2662 = vrcp.pop %v2632
      %v2663 = vrcp.pop %v2635
      %v2664 = vrcp.pop %v2638
      %v2665 = vrcp.pop %v2641
      %v2666 = vrcp.pop %v2644
      %v2667 = vrcp.pop %v2647
      %v2668 = vrcp.pop %v2650
      %v2669 = vrcp.pop %v2653
      %v2670 = vmul.f32 %v2575, %v2654
      %v2671 = vmul.f32 %v2577, %v2655
      %v2672 = vmul.f32 %v2579, %v2656
      %v2673 = vmul.f32 %v2581, %v2657
      %v2674 = vmul.f32 %v2583, %v2658
      %v2675 = vmul.f32 %v2585, %v2659
      %v2676 = vmul.f32 %v2587, %v2660
      %v2677 = vmul.f32 %v2589, %v2661
      %v2678 = vmul.f32 %v2591, %v2662
      %v2679 = vmul.f32 %v2593, %v2663
      %v2680 = vmul.f32 %v2595, %v2664
      %v2681 = vmul.f32 %v2597, %v2665
      %v2682 = vmul.f32 %v2599, %v2666
      %v2683 = vmul.f32 %v2601, %v2667
      %v2684 = vmul.f32 %v2603, %v2668
      %v2685 = vmul.f32 %v2605, %v2669
      %v2687 = vcombine.high %v2313, %v2313
      %v2689 = vunpack.c.l.s4 1966171168
      %v2690 = vunpack.c.0.s8 %v2689
      %v2691 = vlaneseq
      %v2692 = vshrl.u32 %v2691, 7
      %v2693 = vsub.s32 %v2690, %v2692
      %v2694 = vrot.slane %v2313, %v2693
      %v2696 = vunpack.c.l.s4 1966171168
      %v2697 = vunpack.c.0.s8 %v2696
      %v2698 = vlaneseq
      %v2699 = vshrl.u32 %v2698, 7
      %v2700 = vsub.s32 %v2697, %v2699
      %v2701 = vrot.slane %v2687, %v2700
      %v2702 = vcombine.high %v2694, %v2694
      %v2703 = vcombine.high %v2701, %v2701
      %v2705 = vunpack.c.l.s4 1966171168
      %v2706 = vunpack.c.0.s8 %v2705
      %v2707 = vlaneseq
      %v2708 = vshrl.u32 %v2707, 7
      %v2709 = vsub.s32 %v2706, %v2708
      %v2710 = vrot.slane %v2694, %v2709
      %v2712 = vunpack.c.l.s4 1966171168
      %v2713 = vunpack.c.0.s8 %v2712
      %v2714 = vlaneseq
      %v2715 = vshrl.u32 %v2714, 7
      %v2716 = vsub.s32 %v2713, %v2715
      %v2717 = vrot.slane %v2701, %v2716
      %v2719 = vunpack.c.l.s4 1966171168
      %v2720 = vunpack.c.0.s8 %v2719
      %v2721 = vlaneseq
      %v2722 = vshrl.u32 %v2721, 7
      %v2723 = vsub.s32 %v2720, %v2722
      %v2724 = vrot.slane %v2702, %v2723
      %v2726 = vunpack.c.l.s4 1966171168
      %v2727 = vunpack.c.0.s8 %v2726
      %v2728 = vlaneseq
      %v2729 = vshrl.u32 %v2728, 7
      %v2730 = vsub.s32 %v2727, %v2729
      %v2731 = vrot.slane %v2703, %v2730
      %v2732 = vcombine.high %v2710, %v2710
      %v2733 = vcombine.high %v2717, %v2717
      %v2734 = vcombine.high %v2724, %v2724
      %v2735 = vcombine.high %v2731, %v2731
      %v2736 = vlaneseq
      %v2737 = vshrl.u32 %v2736, 7
      %v2738 = vsub.s32 0, %v2737
      %v2739 = vrot.slane %v2710, %v2738
      %v2740 = vlaneseq
      %v2741 = vshrl.u32 %v2740, 7
      %v2742 = vsub.s32 0, %v2741
      %v2743 = vrot.slane %v2724, %v2742
      %v2744 = vlaneseq
      %v2745 = vshrl.u32 %v2744, 7
      %v2746 = vsub.s32 0, %v2745
      %v2747 = vrot.slane %v2732, %v2746
      %v2748 = vlaneseq
      %v2749 = vshrl.u32 %v2748, 7
      %v2750 = vsub.s32 0, %v2749
      %v2751 = vrot.slane %v2734, %v2750
      %v2752 = vlaneseq
      %v2753 = vshrl.u32 %v2752, 7
      %v2754 = vsub.s32 0, %v2753
      %v2755 = vrot.slane %v2717, %v2754
      %v2756 = vlaneseq
      %v2757 = vshrl.u32 %v2756, 7
      %v2758 = vsub.s32 0, %v2757
      %v2759 = vrot.slane %v2731, %v2758
      %v2760 = vlaneseq
      %v2761 = vshrl.u32 %v2760, 7
      %v2762 = vsub.s32 0, %v2761
      %v2763 = vrot.slane %v2733, %v2762
      %v2764 = vlaneseq
      %v2765 = vshrl.u32 %v2764, 7
      %v2766 = vsub.s32 0, %v2765
      %v2767 = vrot.slane %v2735, %v2766
      %v2776 = vmul.f32 %v2670, %v2739
      %v2777 = vmul.f32 %v2671, %v2739
      %v2778 = vmul.f32 %v2672, %v2743
      %v2779 = vmul.f32 %v2673, %v2743
      %v2780 = vmul.f32 %v2674, %v2747
      %v2781 = vmul.f32 %v2675, %v2747
      %v2782 = vmul.f32 %v2676, %v2751
      %v2783 = vmul.f32 %v2677, %v2751
      %v2784 = vmul.f32 %v2678, %v2755
      %v2785 = vmul.f32 %v2679, %v2755
      %v2786 = vmul.f32 %v2680, %v2759
      %v2787 = vmul.f32 %v2681, %v2759
      %v2788 = vmul.f32 %v2682, %v2763
      %v2789 = vmul.f32 %v2683, %v2763
      %v2790 = vmul.f32 %v2684, %v2767
      %v2791 = vmul.f32 %v2685, %v2767
      %v2792 = vsel %vm842, %v2776, 0.0
      %2793 = vadd.xlane.f32.xlu0 %v2792
      %v2794 = vpop.xlane.xlu0 %2793
      %v2795 = vsel %vm842, %v2777, 0.0
      %2796 = vadd.xlane.f32.xlu0 %v2795
      %v2797 = vpop.xlane.xlu0 %2796
      %v2798 = vsel %vm842, %v2778, 0.0
      %2799 = vadd.xlane.f32.xlu0 %v2798
      %v2800 = vpop.xlane.xlu0 %2799
      %v2801 = vsel %vm842, %v2779, 0.0
      %2802 = vadd.xlane.f32.xlu0 %v2801
      %v2803 = vpop.xlane.xlu0 %2802
      %v2804 = vsel %vm842, %v2780, 0.0
      %2805 = vadd.xlane.f32.xlu0 %v2804
      %v2806 = vpop.xlane.xlu0 %2805
      %v2807 = vsel %vm842, %v2781, 0.0
      %2808 = vadd.xlane.f32.xlu0 %v2807
      %v2809 = vpop.xlane.xlu0 %2808
      %v2810 = vsel %vm842, %v2782, 0.0
      %2811 = vadd.xlane.f32.xlu0 %v2810
      %v2812 = vpop.xlane.xlu0 %2811
      %v2813 = vsel %vm842, %v2783, 0.0
      %2814 = vadd.xlane.f32.xlu0 %v2813
      %v2815 = vpop.xlane.xlu0 %2814
      %v2816 = vsel %vm842, %v2784, 0.0
      %2817 = vadd.xlane.f32.xlu0 %v2816
      %v2818 = vpop.xlane.xlu0 %2817
      %v2819 = vsel %vm842, %v2785, 0.0
      %2820 = vadd.xlane.f32.xlu0 %v2819
      %v2821 = vpop.xlane.xlu0 %2820
      %v2822 = vsel %vm842, %v2786, 0.0
      %2823 = vadd.xlane.f32.xlu0 %v2822
      %v2824 = vpop.xlane.xlu0 %2823
      %v2825 = vsel %vm842, %v2787, 0.0
      %2826 = vadd.xlane.f32.xlu0 %v2825
      %v2827 = vpop.xlane.xlu0 %2826
      %v2828 = vsel %vm842, %v2788, 0.0
      %2829 = vadd.xlane.f32.xlu0 %v2828
      %v2830 = vpop.xlane.xlu0 %2829
      %v2831 = vsel %vm842, %v2789, 0.0
      %2832 = vadd.xlane.f32.xlu0 %v2831
      %v2833 = vpop.xlane.xlu0 %2832
      %v2834 = vsel %vm842, %v2790, 0.0
      %2835 = vadd.xlane.f32.xlu0 %v2834
      %v2836 = vpop.xlane.xlu0 %2835
      %v2837 = vsel %vm842, %v2791, 0.0
      %2838 = vadd.xlane.f32.xlu0 %v2837
      %v2839 = vpop.xlane.xlu0 %2838
      %v2840 = vld [vmem:[%s10] sm:$0xff]
      %v2857 = vlaneseq
      %v2858 = vand.u32 %v2857, 127
      %v2859 = vlaneseq
      %v2860 = vshrl.u32 %v2859, 7
      %v2861 = vsub.s32 %v2858, %v2860
      %v2862 = vrot.slane %v2794, %v2861
      %v2863 = vadd.s32 %v2858, 4294967288
      %v2864 = vlaneseq
      %v2865 = vshrl.u32 %v2864, 7
      %v2866 = vsub.s32 %v2863, %v2865
      %v2867 = vrot.slane %v2797, %v2866
      %vm2868 = vcmask 130112
      %v2869 = vsel %vm2868, %v2867, %v2862
      %v2870 = vlaneseq
      %v2871 = vshrl.u32 %v2870, 7
      %v2872 = vsub.s32 %v2858, %v2871
      %v2873 = vrot.slane %v2800, %v2872
      %v2874 = vlaneseq
      %v2875 = vshrl.u32 %v2874, 7
      %v2876 = vsub.s32 %v2863, %v2875
      %v2877 = vrot.slane %v2803, %v2876
      %v2878 = vsel %vm2868, %v2877, %v2873
      %v2879 = vlaneseq
      %v2880 = vshrl.u32 %v2879, 7
      %v2881 = vsub.s32 %v2858, %v2880
      %v2882 = vrot.slane %v2806, %v2881
      %v2883 = vlaneseq
      %v2884 = vshrl.u32 %v2883, 7
      %v2885 = vsub.s32 %v2863, %v2884
      %v2886 = vrot.slane %v2809, %v2885
      %v2887 = vsel %vm2868, %v2886, %v2882
      %v2888 = vlaneseq
      %v2889 = vshrl.u32 %v2888, 7
      %v2890 = vsub.s32 %v2858, %v2889
      %v2891 = vrot.slane %v2812, %v2890
      %v2892 = vlaneseq
      %v2893 = vshrl.u32 %v2892, 7
      %v2894 = vsub.s32 %v2863, %v2893
      %v2895 = vrot.slane %v2815, %v2894
      %v2896 = vsel %vm2868, %v2895, %v2891
      %v2897 = vlaneseq
      %v2898 = vshrl.u32 %v2897, 7
      %v2899 = vsub.s32 %v2858, %v2898
      %v2900 = vrot.slane %v2818, %v2899
      %v2901 = vlaneseq
      %v2902 = vshrl.u32 %v2901, 7
      %v2903 = vsub.s32 %v2863, %v2902
      %v2904 = vrot.slane %v2821, %v2903
      %v2905 = vsel %vm2868, %v2904, %v2900
      %v2906 = vlaneseq
      %v2907 = vshrl.u32 %v2906, 7
      %v2908 = vsub.s32 %v2858, %v2907
      %v2909 = vrot.slane %v2824, %v2908
      %v2910 = vlaneseq
      %v2911 = vshrl.u32 %v2910, 7
      %v2912 = vsub.s32 %v2863, %v2911
      %v2913 = vrot.slane %v2827, %v2912
      %v2914 = vsel %vm2868, %v2913, %v2909
      %v2915 = vlaneseq
      %v2916 = vshrl.u32 %v2915, 7
      %v2917 = vsub.s32 %v2858, %v2916
      %v2918 = vrot.slane %v2830, %v2917
      %v2919 = vlaneseq
      %v2920 = vshrl.u32 %v2919, 7
      %v2921 = vsub.s32 %v2863, %v2920
      %v2922 = vrot.slane %v2833, %v2921
      %v2923 = vsel %vm2868, %v2922, %v2918
      %v2924 = vlaneseq
      %v2925 = vshrl.u32 %v2924, 7
      %v2926 = vsub.s32 %v2858, %v2925
      %v2927 = vrot.slane %v2836, %v2926
      %v2928 = vlaneseq
      %v2929 = vshrl.u32 %v2928, 7
      %v2930 = vsub.s32 %v2863, %v2929
      %v2931 = vrot.slane %v2839, %v2930
      %v2932 = vsel %vm2868, %v2931, %v2927
      %vm2933 = vcmask 1041409
      %v2934 = vsel %vm2933, %v2878, %v2869
      %vm2935 = vcmask 1042434
      %v2936 = vsel %vm2935, %v2887, %v2934
      %vm2937 = vcmask 1043459
      %v2938 = vsel %vm2937, %v2896, %v2936
      %vm2939 = vcmask 1044484
      %v2940 = vsel %vm2939, %v2905, %v2938
      %vm2941 = vcmask 1045509
      %v2942 = vsel %vm2941, %v2914, %v2940
      %vm2943 = vcmask 1046534
      %v2944 = vsel %vm2943, %v2923, %v2942
      %vm2945 = vcmask 1047559
      %v2946 = vsel %vm2945, %v2932, %v2944
      %v2949 = vsel %vm991, %v2840, 0
      %2951 = vmatprep.subr.mxu0 0.0
      %2952 = vmatpush1.msra.mxu0 %v2946
      %2953 = vmatprep.subr.mxu0 0.0
      %2954 = vmatpush1.msra.mxu0 0.0
      %2955 = vmatprep.subr.mxu0 0.0
      %2956 = vmatpush1.msra.mxu0 0.0
      %2957 = vmatprep.subr.mxu0 0.0
      %2958 = vmatpush1.msra.mxu0 0.0
      %2959 = vmatprep.subr.mxu0 0.0
      %2960 = vmatpush1.msra.mxu0 0.0
      %2961 = vmatprep.subr.mxu0 0.0
      %2962 = vmatpush1.msra.mxu0 0.0
      %2963 = vmatprep.subr.mxu0 0.0
      %2964 = vmatpush1.msra.mxu0 0.0
      %2965 = vmatprep.subr.mxu0 0.0
      %2966 = vmatpush1.msra.mxu0 0.0
      %2967 = vmatprep.subr.mxu0 0.0
      %2968 = vmatpush1.msra.mxu0 0.0
      %2969 = vmatprep.subr.mxu0 0.0
      %2970 = vmatpush1.msra.mxu0 0.0
      %2971 = vmatprep.subr.mxu0 0.0
      %2972 = vmatpush1.msra.mxu0 0.0
      %2973 = vmatprep.subr.mxu0 0.0
      %2974 = vmatpush1.msra.mxu0 0.0
      %2975 = vmatprep.subr.mxu0 0.0
      %2976 = vmatpush1.msra.mxu0 0.0
      %2977 = vmatprep.subr.mxu0 0.0
      %2978 = vmatpush1.msra.mxu0 0.0
      %2979 = vmatprep.subr.mxu0 0.0
      %2980 = vmatpush1.msra.mxu0 0.0
      %2981 = vmatprep.subr.mxu0 0.0
      %2982 = vmatpush1.msra.mxu0 0.0
      %2983 = vmatprep.subr.mxu0 0.0
      %2984 = vmatpush1.msra.mxu0 0.0
      %2985 = vmatprep.subr.mxu0 0.0
      %2986 = vmatpush1.msra.mxu0 0.0
      %2987 = vmatprep.subr.mxu0 0.0
      %2988 = vmatpush1.msra.mxu0 0.0
      %2989 = vmatprep.subr.mxu0 0.0
      %2990 = vmatpush1.msra.mxu0 0.0
      %2991 = vmatprep.subr.mxu0 0.0
      %2992 = vmatpush1.msra.mxu0 0.0
      %2993 = vmatprep.subr.mxu0 0.0
      %2994 = vmatpush1.msra.mxu0 0.0
      %2995 = vmatprep.subr.mxu0 0.0
      %2996 = vmatpush1.msra.mxu0 0.0
      %2997 = vmatprep.subr.mxu0 0.0
      %2998 = vmatpush1.msra.mxu0 0.0
      %2999 = vmatprep.subr.mxu0 0.0
      %3000 = vmatpush1.msra.mxu0 0.0
      %3001 = vmatprep.subr.mxu0 0.0
      %3002 = vmatpush1.msra.mxu0 0.0
      %3003 = vmatprep.subr.mxu0 0.0
      %3004 = vmatpush1.msra.mxu0 0.0
      %3005 = vmatprep.subr.mxu0 0.0
      %3006 = vmatpush1.msra.mxu0 0.0
      %3007 = vmatprep.subr.mxu0 0.0
      %3008 = vmatpush1.msra.mxu0 0.0
      %3009 = vmatprep.subr.mxu0 0.0
      %3010 = vmatpush1.msra.mxu0 0.0
      %3011 = vmatprep.subr.mxu0 0.0
      %3012 = vmatpush1.msra.mxu0 0.0
      %3013 = vmatprep.subr.mxu0 0.0
      %3014 = vmatpush1.msra.mxu0 0.0
      %3015 = vmatprep.mubr.f32.mxu0 0.0
      %3016 = vmatmul.mubr.f32.gmra.mrb[0].mxu0 %v2949
      %v3017 = vpop.f32.mrb[0].mxu0
      %v3018 = vadd.f32 0.0, %v3017
      %v3019 = vpop.f32.mrb[0].mxu0
      %3020 = vdwg.mxu0
      %v3021 = vadd.f32 %v836, %v3018
      %v3022 = vld [vmem:[%s11] sm:$0xff]
      %3024 = vset.pattern.permute.xlu0 0
      %3025 = vperm.xlu0 %3024, %v3022
      %v3026 = vpop.permute.xlu0 %3025
      %v3028 = vadd.f32 %v3021, %v3026
      %v3029 = vld [vmem:[%s12] sm:$0xff]
      %v3030 = vld [vmem:[%s13] sm:$0xff]
      %v3031 = vsel %vm842, %v3028, 0.0
      %v3032 = vrot.slane %v3031, 4
      %v3033 = vadd.f32 %v3031, %v3032
      %v3034 = vrot.slane %v3033, 2
      %v3035 = vadd.f32 %v3033, %v3034
      %v3036 = vrot.slane %v3035, 1
      %v3037 = vadd.f32 %v3035, %v3036
      %v3038 = vmul.f32 %v3037, %v2197
      %v3039 = vsub.f32 %v3028, %v3038
      %v3040 = vmul.f32 %v3039, %v3039
      %v3041 = vsel %vm842, %v3040, 0.0
      %v3042 = vrot.slane %v3041, 4
      %v3043 = vadd.f32 %v3041, %v3042
      %v3044 = vrot.slane %v3043, 2
      %v3045 = vadd.f32 %v3043, %v3044
      %v3046 = vrot.slane %v3045, 1
      %v3047 = vadd.f32 %v3045, %v3046
      %v3048 = vmul.f32 %v3047, %v2197
      %v3049 = vadd.f32 %v3048, 1e-05
      %v3050 = vrsqrt.pop %v3049
      %v3051 = vmul.f32 %v3039, %v3050
      %3053 = vset.pattern.permute.xlu0 0
      %3054 = vperm.xlu0 %3053, %v3029
      %v3055 = vpop.permute.xlu0 %3054
      %v3057 = vmul.f32 %v3051, %v3055
      %3059 = vset.pattern.permute.xlu0 0
      %3060 = vperm.xlu0 %3059, %v3030
      %v3061 = vpop.permute.xlu0 %3060
      %v3063 = vadd.f32 %v3057, %v3061
      %v3064 = vld [vmem:[%s14] sm:$0xff]
      %v3065 = vld [vmem:[%s15] sm:$0xff]
      %3067 = vset.pattern.permute.xlu0 0
      %3068 = vperm.xlu0 %3067, %v3065
      %v3069 = vpop.permute.xlu0 %3068
      %v3072 = vsel %vm991, %v3064, 0
      %3074 = vmatprep.subr.mxu0 0.0
      %3075 = vmatpush1.msra.mxu0 %v3063
      %3076 = vmatprep.subr.mxu0 0.0
      %3077 = vmatpush1.msra.mxu0 0.0
      %3078 = vmatprep.subr.mxu0 0.0
      %3079 = vmatpush1.msra.mxu0 0.0
      %3080 = vmatprep.subr.mxu0 0.0
      %3081 = vmatpush1.msra.mxu0 0.0
      %3082 = vmatprep.subr.mxu0 0.0
      %3083 = vmatpush1.msra.mxu0 0.0
      %3084 = vmatprep.subr.mxu0 0.0
      %3085 = vmatpush1.msra.mxu0 0.0
      %3086 = vmatprep.subr.mxu0 0.0
      %3087 = vmatpush1.msra.mxu0 0.0
      %3088 = vmatprep.subr.mxu0 0.0
      %3089 = vmatpush1.msra.mxu0 0.0
      %3090 = vmatprep.subr.mxu0 0.0
      %3091 = vmatpush1.msra.mxu0 0.0
      %3092 = vmatprep.subr.mxu0 0.0
      %3093 = vmatpush1.msra.mxu0 0.0
      %3094 = vmatprep.subr.mxu0 0.0
      %3095 = vmatpush1.msra.mxu0 0.0
      %3096 = vmatprep.subr.mxu0 0.0
      %3097 = vmatpush1.msra.mxu0 0.0
      %3098 = vmatprep.subr.mxu0 0.0
      %3099 = vmatpush1.msra.mxu0 0.0
      %3100 = vmatprep.subr.mxu0 0.0
      %3101 = vmatpush1.msra.mxu0 0.0
      %3102 = vmatprep.subr.mxu0 0.0
      %3103 = vmatpush1.msra.mxu0 0.0
      %3104 = vmatprep.subr.mxu0 0.0
      %3105 = vmatpush1.msra.mxu0 0.0
      %3106 = vmatprep.subr.mxu0 0.0
      %3107 = vmatpush1.msra.mxu0 0.0
      %3108 = vmatprep.subr.mxu0 0.0
      %3109 = vmatpush1.msra.mxu0 0.0
      %3110 = vmatprep.subr.mxu0 0.0
      %3111 = vmatpush1.msra.mxu0 0.0
      %3112 = vmatprep.subr.mxu0 0.0
      %3113 = vmatpush1.msra.mxu0 0.0
      %3114 = vmatprep.subr.mxu0 0.0
      %3115 = vmatpush1.msra.mxu0 0.0
      %3116 = vmatprep.subr.mxu0 0.0
      %3117 = vmatpush1.msra.mxu0 0.0
      %3118 = vmatprep.subr.mxu0 0.0
      %3119 = vmatpush1.msra.mxu0 0.0
      %3120 = vmatprep.subr.mxu0 0.0
      %3121 = vmatpush1.msra.mxu0 0.0
      %3122 = vmatprep.subr.mxu0 0.0
      %3123 = vmatpush1.msra.mxu0 0.0
      %3124 = vmatprep.subr.mxu0 0.0
      %3125 = vmatpush1.msra.mxu0 0.0
      %3126 = vmatprep.subr.mxu0 0.0
      %3127 = vmatpush1.msra.mxu0 0.0
      %3128 = vmatprep.subr.mxu0 0.0
      %3129 = vmatpush1.msra.mxu0 0.0
      %3130 = vmatprep.subr.mxu0 0.0
      %3131 = vmatpush1.msra.mxu0 0.0
      %3132 = vmatprep.subr.mxu0 0.0
      %3133 = vmatpush1.msra.mxu0 0.0
      %3134 = vmatprep.subr.mxu0 0.0
      %3135 = vmatpush1.msra.mxu0 0.0
      %3136 = vmatprep.subr.mxu0 0.0
      %3137 = vmatpush1.msra.mxu0 0.0
      %3138 = vmatprep.mubr.f32.mxu0 0.0
      %3139 = vmatmul.mubr.f32.gmra.mrb[0].mxu0 %v3072
      %v3140 = vpop.f32.mrb[0].mxu0
      %v3141 = vadd.f32 %v3069, %v3140
      %v3142 = vpop.f32.mrb[0].mxu0
      %3143 = vdwg.mxu0
      %v3144 = vmul.f32 %v3141, %v3141
      %v3145 = vmul.f32 %v3141, %v3144
      %v3146 = vmul.f32 %v3145, 0.044715
      %v3147 = vadd.f32 %v3141, %v3146
      %v3148 = vmul.f32 %v3147, 0.7978846
      %v3149 = vtanh.pop %v3148
      %v3150 = vadd.f32 %v3149, 1.0
      %v3151 = vmul.f32 %v3150, 0.5
      %v3152 = vmul.f32 %v3141, %v3151
      %v3153 = vld [vmem:[%s16] sm:$0xff]
      %v3154 = vld [vmem:[%s17] sm:$0xff]
      %3156 = vset.pattern.permute.xlu0 0
      %3157 = vperm.xlu0 %3156, %v3154
      %v3158 = vpop.permute.xlu0 %3157
      %v3161 = vsel %vm991, %v3153, 0
      %3163 = vmatprep.subr.mxu0 0.0
      %3164 = vmatpush1.msra.mxu0 %v3152
      %3165 = vmatprep.subr.mxu0 0.0
      %3166 = vmatpush1.msra.mxu0 0.0
      %3167 = vmatprep.subr.mxu0 0.0
      %3168 = vmatpush1.msra.mxu0 0.0
      %3169 = vmatprep.subr.mxu0 0.0
      %3170 = vmatpush1.msra.mxu0 0.0
      %3171 = vmatprep.subr.mxu0 0.0
      %3172 = vmatpush1.msra.mxu0 0.0
      %3173 = vmatprep.subr.mxu0 0.0
      %3174 = vmatpush1.msra.mxu0 0.0
      %3175 = vmatprep.subr.mxu0 0.0
      %3176 = vmatpush1.msra.mxu0 0.0
      %3177 = vmatprep.subr.mxu0 0.0
      %3178 = vmatpush1.msra.mxu0 0.0
      %3179 = vmatprep.subr.mxu0 0.0
      %3180 = vmatpush1.msra.mxu0 0.0
      %3181 = vmatprep.subr.mxu0 0.0
      %3182 = vmatpush1.msra.mxu0 0.0
      %3183 = vmatprep.subr.mxu0 0.0
      %3184 = vmatpush1.msra.mxu0 0.0
      %3185 = vmatprep.subr.mxu0 0.0
      %3186 = vmatpush1.msra.mxu0 0.0
      %3187 = vmatprep.subr.mxu0 0.0
      %3188 = vmatpush1.msra.mxu0 0.0
      %3189 = vmatprep.subr.mxu0 0.0
      %3190 = vmatpush1.msra.mxu0 0.0
      %3191 = vmatprep.subr.mxu0 0.0
      %3192 = vmatpush1.msra.mxu0 0.0
      %3193 = vmatprep.subr.mxu0 0.0
      %3194 = vmatpush1.msra.mxu0 0.0
      %3195 = vmatprep.subr.mxu0 0.0
      %3196 = vmatpush1.msra.mxu0 0.0
      %3197 = vmatprep.subr.mxu0 0.0
      %3198 = vmatpush1.msra.mxu0 0.0
      %3199 = vmatprep.subr.mxu0 0.0
      %3200 = vmatpush1.msra.mxu0 0.0
      %3201 = vmatprep.subr.mxu0 0.0
      %3202 = vmatpush1.msra.mxu0 0.0
      %3203 = vmatprep.subr.mxu0 0.0
      %3204 = vmatpush1.msra.mxu0 0.0
      %3205 = vmatprep.subr.mxu0 0.0
      %3206 = vmatpush1.msra.mxu0 0.0
      %3207 = vmatprep.subr.mxu0 0.0
      %3208 = vmatpush1.msra.mxu0 0.0
      %3209 = vmatprep.subr.mxu0 0.0
      %3210 = vmatpush1.msra.mxu0 0.0
      %3211 = vmatprep.subr.mxu0 0.0
      %3212 = vmatpush1.msra.mxu0 0.0
      %3213 = vmatprep.subr.mxu0 0.0
      %3214 = vmatpush1.msra.mxu0 0.0
      %3215 = vmatprep.subr.mxu0 0.0
      %3216 = vmatpush1.msra.mxu0 0.0
      %3217 = vmatprep.subr.mxu0 0.0
      %3218 = vmatpush1.msra.mxu0 0.0
      %3219 = vmatprep.subr.mxu0 0.0
      %3220 = vmatpush1.msra.mxu0 0.0
      %3221 = vmatprep.subr.mxu0 0.0
      %3222 = vmatpush1.msra.mxu0 0.0
      %3223 = vmatprep.subr.mxu0 0.0
      %3224 = vmatpush1.msra.mxu0 0.0
      %3225 = vmatprep.subr.mxu0 0.0
      %3226 = vmatpush1.msra.mxu0 0.0
      %3227 = vmatprep.mubr.f32.mxu0 0.0
      %3228 = vmatmul.mubr.f32.gmra.mrb[0].mxu0 %v3161
      %v3229 = vpop.f32.mrb[0].mxu0
      %v3230 = vadd.f32 %v3158, %v3229
      %v3231 = vpop.f32.mrb[0].mxu0
      %3232 = vdwg.mxu0
      %v3233 = vadd.f32 %v3028, %v3230
      %v3234 = vld [vmem:[%s18] sm:$0xff]
      %v3235 = vld [vmem:[%s18 + $0x8] sm:$0xff]
      %v3236 = vld [vmem:[%s18 + $0x10] sm:$0xff]
      %v3238 = vsel %vm842, %v3233, 0
      %3240 = vmatprep.subr.mxu0 0.0
      %3241 = vmatpush1.msra.mxu0 %v840
      %3242 = vmatprep.subr.mxu0 0.0
      %3243 = vmatpush1.msra.mxu0 %v841
      %3244 = vmatprep.subr.mxu0 0.0
      %3245 = vmatpush1.msra.mxu0 0.0
      %3246 = vmatprep.subr.mxu0 0.0
      %3247 = vmatpush1.msra.mxu0 0.0
      %3248 = vmatprep.subr.mxu0 0.0
      %3249 = vmatpush1.msra.mxu0 0.0
      %3250 = vmatprep.subr.mxu0 0.0
      %3251 = vmatpush1.msra.mxu0 0.0
      %3252 = vmatprep.subr.mxu0 0.0
      %3253 = vmatpush1.msra.mxu0 0.0
      %3254 = vmatprep.subr.mxu0 0.0
      %3255 = vmatpush1.msra.mxu0 0.0
      %3256 = vmatprep.subr.mxu0 0.0
      %3257 = vmatpush1.msra.mxu0 0.0
      %3258 = vmatprep.subr.mxu0 0.0
      %3259 = vmatpush1.msra.mxu0 0.0
      %3260 = vmatprep.subr.mxu0 0.0
      %3261 = vmatpush1.msra.mxu0 0.0
      %3262 = vmatprep.subr.mxu0 0.0
      %3263 = vmatpush1.msra.mxu0 0.0
      %3264 = vmatprep.subr.mxu0 0.0
      %3265 = vmatpush1.msra.mxu0 0.0
      %3266 = vmatprep.subr.mxu0 0.0
      %3267 = vmatpush1.msra.mxu0 0.0
      %3268 = vmatprep.subr.mxu0 0.0
      %3269 = vmatpush1.msra.mxu0 0.0
      %3270 = vmatprep.subr.mxu0 0.0
      %3271 = vmatpush1.msra.mxu0 0.0
      %3272 = vmatprep.subr.mxu0 0.0
      %3273 = vmatpush1.msra.mxu0 0.0
      %3274 = vmatprep.subr.mxu0 0.0
      %3275 = vmatpush1.msra.mxu0 0.0
      %3276 = vmatprep.subr.mxu0 0.0
      %3277 = vmatpush1.msra.mxu0 0.0
      %3278 = vmatprep.subr.mxu0 0.0
      %3279 = vmatpush1.msra.mxu0 0.0
      %3280 = vmatprep.subr.mxu0 0.0
      %3281 = vmatpush1.msra.mxu0 0.0
      %3282 = vmatprep.subr.mxu0 0.0
      %3283 = vmatpush1.msra.mxu0 0.0
      %3284 = vmatprep.subr.mxu0 0.0
      %3285 = vmatpush1.msra.mxu0 0.0
      %3286 = vmatprep.subr.mxu0 0.0
      %3287 = vmatpush1.msra.mxu0 0.0
      %3288 = vmatprep.subr.mxu0 0.0
      %3289 = vmatpush1.msra.mxu0 0.0
      %3290 = vmatprep.subr.mxu0 0.0
      %3291 = vmatpush1.msra.mxu0 0.0
      %3292 = vmatprep.subr.mxu0 0.0
      %3293 = vmatpush1.msra.mxu0 0.0
      %3294 = vmatprep.subr.mxu0 0.0
      %3295 = vmatpush1.msra.mxu0 0.0
      %3296 = vmatprep.subr.mxu0 0.0
      %3297 = vmatpush1.msra.mxu0 0.0
      %3298 = vmatprep.subr.mxu0 0.0
      %3299 = vmatpush1.msra.mxu0 0.0
      %3300 = vmatprep.subr.mxu0 0.0
      %3301 = vmatpush1.msra.mxu0 0.0
      %3302 = vmatprep.subr.mxu0 0.0
      %3303 = vmatpush1.msra.mxu0 0.0
      %3304 = vmatprep.mubr.f32.mxu0 0.0
      %3305 = vmatmul.mubr.f32.gmra.mrb[0].mxu0 %v3238
      %v3306 = vpop.f32.mrb[0].mxu0
      %v3307 = vadd.f32 0.0, %v3306
      %v3308 = vpop.f32.mrb[0].mxu0
      %3309 = vdwg.mxu0
      %v3310 = vld [vmem:[%s19] sm:$0xff]
      %v3311 = vld [vmem:[%s19 + $0x8] sm:$0xff]
      %v3312 = vld [vmem:[%s19 + $0x10] sm:$0xff]
      %v3314 = vsel %vm842, %v2187, 0
      %3316 = vmatprep.subr.mxu0 0.0
      %3317 = vmatpush1.msra.mxu0 %v840
      %3318 = vmatprep.subr.mxu0 0.0
      %3319 = vmatpush1.msra.mxu0 %v841
      %3320 = vmatprep.subr.mxu0 0.0
      %3321 = vmatpush1.msra.mxu0 0.0
      %3322 = vmatprep.subr.mxu0 0.0
      %3323 = vmatpush1.msra.mxu0 0.0
      %3324 = vmatprep.subr.mxu0 0.0
      %3325 = vmatpush1.msra.mxu0 0.0
      %3326 = vmatprep.subr.mxu0 0.0
      %3327 = vmatpush1.msra.mxu0 0.0
      %3328 = vmatprep.subr.mxu0 0.0
      %3329 = vmatpush1.msra.mxu0 0.0
      %3330 = vmatprep.subr.mxu0 0.0
      %3331 = vmatpush1.msra.mxu0 0.0
      %3332 = vmatprep.subr.mxu0 0.0
      %3333 = vmatpush1.msra.mxu0 0.0
      %3334 = vmatprep.subr.mxu0 0.0
      %3335 = vmatpush1.msra.mxu0 0.0
      %3336 = vmatprep.subr.mxu0 0.0
      %3337 = vmatpush1.msra.mxu0 0.0
      %3338 = vmatprep.subr.mxu0 0.0
      %3339 = vmatpush1.msra.mxu0 0.0
      %3340 = vmatprep.subr.mxu0 0.0
      %3341 = vmatpush1.msra.mxu0 0.0
      %3342 = vmatprep.subr.mxu0 0.0
      %3343 = vmatpush1.msra.mxu0 0.0
      %3344 = vmatprep.subr.mxu0 0.0
      %3345 = vmatpush1.msra.mxu0 0.0
      %3346 = vmatprep.subr.mxu0 0.0
      %3347 = vmatpush1.msra.mxu0 0.0
      %3348 = vmatprep.subr.mxu0 0.0
      %3349 = vmatpush1.msra.mxu0 0.0
      %3350 = vmatprep.subr.mxu0 0.0
      %3351 = vmatpush1.msra.mxu0 0.0
      %3352 = vmatprep.subr.mxu0 0.0
      %3353 = vmatpush1.msra.mxu0 0.0
      %3354 = vmatprep.subr.mxu0 0.0
      %3355 = vmatpush1.msra.mxu0 0.0
      %3356 = vmatprep.subr.mxu0 0.0
      %3357 = vmatpush1.msra.mxu0 0.0
      %3358 = vmatprep.subr.mxu0 0.0
      %3359 = vmatpush1.msra.mxu0 0.0
      %3360 = vmatprep.subr.mxu0 0.0
      %3361 = vmatpush1.msra.mxu0 0.0
      %3362 = vmatprep.subr.mxu0 0.0
      %3363 = vmatpush1.msra.mxu0 0.0
      %3364 = vmatprep.subr.mxu0 0.0
      %3365 = vmatpush1.msra.mxu0 0.0
      %3366 = vmatprep.subr.mxu0 0.0
      %3367 = vmatpush1.msra.mxu0 0.0
      %3368 = vmatprep.subr.mxu0 0.0
      %3369 = vmatpush1.msra.mxu0 0.0
      %3370 = vmatprep.subr.mxu0 0.0
      %3371 = vmatpush1.msra.mxu0 0.0
      %3372 = vmatprep.subr.mxu0 0.0
      %3373 = vmatpush1.msra.mxu0 0.0
      %3374 = vmatprep.subr.mxu0 0.0
      %3375 = vmatpush1.msra.mxu0 0.0
      %3376 = vmatprep.subr.mxu0 0.0
      %3377 = vmatpush1.msra.mxu0 0.0
      %3378 = vmatprep.subr.mxu0 0.0
      %3379 = vmatpush1.msra.mxu0 0.0
      %3380 = vmatprep.mubr.f32.mxu0 0.0
      %3381 = vmatmul.mubr.f32.gmra.mrb[0].mxu0 %v3314
      %v3382 = vpop.f32.mrb[0].mxu0
      %v3383 = vadd.f32 0.0, %v3382
      %v3384 = vpop.f32.mrb[0].mxu0
      %3385 = vdwg.mxu0
      %v3387 = vsel %vm991, %v3310, 0
      %v3390 = vsel %vm991, %v3311, 0
      %v3393 = vsel %vm991, %v3312, 0
      %3395 = vmatprep.subr.mxu0 0.0
      %3396 = vmatpush1.msra.mxu0 %v3383
      %3397 = vmatprep.subr.mxu0 0.0
      %3398 = vmatpush1.msra.mxu0 0.0
      %3399 = vmatprep.subr.mxu0 0.0
      %3400 = vmatpush1.msra.mxu0 0.0
      %3401 = vmatprep.subr.mxu0 0.0
      %3402 = vmatpush1.msra.mxu0 0.0
      %3403 = vmatprep.subr.mxu0 0.0
      %3404 = vmatpush1.msra.mxu0 0.0
      %3405 = vmatprep.subr.mxu0 0.0
      %3406 = vmatpush1.msra.mxu0 0.0
      %3407 = vmatprep.subr.mxu0 0.0
      %3408 = vmatpush1.msra.mxu0 0.0
      %3409 = vmatprep.subr.mxu0 0.0
      %3410 = vmatpush1.msra.mxu0 0.0
      %3411 = vmatprep.subr.mxu0 0.0
      %3412 = vmatpush1.msra.mxu0 0.0
      %3413 = vmatprep.subr.mxu0 0.0
      %3414 = vmatpush1.msra.mxu0 0.0
      %3415 = vmatprep.subr.mxu0 0.0
      %3416 = vmatpush1.msra.mxu0 0.0
      %3417 = vmatprep.subr.mxu0 0.0
      %3418 = vmatpush1.msra.mxu0 0.0
      %3419 = vmatprep.subr.mxu0 0.0
      %3420 = vmatpush1.msra.mxu0 0.0
      %3421 = vmatprep.subr.mxu0 0.0
      %3422 = vmatpush1.msra.mxu0 0.0
      %3423 = vmatprep.subr.mxu0 0.0
      %3424 = vmatpush1.msra.mxu0 0.0
      %3425 = vmatprep.subr.mxu0 0.0
      %3426 = vmatpush1.msra.mxu0 0.0
      %3427 = vmatprep.subr.mxu0 0.0
      %3428 = vmatpush1.msra.mxu0 0.0
      %3429 = vmatprep.subr.mxu0 0.0
      %3430 = vmatpush1.msra.mxu0 0.0
      %3431 = vmatprep.subr.mxu0 0.0
      %3432 = vmatpush1.msra.mxu0 0.0
      %3433 = vmatprep.subr.mxu0 0.0
      %3434 = vmatpush1.msra.mxu0 0.0
      %3435 = vmatprep.subr.mxu0 0.0
      %3436 = vmatpush1.msra.mxu0 0.0
      %3437 = vmatprep.subr.mxu0 0.0
      %3438 = vmatpush1.msra.mxu0 0.0
      %3439 = vmatprep.subr.mxu0 0.0
      %3440 = vmatpush1.msra.mxu0 0.0
      %3441 = vmatprep.subr.mxu0 0.0
      %3442 = vmatpush1.msra.mxu0 0.0
      %3443 = vmatprep.subr.mxu0 0.0
      %3444 = vmatpush1.msra.mxu0 0.0
      %3445 = vmatprep.subr.mxu0 0.0
      %3446 = vmatpush1.msra.mxu0 0.0
      %3447 = vmatprep.subr.mxu0 0.0
      %3448 = vmatpush1.msra.mxu0 0.0
      %3449 = vmatprep.subr.mxu0 0.0
      %3450 = vmatpush1.msra.mxu0 0.0
      %3451 = vmatprep.subr.mxu0 0.0
      %3452 = vmatpush1.msra.mxu0 0.0
      %3453 = vmatprep.subr.mxu0 0.0
      %3454 = vmatpush1.msra.mxu0 0.0
      %3455 = vmatprep.subr.mxu0 0.0
      %3456 = vmatpush1.msra.mxu0 0.0
      %3457 = vmatprep.subr.mxu0 0.0
      %3458 = vmatpush1.msra.mxu0 0.0
      %3459 = vmatprep.mubr.f32.mxu0 0.0
      %3460 = vmatmul.mubr.f32.gmra.mrb[0].mxu0 %v3387
      %v3461 = vpop.f32.mrb[0].mxu0
      %v3462 = vadd.f32 0.0, %v3461
      %v3463 = vpop.f32.mrb[0].mxu0
      %3464 = vmatprep.mubr.f32.mxu0 0.0
      %3465 = vmatmul.mubr.f32.gmra.mrb[0].mxu0 %v3390
      %v3466 = vpop.f32.mrb[0].mxu0
      %v3467 = vadd.f32 0.0, %v3466
      %v3468 = vpop.f32.mrb[0].mxu0
      %3469 = vmatprep.mubr.f32.mxu0 0.0
      %3470 = vmatmul.mubr.f32.gmra.mrb[0].mxu0 %v3393
      %v3471 = vpop.f32.mrb[0].mxu0
      %v3472 = vadd.f32 0.0, %v3471
      %v3473 = vpop.f32.mrb[0].mxu0
      %3474 = vdwg.mxu0
      %v3476 = vsel %vm991, %v3234, 0
      %v3479 = vsel %vm991, %v3235, 0
      %v3482 = vsel %vm991, %v3236, 0
      %3484 = vmatprep.subr.mxu0 0.0
      %3485 = vmatpush1.msra.mxu0 %v3307
      %3486 = vmatprep.subr.mxu0 0.0
      %3487 = vmatpush1.msra.mxu0 0.0
      %3488 = vmatprep.subr.mxu0 0.0
      %3489 = vmatpush1.msra.mxu0 0.0
      %3490 = vmatprep.subr.mxu0 0.0
      %3491 = vmatpush1.msra.mxu0 0.0
      %3492 = vmatprep.subr.mxu0 0.0
      %3493 = vmatpush1.msra.mxu0 0.0
      %3494 = vmatprep.subr.mxu0 0.0
      %3495 = vmatpush1.msra.mxu0 0.0
      %3496 = vmatprep.subr.mxu0 0.0
      %3497 = vmatpush1.msra.mxu0 0.0
      %3498 = vmatprep.subr.mxu0 0.0
      %3499 = vmatpush1.msra.mxu0 0.0
      %3500 = vmatprep.subr.mxu0 0.0
      %3501 = vmatpush1.msra.mxu0 0.0
      %3502 = vmatprep.subr.mxu0 0.0
      %3503 = vmatpush1.msra.mxu0 0.0
      %3504 = vmatprep.subr.mxu0 0.0
      %3505 = vmatpush1.msra.mxu0 0.0
      %3506 = vmatprep.subr.mxu0 0.0
      %3507 = vmatpush1.msra.mxu0 0.0
      %3508 = vmatprep.subr.mxu0 0.0
      %3509 = vmatpush1.msra.mxu0 0.0
      %3510 = vmatprep.subr.mxu0 0.0
      %3511 = vmatpush1.msra.mxu0 0.0
      %3512 = vmatprep.subr.mxu0 0.0
      %3513 = vmatpush1.msra.mxu0 0.0
      %3514 = vmatprep.subr.mxu0 0.0
      %3515 = vmatpush1.msra.mxu0 0.0
      %3516 = vmatprep.subr.mxu0 0.0
      %3517 = vmatpush1.msra.mxu0 0.0
      %3518 = vmatprep.subr.mxu0 0.0
      %3519 = vmatpush1.msra.mxu0 0.0
      %3520 = vmatprep.subr.mxu0 0.0
      %3521 = vmatpush1.msra.mxu0 0.0
      %3522 = vmatprep.subr.mxu0 0.0
      %3523 = vmatpush1.msra.mxu0 0.0
      %3524 = vmatprep.subr.mxu0 0.0
      %3525 = vmatpush1.msra.mxu0 0.0
      %3526 = vmatprep.subr.mxu0 0.0
      %3527 = vmatpush1.msra.mxu0 0.0
      %3528 = vmatprep.subr.mxu0 0.0
      %3529 = vmatpush1.msra.mxu0 0.0
      %3530 = vmatprep.subr.mxu0 0.0
      %3531 = vmatpush1.msra.mxu0 0.0
      %3532 = vmatprep.subr.mxu0 0.0
      %3533 = vmatpush1.msra.mxu0 0.0
      %3534 = vmatprep.subr.mxu0 0.0
      %3535 = vmatpush1.msra.mxu0 0.0
      %3536 = vmatprep.subr.mxu0 0.0
      %3537 = vmatpush1.msra.mxu0 0.0
      %3538 = vmatprep.subr.mxu0 0.0
      %3539 = vmatpush1.msra.mxu0 0.0
      %3540 = vmatprep.subr.mxu0 0.0
      %3541 = vmatpush1.msra.mxu0 0.0
      %3542 = vmatprep.subr.mxu0 0.0
      %3543 = vmatpush1.msra.mxu0 0.0
      %3544 = vmatprep.subr.mxu0 0.0
      %3545 = vmatpush1.msra.mxu0 0.0
      %3546 = vmatprep.subr.mxu0 0.0
      %3547 = vmatpush1.msra.mxu0 0.0
      %3548 = vmatprep.mubr.f32.mxu0 0.0
      %3549 = vmatmul.mubr.f32.gmra.mrb[0].mxu0 %v3476
      %v3550 = vpop.f32.mrb[0].mxu0
      %v3551 = vadd.f32 %v3462, %v3550
      %v3552 = vpop.f32.mrb[0].mxu0
      %3553 = vmatprep.mubr.f32.mxu0 0.0
      %3554 = vmatmul.mubr.f32.gmra.mrb[0].mxu0 %v3479
      %v3555 = vpop.f32.mrb[0].mxu0
      %v3556 = vadd.f32 %v3467, %v3555
      %v3557 = vpop.f32.mrb[0].mxu0
      %3558 = vmatprep.mubr.f32.mxu0 0.0
      %3559 = vmatmul.mubr.f32.gmra.mrb[0].mxu0 %v3482
      %v3560 = vpop.f32.mrb[0].mxu0
      %v3561 = vadd.f32 %v3472, %v3560
      %v3562 = vpop.f32.mrb[0].mxu0
      %3563 = vdwg.mxu0
      %s3564 = scalar_lea.vmem %s18, 24
      %v3565 = vld [vmem:[%s3564] sm:$0xff]
      %v3566 = vld [vmem:[%s3564 + $0x8] sm:$0xff]
      %v3567 = vld [vmem:[%s3564 + $0x10] sm:$0xff]
      %3568 = vmatprep.subr.mxu0 0.0
      %3569 = vmatpush1.msra.mxu0 %v919
      %3570 = vmatprep.subr.mxu0 0.0
      %3571 = vmatpush1.msra.mxu0 %v920
      %3572 = vmatprep.subr.mxu0 0.0
      %3573 = vmatpush1.msra.mxu0 0.0
      %3574 = vmatprep.subr.mxu0 0.0
      %3575 = vmatpush1.msra.mxu0 0.0
      %3576 = vmatprep.subr.mxu0 0.0
      %3577 = vmatpush1.msra.mxu0 0.0
      %3578 = vmatprep.subr.mxu0 0.0
      %3579 = vmatpush1.msra.mxu0 0.0
      %3580 = vmatprep.subr.mxu0 0.0
      %3581 = vmatpush1.msra.mxu0 0.0
      %3582 = vmatprep.subr.mxu0 0.0
      %3583 = vmatpush1.msra.mxu0 0.0
      %3584 = vmatprep.subr.mxu0 0.0
      %3585 = vmatpush1.msra.mxu0 0.0
      %3586 = vmatprep.subr.mxu0 0.0
      %3587 = vmatpush1.msra.mxu0 0.0
      %3588 = vmatprep.subr.mxu0 0.0
      %3589 = vmatpush1.msra.mxu0 0.0
      %3590 = vmatprep.subr.mxu0 0.0
      %3591 = vmatpush1.msra.mxu0 0.0
      %3592 = vmatprep.subr.mxu0 0.0
      %3593 = vmatpush1.msra.mxu0 0.0
      %3594 = vmatprep.subr.mxu0 0.0
      %3595 = vmatpush1.msra.mxu0 0.0
      %3596 = vmatprep.subr.mxu0 0.0
      %3597 = vmatpush1.msra.mxu0 0.0
      %3598 = vmatprep.subr.mxu0 0.0
      %3599 = vmatpush1.msra.mxu0 0.0
      %3600 = vmatprep.subr.mxu0 0.0
      %3601 = vmatpush1.msra.mxu0 0.0
      %3602 = vmatprep.subr.mxu0 0.0
      %3603 = vmatpush1.msra.mxu0 0.0
      %3604 = vmatprep.subr.mxu0 0.0
      %3605 = vmatpush1.msra.mxu0 0.0
      %3606 = vmatprep.subr.mxu0 0.0
      %3607 = vmatpush1.msra.mxu0 0.0
      %3608 = vmatprep.subr.mxu0 0.0
      %3609 = vmatpush1.msra.mxu0 0.0
      %3610 = vmatprep.subr.mxu0 0.0
      %3611 = vmatpush1.msra.mxu0 0.0
      %3612 = vmatprep.subr.mxu0 0.0
      %3613 = vmatpush1.msra.mxu0 0.0
      %3614 = vmatprep.subr.mxu0 0.0
      %3615 = vmatpush1.msra.mxu0 0.0
      %3616 = vmatprep.subr.mxu0 0.0
      %3617 = vmatpush1.msra.mxu0 0.0
      %3618 = vmatprep.subr.mxu0 0.0
      %3619 = vmatpush1.msra.mxu0 0.0
      %3620 = vmatprep.subr.mxu0 0.0
      %3621 = vmatpush1.msra.mxu0 0.0
      %3622 = vmatprep.subr.mxu0 0.0
      %3623 = vmatpush1.msra.mxu0 0.0
      %3624 = vmatprep.subr.mxu0 0.0
      %3625 = vmatpush1.msra.mxu0 0.0
      %3626 = vmatprep.subr.mxu0 0.0
      %3627 = vmatpush1.msra.mxu0 0.0
      %3628 = vmatprep.subr.mxu0 0.0
      %3629 = vmatpush1.msra.mxu0 0.0
      %3630 = vmatprep.subr.mxu0 0.0
      %3631 = vmatpush1.msra.mxu0 0.0
      %3632 = vmatprep.mubr.f32.mxu0 0.0
      %3633 = vmatmul.mubr.f32.gmra.mrb[0].mxu0 %v3238
      %v3634 = vpop.f32.mrb[0].mxu0
      %v3635 = vadd.f32 0.0, %v3634
      %v3636 = vpop.f32.mrb[0].mxu0
      %3637 = vdwg.mxu0
      %v3639 = vsel %vm991, %v3565, 0
      %v3642 = vsel %vm991, %v3566, 0
      %v3645 = vsel %vm991, %v3567, 0
      %3647 = vmatprep.subr.mxu0 0.0
      %3648 = vmatpush1.msra.mxu0 %v3635
      %3649 = vmatprep.subr.mxu0 0.0
      %3650 = vmatpush1.msra.mxu0 0.0
      %3651 = vmatprep.subr.mxu0 0.0
      %3652 = vmatpush1.msra.mxu0 0.0
      %3653 = vmatprep.subr.mxu0 0.0
      %3654 = vmatpush1.msra.mxu0 0.0
      %3655 = vmatprep.subr.mxu0 0.0
      %3656 = vmatpush1.msra.mxu0 0.0
      %3657 = vmatprep.subr.mxu0 0.0
      %3658 = vmatpush1.msra.mxu0 0.0
      %3659 = vmatprep.subr.mxu0 0.0
      %3660 = vmatpush1.msra.mxu0 0.0
      %3661 = vmatprep.subr.mxu0 0.0
      %3662 = vmatpush1.msra.mxu0 0.0
      %3663 = vmatprep.subr.mxu0 0.0
      %3664 = vmatpush1.msra.mxu0 0.0
      %3665 = vmatprep.subr.mxu0 0.0
      %3666 = vmatpush1.msra.mxu0 0.0
      %3667 = vmatprep.subr.mxu0 0.0
      %3668 = vmatpush1.msra.mxu0 0.0
      %3669 = vmatprep.subr.mxu0 0.0
      %3670 = vmatpush1.msra.mxu0 0.0
      %3671 = vmatprep.subr.mxu0 0.0
      %3672 = vmatpush1.msra.mxu0 0.0
      %3673 = vmatprep.subr.mxu0 0.0
      %3674 = vmatpush1.msra.mxu0 0.0
      %3675 = vmatprep.subr.mxu0 0.0
      %3676 = vmatpush1.msra.mxu0 0.0
      %3677 = vmatprep.subr.mxu0 0.0
      %3678 = vmatpush1.msra.mxu0 0.0
      %3679 = vmatprep.subr.mxu0 0.0
      %3680 = vmatpush1.msra.mxu0 0.0
      %3681 = vmatprep.subr.mxu0 0.0
      %3682 = vmatpush1.msra.mxu0 0.0
      %3683 = vmatprep.subr.mxu0 0.0
      %3684 = vmatpush1.msra.mxu0 0.0
      %3685 = vmatprep.subr.mxu0 0.0
      %3686 = vmatpush1.msra.mxu0 0.0
      %3687 = vmatprep.subr.mxu0 0.0
      %3688 = vmatpush1.msra.mxu0 0.0
      %3689 = vmatprep.subr.mxu0 0.0
      %3690 = vmatpush1.msra.mxu0 0.0
      %3691 = vmatprep.subr.mxu0 0.0
      %3692 = vmatpush1.msra.mxu0 0.0
      %3693 = vmatprep.subr.mxu0 0.0
      %3694 = vmatpush1.msra.mxu0 0.0
      %3695 = vmatprep.subr.mxu0 0.0
      %3696 = vmatpush1.msra.mxu0 0.0
      %3697 = vmatprep.subr.mxu0 0.0
      %3698 = vmatpush1.msra.mxu0 0.0
      %3699 = vmatprep.subr.mxu0 0.0
      %3700 = vmatpush1.msra.mxu0 0.0
      %3701 = vmatprep.subr.mxu0 0.0
      %3702 = vmatpush1.msra.mxu0 0.0
      %3703 = vmatprep.subr.mxu0 0.0
      %3704 = vmatpush1.msra.mxu0 0.0
      %3705 = vmatprep.subr.mxu0 0.0
      %3706 = vmatpush1.msra.mxu0 0.0
      %3707 = vmatprep.subr.mxu0 0.0
      %3708 = vmatpush1.msra.mxu0 0.0
      %3709 = vmatprep.subr.mxu0 0.0
      %3710 = vmatpush1.msra.mxu0 0.0
      %3711 = vmatprep.mubr.f32.mxu0 0.0
      %3712 = vmatmul.mubr.f32.gmra.mrb[0].mxu0 %v3639
      %v3713 = vpop.f32.mrb[0].mxu0
      %v3714 = vadd.f32 0.0, %v3713
      %v3715 = vpop.f32.mrb[0].mxu0
      %3716 = vmatprep.mubr.f32.mxu0 0.0
      %3717 = vmatmul.mubr.f32.gmra.mrb[0].mxu0 %v3642
      %v3718 = vpop.f32.mrb[0].mxu0
      %v3719 = vadd.f32 0.0, %v3718
      %v3720 = vpop.f32.mrb[0].mxu0
      %3721 = vmatprep.mubr.f32.mxu0 0.0
      %3722 = vmatmul.mubr.f32.gmra.mrb[0].mxu0 %v3645
      %v3723 = vpop.f32.mrb[0].mxu0
      %v3724 = vadd.f32 0.0, %v3723
      %v3725 = vpop.f32.mrb[0].mxu0
      %3726 = vdwg.mxu0
      %v3727 = vadd.f32 %v3551, %v3714
      %v3728 = vadd.f32 %v3556, %v3719
      %v3729 = vadd.f32 %v3561, %v3724
      %s3730 = scalar_lea.vmem %s19, 24
      %v3731 = vld [vmem:[%s3730] sm:$0xff]
      %v3732 = vld [vmem:[%s3730 + $0x8] sm:$0xff]
      %v3733 = vld [vmem:[%s3730 + $0x10] sm:$0xff]
      %3734 = vmatprep.subr.mxu0 0.0
      %3735 = vmatpush1.msra.mxu0 %v919
      %3736 = vmatprep.subr.mxu0 0.0
      %3737 = vmatpush1.msra.mxu0 %v920
      %3738 = vmatprep.subr.mxu0 0.0
      %3739 = vmatpush1.msra.mxu0 0.0
      %3740 = vmatprep.subr.mxu0 0.0
      %3741 = vmatpush1.msra.mxu0 0.0
      %3742 = vmatprep.subr.mxu0 0.0
      %3743 = vmatpush1.msra.mxu0 0.0
      %3744 = vmatprep.subr.mxu0 0.0
      %3745 = vmatpush1.msra.mxu0 0.0
      %3746 = vmatprep.subr.mxu0 0.0
      %3747 = vmatpush1.msra.mxu0 0.0
      %3748 = vmatprep.subr.mxu0 0.0
      %3749 = vmatpush1.msra.mxu0 0.0
      %3750 = vmatprep.subr.mxu0 0.0
      %3751 = vmatpush1.msra.mxu0 0.0
      %3752 = vmatprep.subr.mxu0 0.0
      %3753 = vmatpush1.msra.mxu0 0.0
      %3754 = vmatprep.subr.mxu0 0.0
      %3755 = vmatpush1.msra.mxu0 0.0
      %3756 = vmatprep.subr.mxu0 0.0
      %3757 = vmatpush1.msra.mxu0 0.0
      %3758 = vmatprep.subr.mxu0 0.0
      %3759 = vmatpush1.msra.mxu0 0.0
      %3760 = vmatprep.subr.mxu0 0.0
      %3761 = vmatpush1.msra.mxu0 0.0
      %3762 = vmatprep.subr.mxu0 0.0
      %3763 = vmatpush1.msra.mxu0 0.0
      %3764 = vmatprep.subr.mxu0 0.0
      %3765 = vmatpush1.msra.mxu0 0.0
      %3766 = vmatprep.subr.mxu0 0.0
      %3767 = vmatpush1.msra.mxu0 0.0
      %3768 = vmatprep.subr.mxu0 0.0
      %3769 = vmatpush1.msra.mxu0 0.0
      %3770 = vmatprep.subr.mxu0 0.0
      %3771 = vmatpush1.msra.mxu0 0.0
      %3772 = vmatprep.subr.mxu0 0.0
      %3773 = vmatpush1.msra.mxu0 0.0
      %3774 = vmatprep.subr.mxu0 0.0
      %3775 = vmatpush1.msra.mxu0 0.0
      %3776 = vmatprep.subr.mxu0 0.0
      %3777 = vmatpush1.msra.mxu0 0.0
      %3778 = vmatprep.subr.mxu0 0.0
      %3779 = vmatpush1.msra.mxu0 0.0
      %3780 = vmatprep.subr.mxu0 0.0
      %3781 = vmatpush1.msra.mxu0 0.0
      %3782 = vmatprep.subr.mxu0 0.0
      %3783 = vmatpush1.msra.mxu0 0.0
      %3784 = vmatprep.subr.mxu0 0.0
      %3785 = vmatpush1.msra.mxu0 0.0
      %3786 = vmatprep.subr.mxu0 0.0
      %3787 = vmatpush1.msra.mxu0 0.0
      %3788 = vmatprep.subr.mxu0 0.0
      %3789 = vmatpush1.msra.mxu0 0.0
      %3790 = vmatprep.subr.mxu0 0.0
      %3791 = vmatpush1.msra.mxu0 0.0
      %3792 = vmatprep.subr.mxu0 0.0
      %3793 = vmatpush1.msra.mxu0 0.0
      %3794 = vmatprep.subr.mxu0 0.0
      %3795 = vmatpush1.msra.mxu0 0.0
      %3796 = vmatprep.subr.mxu0 0.0
      %3797 = vmatpush1.msra.mxu0 0.0
      %3798 = vmatprep.mubr.f32.mxu0 0.0
      %3799 = vmatmul.mubr.f32.gmra.mrb[0].mxu0 %v3314
      %v3800 = vpop.f32.mrb[0].mxu0
      %v3801 = vadd.f32 0.0, %v3800
      %v3802 = vpop.f32.mrb[0].mxu0
      %3803 = vdwg.mxu0
      %v3805 = vsel %vm991, %v3731, 0
      %v3808 = vsel %vm991, %v3732, 0
      %v3811 = vsel %vm991, %v3733, 0
      %3813 = vmatprep.subr.mxu0 0.0
      %3814 = vmatpush1.msra.mxu0 %v3801
      %3815 = vmatprep.subr.mxu0 0.0
      %3816 = vmatpush1.msra.mxu0 0.0
      %3817 = vmatprep.subr.mxu0 0.0
      %3818 = vmatpush1.msra.mxu0 0.0
      %3819 = vmatprep.subr.mxu0 0.0
      %3820 = vmatpush1.msra.mxu0 0.0
      %3821 = vmatprep.subr.mxu0 0.0
      %3822 = vmatpush1.msra.mxu0 0.0
      %3823 = vmatprep.subr.mxu0 0.0
      %3824 = vmatpush1.msra.mxu0 0.0
      %3825 = vmatprep.subr.mxu0 0.0
      %3826 = vmatpush1.msra.mxu0 0.0
      %3827 = vmatprep.subr.mxu0 0.0
      %3828 = vmatpush1.msra.mxu0 0.0
      %3829 = vmatprep.subr.mxu0 0.0
      %3830 = vmatpush1.msra.mxu0 0.0
      %3831 = vmatprep.subr.mxu0 0.0
      %3832 = vmatpush1.msra.mxu0 0.0
      %3833 = vmatprep.subr.mxu0 0.0
      %3834 = vmatpush1.msra.mxu0 0.0
      %3835 = vmatprep.subr.mxu0 0.0
      %3836 = vmatpush1.msra.mxu0 0.0
      %3837 = vmatprep.subr.mxu0 0.0
      %3838 = vmatpush1.msra.mxu0 0.0
      %3839 = vmatprep.subr.mxu0 0.0
      %3840 = vmatpush1.msra.mxu0 0.0
      %3841 = vmatprep.subr.mxu0 0.0
      %3842 = vmatpush1.msra.mxu0 0.0
      %3843 = vmatprep.subr.mxu0 0.0
      %3844 = vmatpush1.msra.mxu0 0.0
      %3845 = vmatprep.subr.mxu0 0.0
      %3846 = vmatpush1.msra.mxu0 0.0
      %3847 = vmatprep.subr.mxu0 0.0
      %3848 = vmatpush1.msra.mxu0 0.0
      %3849 = vmatprep.subr.mxu0 0.0
      %3850 = vmatpush1.msra.mxu0 0.0
      %3851 = vmatprep.subr.mxu0 0.0
      %3852 = vmatpush1.msra.mxu0 0.0
      %3853 = vmatprep.subr.mxu0 0.0
      %3854 = vmatpush1.msra.mxu0 0.0
      %3855 = vmatprep.subr.mxu0 0.0
      %3856 = vmatpush1.msra.mxu0 0.0
      %3857 = vmatprep.subr.mxu0 0.0
      %3858 = vmatpush1.msra.mxu0 0.0
      %3859 = vmatprep.subr.mxu0 0.0
      %3860 = vmatpush1.msra.mxu0 0.0
      %3861 = vmatprep.subr.mxu0 0.0
      %3862 = vmatpush1.msra.mxu0 0.0
      %3863 = vmatprep.subr.mxu0 0.0
      %3864 = vmatpush1.msra.mxu0 0.0
      %3865 = vmatprep.subr.mxu0 0.0
      %3866 = vmatpush1.msra.mxu0 0.0
      %3867 = vmatprep.subr.mxu0 0.0
      %3868 = vmatpush1.msra.mxu0 0.0
      %3869 = vmatprep.subr.mxu0 0.0
      %3870 = vmatpush1.msra.mxu0 0.0
      %3871 = vmatprep.subr.mxu0 0.0
      %3872 = vmatpush1.msra.mxu0 0.0
      %3873 = vmatprep.subr.mxu0 0.0
      %3874 = vmatpush1.msra.mxu0 0.0
      %3875 = vmatprep.subr.mxu0 0.0
      %3876 = vmatpush1.msra.mxu0 0.0
      %3877 = vmatprep.mubr.f32.mxu0 0.0
      %3878 = vmatmul.mubr.f32.gmra.mrb[0].mxu0 %v3805
      %v3879 = vpop.f32.mrb[0].mxu0
      %v3880 = vadd.f32 0.0, %v3879
      %v3881 = vpop.f32.mrb[0].mxu0
      %3882 = vmatprep.mubr.f32.mxu0 0.0
      %3883 = vmatmul.mubr.f32.gmra.mrb[0].mxu0 %v3808
      %v3884 = vpop.f32.mrb[0].mxu0
      %v3885 = vadd.f32 0.0, %v3884
      %v3886 = vpop.f32.mrb[0].mxu0
      %3887 = vmatprep.mubr.f32.mxu0 0.0
      %3888 = vmatmul.mubr.f32.gmra.mrb[0].mxu0 %v3811
      %v3889 = vpop.f32.mrb[0].mxu0
      %v3890 = vadd.f32 0.0, %v3889
      %v3891 = vpop.f32.mrb[0].mxu0
      %3892 = vdwg.mxu0
      %v3893 = vadd.f32 %v3727, %v3880
      %v3894 = vadd.f32 %v3728, %v3885
      %v3895 = vadd.f32 %v3729, %v3890
      %s3896 = scalar_lea.vmem %s18, 48
      %v3897 = vld [vmem:[%s3896] sm:$0xff]
      %v3898 = vld [vmem:[%s3896 + $0x8] sm:$0xff]
      %v3899 = vld [vmem:[%s3896 + $0x10] sm:$0xff]
      %3900 = vmatprep.subr.mxu0 0.0
      %3901 = vmatpush1.msra.mxu0 %v1141
      %3902 = vmatprep.subr.mxu0 0.0
      %3903 = vmatpush1.msra.mxu0 %v1142
      %3904 = vmatprep.subr.mxu0 0.0
      %3905 = vmatpush1.msra.mxu0 0.0
      %3906 = vmatprep.subr.mxu0 0.0
      %3907 = vmatpush1.msra.mxu0 0.0
      %3908 = vmatprep.subr.mxu0 0.0
      %3909 = vmatpush1.msra.mxu0 0.0
      %3910 = vmatprep.subr.mxu0 0.0
      %3911 = vmatpush1.msra.mxu0 0.0
      %3912 = vmatprep.subr.mxu0 0.0
      %3913 = vmatpush1.msra.mxu0 0.0
      %3914 = vmatprep.subr.mxu0 0.0
      %3915 = vmatpush1.msra.mxu0 0.0
      %3916 = vmatprep.subr.mxu0 0.0
      %3917 = vmatpush1.msra.mxu0 0.0
      %3918 = vmatprep.subr.mxu0 0.0
      %3919 = vmatpush1.msra.mxu0 0.0
      %3920 = vmatprep.subr.mxu0 0.0
      %3921 = vmatpush1.msra.mxu0 0.0
      %3922 = vmatprep.subr.mxu0 0.0
      %3923 = vmatpush1.msra.mxu0 0.0
      %3924 = vmatprep.subr.mxu0 0.0
      %3925 = vmatpush1.msra.mxu0 0.0
      %3926 = vmatprep.subr.mxu0 0.0
      %3927 = vmatpush1.msra.mxu0 0.0
      %3928 = vmatprep.subr.mxu0 0.0
      %3929 = vmatpush1.msra.mxu0 0.0
      %3930 = vmatprep.subr.mxu0 0.0
      %3931 = vmatpush1.msra.mxu0 0.0
      %3932 = vmatprep.subr.mxu0 0.0
      %3933 = vmatpush1.msra.mxu0 0.0
      %3934 = vmatprep.subr.mxu0 0.0
      %3935 = vmatpush1.msra.mxu0 0.0
      %3936 = vmatprep.subr.mxu0 0.0
      %3937 = vmatpush1.msra.mxu0 0.0
      %3938 = vmatprep.subr.mxu0 0.0
      %3939 = vmatpush1.msra.mxu0 0.0
      %3940 = vmatprep.subr.mxu0 0.0
      %3941 = vmatpush1.msra.mxu0 0.0
      %3942 = vmatprep.subr.mxu0 0.0
      %3943 = vmatpush1.msra.mxu0 0.0
      %3944 = vmatprep.subr.mxu0 0.0
      %3945 = vmatpush1.msra.mxu0 0.0
      %3946 = vmatprep.subr.mxu0 0.0
      %3947 = vmatpush1.msra.mxu0 0.0
      %3948 = vmatprep.subr.mxu0 0.0
      %3949 = vmatpush1.msra.mxu0 0.0
      %3950 = vmatprep.subr.mxu0 0.0
      %3951 = vmatpush1.msra.mxu0 0.0
      %3952 = vmatprep.subr.mxu0 0.0
      %3953 = vmatpush1.msra.mxu0 0.0
      %3954 = vmatprep.subr.mxu0 0.0
      %3955 = vmatpush1.msra.mxu0 0.0
      %3956 = vmatprep.subr.mxu0 0.0
      %3957 = vmatpush1.msra.mxu0 0.0
      %3958 = vmatprep.subr.mxu0 0.0
      %3959 = vmatpush1.msra.mxu0 0.0
      %3960 = vmatprep.subr.mxu0 0.0
      %3961 = vmatpush1.msra.mxu0 0.0
      %3962 = vmatprep.subr.mxu0 0.0
      %3963 = vmatpush1.msra.mxu0 0.0
      %3964 = vmatprep.mubr.f32.mxu0 0.0
      %3965 = vmatmul.mubr.f32.gmra.mrb[0].mxu0 %v3238
      %v3966 = vpop.f32.mrb[0].mxu0
      %v3967 = vadd.f32 0.0, %v3966
      %v3968 = vpop.f32.mrb[0].mxu0
      %3969 = vdwg.mxu0
      %v3971 = vsel %vm991, %v3897, 0
      %v3974 = vsel %vm991, %v3898, 0
      %v3977 = vsel %vm991, %v3899, 0
      %3979 = vmatprep.subr.mxu0 0.0
      %3980 = vmatpush1.msra.mxu0 %v3967
      %3981 = vmatprep.subr.mxu0 0.0
      %3982 = vmatpush1.msra.mxu0 0.0
      %3983 = vmatprep.subr.mxu0 0.0
      %3984 = vmatpush1.msra.mxu0 0.0
      %3985 = vmatprep.subr.mxu0 0.0
      %3986 = vmatpush1.msra.mxu0 0.0
      %3987 = vmatprep.subr.mxu0 0.0
      %3988 = vmatpush1.msra.mxu0 0.0
      %3989 = vmatprep.subr.mxu0 0.0
      %3990 = vmatpush1.msra.mxu0 0.0
      %3991 = vmatprep.subr.mxu0 0.0
      %3992 = vmatpush1.msra.mxu0 0.0
      %3993 = vmatprep.subr.mxu0 0.0
      %3994 = vmatpush1.msra.mxu0 0.0
      %3995 = vmatprep.subr.mxu0 0.0
      %3996 = vmatpush1.msra.mxu0 0.0
      %3997 = vmatprep.subr.mxu0 0.0
      %3998 = vmatpush1.msra.mxu0 0.0
      %3999 = vmatprep.subr.mxu0 0.0
      %4000 = vmatpush1.msra.mxu0 0.0
      %4001 = vmatprep.subr.mxu0 0.0
      %4002 = vmatpush1.msra.mxu0 0.0
      %4003 = vmatprep.subr.mxu0 0.0
      %4004 = vmatpush1.msra.mxu0 0.0
      %4005 = vmatprep.subr.mxu0 0.0
      %4006 = vmatpush1.msra.mxu0 0.0
      %4007 = vmatprep.subr.mxu0 0.0
      %4008 = vmatpush1.msra.mxu0 0.0
      %4009 = vmatprep.subr.mxu0 0.0
      %4010 = vmatpush1.msra.mxu0 0.0
      %4011 = vmatprep.subr.mxu0 0.0
      %4012 = vmatpush1.msra.mxu0 0.0
      %4013 = vmatprep.subr.mxu0 0.0
      %4014 = vmatpush1.msra.mxu0 0.0
      %4015 = vmatprep.subr.mxu0 0.0
      %4016 = vmatpush1.msra.mxu0 0.0
      %4017 = vmatprep.subr.mxu0 0.0
      %4018 = vmatpush1.msra.mxu0 0.0
      %4019 = vmatprep.subr.mxu0 0.0
      %4020 = vmatpush1.msra.mxu0 0.0
      %4021 = vmatprep.subr.mxu0 0.0
      %4022 = vmatpush1.msra.mxu0 0.0
      %4023 = vmatprep.subr.mxu0 0.0
      %4024 = vmatpush1.msra.mxu0 0.0
      %4025 = vmatprep.subr.mxu0 0.0
      %4026 = vmatpush1.msra.mxu0 0.0
      %4027 = vmatprep.subr.mxu0 0.0
      %4028 = vmatpush1.msra.mxu0 0.0
      %4029 = vmatprep.subr.mxu0 0.0
      %4030 = vmatpush1.msra.mxu0 0.0
      %4031 = vmatprep.subr.mxu0 0.0
      %4032 = vmatpush1.msra.mxu0 0.0
      %4033 = vmatprep.subr.mxu0 0.0
      %4034 = vmatpush1.msra.mxu0 0.0
      %4035 = vmatprep.subr.mxu0 0.0
      %4036 = vmatpush1.msra.mxu0 0.0
      %4037 = vmatprep.subr.mxu0 0.0
      %4038 = vmatpush1.msra.mxu0 0.0
      %4039 = vmatprep.subr.mxu0 0.0
      %4040 = vmatpush1.msra.mxu0 0.0
      %4041 = vmatprep.subr.mxu0 0.0
      %4042 = vmatpush1.msra.mxu0 0.0
      %4043 = vmatprep.mubr.f32.mxu0 0.0
      %4044 = vmatmul.mubr.f32.gmra.mrb[0].mxu0 %v3971
      %v4045 = vpop.f32.mrb[0].mxu0
      %v4046 = vadd.f32 0.0, %v4045
      %v4047 = vpop.f32.mrb[0].mxu0
      %4048 = vmatprep.mubr.f32.mxu0 0.0
      %4049 = vmatmul.mubr.f32.gmra.mrb[0].mxu0 %v3974
      %v4050 = vpop.f32.mrb[0].mxu0
      %v4051 = vadd.f32 0.0, %v4050
      %v4052 = vpop.f32.mrb[0].mxu0
      %4053 = vmatprep.mubr.f32.mxu0 0.0
      %4054 = vmatmul.mubr.f32.gmra.mrb[0].mxu0 %v3977
      %v4055 = vpop.f32.mrb[0].mxu0
      %v4056 = vadd.f32 0.0, %v4055
      %v4057 = vpop.f32.mrb[0].mxu0
      %4058 = vdwg.mxu0
      %v4059 = vadd.f32 %v3893, %v4046
      %v4060 = vadd.f32 %v3894, %v4051
      %v4061 = vadd.f32 %v3895, %v4056
      %s4062 = scalar_lea.vmem %s19, 48
      %v4063 = vld [vmem:[%s4062] sm:$0xff]
      %v4064 = vld [vmem:[%s4062 + $0x8] sm:$0xff]
      %v4065 = vld [vmem:[%s4062 + $0x10] sm:$0xff]
      %4066 = vmatprep.subr.mxu0 0.0
      %4067 = vmatpush1.msra.mxu0 %v1141
      %4068 = vmatprep.subr.mxu0 0.0
      %4069 = vmatpush1.msra.mxu0 %v1142
      %4070 = vmatprep.subr.mxu0 0.0
      %4071 = vmatpush1.msra.mxu0 0.0
      %4072 = vmatprep.subr.mxu0 0.0
      %4073 = vmatpush1.msra.mxu0 0.0
      %4074 = vmatprep.subr.mxu0 0.0
      %4075 = vmatpush1.msra.mxu0 0.0
      %4076 = vmatprep.subr.mxu0 0.0
      %4077 = vmatpush1.msra.mxu0 0.0
      %4078 = vmatprep.subr.mxu0 0.0
      %4079 = vmatpush1.msra.mxu0 0.0
      %4080 = vmatprep.subr.mxu0 0.0
      %4081 = vmatpush1.msra.mxu0 0.0
      %4082 = vmatprep.subr.mxu0 0.0
      %4083 = vmatpush1.msra.mxu0 0.0
      %4084 = vmatprep.subr.mxu0 0.0
      %4085 = vmatpush1.msra.mxu0 0.0
      %4086 = vmatprep.subr.mxu0 0.0
      %4087 = vmatpush1.msra.mxu0 0.0
      %4088 = vmatprep.subr.mxu0 0.0
      %4089 = vmatpush1.msra.mxu0 0.0
      %4090 = vmatprep.subr.mxu0 0.0
      %4091 = vmatpush1.msra.mxu0 0.0
      %4092 = vmatprep.subr.mxu0 0.0
      %4093 = vmatpush1.msra.mxu0 0.0
      %4094 = vmatprep.subr.mxu0 0.0
      %4095 = vmatpush1.msra.mxu0 0.0
      %4096 = vmatprep.subr.mxu0 0.0
      %4097 = vmatpush1.msra.mxu0 0.0
      %4098 = vmatprep.subr.mxu0 0.0
      %4099 = vmatpush1.msra.mxu0 0.0
      %4100 = vmatprep.subr.mxu0 0.0
      %4101 = vmatpush1.msra.mxu0 0.0
      %4102 = vmatprep.subr.mxu0 0.0
      %4103 = vmatpush1.msra.mxu0 0.0
      %4104 = vmatprep.subr.mxu0 0.0
      %4105 = vmatpush1.msra.mxu0 0.0
      %4106 = vmatprep.subr.mxu0 0.0
      %4107 = vmatpush1.msra.mxu0 0.0
      %4108 = vmatprep.subr.mxu0 0.0
      %4109 = vmatpush1.msra.mxu0 0.0
      %4110 = vmatprep.subr.mxu0 0.0
      %4111 = vmatpush1.msra.mxu0 0.0
      %4112 = vmatprep.subr.mxu0 0.0
      %4113 = vmatpush1.msra.mxu0 0.0
      %4114 = vmatprep.subr.mxu0 0.0
      %4115 = vmatpush1.msra.mxu0 0.0
      %4116 = vmatprep.subr.mxu0 0.0
      %4117 = vmatpush1.msra.mxu0 0.0
      %4118 = vmatprep.subr.mxu0 0.0
      %4119 = vmatpush1.msra.mxu0 0.0
      %4120 = vmatprep.subr.mxu0 0.0
      %4121 = vmatpush1.msra.mxu0 0.0
      %4122 = vmatprep.subr.mxu0 0.0
      %4123 = vmatpush1.msra.mxu0 0.0
      %4124 = vmatprep.subr.mxu0 0.0
      %4125 = vmatpush1.msra.mxu0 0.0
      %4126 = vmatprep.subr.mxu0 0.0
      %4127 = vmatpush1.msra.mxu0 0.0
      %4128 = vmatprep.subr.mxu0 0.0
      %4129 = vmatpush1.msra.mxu0 0.0
      %4130 = vmatprep.mubr.f32.mxu0 0.0
      %4131 = vmatmul.mubr.f32.gmra.mrb[0].mxu0 %v3314
      %v4132 = vpop.f32.mrb[0].mxu0
      %v4133 = vadd.f32 0.0, %v4132
      %v4134 = vpop.f32.mrb[0].mxu0
      %4135 = vdwg.mxu0
      %v4137 = vsel %vm991, %v4063, 0
      %v4140 = vsel %vm991, %v4064, 0
      %v4143 = vsel %vm991, %v4065, 0
      %4145 = vmatprep.subr.mxu0 0.0
      %4146 = vmatpush1.msra.mxu0 %v4133
      %4147 = vmatprep.subr.mxu0 0.0
      %4148 = vmatpush1.msra.mxu0 0.0
      %4149 = vmatprep.subr.mxu0 0.0
      %4150 = vmatpush1.msra.mxu0 0.0
      %4151 = vmatprep.subr.mxu0 0.0
      %4152 = vmatpush1.msra.mxu0 0.0
      %4153 = vmatprep.subr.mxu0 0.0
      %4154 = vmatpush1.msra.mxu0 0.0
      %4155 = vmatprep.subr.mxu0 0.0
      %4156 = vmatpush1.msra.mxu0 0.0
      %4157 = vmatprep.subr.mxu0 0.0
      %4158 = vmatpush1.msra.mxu0 0.0
      %4159 = vmatprep.subr.mxu0 0.0
      %4160 = vmatpush1.msra.mxu0 0.0
      %4161 = vmatprep.subr.mxu0 0.0
      %4162 = vmatpush1.msra.mxu0 0.0
      %4163 = vmatprep.subr.mxu0 0.0
      %4164 = vmatpush1.msra.mxu0 0.0
      %4165 = vmatprep.subr.mxu0 0.0
      %4166 = vmatpush1.msra.mxu0 0.0
      %4167 = vmatprep.subr.mxu0 0.0
      %4168 = vmatpush1.msra.mxu0 0.0
      %4169 = vmatprep.subr.mxu0 0.0
      %4170 = vmatpush1.msra.mxu0 0.0
      %4171 = vmatprep.subr.mxu0 0.0
      %4172 = vmatpush1.msra.mxu0 0.0
      %4173 = vmatprep.subr.mxu0 0.0
      %4174 = vmatpush1.msra.mxu0 0.0
      %4175 = vmatprep.subr.mxu0 0.0
      %4176 = vmatpush1.msra.mxu0 0.0
      %4177 = vmatprep.subr.mxu0 0.0
      %4178 = vmatpush1.msra.mxu0 0.0
      %4179 = vmatprep.subr.mxu0 0.0
      %4180 = vmatpush1.msra.mxu0 0.0
      %4181 = vmatprep.subr.mxu0 0.0
      %4182 = vmatpush1.msra.mxu0 0.0
      %4183 = vmatprep.subr.mxu0 0.0
      %4184 = vmatpush1.msra.mxu0 0.0
      %4185 = vmatprep.subr.mxu0 0.0
      %4186 = vmatpush1.msra.mxu0 0.0
      %4187 = vmatprep.subr.mxu0 0.0
      %4188 = vmatpush1.msra.mxu0 0.0
      %4189 = vmatprep.subr.mxu0 0.0
      %4190 = vmatpush1.msra.mxu0 0.0
      %4191 = vmatprep.subr.mxu0 0.0
      %4192 = vmatpush1.msra.mxu0 0.0
      %4193 = vmatprep.subr.mxu0 0.0
      %4194 = vmatpush1.msra.mxu0 0.0
      %4195 = vmatprep.subr.mxu0 0.0
      %4196 = vmatpush1.msra.mxu0 0.0
      %4197 = vmatprep.subr.mxu0 0.0
      %4198 = vmatpush1.msra.mxu0 0.0
      %4199 = vmatprep.subr.mxu0 0.0
      %4200 = vmatpush1.msra.mxu0 0.0
      %4201 = vmatprep.subr.mxu0 0.0
      %4202 = vmatpush1.msra.mxu0 0.0
      %4203 = vmatprep.subr.mxu0 0.0
      %4204 = vmatpush1.msra.mxu0 0.0
      %4205 = vmatprep.subr.mxu0 0.0
      %4206 = vmatpush1.msra.mxu0 0.0
      %4207 = vmatprep.subr.mxu0 0.0
      %4208 = vmatpush1.msra.mxu0 0.0
      %4209 = vmatprep.mubr.f32.mxu0 0.0
      %4210 = vmatmul.mubr.f32.gmra.mrb[0].mxu0 %v4137
      %v4211 = vpop.f32.mrb[0].mxu0
      %v4212 = vadd.f32 0.0, %v4211
      %v4213 = vpop.f32.mrb[0].mxu0
      %4214 = vmatprep.mubr.f32.mxu0 0.0
      %4215 = vmatmul.mubr.f32.gmra.mrb[0].mxu0 %v4140
      %v4216 = vpop.f32.mrb[0].mxu0
      %v4217 = vadd.f32 0.0, %v4216
      %v4218 = vpop.f32.mrb[0].mxu0
      %4219 = vmatprep.mubr.f32.mxu0 0.0
      %4220 = vmatmul.mubr.f32.gmra.mrb[0].mxu0 %v4143
      %v4221 = vpop.f32.mrb[0].mxu0
      %v4222 = vadd.f32 0.0, %v4221
      %v4223 = vpop.f32.mrb[0].mxu0
      %4224 = vdwg.mxu0
      %v4225 = vadd.f32 %v4059, %v4212
      %v4226 = vadd.f32 %v4060, %v4217
      %v4227 = vadd.f32 %v4061, %v4222
      %s4228 = scalar_lea.vmem %s18, 72
      %v4229 = vld [vmem:[%s4228] sm:$0xff]
      %v4230 = vld [vmem:[%s4228 + $0x8] sm:$0xff]
      %v4231 = vld [vmem:[%s4228 + $0x10] sm:$0xff]
      %4232 = vmatprep.subr.mxu0 0.0
      %4233 = vmatpush1.msra.mxu0 %v1290
      %4234 = vmatprep.subr.mxu0 0.0
      %4235 = vmatpush1.msra.mxu0 %v1291
      %4236 = vmatprep.subr.mxu0 0.0
      %4237 = vmatpush1.msra.mxu0 0.0
      %4238 = vmatprep.subr.mxu0 0.0
      %4239 = vmatpush1.msra.mxu0 0.0
      %4240 = vmatprep.subr.mxu0 0.0
      %4241 = vmatpush1.msra.mxu0 0.0
      %4242 = vmatprep.subr.mxu0 0.0
      %4243 = vmatpush1.msra.mxu0 0.0
      %4244 = vmatprep.subr.mxu0 0.0
      %4245 = vmatpush1.msra.mxu0 0.0
      %4246 = vmatprep.subr.mxu0 0.0
      %4247 = vmatpush1.msra.mxu0 0.0
      %4248 = vmatprep.subr.mxu0 0.0
      %4249 = vmatpush1.msra.mxu0 0.0
      %4250 = vmatprep.subr.mxu0 0.0
      %4251 = vmatpush1.msra.mxu0 0.0
      %4252 = vmatprep.subr.mxu0 0.0
      %4253 = vmatpush1.msra.mxu0 0.0
      %4254 = vmatprep.subr.mxu0 0.0
      %4255 = vmatpush1.msra.mxu0 0.0
      %4256 = vmatprep.subr.mxu0 0.0
      %4257 = vmatpush1.msra.mxu0 0.0
      %4258 = vmatprep.subr.mxu0 0.0
      %4259 = vmatpush1.msra.mxu0 0.0
      %4260 = vmatprep.subr.mxu0 0.0
      %4261 = vmatpush1.msra.mxu0 0.0
      %4262 = vmatprep.subr.mxu0 0.0
      %4263 = vmatpush1.msra.mxu0 0.0
      %4264 = vmatprep.subr.mxu0 0.0
      %4265 = vmatpush1.msra.mxu0 0.0
      %4266 = vmatprep.subr.mxu0 0.0
      %4267 = vmatpush1.msra.mxu0 0.0
      %4268 = vmatprep.subr.mxu0 0.0
      %4269 = vmatpush1.msra.mxu0 0.0
      %4270 = vmatprep.subr.mxu0 0.0
      %4271 = vmatpush1.msra.mxu0 0.0
      %4272 = vmatprep.subr.mxu0 0.0
      %4273 = vmatpush1.msra.mxu0 0.0
      %4274 = vmatprep.subr.mxu0 0.0
      %4275 = vmatpush1.msra.mxu0 0.0
      %4276 = vmatprep.subr.mxu0 0.0
      %4277 = vmatpush1.msra.mxu0 0.0
      %4278 = vmatprep.subr.mxu0 0.0
      %4279 = vmatpush1.msra.mxu0 0.0
      %4280 = vmatprep.subr.mxu0 0.0
      %4281 = vmatpush1.msra.mxu0 0.0
      %4282 = vmatprep.subr.mxu0 0.0
      %4283 = vmatpush1.msra.mxu0 0.0
      %4284 = vmatprep.subr.mxu0 0.0
      %4285 = vmatpush1.msra.mxu0 0.0
      %4286 = vmatprep.subr.mxu0 0.0
      %4287 = vmatpush1.msra.mxu0 0.0
      %4288 = vmatprep.subr.mxu0 0.0
      %4289 = vmatpush1.msra.mxu0 0.0
      %4290 = vmatprep.subr.mxu0 0.0
      %4291 = vmatpush1.msra.mxu0 0.0
      %4292 = vmatprep.subr.mxu0 0.0
      %4293 = vmatpush1.msra.mxu0 0.0
      %4294 = vmatprep.subr.mxu0 0.0
      %4295 = vmatpush1.msra.mxu0 0.0
      %4296 = vmatprep.mubr.f32.mxu0 0.0
      %4297 = vmatmul.mubr.f32.gmra.mrb[0].mxu0 %v3238
      %v4298 = vpop.f32.mrb[0].mxu0
      %v4299 = vadd.f32 0.0, %v4298
      %v4300 = vpop.f32.mrb[0].mxu0
      %4301 = vdwg.mxu0
      %v4303 = vsel %vm991, %v4229, 0
      %v4306 = vsel %vm991, %v4230, 0
      %v4309 = vsel %vm991, %v4231, 0
      %4311 = vmatprep.subr.mxu0 0.0
      %4312 = vmatpush1.msra.mxu0 %v4299
      %4313 = vmatprep.subr.mxu0 0.0
      %4314 = vmatpush1.msra.mxu0 0.0
      %4315 = vmatprep.subr.mxu0 0.0
      %4316 = vmatpush1.msra.mxu0 0.0
      %4317 = vmatprep.subr.mxu0 0.0
      %4318 = vmatpush1.msra.mxu0 0.0
      %4319 = vmatprep.subr.mxu0 0.0
      %4320 = vmatpush1.msra.mxu0 0.0
      %4321 = vmatprep.subr.mxu0 0.0
      %4322 = vmatpush1.msra.mxu0 0.0
      %4323 = vmatprep.subr.mxu0 0.0
      %4324 = vmatpush1.msra.mxu0 0.0
      %4325 = vmatprep.subr.mxu0 0.0
      %4326 = vmatpush1.msra.mxu0 0.0
      %4327 = vmatprep.subr.mxu0 0.0
      %4328 = vmatpush1.msra.mxu0 0.0
      %4329 = vmatprep.subr.mxu0 0.0
      %4330 = vmatpush1.msra.mxu0 0.0
      %4331 = vmatprep.subr.mxu0 0.0
      %4332 = vmatpush1.msra.mxu0 0.0
      %4333 = vmatprep.subr.mxu0 0.0
      %4334 = vmatpush1.msra.mxu0 0.0
      %4335 = vmatprep.subr.mxu0 0.0
      %4336 = vmatpush1.msra.mxu0 0.0
      %4337 = vmatprep.subr.mxu0 0.0
      %4338 = vmatpush1.msra.mxu0 0.0
      %4339 = vmatprep.subr.mxu0 0.0
      %4340 = vmatpush1.msra.mxu0 0.0
      %4341 = vmatprep.subr.mxu0 0.0
      %4342 = vmatpush1.msra.mxu0 0.0
      %4343 = vmatprep.subr.mxu0 0.0
      %4344 = vmatpush1.msra.mxu0 0.0
      %4345 = vmatprep.subr.mxu0 0.0
      %4346 = vmatpush1.msra.mxu0 0.0
      %4347 = vmatprep.subr.mxu0 0.0
      %4348 = vmatpush1.msra.mxu0 0.0
      %4349 = vmatprep.subr.mxu0 0.0
      %4350 = vmatpush1.msra.mxu0 0.0
      %4351 = vmatprep.subr.mxu0 0.0
      %4352 = vmatpush1.msra.mxu0 0.0
      %4353 = vmatprep.subr.mxu0 0.0
      %4354 = vmatpush1.msra.mxu0 0.0
      %4355 = vmatprep.subr.mxu0 0.0
      %4356 = vmatpush1.msra.mxu0 0.0
      %4357 = vmatprep.subr.mxu0 0.0
      %4358 = vmatpush1.msra.mxu0 0.0
      %4359 = vmatprep.subr.mxu0 0.0
      %4360 = vmatpush1.msra.mxu0 0.0
      %4361 = vmatprep.subr.mxu0 0.0
      %4362 = vmatpush1.msra.mxu0 0.0
      %4363 = vmatprep.subr.mxu0 0.0
      %4364 = vmatpush1.msra.mxu0 0.0
      %4365 = vmatprep.subr.mxu0 0.0
      %4366 = vmatpush1.msra.mxu0 0.0
      %4367 = vmatprep.subr.mxu0 0.0
      %4368 = vmatpush1.msra.mxu0 0.0
      %4369 = vmatprep.subr.mxu0 0.0
      %4370 = vmatpush1.msra.mxu0 0.0
      %4371 = vmatprep.subr.mxu0 0.0
      %4372 = vmatpush1.msra.mxu0 0.0
      %4373 = vmatprep.subr.mxu0 0.0
      %4374 = vmatpush1.msra.mxu0 0.0
      %4375 = vmatprep.mubr.f32.mxu0 0.0
      %4376 = vmatmul.mubr.f32.gmra.mrb[0].mxu0 %v4303
      %v4377 = vpop.f32.mrb[0].mxu0
      %v4378 = vadd.f32 0.0, %v4377
      %v4379 = vpop.f32.mrb[0].mxu0
      %4380 = vmatprep.mubr.f32.mxu0 0.0
      %4381 = vmatmul.mubr.f32.gmra.mrb[0].mxu0 %v4306
      %v4382 = vpop.f32.mrb[0].mxu0
      %v4383 = vadd.f32 0.0, %v4382
      %v4384 = vpop.f32.mrb[0].mxu0
      %4385 = vmatprep.mubr.f32.mxu0 0.0
      %4386 = vmatmul.mubr.f32.gmra.mrb[0].mxu0 %v4309
      %v4387 = vpop.f32.mrb[0].mxu0
      %v4388 = vadd.f32 0.0, %v4387
      %v4389 = vpop.f32.mrb[0].mxu0
      %4390 = vdwg.mxu0
      %v4391 = vadd.f32 %v4225, %v4378
      %v4392 = vadd.f32 %v4226, %v4383
      %v4393 = vadd.f32 %v4227, %v4388
      %s4394 = scalar_lea.vmem %s19, 72
      %v4395 = vld [vmem:[%s4394] sm:$0xff]
      %v4396 = vld [vmem:[%s4394 + $0x8] sm:$0xff]
      %v4397 = vld [vmem:[%s4394 + $0x10] sm:$0xff]
      %4398 = vmatprep.subr.mxu0 0.0
      %4399 = vmatpush1.msra.mxu0 %v1290
      %4400 = vmatprep.subr.mxu0 0.0
      %4401 = vmatpush1.msra.mxu0 %v1291
      %4402 = vmatprep.subr.mxu0 0.0
      %4403 = vmatpush1.msra.mxu0 0.0
      %4404 = vmatprep.subr.mxu0 0.0
      %4405 = vmatpush1.msra.mxu0 0.0
      %4406 = vmatprep.subr.mxu0 0.0
      %4407 = vmatpush1.msra.mxu0 0.0
      %4408 = vmatprep.subr.mxu0 0.0
      %4409 = vmatpush1.msra.mxu0 0.0
      %4410 = vmatprep.subr.mxu0 0.0
      %4411 = vmatpush1.msra.mxu0 0.0
      %4412 = vmatprep.subr.mxu0 0.0
      %4413 = vmatpush1.msra.mxu0 0.0
      %4414 = vmatprep.subr.mxu0 0.0
      %4415 = vmatpush1.msra.mxu0 0.0
      %4416 = vmatprep.subr.mxu0 0.0
      %4417 = vmatpush1.msra.mxu0 0.0
      %4418 = vmatprep.subr.mxu0 0.0
      %4419 = vmatpush1.msra.mxu0 0.0
      %4420 = vmatprep.subr.mxu0 0.0
      %4421 = vmatpush1.msra.mxu0 0.0
      %4422 = vmatprep.subr.mxu0 0.0
      %4423 = vmatpush1.msra.mxu0 0.0
      %4424 = vmatprep.subr.mxu0 0.0
      %4425 = vmatpush1.msra.mxu0 0.0
      %4426 = vmatprep.subr.mxu0 0.0
      %4427 = vmatpush1.msra.mxu0 0.0
      %4428 = vmatprep.subr.mxu0 0.0
      %4429 = vmatpush1.msra.mxu0 0.0
      %4430 = vmatprep.subr.mxu0 0.0
      %4431 = vmatpush1.msra.mxu0 0.0
      %4432 = vmatprep.subr.mxu0 0.0
      %4433 = vmatpush1.msra.mxu0 0.0
      %4434 = vmatprep.subr.mxu0 0.0
      %4435 = vmatpush1.msra.mxu0 0.0
      %4436 = vmatprep.subr.mxu0 0.0
      %4437 = vmatpush1.msra.mxu0 0.0
      %4438 = vmatprep.subr.mxu0 0.0
      %4439 = vmatpush1.msra.mxu0 0.0
      %4440 = vmatprep.subr.mxu0 0.0
      %4441 = vmatpush1.msra.mxu0 0.0
      %4442 = vmatprep.subr.mxu0 0.0
      %4443 = vmatpush1.msra.mxu0 0.0
      %4444 = vmatprep.subr.mxu0 0.0
      %4445 = vmatpush1.msra.mxu0 0.0
      %4446 = vmatprep.subr.mxu0 0.0
      %4447 = vmatpush1.msra.mxu0 0.0
      %4448 = vmatprep.subr.mxu0 0.0
      %4449 = vmatpush1.msra.mxu0 0.0
      %4450 = vmatprep.subr.mxu0 0.0
      %4451 = vmatpush1.msra.mxu0 0.0
      %4452 = vmatprep.subr.mxu0 0.0
      %4453 = vmatpush1.msra.mxu0 0.0
      %4454 = vmatprep.subr.mxu0 0.0
      %4455 = vmatpush1.msra.mxu0 0.0
      %4456 = vmatprep.subr.mxu0 0.0
      %4457 = vmatpush1.msra.mxu0 0.0
      %4458 = vmatprep.subr.mxu0 0.0
      %4459 = vmatpush1.msra.mxu0 0.0
      %4460 = vmatprep.subr.mxu0 0.0
      %4461 = vmatpush1.msra.mxu0 0.0
      %4462 = vmatprep.mubr.f32.mxu0 0.0
      %4463 = vmatmul.mubr.f32.gmra.mrb[0].mxu0 %v3314
      %v4464 = vpop.f32.mrb[0].mxu0
      %v4465 = vadd.f32 0.0, %v4464
      %v4466 = vpop.f32.mrb[0].mxu0
      %4467 = vdwg.mxu0
      %v4469 = vsel %vm991, %v4395, 0
      %v4472 = vsel %vm991, %v4396, 0
      %v4475 = vsel %vm991, %v4397, 0
      %4477 = vmatprep.subr.mxu0 0.0
      %4478 = vmatpush1.msra.mxu0 %v4465
      %4479 = vmatprep.subr.mxu0 0.0
      %4480 = vmatpush1.msra.mxu0 0.0
      %4481 = vmatprep.subr.mxu0 0.0
      %4482 = vmatpush1.msra.mxu0 0.0
      %4483 = vmatprep.subr.mxu0 0.0
      %4484 = vmatpush1.msra.mxu0 0.0
      %4485 = vmatprep.subr.mxu0 0.0
      %4486 = vmatpush1.msra.mxu0 0.0
      %4487 = vmatprep.subr.mxu0 0.0
      %4488 = vmatpush1.msra.mxu0 0.0
      %4489 = vmatprep.subr.mxu0 0.0
      %4490 = vmatpush1.msra.mxu0 0.0
      %4491 = vmatprep.subr.mxu0 0.0
      %4492 = vmatpush1.msra.mxu0 0.0
      %4493 = vmatprep.subr.mxu0 0.0
      %4494 = vmatpush1.msra.mxu0 0.0
      %4495 = vmatprep.subr.mxu0 0.0
      %4496 = vmatpush1.msra.mxu0 0.0
      %4497 = vmatprep.subr.mxu0 0.0
      %4498 = vmatpush1.msra.mxu0 0.0
      %4499 = vmatprep.subr.mxu0 0.0
      %4500 = vmatpush1.msra.mxu0 0.0
      %4501 = vmatprep.subr.mxu0 0.0
      %4502 = vmatpush1.msra.mxu0 0.0
      %4503 = vmatprep.subr.mxu0 0.0
      %4504 = vmatpush1.msra.mxu0 0.0
      %4505 = vmatprep.subr.mxu0 0.0
      %4506 = vmatpush1.msra.mxu0 0.0
      %4507 = vmatprep.subr.mxu0 0.0
      %4508 = vmatpush1.msra.mxu0 0.0
      %4509 = vmatprep.subr.mxu0 0.0
      %4510 = vmatpush1.msra.mxu0 0.0
      %4511 = vmatprep.subr.mxu0 0.0
      %4512 = vmatpush1.msra.mxu0 0.0
      %4513 = vmatprep.subr.mxu0 0.0
      %4514 = vmatpush1.msra.mxu0 0.0
      %4515 = vmatprep.subr.mxu0 0.0
      %4516 = vmatpush1.msra.mxu0 0.0
      %4517 = vmatprep.subr.mxu0 0.0
      %4518 = vmatpush1.msra.mxu0 0.0
      %4519 = vmatprep.subr.mxu0 0.0
      %4520 = vmatpush1.msra.mxu0 0.0
      %4521 = vmatprep.subr.mxu0 0.0
      %4522 = vmatpush1.msra.mxu0 0.0
      %4523 = vmatprep.subr.mxu0 0.0
      %4524 = vmatpush1.msra.mxu0 0.0
      %4525 = vmatprep.subr.mxu0 0.0
      %4526 = vmatpush1.msra.mxu0 0.0
      %4527 = vmatprep.subr.mxu0 0.0
      %4528 = vmatpush1.msra.mxu0 0.0
      %4529 = vmatprep.subr.mxu0 0.0
      %4530 = vmatpush1.msra.mxu0 0.0
      %4531 = vmatprep.subr.mxu0 0.0
      %4532 = vmatpush1.msra.mxu0 0.0
      %4533 = vmatprep.subr.mxu0 0.0
      %4534 = vmatpush1.msra.mxu0 0.0
      %4535 = vmatprep.subr.mxu0 0.0
      %4536 = vmatpush1.msra.mxu0 0.0
      %4537 = vmatprep.subr.mxu0 0.0
      %4538 = vmatpush1.msra.mxu0 0.0
      %4539 = vmatprep.subr.mxu0 0.0
      %4540 = vmatpush1.msra.mxu0 0.0
      %4541 = vmatprep.mubr.f32.mxu0 0.0
      %4542 = vmatmul.mubr.f32.gmra.mrb[0].mxu0 %v4469
      %v4543 = vpop.f32.mrb[0].mxu0
      %v4544 = vadd.f32 0.0, %v4543
      %v4545 = vpop.f32.mrb[0].mxu0
      %4546 = vmatprep.mubr.f32.mxu0 0.0
      %4547 = vmatmul.mubr.f32.gmra.mrb[0].mxu0 %v4472
      %v4548 = vpop.f32.mrb[0].mxu0
      %v4549 = vadd.f32 0.0, %v4548
      %v4550 = vpop.f32.mrb[0].mxu0
      %4551 = vmatprep.mubr.f32.mxu0 0.0
      %4552 = vmatmul.mubr.f32.gmra.mrb[0].mxu0 %v4475
      %v4553 = vpop.f32.mrb[0].mxu0
      %v4554 = vadd.f32 0.0, %v4553
      %v4555 = vpop.f32.mrb[0].mxu0
      %4556 = vdwg.mxu0
      %v4557 = vadd.f32 %v4391, %v4544
      %v4558 = vadd.f32 %v4392, %v4549
      %v4559 = vadd.f32 %v4393, %v4554
      %s4560 = scalar_lea.vmem %s18, 96
      %v4561 = vld [vmem:[%s4560] sm:$0xff]
      %v4562 = vld [vmem:[%s4560 + $0x8] sm:$0xff]
      %v4563 = vld [vmem:[%s4560 + $0x10] sm:$0xff]
      %4564 = vmatprep.subr.mxu0 0.0
      %4565 = vmatpush1.msra.mxu0 %v1439
      %4566 = vmatprep.subr.mxu0 0.0
      %4567 = vmatpush1.msra.mxu0 %v1440
      %4568 = vmatprep.subr.mxu0 0.0
      %4569 = vmatpush1.msra.mxu0 0.0
      %4570 = vmatprep.subr.mxu0 0.0
      %4571 = vmatpush1.msra.mxu0 0.0
      %4572 = vmatprep.subr.mxu0 0.0
      %4573 = vmatpush1.msra.mxu0 0.0
      %4574 = vmatprep.subr.mxu0 0.0
      %4575 = vmatpush1.msra.mxu0 0.0
      %4576 = vmatprep.subr.mxu0 0.0
      %4577 = vmatpush1.msra.mxu0 0.0
      %4578 = vmatprep.subr.mxu0 0.0
      %4579 = vmatpush1.msra.mxu0 0.0
      %4580 = vmatprep.subr.mxu0 0.0
      %4581 = vmatpush1.msra.mxu0 0.0
      %4582 = vmatprep.subr.mxu0 0.0
      %4583 = vmatpush1.msra.mxu0 0.0
      %4584 = vmatprep.subr.mxu0 0.0
      %4585 = vmatpush1.msra.mxu0 0.0
      %4586 = vmatprep.subr.mxu0 0.0
      %4587 = vmatpush1.msra.mxu0 0.0
      %4588 = vmatprep.subr.mxu0 0.0
      %4589 = vmatpush1.msra.mxu0 0.0
      %4590 = vmatprep.subr.mxu0 0.0
      %4591 = vmatpush1.msra.mxu0 0.0
      %4592 = vmatprep.subr.mxu0 0.0
      %4593 = vmatpush1.msra.mxu0 0.0
      %4594 = vmatprep.subr.mxu0 0.0
      %4595 = vmatpush1.msra.mxu0 0.0
      %4596 = vmatprep.subr.mxu0 0.0
      %4597 = vmatpush1.msra.mxu0 0.0
      %4598 = vmatprep.subr.mxu0 0.0
      %4599 = vmatpush1.msra.mxu0 0.0
      %4600 = vmatprep.subr.mxu0 0.0
      %4601 = vmatpush1.msra.mxu0 0.0
      %4602 = vmatprep.subr.mxu0 0.0
      %4603 = vmatpush1.msra.mxu0 0.0
      %4604 = vmatprep.subr.mxu0 0.0
      %4605 = vmatpush1.msra.mxu0 0.0
      %4606 = vmatprep.subr.mxu0 0.0
      %4607 = vmatpush1.msra.mxu0 0.0
      %4608 = vmatprep.subr.mxu0 0.0
      %4609 = vmatpush1.msra.mxu0 0.0
      %4610 = vmatprep.subr.mxu0 0.0
      %4611 = vmatpush1.msra.mxu0 0.0
      %4612 = vmatprep.subr.mxu0 0.0
      %4613 = vmatpush1.msra.mxu0 0.0
      %4614 = vmatprep.subr.mxu0 0.0
      %4615 = vmatpush1.msra.mxu0 0.0
      %4616 = vmatprep.subr.mxu0 0.0
      %4617 = vmatpush1.msra.mxu0 0.0
      %4618 = vmatprep.subr.mxu0 0.0
      %4619 = vmatpush1.msra.mxu0 0.0
      %4620 = vmatprep.subr.mxu0 0.0
      %4621 = vmatpush1.msra.mxu0 0.0
      %4622 = vmatprep.subr.mxu0 0.0
      %4623 = vmatpush1.msra.mxu0 0.0
      %4624 = vmatprep.subr.mxu0 0.0
      %4625 = vmatpush1.msra.mxu0 0.0
      %4626 = vmatprep.subr.mxu0 0.0
      %4627 = vmatpush1.msra.mxu0 0.0
      %4628 = vmatprep.mubr.f32.mxu0 0.0
      %4629 = vmatmul.mubr.f32.gmra.mrb[0].mxu0 %v3238
      %v4630 = vpop.f32.mrb[0].mxu0
      %v4631 = vadd.f32 0.0, %v4630
      %v4632 = vpop.f32.mrb[0].mxu0
      %4633 = vdwg.mxu0
      %v4635 = vsel %vm991, %v4561, 0
      %v4638 = vsel %vm991, %v4562, 0
      %v4641 = vsel %vm991, %v4563, 0
      %4643 = vmatprep.subr.mxu0 0.0
      %4644 = vmatpush1.msra.mxu0 %v4631
      %4645 = vmatprep.subr.mxu0 0.0
      %4646 = vmatpush1.msra.mxu0 0.0
      %4647 = vmatprep.subr.mxu0 0.0
      %4648 = vmatpush1.msra.mxu0 0.0
      %4649 = vmatprep.subr.mxu0 0.0
      %4650 = vmatpush1.msra.mxu0 0.0
      %4651 = vmatprep.subr.mxu0 0.0
      %4652 = vmatpush1.msra.mxu0 0.0
      %4653 = vmatprep.subr.mxu0 0.0
      %4654 = vmatpush1.msra.mxu0 0.0
      %4655 = vmatprep.subr.mxu0 0.0
      %4656 = vmatpush1.msra.mxu0 0.0
      %4657 = vmatprep.subr.mxu0 0.0
      %4658 = vmatpush1.msra.mxu0 0.0
      %4659 = vmatprep.subr.mxu0 0.0
      %4660 = vmatpush1.msra.mxu0 0.0
      %4661 = vmatprep.subr.mxu0 0.0
      %4662 = vmatpush1.msra.mxu0 0.0
      %4663 = vmatprep.subr.mxu0 0.0
      %4664 = vmatpush1.msra.mxu0 0.0
      %4665 = vmatprep.subr.mxu0 0.0
      %4666 = vmatpush1.msra.mxu0 0.0
      %4667 = vmatprep.subr.mxu0 0.0
      %4668 = vmatpush1.msra.mxu0 0.0
      %4669 = vmatprep.subr.mxu0 0.0
      %4670 = vmatpush1.msra.mxu0 0.0
      %4671 = vmatprep.subr.mxu0 0.0
      %4672 = vmatpush1.msra.mxu0 0.0
      %4673 = vmatprep.subr.mxu0 0.0
      %4674 = vmatpush1.msra.mxu0 0.0
      %4675 = vmatprep.subr.mxu0 0.0
      %4676 = vmatpush1.msra.mxu0 0.0
      %4677 = vmatprep.subr.mxu0 0.0
      %4678 = vmatpush1.msra.mxu0 0.0
      %4679 = vmatprep.subr.mxu0 0.0
      %4680 = vmatpush1.msra.mxu0 0.0
      %4681 = vmatprep.subr.mxu0 0.0
      %4682 = vmatpush1.msra.mxu0 0.0
      %4683 = vmatprep.subr.mxu0 0.0
      %4684 = vmatpush1.msra.mxu0 0.0
      %4685 = vmatprep.subr.mxu0 0.0
      %4686 = vmatpush1.msra.mxu0 0.0
      %4687 = vmatprep.subr.mxu0 0.0
      %4688 = vmatpush1.msra.mxu0 0.0
      %4689 = vmatprep.subr.mxu0 0.0
      %4690 = vmatpush1.msra.mxu0 0.0
      %4691 = vmatprep.subr.mxu0 0.0
      %4692 = vmatpush1.msra.mxu0 0.0
      %4693 = vmatprep.subr.mxu0 0.0
      %4694 = vmatpush1.msra.mxu0 0.0
      %4695 = vmatprep.subr.mxu0 0.0
      %4696 = vmatpush1.msra.mxu0 0.0
      %4697 = vmatprep.subr.mxu0 0.0
      %4698 = vmatpush1.msra.mxu0 0.0
      %4699 = vmatprep.subr.mxu0 0.0
      %4700 = vmatpush1.msra.mxu0 0.0
      %4701 = vmatprep.subr.mxu0 0.0
      %4702 = vmatpush1.msra.mxu0 0.0
      %4703 = vmatprep.subr.mxu0 0.0
      %4704 = vmatpush1.msra.mxu0 0.0
      %4705 = vmatprep.subr.mxu0 0.0
      %4706 = vmatpush1.msra.mxu0 0.0
      %4707 = vmatprep.mubr.f32.mxu0 0.0
      %4708 = vmatmul.mubr.f32.gmra.mrb[0].mxu0 %v4635
      %v4709 = vpop.f32.mrb[0].mxu0
      %v4710 = vadd.f32 0.0, %v4709
      %v4711 = vpop.f32.mrb[0].mxu0
      %4712 = vmatprep.mubr.f32.mxu0 0.0
      %4713 = vmatmul.mubr.f32.gmra.mrb[0].mxu0 %v4638
      %v4714 = vpop.f32.mrb[0].mxu0
      %v4715 = vadd.f32 0.0, %v4714
      %v4716 = vpop.f32.mrb[0].mxu0
      %4717 = vmatprep.mubr.f32.mxu0 0.0
      %4718 = vmatmul.mubr.f32.gmra.mrb[0].mxu0 %v4641
      %v4719 = vpop.f32.mrb[0].mxu0
      %v4720 = vadd.f32 0.0, %v4719
      %v4721 = vpop.f32.mrb[0].mxu0
      %4722 = vdwg.mxu0
      %v4723 = vadd.f32 %v4557, %v4710
      %v4724 = vadd.f32 %v4558, %v4715
      %v4725 = vadd.f32 %v4559, %v4720
      %s4726 = scalar_lea.vmem %s19, 96
      %v4727 = vld [vmem:[%s4726] sm:$0xff]
      %v4728 = vld [vmem:[%s4726 + $0x8] sm:$0xff]
      %v4729 = vld [vmem:[%s4726 + $0x10] sm:$0xff]
      %4730 = vmatprep.subr.mxu0 0.0
      %4731 = vmatpush1.msra.mxu0 %v1439
      %4732 = vmatprep.subr.mxu0 0.0
      %4733 = vmatpush1.msra.mxu0 %v1440
      %4734 = vmatprep.subr.mxu0 0.0
      %4735 = vmatpush1.msra.mxu0 0.0
      %4736 = vmatprep.subr.mxu0 0.0
      %4737 = vmatpush1.msra.mxu0 0.0
      %4738 = vmatprep.subr.mxu0 0.0
      %4739 = vmatpush1.msra.mxu0 0.0
      %4740 = vmatprep.subr.mxu0 0.0
      %4741 = vmatpush1.msra.mxu0 0.0
      %4742 = vmatprep.subr.mxu0 0.0
      %4743 = vmatpush1.msra.mxu0 0.0
      %4744 = vmatprep.subr.mxu0 0.0
      %4745 = vmatpush1.msra.mxu0 0.0
      %4746 = vmatprep.subr.mxu0 0.0
      %4747 = vmatpush1.msra.mxu0 0.0
      %4748 = vmatprep.subr.mxu0 0.0
      %4749 = vmatpush1.msra.mxu0 0.0
      %4750 = vmatprep.subr.mxu0 0.0
      %4751 = vmatpush1.msra.mxu0 0.0
      %4752 = vmatprep.subr.mxu0 0.0
      %4753 = vmatpush1.msra.mxu0 0.0
      %4754 = vmatprep.subr.mxu0 0.0
      %4755 = vmatpush1.msra.mxu0 0.0
      %4756 = vmatprep.subr.mxu0 0.0
      %4757 = vmatpush1.msra.mxu0 0.0
      %4758 = vmatprep.subr.mxu0 0.0
      %4759 = vmatpush1.msra.mxu0 0.0
      %4760 = vmatprep.subr.mxu0 0.0
      %4761 = vmatpush1.msra.mxu0 0.0
      %4762 = vmatprep.subr.mxu0 0.0
      %4763 = vmatpush1.msra.mxu0 0.0
      %4764 = vmatprep.subr.mxu0 0.0
      %4765 = vmatpush1.msra.mxu0 0.0
      %4766 = vmatprep.subr.mxu0 0.0
      %4767 = vmatpush1.msra.mxu0 0.0
      %4768 = vmatprep.subr.mxu0 0.0
      %4769 = vmatpush1.msra.mxu0 0.0
      %4770 = vmatprep.subr.mxu0 0.0
      %4771 = vmatpush1.msra.mxu0 0.0
      %4772 = vmatprep.subr.mxu0 0.0
      %4773 = vmatpush1.msra.mxu0 0.0
      %4774 = vmatprep.subr.mxu0 0.0
      %4775 = vmatpush1.msra.mxu0 0.0
      %4776 = vmatprep.subr.mxu0 0.0
      %4777 = vmatpush1.msra.mxu0 0.0
      %4778 = vmatprep.subr.mxu0 0.0
      %4779 = vmatpush1.msra.mxu0 0.0
      %4780 = vmatprep.subr.mxu0 0.0
      %4781 = vmatpush1.msra.mxu0 0.0
      %4782 = vmatprep.subr.mxu0 0.0
      %4783 = vmatpush1.msra.mxu0 0.0
      %4784 = vmatprep.subr.mxu0 0.0
      %4785 = vmatpush1.msra.mxu0 0.0
      %4786 = vmatprep.subr.mxu0 0.0
      %4787 = vmatpush1.msra.mxu0 0.0
      %4788 = vmatprep.subr.mxu0 0.0
      %4789 = vmatpush1.msra.mxu0 0.0
      %4790 = vmatprep.subr.mxu0 0.0
      %4791 = vmatpush1.msra.mxu0 0.0
      %4792 = vmatprep.subr.mxu0 0.0
      %4793 = vmatpush1.msra.mxu0 0.0
      %4794 = vmatprep.mubr.f32.mxu0 0.0
      %4795 = vmatmul.mubr.f32.gmra.mrb[0].mxu0 %v3314
      %v4796 = vpop.f32.mrb[0].mxu0
      %v4797 = vadd.f32 0.0, %v4796
      %v4798 = vpop.f32.mrb[0].mxu0
      %4799 = vdwg.mxu0
      %v4801 = vsel %vm991, %v4727, 0
      %v4804 = vsel %vm991, %v4728, 0
      %v4807 = vsel %vm991, %v4729, 0
      %4809 = vmatprep.subr.mxu0 0.0
      %4810 = vmatpush1.msra.mxu0 %v4797
      %4811 = vmatprep.subr.mxu0 0.0
      %4812 = vmatpush1.msra.mxu0 0.0
      %4813 = vmatprep.subr.mxu0 0.0
      %4814 = vmatpush1.msra.mxu0 0.0
      %4815 = vmatprep.subr.mxu0 0.0
      %4816 = vmatpush1.msra.mxu0 0.0
      %4817 = vmatprep.subr.mxu0 0.0
      %4818 = vmatpush1.msra.mxu0 0.0
      %4819 = vmatprep.subr.mxu0 0.0
      %4820 = vmatpush1.msra.mxu0 0.0
      %4821 = vmatprep.subr.mxu0 0.0
      %4822 = vmatpush1.msra.mxu0 0.0
      %4823 = vmatprep.subr.mxu0 0.0
      %4824 = vmatpush1.msra.mxu0 0.0
      %4825 = vmatprep.subr.mxu0 0.0
      %4826 = vmatpush1.msra.mxu0 0.0
      %4827 = vmatprep.subr.mxu0 0.0
      %4828 = vmatpush1.msra.mxu0 0.0
      %4829 = vmatprep.subr.mxu0 0.0
      %4830 = vmatpush1.msra.mxu0 0.0
      %4831 = vmatprep.subr.mxu0 0.0
      %4832 = vmatpush1.msra.mxu0 0.0
      %4833 = vmatprep.subr.mxu0 0.0
      %4834 = vmatpush1.msra.mxu0 0.0
      %4835 = vmatprep.subr.mxu0 0.0
      %4836 = vmatpush1.msra.mxu0 0.0
      %4837 = vmatprep.subr.mxu0 0.0
      %4838 = vmatpush1.msra.mxu0 0.0
      %4839 = vmatprep.subr.mxu0 0.0
      %4840 = vmatpush1.msra.mxu0 0.0
      %4841 = vmatprep.subr.mxu0 0.0
      %4842 = vmatpush1.msra.mxu0 0.0
      %4843 = vmatprep.subr.mxu0 0.0
      %4844 = vmatpush1.msra.mxu0 0.0
      %4845 = vmatprep.subr.mxu0 0.0
      %4846 = vmatpush1.msra.mxu0 0.0
      %4847 = vmatprep.subr.mxu0 0.0
      %4848 = vmatpush1.msra.mxu0 0.0
      %4849 = vmatprep.subr.mxu0 0.0
      %4850 = vmatpush1.msra.mxu0 0.0
      %4851 = vmatprep.subr.mxu0 0.0
      %4852 = vmatpush1.msra.mxu0 0.0
      %4853 = vmatprep.subr.mxu0 0.0
      %4854 = vmatpush1.msra.mxu0 0.0
      %4855 = vmatprep.subr.mxu0 0.0
      %4856 = vmatpush1.msra.mxu0 0.0
      %4857 = vmatprep.subr.mxu0 0.0
      %4858 = vmatpush1.msra.mxu0 0.0
      %4859 = vmatprep.subr.mxu0 0.0
      %4860 = vmatpush1.msra.mxu0 0.0
      %4861 = vmatprep.subr.mxu0 0.0
      %4862 = vmatpush1.msra.mxu0 0.0
      %4863 = vmatprep.subr.mxu0 0.0
      %4864 = vmatpush1.msra.mxu0 0.0
      %4865 = vmatprep.subr.mxu0 0.0
      %4866 = vmatpush1.msra.mxu0 0.0
      %4867 = vmatprep.subr.mxu0 0.0
      %4868 = vmatpush1.msra.mxu0 0.0
      %4869 = vmatprep.subr.mxu0 0.0
      %4870 = vmatpush1.msra.mxu0 0.0
      %4871 = vmatprep.subr.mxu0 0.0
      %4872 = vmatpush1.msra.mxu0 0.0
      %4873 = vmatprep.mubr.f32.mxu0 0.0
      %4874 = vmatmul.mubr.f32.gmra.mrb[0].mxu0 %v4801
      %v4875 = vpop.f32.mrb[0].mxu0
      %v4876 = vadd.f32 0.0, %v4875
      %v4877 = vpop.f32.mrb[0].mxu0
      %4878 = vmatprep.mubr.f32.mxu0 0.0
      %4879 = vmatmul.mubr.f32.gmra.mrb[0].mxu0 %v4804
      %v4880 = vpop.f32.mrb[0].mxu0
      %v4881 = vadd.f32 0.0, %v4880
      %v4882 = vpop.f32.mrb[0].mxu0
      %4883 = vmatprep.mubr.f32.mxu0 0.0
      %4884 = vmatmul.mubr.f32.gmra.mrb[0].mxu0 %v4807
      %v4885 = vpop.f32.mrb[0].mxu0
      %v4886 = vadd.f32 0.0, %v4885
      %v4887 = vpop.f32.mrb[0].mxu0
      %4888 = vdwg.mxu0
      %v4889 = vadd.f32 %v4723, %v4876
      %v4890 = vadd.f32 %v4724, %v4881
      %v4891 = vadd.f32 %v4725, %v4886
      %s4892 = scalar_lea.vmem %s18, 120
      %v4893 = vld [vmem:[%s4892] sm:$0xff]
      %v4894 = vld [vmem:[%s4892 + $0x8] sm:$0xff]
      %v4895 = vld [vmem:[%s4892 + $0x10] sm:$0xff]
      %4896 = vmatprep.subr.mxu0 0.0
      %4897 = vmatpush1.msra.mxu0 %v1588
      %4898 = vmatprep.subr.mxu0 0.0
      %4899 = vmatpush1.msra.mxu0 %v1589
      %4900 = vmatprep.subr.mxu0 0.0
      %4901 = vmatpush1.msra.mxu0 0.0
      %4902 = vmatprep.subr.mxu0 0.0
      %4903 = vmatpush1.msra.mxu0 0.0
      %4904 = vmatprep.subr.mxu0 0.0
      %4905 = vmatpush1.msra.mxu0 0.0
      %4906 = vmatprep.subr.mxu0 0.0
      %4907 = vmatpush1.msra.mxu0 0.0
      %4908 = vmatprep.subr.mxu0 0.0
      %4909 = vmatpush1.msra.mxu0 0.0
      %4910 = vmatprep.subr.mxu0 0.0
      %4911 = vmatpush1.msra.mxu0 0.0
      %4912 = vmatprep.subr.mxu0 0.0
      %4913 = vmatpush1.msra.mxu0 0.0
      %4914 = vmatprep.subr.mxu0 0.0
      %4915 = vmatpush1.msra.mxu0 0.0
      %4916 = vmatprep.subr.mxu0 0.0
      %4917 = vmatpush1.msra.mxu0 0.0
      %4918 = vmatprep.subr.mxu0 0.0
      %4919 = vmatpush1.msra.mxu0 0.0
      %4920 = vmatprep.subr.mxu0 0.0
      %4921 = vmatpush1.msra.mxu0 0.0
      %4922 = vmatprep.subr.mxu0 0.0
      %4923 = vmatpush1.msra.mxu0 0.0
      %4924 = vmatprep.subr.mxu0 0.0
      %4925 = vmatpush1.msra.mxu0 0.0
      %4926 = vmatprep.subr.mxu0 0.0
      %4927 = vmatpush1.msra.mxu0 0.0
      %4928 = vmatprep.subr.mxu0 0.0
      %4929 = vmatpush1.msra.mxu0 0.0
      %4930 = vmatprep.subr.mxu0 0.0
      %4931 = vmatpush1.msra.mxu0 0.0
      %4932 = vmatprep.subr.mxu0 0.0
      %4933 = vmatpush1.msra.mxu0 0.0
      %4934 = vmatprep.subr.mxu0 0.0
      %4935 = vmatpush1.msra.mxu0 0.0
      %4936 = vmatprep.subr.mxu0 0.0
      %4937 = vmatpush1.msra.mxu0 0.0
      %4938 = vmatprep.subr.mxu0 0.0
      %4939 = vmatpush1.msra.mxu0 0.0
      %4940 = vmatprep.subr.mxu0 0.0
      %4941 = vmatpush1.msra.mxu0 0.0
      %4942 = vmatprep.subr.mxu0 0.0
      %4943 = vmatpush1.msra.mxu0 0.0
      %4944 = vmatprep.subr.mxu0 0.0
      %4945 = vmatpush1.msra.mxu0 0.0
      %4946 = vmatprep.subr.mxu0 0.0
      %4947 = vmatpush1.msra.mxu0 0.0
      %4948 = vmatprep.subr.mxu0 0.0
      %4949 = vmatpush1.msra.mxu0 0.0
      %4950 = vmatprep.subr.mxu0 0.0
      %4951 = vmatpush1.msra.mxu0 0.0
      %4952 = vmatprep.subr.mxu0 0.0
      %4953 = vmatpush1.msra.mxu0 0.0
      %4954 = vmatprep.subr.mxu0 0.0
      %4955 = vmatpush1.msra.mxu0 0.0
      %4956 = vmatprep.subr.mxu0 0.0
      %4957 = vmatpush1.msra.mxu0 0.0
      %4958 = vmatprep.subr.mxu0 0.0
      %4959 = vmatpush1.msra.mxu0 0.0
      %4960 = vmatprep.mubr.f32.mxu0 0.0
      %4961 = vmatmul.mubr.f32.gmra.mrb[0].mxu0 %v3238
      %v4962 = vpop.f32.mrb[0].mxu0
      %v4963 = vadd.f32 0.0, %v4962
      %v4964 = vpop.f32.mrb[0].mxu0
      %4965 = vdwg.mxu0
      %v4967 = vsel %vm991, %v4893, 0
      %v4970 = vsel %vm991, %v4894, 0
      %v4973 = vsel %vm991, %v4895, 0
      %4975 = vmatprep.subr.mxu0 0.0
      %4976 = vmatpush1.msra.mxu0 %v4963
      %4977 = vmatprep.subr.mxu0 0.0
      %4978 = vmatpush1.msra.mxu0 0.0
      %4979 = vmatprep.subr.mxu0 0.0
      %4980 = vmatpush1.msra.mxu0 0.0
      %4981 = vmatprep.subr.mxu0 0.0
      %4982 = vmatpush1.msra.mxu0 0.0
      %4983 = vmatprep.subr.mxu0 0.0
      %4984 = vmatpush1.msra.mxu0 0.0
      %4985 = vmatprep.subr.mxu0 0.0
      %4986 = vmatpush1.msra.mxu0 0.0
      %4987 = vmatprep.subr.mxu0 0.0
      %4988 = vmatpush1.msra.mxu0 0.0
      %4989 = vmatprep.subr.mxu0 0.0
      %4990 = vmatpush1.msra.mxu0 0.0
      %4991 = vmatprep.subr.mxu0 0.0
      %4992 = vmatpush1.msra.mxu0 0.0
      %4993 = vmatprep.subr.mxu0 0.0
      %4994 = vmatpush1.msra.mxu0 0.0
      %4995 = vmatprep.subr.mxu0 0.0
      %4996 = vmatpush1.msra.mxu0 0.0
      %4997 = vmatprep.subr.mxu0 0.0
      %4998 = vmatpush1.msra.mxu0 0.0
      %4999 = vmatprep.subr.mxu0 0.0
      %5000 = vmatpush1.msra.mxu0 0.0
      %5001 = vmatprep.subr.mxu0 0.0
      %5002 = vmatpush1.msra.mxu0 0.0
      %5003 = vmatprep.subr.mxu0 0.0
      %5004 = vmatpush1.msra.mxu0 0.0
      %5005 = vmatprep.subr.mxu0 0.0
      %5006 = vmatpush1.msra.mxu0 0.0
      %5007 = vmatprep.subr.mxu0 0.0
      %5008 = vmatpush1.msra.mxu0 0.0
      %5009 = vmatprep.subr.mxu0 0.0
      %5010 = vmatpush1.msra.mxu0 0.0
      %5011 = vmatprep.subr.mxu0 0.0
      %5012 = vmatpush1.msra.mxu0 0.0
      %5013 = vmatprep.subr.mxu0 0.0
      %5014 = vmatpush1.msra.mxu0 0.0
      %5015 = vmatprep.subr.mxu0 0.0
      %5016 = vmatpush1.msra.mxu0 0.0
      %5017 = vmatprep.subr.mxu0 0.0
      %5018 = vmatpush1.msra.mxu0 0.0
      %5019 = vmatprep.subr.mxu0 0.0
      %5020 = vmatpush1.msra.mxu0 0.0
      %5021 = vmatprep.subr.mxu0 0.0
      %5022 = vmatpush1.msra.mxu0 0.0
      %5023 = vmatprep.subr.mxu0 0.0
      %5024 = vmatpush1.msra.mxu0 0.0
      %5025 = vmatprep.subr.mxu0 0.0
      %5026 = vmatpush1.msra.mxu0 0.0
      %5027 = vmatprep.subr.mxu0 0.0
      %5028 = vmatpush1.msra.mxu0 0.0
      %5029 = vmatprep.subr.mxu0 0.0
      %5030 = vmatpush1.msra.mxu0 0.0
      %5031 = vmatprep.subr.mxu0 0.0
      %5032 = vmatpush1.msra.mxu0 0.0
      %5033 = vmatprep.subr.mxu0 0.0
      %5034 = vmatpush1.msra.mxu0 0.0
      %5035 = vmatprep.subr.mxu0 0.0
      %5036 = vmatpush1.msra.mxu0 0.0
      %5037 = vmatprep.subr.mxu0 0.0
      %5038 = vmatpush1.msra.mxu0 0.0
      %5039 = vmatprep.mubr.f32.mxu0 0.0
      %5040 = vmatmul.mubr.f32.gmra.mrb[0].mxu0 %v4967
      %v5041 = vpop.f32.mrb[0].mxu0
      %v5042 = vadd.f32 0.0, %v5041
      %v5043 = vpop.f32.mrb[0].mxu0
      %5044 = vmatprep.mubr.f32.mxu0 0.0
      %5045 = vmatmul.mubr.f32.gmra.mrb[0].mxu0 %v4970
      %v5046 = vpop.f32.mrb[0].mxu0
      %v5047 = vadd.f32 0.0, %v5046
      %v5048 = vpop.f32.mrb[0].mxu0
      %5049 = vmatprep.mubr.f32.mxu0 0.0
      %5050 = vmatmul.mubr.f32.gmra.mrb[0].mxu0 %v4973
      %v5051 = vpop.f32.mrb[0].mxu0
      %v5052 = vadd.f32 0.0, %v5051
      %v5053 = vpop.f32.mrb[0].mxu0
      %5054 = vdwg.mxu0
      %v5055 = vadd.f32 %v4889, %v5042
      %v5056 = vadd.f32 %v4890, %v5047
      %v5057 = vadd.f32 %v4891, %v5052
      %s5058 = scalar_lea.vmem %s19, 120
      %v5059 = vld [vmem:[%s5058] sm:$0xff]
      %v5060 = vld [vmem:[%s5058 + $0x8] sm:$0xff]
      %v5061 = vld [vmem:[%s5058 + $0x10] sm:$0xff]
      %5062 = vmatprep.subr.mxu0 0.0
      %5063 = vmatpush1.msra.mxu0 %v1588
      %5064 = vmatprep.subr.mxu0 0.0
      %5065 = vmatpush1.msra.mxu0 %v1589
      %5066 = vmatprep.subr.mxu0 0.0
      %5067 = vmatpush1.msra.mxu0 0.0
      %5068 = vmatprep.subr.mxu0 0.0
      %5069 = vmatpush1.msra.mxu0 0.0
      %5070 = vmatprep.subr.mxu0 0.0
      %5071 = vmatpush1.msra.mxu0 0.0
      %5072 = vmatprep.subr.mxu0 0.0
      %5073 = vmatpush1.msra.mxu0 0.0
      %5074 = vmatprep.subr.mxu0 0.0
      %5075 = vmatpush1.msra.mxu0 0.0
      %5076 = vmatprep.subr.mxu0 0.0
      %5077 = vmatpush1.msra.mxu0 0.0
      %5078 = vmatprep.subr.mxu0 0.0
      %5079 = vmatpush1.msra.mxu0 0.0
      %5080 = vmatprep.subr.mxu0 0.0
      %5081 = vmatpush1.msra.mxu0 0.0
      %5082 = vmatprep.subr.mxu0 0.0
      %5083 = vmatpush1.msra.mxu0 0.0
      %5084 = vmatprep.subr.mxu0 0.0
      %5085 = vmatpush1.msra.mxu0 0.0
      %5086 = vmatprep.subr.mxu0 0.0
      %5087 = vmatpush1.msra.mxu0 0.0
      %5088 = vmatprep.subr.mxu0 0.0
      %5089 = vmatpush1.msra.mxu0 0.0
      %5090 = vmatprep.subr.mxu0 0.0
      %5091 = vmatpush1.msra.mxu0 0.0
      %5092 = vmatprep.subr.mxu0 0.0
      %5093 = vmatpush1.msra.mxu0 0.0
      %5094 = vmatprep.subr.mxu0 0.0
      %5095 = vmatpush1.msra.mxu0 0.0
      %5096 = vmatprep.subr.mxu0 0.0
      %5097 = vmatpush1.msra.mxu0 0.0
      %5098 = vmatprep.subr.mxu0 0.0
      %5099 = vmatpush1.msra.mxu0 0.0
      %5100 = vmatprep.subr.mxu0 0.0
      %5101 = vmatpush1.msra.mxu0 0.0
      %5102 = vmatprep.subr.mxu0 0.0
      %5103 = vmatpush1.msra.mxu0 0.0
      %5104 = vmatprep.subr.mxu0 0.0
      %5105 = vmatpush1.msra.mxu0 0.0
      %5106 = vmatprep.subr.mxu0 0.0
      %5107 = vmatpush1.msra.mxu0 0.0
      %5108 = vmatprep.subr.mxu0 0.0
      %5109 = vmatpush1.msra.mxu0 0.0
      %5110 = vmatprep.subr.mxu0 0.0
      %5111 = vmatpush1.msra.mxu0 0.0
      %5112 = vmatprep.subr.mxu0 0.0
      %5113 = vmatpush1.msra.mxu0 0.0
      %5114 = vmatprep.subr.mxu0 0.0
      %5115 = vmatpush1.msra.mxu0 0.0
      %5116 = vmatprep.subr.mxu0 0.0
      %5117 = vmatpush1.msra.mxu0 0.0
      %5118 = vmatprep.subr.mxu0 0.0
      %5119 = vmatpush1.msra.mxu0 0.0
      %5120 = vmatprep.subr.mxu0 0.0
      %5121 = vmatpush1.msra.mxu0 0.0
      %5122 = vmatprep.subr.mxu0 0.0
      %5123 = vmatpush1.msra.mxu0 0.0
      %5124 = vmatprep.subr.mxu0 0.0
      %5125 = vmatpush1.msra.mxu0 0.0
      %5126 = vmatprep.mubr.f32.mxu0 0.0
      %5127 = vmatmul.mubr.f32.gmra.mrb[0].mxu0 %v3314
      %v5128 = vpop.f32.mrb[0].mxu0
      %v5129 = vadd.f32 0.0, %v5128
      %v5130 = vpop.f32.mrb[0].mxu0
      %5131 = vdwg.mxu0
      %v5133 = vsel %vm991, %v5059, 0
      %v5136 = vsel %vm991, %v5060, 0
      %v5139 = vsel %vm991, %v5061, 0
      %5141 = vmatprep.subr.mxu0 0.0
      %5142 = vmatpush1.msra.mxu0 %v5129
      %5143 = vmatprep.subr.mxu0 0.0
      %5144 = vmatpush1.msra.mxu0 0.0
      %5145 = vmatprep.subr.mxu0 0.0
      %5146 = vmatpush1.msra.mxu0 0.0
      %5147 = vmatprep.subr.mxu0 0.0
      %5148 = vmatpush1.msra.mxu0 0.0
      %5149 = vmatprep.subr.mxu0 0.0
      %5150 = vmatpush1.msra.mxu0 0.0
      %5151 = vmatprep.subr.mxu0 0.0
      %5152 = vmatpush1.msra.mxu0 0.0
      %5153 = vmatprep.subr.mxu0 0.0
      %5154 = vmatpush1.msra.mxu0 0.0
      %5155 = vmatprep.subr.mxu0 0.0
      %5156 = vmatpush1.msra.mxu0 0.0
      %5157 = vmatprep.subr.mxu0 0.0
      %5158 = vmatpush1.msra.mxu0 0.0
      %5159 = vmatprep.subr.mxu0 0.0
      %5160 = vmatpush1.msra.mxu0 0.0
      %5161 = vmatprep.subr.mxu0 0.0
      %5162 = vmatpush1.msra.mxu0 0.0
      %5163 = vmatprep.subr.mxu0 0.0
      %5164 = vmatpush1.msra.mxu0 0.0
      %5165 = vmatprep.subr.mxu0 0.0
      %5166 = vmatpush1.msra.mxu0 0.0
      %5167 = vmatprep.subr.mxu0 0.0
      %5168 = vmatpush1.msra.mxu0 0.0
      %5169 = vmatprep.subr.mxu0 0.0
      %5170 = vmatpush1.msra.mxu0 0.0
      %5171 = vmatprep.subr.mxu0 0.0
      %5172 = vmatpush1.msra.mxu0 0.0
      %5173 = vmatprep.subr.mxu0 0.0
      %5174 = vmatpush1.msra.mxu0 0.0
      %5175 = vmatprep.subr.mxu0 0.0
      %5176 = vmatpush1.msra.mxu0 0.0
      %5177 = vmatprep.subr.mxu0 0.0
      %5178 = vmatpush1.msra.mxu0 0.0
      %5179 = vmatprep.subr.mxu0 0.0
      %5180 = vmatpush1.msra.mxu0 0.0
      %5181 = vmatprep.subr.mxu0 0.0
      %5182 = vmatpush1.msra.mxu0 0.0
      %5183 = vmatprep.subr.mxu0 0.0
      %5184 = vmatpush1.msra.mxu0 0.0
      %5185 = vmatprep.subr.mxu0 0.0
      %5186 = vmatpush1.msra.mxu0 0.0
      %5187 = vmatprep.subr.mxu0 0.0
      %5188 = vmatpush1.msra.mxu0 0.0
      %5189 = vmatprep.subr.mxu0 0.0
      %5190 = vmatpush1.msra.mxu0 0.0
      %5191 = vmatprep.subr.mxu0 0.0
      %5192 = vmatpush1.msra.mxu0 0.0
      %5193 = vmatprep.subr.mxu0 0.0
      %5194 = vmatpush1.msra.mxu0 0.0
      %5195 = vmatprep.subr.mxu0 0.0
      %5196 = vmatpush1.msra.mxu0 0.0
      %5197 = vmatprep.subr.mxu0 0.0
      %5198 = vmatpush1.msra.mxu0 0.0
      %5199 = vmatprep.subr.mxu0 0.0
      %5200 = vmatpush1.msra.mxu0 0.0
      %5201 = vmatprep.subr.mxu0 0.0
      %5202 = vmatpush1.msra.mxu0 0.0
      %5203 = vmatprep.subr.mxu0 0.0
      %5204 = vmatpush1.msra.mxu0 0.0
      %5205 = vmatprep.mubr.f32.mxu0 0.0
      %5206 = vmatmul.mubr.f32.gmra.mrb[0].mxu0 %v5133
      %v5207 = vpop.f32.mrb[0].mxu0
      %v5208 = vadd.f32 0.0, %v5207
      %v5209 = vpop.f32.mrb[0].mxu0
      %5210 = vmatprep.mubr.f32.mxu0 0.0
      %5211 = vmatmul.mubr.f32.gmra.mrb[0].mxu0 %v5136
      %v5212 = vpop.f32.mrb[0].mxu0
      %v5213 = vadd.f32 0.0, %v5212
      %v5214 = vpop.f32.mrb[0].mxu0
      %5215 = vmatprep.mubr.f32.mxu0 0.0
      %5216 = vmatmul.mubr.f32.gmra.mrb[0].mxu0 %v5139
      %v5217 = vpop.f32.mrb[0].mxu0
      %v5218 = vadd.f32 0.0, %v5217
      %v5219 = vpop.f32.mrb[0].mxu0
      %5220 = vdwg.mxu0
      %v5221 = vadd.f32 %v5055, %v5208
      %v5222 = vadd.f32 %v5056, %v5213
      %v5223 = vadd.f32 %v5057, %v5218
      %s5224 = scalar_lea.vmem %s18, 144
      %v5225 = vld [vmem:[%s5224] sm:$0xff]
      %v5226 = vld [vmem:[%s5224 + $0x8] sm:$0xff]
      %v5227 = vld [vmem:[%s5224 + $0x10] sm:$0xff]
      %5228 = vmatprep.subr.mxu0 0.0
      %5229 = vmatpush1.msra.mxu0 %v1737
      %5230 = vmatprep.subr.mxu0 0.0
      %5231 = vmatpush1.msra.mxu0 %v1738
      %5232 = vmatprep.subr.mxu0 0.0
      %5233 = vmatpush1.msra.mxu0 0.0
      %5234 = vmatprep.subr.mxu0 0.0
      %5235 = vmatpush1.msra.mxu0 0.0
      %5236 = vmatprep.subr.mxu0 0.0
      %5237 = vmatpush1.msra.mxu0 0.0
      %5238 = vmatprep.subr.mxu0 0.0
      %5239 = vmatpush1.msra.mxu0 0.0
      %5240 = vmatprep.subr.mxu0 0.0
      %5241 = vmatpush1.msra.mxu0 0.0
      %5242 = vmatprep.subr.mxu0 0.0
      %5243 = vmatpush1.msra.mxu0 0.0
      %5244 = vmatprep.subr.mxu0 0.0
      %5245 = vmatpush1.msra.mxu0 0.0
      %5246 = vmatprep.subr.mxu0 0.0
      %5247 = vmatpush1.msra.mxu0 0.0
      %5248 = vmatprep.subr.mxu0 0.0
      %5249 = vmatpush1.msra.mxu0 0.0
      %5250 = vmatprep.subr.mxu0 0.0
      %5251 = vmatpush1.msra.mxu0 0.0
      %5252 = vmatprep.subr.mxu0 0.0
      %5253 = vmatpush1.msra.mxu0 0.0
      %5254 = vmatprep.subr.mxu0 0.0
      %5255 = vmatpush1.msra.mxu0 0.0
      %5256 = vmatprep.subr.mxu0 0.0
      %5257 = vmatpush1.msra.mxu0 0.0
      %5258 = vmatprep.subr.mxu0 0.0
      %5259 = vmatpush1.msra.mxu0 0.0
      %5260 = vmatprep.subr.mxu0 0.0
      %5261 = vmatpush1.msra.mxu0 0.0
      %5262 = vmatprep.subr.mxu0 0.0
      %5263 = vmatpush1.msra.mxu0 0.0
      %5264 = vmatprep.subr.mxu0 0.0
      %5265 = vmatpush1.msra.mxu0 0.0
      %5266 = vmatprep.subr.mxu0 0.0
      %5267 = vmatpush1.msra.mxu0 0.0
      %5268 = vmatprep.subr.mxu0 0.0
      %5269 = vmatpush1.msra.mxu0 0.0
      %5270 = vmatprep.subr.mxu0 0.0
      %5271 = vmatpush1.msra.mxu0 0.0
      %5272 = vmatprep.subr.mxu0 0.0
      %5273 = vmatpush1.msra.mxu0 0.0
      %5274 = vmatprep.subr.mxu0 0.0
      %5275 = vmatpush1.msra.mxu0 0.0
      %5276 = vmatprep.subr.mxu0 0.0
      %5277 = vmatpush1.msra.mxu0 0.0
      %5278 = vmatprep.subr.mxu0 0.0
      %5279 = vmatpush1.msra.mxu0 0.0
      %5280 = vmatprep.subr.mxu0 0.0
      %5281 = vmatpush1.msra.mxu0 0.0
      %5282 = vmatprep.subr.mxu0 0.0
      %5283 = vmatpush1.msra.mxu0 0.0
      %5284 = vmatprep.subr.mxu0 0.0
      %5285 = vmatpush1.msra.mxu0 0.0
      %5286 = vmatprep.subr.mxu0 0.0
      %5287 = vmatpush1.msra.mxu0 0.0
      %5288 = vmatprep.subr.mxu0 0.0
      %5289 = vmatpush1.msra.mxu0 0.0
      %5290 = vmatprep.subr.mxu0 0.0
      %5291 = vmatpush1.msra.mxu0 0.0
      %5292 = vmatprep.mubr.f32.mxu0 0.0
      %5293 = vmatmul.mubr.f32.gmra.mrb[0].mxu0 %v3238
      %v5294 = vpop.f32.mrb[0].mxu0
      %v5295 = vadd.f32 0.0, %v5294
      %v5296 = vpop.f32.mrb[0].mxu0
      %5297 = vdwg.mxu0
      %v5299 = vsel %vm991, %v5225, 0
      %v5302 = vsel %vm991, %v5226, 0
      %v5305 = vsel %vm991, %v5227, 0
      %5307 = vmatprep.subr.mxu0 0.0
      %5308 = vmatpush1.msra.mxu0 %v5295
      %5309 = vmatprep.subr.mxu0 0.0
      %5310 = vmatpush1.msra.mxu0 0.0
      %5311 = vmatprep.subr.mxu0 0.0
      %5312 = vmatpush1.msra.mxu0 0.0
      %5313 = vmatprep.subr.mxu0 0.0
      %5314 = vmatpush1.msra.mxu0 0.0
      %5315 = vmatprep.subr.mxu0 0.0
      %5316 = vmatpush1.msra.mxu0 0.0
      %5317 = vmatprep.subr.mxu0 0.0
      %5318 = vmatpush1.msra.mxu0 0.0
      %5319 = vmatprep.subr.mxu0 0.0
      %5320 = vmatpush1.msra.mxu0 0.0
      %5321 = vmatprep.subr.mxu0 0.0
      %5322 = vmatpush1.msra.mxu0 0.0
      %5323 = vmatprep.subr.mxu0 0.0
      %5324 = vmatpush1.msra.mxu0 0.0
      %5325 = vmatprep.subr.mxu0 0.0
      %5326 = vmatpush1.msra.mxu0 0.0
      %5327 = vmatprep.subr.mxu0 0.0
      %5328 = vmatpush1.msra.mxu0 0.0
      %5329 = vmatprep.subr.mxu0 0.0
      %5330 = vmatpush1.msra.mxu0 0.0
      %5331 = vmatprep.subr.mxu0 0.0
      %5332 = vmatpush1.msra.mxu0 0.0
      %5333 = vmatprep.subr.mxu0 0.0
      %5334 = vmatpush1.msra.mxu0 0.0
      %5335 = vmatprep.subr.mxu0 0.0
      %5336 = vmatpush1.msra.mxu0 0.0
      %5337 = vmatprep.subr.mxu0 0.0
      %5338 = vmatpush1.msra.mxu0 0.0
      %5339 = vmatprep.subr.mxu0 0.0
      %5340 = vmatpush1.msra.mxu0 0.0
      %5341 = vmatprep.subr.mxu0 0.0
      %5342 = vmatpush1.msra.mxu0 0.0
      %5343 = vmatprep.subr.mxu0 0.0
      %5344 = vmatpush1.msra.mxu0 0.0
      %5345 = vmatprep.subr.mxu0 0.0
      %5346 = vmatpush1.msra.mxu0 0.0
      %5347 = vmatprep.subr.mxu0 0.0
      %5348 = vmatpush1.msra.mxu0 0.0
      %5349 = vmatprep.subr.mxu0 0.0
      %5350 = vmatpush1.msra.mxu0 0.0
      %5351 = vmatprep.subr.mxu0 0.0
      %5352 = vmatpush1.msra.mxu0 0.0
      %5353 = vmatprep.subr.mxu0 0.0
      %5354 = vmatpush1.msra.mxu0 0.0
      %5355 = vmatprep.subr.mxu0 0.0
      %5356 = vmatpush1.msra.mxu0 0.0
      %5357 = vmatprep.subr.mxu0 0.0
      %5358 = vmatpush1.msra.mxu0 0.0
      %5359 = vmatprep.subr.mxu0 0.0
      %5360 = vmatpush1.msra.mxu0 0.0
      %5361 = vmatprep.subr.mxu0 0.0
      %5362 = vmatpush1.msra.mxu0 0.0
      %5363 = vmatprep.subr.mxu0 0.0
      %5364 = vmatpush1.msra.mxu0 0.0
      %5365 = vmatprep.subr.mxu0 0.0
      %5366 = vmatpush1.msra.mxu0 0.0
      %5367 = vmatprep.subr.mxu0 0.0
      %5368 = vmatpush1.msra.mxu0 0.0
      %5369 = vmatprep.subr.mxu0 0.0
      %5370 = vmatpush1.msra.mxu0 0.0
      %5371 = vmatprep.mubr.f32.mxu0 0.0
      %5372 = vmatmul.mubr.f32.gmra.mrb[0].mxu0 %v5299
      %v5373 = vpop.f32.mrb[0].mxu0
      %v5374 = vadd.f32 0.0, %v5373
      %v5375 = vpop.f32.mrb[0].mxu0
      %5376 = vmatprep.mubr.f32.mxu0 0.0
      %5377 = vmatmul.mubr.f32.gmra.mrb[0].mxu0 %v5302
      %v5378 = vpop.f32.mrb[0].mxu0
      %v5379 = vadd.f32 0.0, %v5378
      %v5380 = vpop.f32.mrb[0].mxu0
      %5381 = vmatprep.mubr.f32.mxu0 0.0
      %5382 = vmatmul.mubr.f32.gmra.mrb[0].mxu0 %v5305
      %v5383 = vpop.f32.mrb[0].mxu0
      %v5384 = vadd.f32 0.0, %v5383
      %v5385 = vpop.f32.mrb[0].mxu0
      %5386 = vdwg.mxu0
      %v5387 = vadd.f32 %v5221, %v5374
      %v5388 = vadd.f32 %v5222, %v5379
      %v5389 = vadd.f32 %v5223, %v5384
      %s5390 = scalar_lea.vmem %s19, 144
      %v5391 = vld [vmem:[%s5390] sm:$0xff]
      %v5392 = vld [vmem:[%s5390 + $0x8] sm:$0xff]
      %v5393 = vld [vmem:[%s5390 + $0x10] sm:$0xff]
      %5394 = vmatprep.subr.mxu0 0.0
      %5395 = vmatpush1.msra.mxu0 %v1737
      %5396 = vmatprep.subr.mxu0 0.0
      %5397 = vmatpush1.msra.mxu0 %v1738
      %5398 = vmatprep.subr.mxu0 0.0
      %5399 = vmatpush1.msra.mxu0 0.0
      %5400 = vmatprep.subr.mxu0 0.0
      %5401 = vmatpush1.msra.mxu0 0.0
      %5402 = vmatprep.subr.mxu0 0.0
      %5403 = vmatpush1.msra.mxu0 0.0
      %5404 = vmatprep.subr.mxu0 0.0
      %5405 = vmatpush1.msra.mxu0 0.0
      %5406 = vmatprep.subr.mxu0 0.0
      %5407 = vmatpush1.msra.mxu0 0.0
      %5408 = vmatprep.subr.mxu0 0.0
      %5409 = vmatpush1.msra.mxu0 0.0
      %5410 = vmatprep.subr.mxu0 0.0
      %5411 = vmatpush1.msra.mxu0 0.0
      %5412 = vmatprep.subr.mxu0 0.0
      %5413 = vmatpush1.msra.mxu0 0.0
      %5414 = vmatprep.subr.mxu0 0.0
      %5415 = vmatpush1.msra.mxu0 0.0
      %5416 = vmatprep.subr.mxu0 0.0
      %5417 = vmatpush1.msra.mxu0 0.0
      %5418 = vmatprep.subr.mxu0 0.0
      %5419 = vmatpush1.msra.mxu0 0.0
      %5420 = vmatprep.subr.mxu0 0.0
      %5421 = vmatpush1.msra.mxu0 0.0
      %5422 = vmatprep.subr.mxu0 0.0
      %5423 = vmatpush1.msra.mxu0 0.0
      %5424 = vmatprep.subr.mxu0 0.0
      %5425 = vmatpush1.msra.mxu0 0.0
      %5426 = vmatprep.subr.mxu0 0.0
      %5427 = vmatpush1.msra.mxu0 0.0
      %5428 = vmatprep.subr.mxu0 0.0
      %5429 = vmatpush1.msra.mxu0 0.0
      %5430 = vmatprep.subr.mxu0 0.0
      %5431 = vmatpush1.msra.mxu0 0.0
      %5432 = vmatprep.subr.mxu0 0.0
      %5433 = vmatpush1.msra.mxu0 0.0
      %5434 = vmatprep.subr.mxu0 0.0
      %5435 = vmatpush1.msra.mxu0 0.0
      %5436 = vmatprep.subr.mxu0 0.0
      %5437 = vmatpush1.msra.mxu0 0.0
      %5438 = vmatprep.subr.mxu0 0.0
      %5439 = vmatpush1.msra.mxu0 0.0
      %5440 = vmatprep.subr.mxu0 0.0
      %5441 = vmatpush1.msra.mxu0 0.0
      %5442 = vmatprep.subr.mxu0 0.0
      %5443 = vmatpush1.msra.mxu0 0.0
      %5444 = vmatprep.subr.mxu0 0.0
      %5445 = vmatpush1.msra.mxu0 0.0
      %5446 = vmatprep.subr.mxu0 0.0
      %5447 = vmatpush1.msra.mxu0 0.0
      %5448 = vmatprep.subr.mxu0 0.0
      %5449 = vmatpush1.msra.mxu0 0.0
      %5450 = vmatprep.subr.mxu0 0.0
      %5451 = vmatpush1.msra.mxu0 0.0
      %5452 = vmatprep.subr.mxu0 0.0
      %5453 = vmatpush1.msra.mxu0 0.0
      %5454 = vmatprep.subr.mxu0 0.0
      %5455 = vmatpush1.msra.mxu0 0.0
      %5456 = vmatprep.subr.mxu0 0.0
      %5457 = vmatpush1.msra.mxu0 0.0
      %5458 = vmatprep.mubr.f32.mxu0 0.0
      %5459 = vmatmul.mubr.f32.gmra.mrb[0].mxu0 %v3314
      %v5460 = vpop.f32.mrb[0].mxu0
      %v5461 = vadd.f32 0.0, %v5460
      %v5462 = vpop.f32.mrb[0].mxu0
      %5463 = vdwg.mxu0
      %v5465 = vsel %vm991, %v5391, 0
      %v5468 = vsel %vm991, %v5392, 0
      %v5471 = vsel %vm991, %v5393, 0
      %5473 = vmatprep.subr.mxu0 0.0
      %5474 = vmatpush1.msra.mxu0 %v5461
      %5475 = vmatprep.subr.mxu0 0.0
      %5476 = vmatpush1.msra.mxu0 0.0
      %5477 = vmatprep.subr.mxu0 0.0
      %5478 = vmatpush1.msra.mxu0 0.0
      %5479 = vmatprep.subr.mxu0 0.0
      %5480 = vmatpush1.msra.mxu0 0.0
      %5481 = vmatprep.subr.mxu0 0.0
      %5482 = vmatpush1.msra.mxu0 0.0
      %5483 = vmatprep.subr.mxu0 0.0
      %5484 = vmatpush1.msra.mxu0 0.0
      %5485 = vmatprep.subr.mxu0 0.0
      %5486 = vmatpush1.msra.mxu0 0.0
      %5487 = vmatprep.subr.mxu0 0.0
      %5488 = vmatpush1.msra.mxu0 0.0
      %5489 = vmatprep.subr.mxu0 0.0
      %5490 = vmatpush1.msra.mxu0 0.0
      %5491 = vmatprep.subr.mxu0 0.0
      %5492 = vmatpush1.msra.mxu0 0.0
      %5493 = vmatprep.subr.mxu0 0.0
      %5494 = vmatpush1.msra.mxu0 0.0
      %5495 = vmatprep.subr.mxu0 0.0
      %5496 = vmatpush1.msra.mxu0 0.0
      %5497 = vmatprep.subr.mxu0 0.0
      %5498 = vmatpush1.msra.mxu0 0.0
      %5499 = vmatprep.subr.mxu0 0.0
      %5500 = vmatpush1.msra.mxu0 0.0
      %5501 = vmatprep.subr.mxu0 0.0
      %5502 = vmatpush1.msra.mxu0 0.0
      %5503 = vmatprep.subr.mxu0 0.0
      %5504 = vmatpush1.msra.mxu0 0.0
      %5505 = vmatprep.subr.mxu0 0.0
      %5506 = vmatpush1.msra.mxu0 0.0
      %5507 = vmatprep.subr.mxu0 0.0
      %5508 = vmatpush1.msra.mxu0 0.0
      %5509 = vmatprep.subr.mxu0 0.0
      %5510 = vmatpush1.msra.mxu0 0.0
      %5511 = vmatprep.subr.mxu0 0.0
      %5512 = vmatpush1.msra.mxu0 0.0
      %5513 = vmatprep.subr.mxu0 0.0
      %5514 = vmatpush1.msra.mxu0 0.0
      %5515 = vmatprep.subr.mxu0 0.0
      %5516 = vmatpush1.msra.mxu0 0.0
      %5517 = vmatprep.subr.mxu0 0.0
      %5518 = vmatpush1.msra.mxu0 0.0
      %5519 = vmatprep.subr.mxu0 0.0
      %5520 = vmatpush1.msra.mxu0 0.0
      %5521 = vmatprep.subr.mxu0 0.0
      %5522 = vmatpush1.msra.mxu0 0.0
      %5523 = vmatprep.subr.mxu0 0.0
      %5524 = vmatpush1.msra.mxu0 0.0
      %5525 = vmatprep.subr.mxu0 0.0
      %5526 = vmatpush1.msra.mxu0 0.0
      %5527 = vmatprep.subr.mxu0 0.0
      %5528 = vmatpush1.msra.mxu0 0.0
      %5529 = vmatprep.subr.mxu0 0.0
      %5530 = vmatpush1.msra.mxu0 0.0
      %5531 = vmatprep.subr.mxu0 0.0
      %5532 = vmatpush1.msra.mxu0 0.0
      %5533 = vmatprep.subr.mxu0 0.0
      %5534 = vmatpush1.msra.mxu0 0.0
      %5535 = vmatprep.subr.mxu0 0.0
      %5536 = vmatpush1.msra.mxu0 0.0
      %5537 = vmatprep.mubr.f32.mxu0 0.0
      %5538 = vmatmul.mubr.f32.gmra.mrb[0].mxu0 %v5465
      %v5539 = vpop.f32.mrb[0].mxu0
      %v5540 = vadd.f32 0.0, %v5539
      %v5541 = vpop.f32.mrb[0].mxu0
      %5542 = vmatprep.mubr.f32.mxu0 0.0
      %5543 = vmatmul.mubr.f32.gmra.mrb[0].mxu0 %v5468
      %v5544 = vpop.f32.mrb[0].mxu0
      %v5545 = vadd.f32 0.0, %v5544
      %v5546 = vpop.f32.mrb[0].mxu0
      %5547 = vmatprep.mubr.f32.mxu0 0.0
      %5548 = vmatmul.mubr.f32.gmra.mrb[0].mxu0 %v5471
      %v5549 = vpop.f32.mrb[0].mxu0
      %v5550 = vadd.f32 0.0, %v5549
      %v5551 = vpop.f32.mrb[0].mxu0
      %5552 = vdwg.mxu0
      %v5553 = vadd.f32 %v5387, %v5540
      %v5554 = vadd.f32 %v5388, %v5545
      %v5555 = vadd.f32 %v5389, %v5550
      %s5556 = scalar_lea.vmem %s18, 168
      %v5557 = vld [vmem:[%s5556] sm:$0xff]
      %v5558 = vld [vmem:[%s5556 + $0x8] sm:$0xff]
      %v5559 = vld [vmem:[%s5556 + $0x10] sm:$0xff]
      %5560 = vmatprep.subr.mxu0 0.0
      %5561 = vmatpush1.msra.mxu0 %v1886
      %5562 = vmatprep.subr.mxu0 0.0
      %5563 = vmatpush1.msra.mxu0 %v1887
      %5564 = vmatprep.subr.mxu0 0.0
      %5565 = vmatpush1.msra.mxu0 0.0
      %5566 = vmatprep.subr.mxu0 0.0
      %5567 = vmatpush1.msra.mxu0 0.0
      %5568 = vmatprep.subr.mxu0 0.0
      %5569 = vmatpush1.msra.mxu0 0.0
      %5570 = vmatprep.subr.mxu0 0.0
      %5571 = vmatpush1.msra.mxu0 0.0
      %5572 = vmatprep.subr.mxu0 0.0
      %5573 = vmatpush1.msra.mxu0 0.0
      %5574 = vmatprep.subr.mxu0 0.0
      %5575 = vmatpush1.msra.mxu0 0.0
      %5576 = vmatprep.subr.mxu0 0.0
      %5577 = vmatpush1.msra.mxu0 0.0
      %5578 = vmatprep.subr.mxu0 0.0
      %5579 = vmatpush1.msra.mxu0 0.0
      %5580 = vmatprep.subr.mxu0 0.0
      %5581 = vmatpush1.msra.mxu0 0.0
      %5582 = vmatprep.subr.mxu0 0.0
      %5583 = vmatpush1.msra.mxu0 0.0
      %5584 = vmatprep.subr.mxu0 0.0
      %5585 = vmatpush1.msra.mxu0 0.0
      %5586 = vmatprep.subr.mxu0 0.0
      %5587 = vmatpush1.msra.mxu0 0.0
      %5588 = vmatprep.subr.mxu0 0.0
      %5589 = vmatpush1.msra.mxu0 0.0
      %5590 = vmatprep.subr.mxu0 0.0
      %5591 = vmatpush1.msra.mxu0 0.0
      %5592 = vmatprep.subr.mxu0 0.0
      %5593 = vmatpush1.msra.mxu0 0.0
      %5594 = vmatprep.subr.mxu0 0.0
      %5595 = vmatpush1.msra.mxu0 0.0
      %5596 = vmatprep.subr.mxu0 0.0
      %5597 = vmatpush1.msra.mxu0 0.0
      %5598 = vmatprep.subr.mxu0 0.0
      %5599 = vmatpush1.msra.mxu0 0.0
      %5600 = vmatprep.subr.mxu0 0.0
      %5601 = vmatpush1.msra.mxu0 0.0
      %5602 = vmatprep.subr.mxu0 0.0
      %5603 = vmatpush1.msra.mxu0 0.0
      %5604 = vmatprep.subr.mxu0 0.0
      %5605 = vmatpush1.msra.mxu0 0.0
      %5606 = vmatprep.subr.mxu0 0.0
      %5607 = vmatpush1.msra.mxu0 0.0
      %5608 = vmatprep.subr.mxu0 0.0
      %5609 = vmatpush1.msra.mxu0 0.0
      %5610 = vmatprep.subr.mxu0 0.0
      %5611 = vmatpush1.msra.mxu0 0.0
      %5612 = vmatprep.subr.mxu0 0.0
      %5613 = vmatpush1.msra.mxu0 0.0
      %5614 = vmatprep.subr.mxu0 0.0
      %5615 = vmatpush1.msra.mxu0 0.0
      %5616 = vmatprep.subr.mxu0 0.0
      %5617 = vmatpush1.msra.mxu0 0.0
      %5618 = vmatprep.subr.mxu0 0.0
      %5619 = vmatpush1.msra.mxu0 0.0
      %5620 = vmatprep.subr.mxu0 0.0
      %5621 = vmatpush1.msra.mxu0 0.0
      %5622 = vmatprep.subr.mxu0 0.0
      %5623 = vmatpush1.msra.mxu0 0.0
      %5624 = vmatprep.mubr.f32.mxu0 0.0
      %5625 = vmatmul.mubr.f32.gmra.mrb[0].mxu0 %v3238
      %v5626 = vpop.f32.mrb[0].mxu0
      %v5627 = vadd.f32 0.0, %v5626
      %v5628 = vpop.f32.mrb[0].mxu0
      %5629 = vdwg.mxu0
      %v5631 = vsel %vm991, %v5557, 0
      %v5634 = vsel %vm991, %v5558, 0
      %v5637 = vsel %vm991, %v5559, 0
      %5639 = vmatprep.subr.mxu0 0.0
      %5640 = vmatpush1.msra.mxu0 %v5627
      %5641 = vmatprep.subr.mxu0 0.0
      %5642 = vmatpush1.msra.mxu0 0.0
      %5643 = vmatprep.subr.mxu0 0.0
      %5644 = vmatpush1.msra.mxu0 0.0
      %5645 = vmatprep.subr.mxu0 0.0
      %5646 = vmatpush1.msra.mxu0 0.0
      %5647 = vmatprep.subr.mxu0 0.0
      %5648 = vmatpush1.msra.mxu0 0.0
      %5649 = vmatprep.subr.mxu0 0.0
      %5650 = vmatpush1.msra.mxu0 0.0
      %5651 = vmatprep.subr.mxu0 0.0
      %5652 = vmatpush1.msra.mxu0 0.0
      %5653 = vmatprep.subr.mxu0 0.0
      %5654 = vmatpush1.msra.mxu0 0.0
      %5655 = vmatprep.subr.mxu0 0.0
      %5656 = vmatpush1.msra.mxu0 0.0
      %5657 = vmatprep.subr.mxu0 0.0
      %5658 = vmatpush1.msra.mxu0 0.0
      %5659 = vmatprep.subr.mxu0 0.0
      %5660 = vmatpush1.msra.mxu0 0.0
      %5661 = vmatprep.subr.mxu0 0.0
      %5662 = vmatpush1.msra.mxu0 0.0
      %5663 = vmatprep.subr.mxu0 0.0
      %5664 = vmatpush1.msra.mxu0 0.0
      %5665 = vmatprep.subr.mxu0 0.0
      %5666 = vmatpush1.msra.mxu0 0.0
      %5667 = vmatprep.subr.mxu0 0.0
      %5668 = vmatpush1.msra.mxu0 0.0
      %5669 = vmatprep.subr.mxu0 0.0
      %5670 = vmatpush1.msra.mxu0 0.0
      %5671 = vmatprep.subr.mxu0 0.0
      %5672 = vmatpush1.msra.mxu0 0.0
      %5673 = vmatprep.subr.mxu0 0.0
      %5674 = vmatpush1.msra.mxu0 0.0
      %5675 = vmatprep.subr.mxu0 0.0
      %5676 = vmatpush1.msra.mxu0 0.0
      %5677 = vmatprep.subr.mxu0 0.0
      %5678 = vmatpush1.msra.mxu0 0.0
      %5679 = vmatprep.subr.mxu0 0.0
      %5680 = vmatpush1.msra.mxu0 0.0
      %5681 = vmatprep.subr.mxu0 0.0
      %5682 = vmatpush1.msra.mxu0 0.0
      %5683 = vmatprep.subr.mxu0 0.0
      %5684 = vmatpush1.msra.mxu0 0.0
      %5685 = vmatprep.subr.mxu0 0.0
      %5686 = vmatpush1.msra.mxu0 0.0
      %5687 = vmatprep.subr.mxu0 0.0
      %5688 = vmatpush1.msra.mxu0 0.0
      %5689 = vmatprep.subr.mxu0 0.0
      %5690 = vmatpush1.msra.mxu0 0.0
      %5691 = vmatprep.subr.mxu0 0.0
      %5692 = vmatpush1.msra.mxu0 0.0
      %5693 = vmatprep.subr.mxu0 0.0
      %5694 = vmatpush1.msra.mxu0 0.0
      %5695 = vmatprep.subr.mxu0 0.0
      %5696 = vmatpush1.msra.mxu0 0.0
      %5697 = vmatprep.subr.mxu0 0.0
      %5698 = vmatpush1.msra.mxu0 0.0
      %5699 = vmatprep.subr.mxu0 0.0
      %5700 = vmatpush1.msra.mxu0 0.0
      %5701 = vmatprep.subr.mxu0 0.0
      %5702 = vmatpush1.msra.mxu0 0.0
      %5703 = vmatprep.mubr.f32.mxu0 0.0
      %5704 = vmatmul.mubr.f32.gmra.mrb[0].mxu0 %v5631
      %v5705 = vpop.f32.mrb[0].mxu0
      %v5706 = vadd.f32 0.0, %v5705
      %v5707 = vpop.f32.mrb[0].mxu0
      %5708 = vmatprep.mubr.f32.mxu0 0.0
      %5709 = vmatmul.mubr.f32.gmra.mrb[0].mxu0 %v5634
      %v5710 = vpop.f32.mrb[0].mxu0
      %v5711 = vadd.f32 0.0, %v5710
      %v5712 = vpop.f32.mrb[0].mxu0
      %5713 = vmatprep.mubr.f32.mxu0 0.0
      %5714 = vmatmul.mubr.f32.gmra.mrb[0].mxu0 %v5637
      %v5715 = vpop.f32.mrb[0].mxu0
      %v5716 = vadd.f32 0.0, %v5715
      %v5717 = vpop.f32.mrb[0].mxu0
      %5718 = vdwg.mxu0
      %v5719 = vadd.f32 %v5553, %v5706
      %v5720 = vadd.f32 %v5554, %v5711
      %v5721 = vadd.f32 %v5555, %v5716
      %s5722 = scalar_lea.vmem %s19, 168
      %v5723 = vld [vmem:[%s5722] sm:$0xff]
      %v5724 = vld [vmem:[%s5722 + $0x8] sm:$0xff]
      %v5725 = vld [vmem:[%s5722 + $0x10] sm:$0xff]
      %5726 = vmatprep.subr.mxu0 0.0
      %5727 = vmatpush1.msra.mxu0 %v1886
      %5728 = vmatprep.subr.mxu0 0.0
      %5729 = vmatpush1.msra.mxu0 %v1887
      %5730 = vmatprep.subr.mxu0 0.0
      %5731 = vmatpush1.msra.mxu0 0.0
      %5732 = vmatprep.subr.mxu0 0.0
      %5733 = vmatpush1.msra.mxu0 0.0
      %5734 = vmatprep.subr.mxu0 0.0
      %5735 = vmatpush1.msra.mxu0 0.0
      %5736 = vmatprep.subr.mxu0 0.0
      %5737 = vmatpush1.msra.mxu0 0.0
      %5738 = vmatprep.subr.mxu0 0.0
      %5739 = vmatpush1.msra.mxu0 0.0
      %5740 = vmatprep.subr.mxu0 0.0
      %5741 = vmatpush1.msra.mxu0 0.0
      %5742 = vmatprep.subr.mxu0 0.0
      %5743 = vmatpush1.msra.mxu0 0.0
      %5744 = vmatprep.subr.mxu0 0.0
      %5745 = vmatpush1.msra.mxu0 0.0
      %5746 = vmatprep.subr.mxu0 0.0
      %5747 = vmatpush1.msra.mxu0 0.0
      %5748 = vmatprep.subr.mxu0 0.0
      %5749 = vmatpush1.msra.mxu0 0.0
      %5750 = vmatprep.subr.mxu0 0.0
      %5751 = vmatpush1.msra.mxu0 0.0
      %5752 = vmatprep.subr.mxu0 0.0
      %5753 = vmatpush1.msra.mxu0 0.0
      %5754 = vmatprep.subr.mxu0 0.0
      %5755 = vmatpush1.msra.mxu0 0.0
      %5756 = vmatprep.subr.mxu0 0.0
      %5757 = vmatpush1.msra.mxu0 0.0
      %5758 = vmatprep.subr.mxu0 0.0
      %5759 = vmatpush1.msra.mxu0 0.0
      %5760 = vmatprep.subr.mxu0 0.0
      %5761 = vmatpush1.msra.mxu0 0.0
      %5762 = vmatprep.subr.mxu0 0.0
      %5763 = vmatpush1.msra.mxu0 0.0
      %5764 = vmatprep.subr.mxu0 0.0
      %5765 = vmatpush1.msra.mxu0 0.0
      %5766 = vmatprep.subr.mxu0 0.0
      %5767 = vmatpush1.msra.mxu0 0.0
      %5768 = vmatprep.subr.mxu0 0.0
      %5769 = vmatpush1.msra.mxu0 0.0
      %5770 = vmatprep.subr.mxu0 0.0
      %5771 = vmatpush1.msra.mxu0 0.0
      %5772 = vmatprep.subr.mxu0 0.0
      %5773 = vmatpush1.msra.mxu0 0.0
      %5774 = vmatprep.subr.mxu0 0.0
      %5775 = vmatpush1.msra.mxu0 0.0
      %5776 = vmatprep.subr.mxu0 0.0
      %5777 = vmatpush1.msra.mxu0 0.0
      %5778 = vmatprep.subr.mxu0 0.0
      %5779 = vmatpush1.msra.mxu0 0.0
      %5780 = vmatprep.subr.mxu0 0.0
      %5781 = vmatpush1.msra.mxu0 0.0
      %5782 = vmatprep.subr.mxu0 0.0
      %5783 = vmatpush1.msra.mxu0 0.0
      %5784 = vmatprep.subr.mxu0 0.0
      %5785 = vmatpush1.msra.mxu0 0.0
      %5786 = vmatprep.subr.mxu0 0.0
      %5787 = vmatpush1.msra.mxu0 0.0
      %5788 = vmatprep.subr.mxu0 0.0
      %5789 = vmatpush1.msra.mxu0 0.0
      %5790 = vmatprep.mubr.f32.mxu0 0.0
      %5791 = vmatmul.mubr.f32.gmra.mrb[0].mxu0 %v3314
      %v5792 = vpop.f32.mrb[0].mxu0
      %v5793 = vadd.f32 0.0, %v5792
      %v5794 = vpop.f32.mrb[0].mxu0
      %5795 = vdwg.mxu0
      %v5797 = vsel %vm991, %v5723, 0
      %v5800 = vsel %vm991, %v5724, 0
      %v5803 = vsel %vm991, %v5725, 0
      %5805 = vmatprep.subr.mxu0 0.0
      %5806 = vmatpush1.msra.mxu0 %v5793
      %5807 = vmatprep.subr.mxu0 0.0
      %5808 = vmatpush1.msra.mxu0 0.0
      %5809 = vmatprep.subr.mxu0 0.0
      %5810 = vmatpush1.msra.mxu0 0.0
      %5811 = vmatprep.subr.mxu0 0.0
      %5812 = vmatpush1.msra.mxu0 0.0
      %5813 = vmatprep.subr.mxu0 0.0
      %5814 = vmatpush1.msra.mxu0 0.0
      %5815 = vmatprep.subr.mxu0 0.0
      %5816 = vmatpush1.msra.mxu0 0.0
      %5817 = vmatprep.subr.mxu0 0.0
      %5818 = vmatpush1.msra.mxu0 0.0
      %5819 = vmatprep.subr.mxu0 0.0
      %5820 = vmatpush1.msra.mxu0 0.0
      %5821 = vmatprep.subr.mxu0 0.0
      %5822 = vmatpush1.msra.mxu0 0.0
      %5823 = vmatprep.subr.mxu0 0.0
      %5824 = vmatpush1.msra.mxu0 0.0
      %5825 = vmatprep.subr.mxu0 0.0
      %5826 = vmatpush1.msra.mxu0 0.0
      %5827 = vmatprep.subr.mxu0 0.0
      %5828 = vmatpush1.msra.mxu0 0.0
      %5829 = vmatprep.subr.mxu0 0.0
      %5830 = vmatpush1.msra.mxu0 0.0
      %5831 = vmatprep.subr.mxu0 0.0
      %5832 = vmatpush1.msra.mxu0 0.0
      %5833 = vmatprep.subr.mxu0 0.0
      %5834 = vmatpush1.msra.mxu0 0.0
      %5835 = vmatprep.subr.mxu0 0.0
      %5836 = vmatpush1.msra.mxu0 0.0
      %5837 = vmatprep.subr.mxu0 0.0
      %5838 = vmatpush1.msra.mxu0 0.0
      %5839 = vmatprep.subr.mxu0 0.0
      %5840 = vmatpush1.msra.mxu0 0.0
      %5841 = vmatprep.subr.mxu0 0.0
      %5842 = vmatpush1.msra.mxu0 0.0
      %5843 = vmatprep.subr.mxu0 0.0
      %5844 = vmatpush1.msra.mxu0 0.0
      %5845 = vmatprep.subr.mxu0 0.0
      %5846 = vmatpush1.msra.mxu0 0.0
      %5847 = vmatprep.subr.mxu0 0.0
      %5848 = vmatpush1.msra.mxu0 0.0
      %5849 = vmatprep.subr.mxu0 0.0
      %5850 = vmatpush1.msra.mxu0 0.0
      %5851 = vmatprep.subr.mxu0 0.0
      %5852 = vmatpush1.msra.mxu0 0.0
      %5853 = vmatprep.subr.mxu0 0.0
      %5854 = vmatpush1.msra.mxu0 0.0
      %5855 = vmatprep.subr.mxu0 0.0
      %5856 = vmatpush1.msra.mxu0 0.0
      %5857 = vmatprep.subr.mxu0 0.0
      %5858 = vmatpush1.msra.mxu0 0.0
      %5859 = vmatprep.subr.mxu0 0.0
      %5860 = vmatpush1.msra.mxu0 0.0
      %5861 = vmatprep.subr.mxu0 0.0
      %5862 = vmatpush1.msra.mxu0 0.0
      %5863 = vmatprep.subr.mxu0 0.0
      %5864 = vmatpush1.msra.mxu0 0.0
      %5865 = vmatprep.subr.mxu0 0.0
      %5866 = vmatpush1.msra.mxu0 0.0
      %5867 = vmatprep.subr.mxu0 0.0
      %5868 = vmatpush1.msra.mxu0 0.0
      %5869 = vmatprep.mubr.f32.mxu0 0.0
      %5870 = vmatmul.mubr.f32.gmra.mrb[0].mxu0 %v5797
      %v5871 = vpop.f32.mrb[0].mxu0
      %v5872 = vadd.f32 0.0, %v5871
      %v5873 = vpop.f32.mrb[0].mxu0
      %5874 = vmatprep.mubr.f32.mxu0 0.0
      %5875 = vmatmul.mubr.f32.gmra.mrb[0].mxu0 %v5800
      %v5876 = vpop.f32.mrb[0].mxu0
      %v5877 = vadd.f32 0.0, %v5876
      %v5878 = vpop.f32.mrb[0].mxu0
      %5879 = vmatprep.mubr.f32.mxu0 0.0
      %5880 = vmatmul.mubr.f32.gmra.mrb[0].mxu0 %v5803
      %v5881 = vpop.f32.mrb[0].mxu0
      %v5882 = vadd.f32 0.0, %v5881
      %v5883 = vpop.f32.mrb[0].mxu0
      %5884 = vdwg.mxu0
      %v5885 = vadd.f32 %v5719, %v5872
      %v5886 = vadd.f32 %v5720, %v5877
      %v5887 = vadd.f32 %v5721, %v5882
      %s5888 = scalar_lea.vmem %s18, 192
      %v5889 = vld [vmem:[%s5888] sm:$0xff]
      %v5890 = vld [vmem:[%s5888 + $0x8] sm:$0xff]
      %v5891 = vld [vmem:[%s5888 + $0x10] sm:$0xff]
      %5892 = vmatprep.subr.mxu0 0.0
      %5893 = vmatpush1.msra.mxu0 %v2035
      %5894 = vmatprep.subr.mxu0 0.0
      %5895 = vmatpush1.msra.mxu0 %v2036
      %5896 = vmatprep.subr.mxu0 0.0
      %5897 = vmatpush1.msra.mxu0 0.0
      %5898 = vmatprep.subr.mxu0 0.0
      %5899 = vmatpush1.msra.mxu0 0.0
      %5900 = vmatprep.subr.mxu0 0.0
      %5901 = vmatpush1.msra.mxu0 0.0
      %5902 = vmatprep.subr.mxu0 0.0
      %5903 = vmatpush1.msra.mxu0 0.0
      %5904 = vmatprep.subr.mxu0 0.0
      %5905 = vmatpush1.msra.mxu0 0.0
      %5906 = vmatprep.subr.mxu0 0.0
      %5907 = vmatpush1.msra.mxu0 0.0
      %5908 = vmatprep.subr.mxu0 0.0
      %5909 = vmatpush1.msra.mxu0 0.0
      %5910 = vmatprep.subr.mxu0 0.0
      %5911 = vmatpush1.msra.mxu0 0.0
      %5912 = vmatprep.subr.mxu0 0.0
      %5913 = vmatpush1.msra.mxu0 0.0
      %5914 = vmatprep.subr.mxu0 0.0
      %5915 = vmatpush1.msra.mxu0 0.0
      %5916 = vmatprep.subr.mxu0 0.0
      %5917 = vmatpush1.msra.mxu0 0.0
      %5918 = vmatprep.subr.mxu0 0.0
      %5919 = vmatpush1.msra.mxu0 0.0
      %5920 = vmatprep.subr.mxu0 0.0
      %5921 = vmatpush1.msra.mxu0 0.0
      %5922 = vmatprep.subr.mxu0 0.0
      %5923 = vmatpush1.msra.mxu0 0.0
      %5924 = vmatprep.subr.mxu0 0.0
      %5925 = vmatpush1.msra.mxu0 0.0
      %5926 = vmatprep.subr.mxu0 0.0
      %5927 = vmatpush1.msra.mxu0 0.0
      %5928 = vmatprep.subr.mxu0 0.0
      %5929 = vmatpush1.msra.mxu0 0.0
      %5930 = vmatprep.subr.mxu0 0.0
      %5931 = vmatpush1.msra.mxu0 0.0
      %5932 = vmatprep.subr.mxu0 0.0
      %5933 = vmatpush1.msra.mxu0 0.0
      %5934 = vmatprep.subr.mxu0 0.0
      %5935 = vmatpush1.msra.mxu0 0.0
      %5936 = vmatprep.subr.mxu0 0.0
      %5937 = vmatpush1.msra.mxu0 0.0
      %5938 = vmatprep.subr.mxu0 0.0
      %5939 = vmatpush1.msra.mxu0 0.0
      %5940 = vmatprep.subr.mxu0 0.0
      %5941 = vmatpush1.msra.mxu0 0.0
      %5942 = vmatprep.subr.mxu0 0.0
      %5943 = vmatpush1.msra.mxu0 0.0
      %5944 = vmatprep.subr.mxu0 0.0
      %5945 = vmatpush1.msra.mxu0 0.0
      %5946 = vmatprep.subr.mxu0 0.0
      %5947 = vmatpush1.msra.mxu0 0.0
      %5948 = vmatprep.subr.mxu0 0.0
      %5949 = vmatpush1.msra.mxu0 0.0
      %5950 = vmatprep.subr.mxu0 0.0
      %5951 = vmatpush1.msra.mxu0 0.0
      %5952 = vmatprep.subr.mxu0 0.0
      %5953 = vmatpush1.msra.mxu0 0.0
      %5954 = vmatprep.subr.mxu0 0.0
      %5955 = vmatpush1.msra.mxu0 0.0
      %5956 = vmatprep.mubr.f32.mxu0 0.0
      %5957 = vmatmul.mubr.f32.gmra.mrb[0].mxu0 %v3238
      %v5958 = vpop.f32.mrb[0].mxu0
      %v5959 = vadd.f32 0.0, %v5958
      %v5960 = vpop.f32.mrb[0].mxu0
      %5961 = vdwg.mxu0
      %v5963 = vsel %vm991, %v5889, 0
      %v5966 = vsel %vm991, %v5890, 0
      %v5969 = vsel %vm991, %v5891, 0
      %5971 = vmatprep.subr.mxu0 0.0
      %5972 = vmatpush1.msra.mxu0 %v5959
      %5973 = vmatprep.subr.mxu0 0.0
      %5974 = vmatpush1.msra.mxu0 0.0
      %5975 = vmatprep.subr.mxu0 0.0
      %5976 = vmatpush1.msra.mxu0 0.0
      %5977 = vmatprep.subr.mxu0 0.0
      %5978 = vmatpush1.msra.mxu0 0.0
      %5979 = vmatprep.subr.mxu0 0.0
      %5980 = vmatpush1.msra.mxu0 0.0
      %5981 = vmatprep.subr.mxu0 0.0
      %5982 = vmatpush1.msra.mxu0 0.0
      %5983 = vmatprep.subr.mxu0 0.0
      %5984 = vmatpush1.msra.mxu0 0.0
      %5985 = vmatprep.subr.mxu0 0.0
      %5986 = vmatpush1.msra.mxu0 0.0
      %5987 = vmatprep.subr.mxu0 0.0
      %5988 = vmatpush1.msra.mxu0 0.0
      %5989 = vmatprep.subr.mxu0 0.0
      %5990 = vmatpush1.msra.mxu0 0.0
      %5991 = vmatprep.subr.mxu0 0.0
      %5992 = vmatpush1.msra.mxu0 0.0
      %5993 = vmatprep.subr.mxu0 0.0
      %5994 = vmatpush1.msra.mxu0 0.0
      %5995 = vmatprep.subr.mxu0 0.0
      %5996 = vmatpush1.msra.mxu0 0.0
      %5997 = vmatprep.subr.mxu0 0.0
      %5998 = vmatpush1.msra.mxu0 0.0
      %5999 = vmatprep.subr.mxu0 0.0
      %6000 = vmatpush1.msra.mxu0 0.0
      %6001 = vmatprep.subr.mxu0 0.0
      %6002 = vmatpush1.msra.mxu0 0.0
      %6003 = vmatprep.subr.mxu0 0.0
      %6004 = vmatpush1.msra.mxu0 0.0
      %6005 = vmatprep.subr.mxu0 0.0
      %6006 = vmatpush1.msra.mxu0 0.0
      %6007 = vmatprep.subr.mxu0 0.0
      %6008 = vmatpush1.msra.mxu0 0.0
      %6009 = vmatprep.subr.mxu0 0.0
      %6010 = vmatpush1.msra.mxu0 0.0
      %6011 = vmatprep.subr.mxu0 0.0
      %6012 = vmatpush1.msra.mxu0 0.0
      %6013 = vmatprep.subr.mxu0 0.0
      %6014 = vmatpush1.msra.mxu0 0.0
      %6015 = vmatprep.subr.mxu0 0.0
      %6016 = vmatpush1.msra.mxu0 0.0
      %6017 = vmatprep.subr.mxu0 0.0
      %6018 = vmatpush1.msra.mxu0 0.0
      %6019 = vmatprep.subr.mxu0 0.0
      %6020 = vmatpush1.msra.mxu0 0.0
      %6021 = vmatprep.subr.mxu0 0.0
      %6022 = vmatpush1.msra.mxu0 0.0
      %6023 = vmatprep.subr.mxu0 0.0
      %6024 = vmatpush1.msra.mxu0 0.0
      %6025 = vmatprep.subr.mxu0 0.0
      %6026 = vmatpush1.msra.mxu0 0.0
      %6027 = vmatprep.subr.mxu0 0.0
      %6028 = vmatpush1.msra.mxu0 0.0
      %6029 = vmatprep.subr.mxu0 0.0
      %6030 = vmatpush1.msra.mxu0 0.0
      %6031 = vmatprep.subr.mxu0 0.0
      %6032 = vmatpush1.msra.mxu0 0.0
      %6033 = vmatprep.subr.mxu0 0.0
      %6034 = vmatpush1.msra.mxu0 0.0
      %6035 = vmatprep.mubr.f32.mxu0 0.0
      %6036 = vmatmul.mubr.f32.gmra.mrb[0].mxu0 %v5963
      %v6037 = vpop.f32.mrb[0].mxu0
      %v6038 = vadd.f32 0.0, %v6037
      %v6039 = vpop.f32.mrb[0].mxu0
      %6040 = vmatprep.mubr.f32.mxu0 0.0
      %6041 = vmatmul.mubr.f32.gmra.mrb[0].mxu0 %v5966
      %v6042 = vpop.f32.mrb[0].mxu0
      %v6043 = vadd.f32 0.0, %v6042
      %v6044 = vpop.f32.mrb[0].mxu0
      %6045 = vmatprep.mubr.f32.mxu0 0.0
      %6046 = vmatmul.mubr.f32.gmra.mrb[0].mxu0 %v5969
      %v6047 = vpop.f32.mrb[0].mxu0
      %v6048 = vadd.f32 0.0, %v6047
      %v6049 = vpop.f32.mrb[0].mxu0
      %6050 = vdwg.mxu0
      %v6051 = vadd.f32 %v5885, %v6038
      %v6052 = vadd.f32 %v5886, %v6043
      %v6053 = vadd.f32 %v5887, %v6048
      %s6054 = scalar_lea.vmem %s19, 192
      %v6055 = vld [vmem:[%s6054] sm:$0xff]
      %v6056 = vld [vmem:[%s6054 + $0x8] sm:$0xff]
      %v6057 = vld [vmem:[%s6054 + $0x10] sm:$0xff]
      %6058 = vmatprep.subr.mxu0 0.0
      %6059 = vmatpush1.msra.mxu0 %v2035
      %6060 = vmatprep.subr.mxu0 0.0
      %6061 = vmatpush1.msra.mxu0 %v2036
      %6062 = vmatprep.subr.mxu0 0.0
      %6063 = vmatpush1.msra.mxu0 0.0
      %6064 = vmatprep.subr.mxu0 0.0
      %6065 = vmatpush1.msra.mxu0 0.0
      %6066 = vmatprep.subr.mxu0 0.0
      %6067 = vmatpush1.msra.mxu0 0.0
      %6068 = vmatprep.subr.mxu0 0.0
      %6069 = vmatpush1.msra.mxu0 0.0
      %6070 = vmatprep.subr.mxu0 0.0
      %6071 = vmatpush1.msra.mxu0 0.0
      %6072 = vmatprep.subr.mxu0 0.0
      %6073 = vmatpush1.msra.mxu0 0.0
      %6074 = vmatprep.subr.mxu0 0.0
      %6075 = vmatpush1.msra.mxu0 0.0
      %6076 = vmatprep.subr.mxu0 0.0
      %6077 = vmatpush1.msra.mxu0 0.0
      %6078 = vmatprep.subr.mxu0 0.0
      %6079 = vmatpush1.msra.mxu0 0.0
      %6080 = vmatprep.subr.mxu0 0.0
      %6081 = vmatpush1.msra.mxu0 0.0
      %6082 = vmatprep.subr.mxu0 0.0
      %6083 = vmatpush1.msra.mxu0 0.0
      %6084 = vmatprep.subr.mxu0 0.0
      %6085 = vmatpush1.msra.mxu0 0.0
      %6086 = vmatprep.subr.mxu0 0.0
      %6087 = vmatpush1.msra.mxu0 0.0
      %6088 = vmatprep.subr.mxu0 0.0
      %6089 = vmatpush1.msra.mxu0 0.0
      %6090 = vmatprep.subr.mxu0 0.0
      %6091 = vmatpush1.msra.mxu0 0.0
      %6092 = vmatprep.subr.mxu0 0.0
      %6093 = vmatpush1.msra.mxu0 0.0
      %6094 = vmatprep.subr.mxu0 0.0
      %6095 = vmatpush1.msra.mxu0 0.0
      %6096 = vmatprep.subr.mxu0 0.0
      %6097 = vmatpush1.msra.mxu0 0.0
      %6098 = vmatprep.subr.mxu0 0.0
      %6099 = vmatpush1.msra.mxu0 0.0
      %6100 = vmatprep.subr.mxu0 0.0
      %6101 = vmatpush1.msra.mxu0 0.0
      %6102 = vmatprep.subr.mxu0 0.0
      %6103 = vmatpush1.msra.mxu0 0.0
      %6104 = vmatprep.subr.mxu0 0.0
      %6105 = vmatpush1.msra.mxu0 0.0
      %6106 = vmatprep.subr.mxu0 0.0
      %6107 = vmatpush1.msra.mxu0 0.0
      %6108 = vmatprep.subr.mxu0 0.0
      %6109 = vmatpush1.msra.mxu0 0.0
      %6110 = vmatprep.subr.mxu0 0.0
      %6111 = vmatpush1.msra.mxu0 0.0
      %6112 = vmatprep.subr.mxu0 0.0
      %6113 = vmatpush1.msra.mxu0 0.0
      %6114 = vmatprep.subr.mxu0 0.0
      %6115 = vmatpush1.msra.mxu0 0.0
      %6116 = vmatprep.subr.mxu0 0.0
      %6117 = vmatpush1.msra.mxu0 0.0
      %6118 = vmatprep.subr.mxu0 0.0
      %6119 = vmatpush1.msra.mxu0 0.0
      %6120 = vmatprep.subr.mxu0 0.0
      %6121 = vmatpush1.msra.mxu0 0.0
      %6122 = vmatprep.mubr.f32.mxu0 0.0
      %6123 = vmatmul.mubr.f32.gmra.mrb[0].mxu0 %v3314
      %v6124 = vpop.f32.mrb[0].mxu0
      %v6125 = vadd.f32 0.0, %v6124
      %v6126 = vpop.f32.mrb[0].mxu0
      %6127 = vdwg.mxu0
      %v6129 = vsel %vm991, %v6055, 0
      %v6132 = vsel %vm991, %v6056, 0
      %v6135 = vsel %vm991, %v6057, 0
      %6137 = vmatprep.subr.mxu0 0.0
      %6138 = vmatpush1.msra.mxu0 %v6125
      %6139 = vmatprep.subr.mxu0 0.0
      %6140 = vmatpush1.msra.mxu0 0.0
      %6141 = vmatprep.subr.mxu0 0.0
      %6142 = vmatpush1.msra.mxu0 0.0
      %6143 = vmatprep.subr.mxu0 0.0
      %6144 = vmatpush1.msra.mxu0 0.0
      %6145 = vmatprep.subr.mxu0 0.0
      %6146 = vmatpush1.msra.mxu0 0.0
      %6147 = vmatprep.subr.mxu0 0.0
      %6148 = vmatpush1.msra.mxu0 0.0
      %6149 = vmatprep.subr.mxu0 0.0
      %6150 = vmatpush1.msra.mxu0 0.0
      %6151 = vmatprep.subr.mxu0 0.0
      %6152 = vmatpush1.msra.mxu0 0.0
      %6153 = vmatprep.subr.mxu0 0.0
      %6154 = vmatpush1.msra.mxu0 0.0
      %6155 = vmatprep.subr.mxu0 0.0
      %6156 = vmatpush1.msra.mxu0 0.0
      %6157 = vmatprep.subr.mxu0 0.0
      %6158 = vmatpush1.msra.mxu0 0.0
      %6159 = vmatprep.subr.mxu0 0.0
      %6160 = vmatpush1.msra.mxu0 0.0
      %6161 = vmatprep.subr.mxu0 0.0
      %6162 = vmatpush1.msra.mxu0 0.0
      %6163 = vmatprep.subr.mxu0 0.0
      %6164 = vmatpush1.msra.mxu0 0.0
      %6165 = vmatprep.subr.mxu0 0.0
      %6166 = vmatpush1.msra.mxu0 0.0
      %6167 = vmatprep.subr.mxu0 0.0
      %6168 = vmatpush1.msra.mxu0 0.0
      %6169 = vmatprep.subr.mxu0 0.0
      %6170 = vmatpush1.msra.mxu0 0.0
      %6171 = vmatprep.subr.mxu0 0.0
      %6172 = vmatpush1.msra.mxu0 0.0
      %6173 = vmatprep.subr.mxu0 0.0
      %6174 = vmatpush1.msra.mxu0 0.0
      %6175 = vmatprep.subr.mxu0 0.0
      %6176 = vmatpush1.msra.mxu0 0.0
      %6177 = vmatprep.subr.mxu0 0.0
      %6178 = vmatpush1.msra.mxu0 0.0
      %6179 = vmatprep.subr.mxu0 0.0
      %6180 = vmatpush1.msra.mxu0 0.0
      %6181 = vmatprep.subr.mxu0 0.0
      %6182 = vmatpush1.msra.mxu0 0.0
      %6183 = vmatprep.subr.mxu0 0.0
      %6184 = vmatpush1.msra.mxu0 0.0
      %6185 = vmatprep.subr.mxu0 0.0
      %6186 = vmatpush1.msra.mxu0 0.0
      %6187 = vmatprep.subr.mxu0 0.0
      %6188 = vmatpush1.msra.mxu0 0.0
      %6189 = vmatprep.subr.mxu0 0.0
      %6190 = vmatpush1.msra.mxu0 0.0
      %6191 = vmatprep.subr.mxu0 0.0
      %6192 = vmatpush1.msra.mxu0 0.0
      %6193 = vmatprep.subr.mxu0 0.0
      %6194 = vmatpush1.msra.mxu0 0.0
      %6195 = vmatprep.subr.mxu0 0.0
      %6196 = vmatpush1.msra.mxu0 0.0
      %6197 = vmatprep.subr.mxu0 0.0
      %6198 = vmatpush1.msra.mxu0 0.0
      %6199 = vmatprep.subr.mxu0 0.0
      %6200 = vmatpush1.msra.mxu0 0.0
      %6201 = vmatprep.mubr.f32.mxu0 0.0
      %6202 = vmatmul.mubr.f32.gmra.mrb[0].mxu0 %v6129
      %v6203 = vpop.f32.mrb[0].mxu0
      %v6204 = vadd.f32 0.0, %v6203
      %v6205 = vpop.f32.mrb[0].mxu0
      %6206 = vmatprep.mubr.f32.mxu0 0.0
      %6207 = vmatmul.mubr.f32.gmra.mrb[0].mxu0 %v6132
      %v6208 = vpop.f32.mrb[0].mxu0
      %v6209 = vadd.f32 0.0, %v6208
      %v6210 = vpop.f32.mrb[0].mxu0
      %6211 = vmatprep.mubr.f32.mxu0 0.0
      %6212 = vmatmul.mubr.f32.gmra.mrb[0].mxu0 %v6135
      %v6213 = vpop.f32.mrb[0].mxu0
      %v6214 = vadd.f32 0.0, %v6213
      %v6215 = vpop.f32.mrb[0].mxu0
      %6216 = vdwg.mxu0
      %v6217 = vadd.f32 %v6051, %v6204
      %v6218 = vadd.f32 %v6052, %v6209
      %v6219 = vadd.f32 %v6053, %v6214
      %v6220 = vld [vmem:[%s20] sm:$0xff]
      %v6221 = vld [vmem:[%s20 + $0x8] sm:$0xff]
      %v6222 = vld [vmem:[%s20 + $0x10] sm:$0xff]
      %6224 = vset.pattern.permute.xlu0 0
      %6225 = vperm.xlu0 %6224, %v6220
      %v6226 = vpop.permute.xlu0 %6225
      %6229 = vset.pattern.permute.xlu0 0
      %6230 = vperm.xlu0 %6229, %v6221
      %v6231 = vpop.permute.xlu0 %6230
      %6234 = vset.pattern.permute.xlu0 0
      %6235 = vperm.xlu0 %6234, %v6222
      %v6236 = vpop.permute.xlu0 %6235
      %v6238 = vadd.f32 %v6217, %v6226
      %v6239 = vadd.f32 %v6218, %v6231
      %v6240 = vadd.f32 %v6219, %v6236
      %6241 = vst.msk [vmem:[%s656] sm:$0xff] %vm842, %v6238
      %6242 = vst.msk [vmem:[%s656 + $0x8] sm:$0xff] %vm842, %v6239
      %6243 = vst.msk [vmem:[%s656 + $0x10] sm:$0xff] %vm842, %v6240
      %p6244 = scmp.lt.s32.totalorder %s32, 1
      %s6245 = scalar_select %p6244, %s32, 1
      %s6246 = smul.addr %s6245, 3
      %s6247 = smul.addr %s6246, 8
      %s6248 = scalar_lea.vmem %s21, %s6247
      // Predicated region
      $region105: #{forward.3} parent=103 // pred_check
        %p6249 = pneg %p496
      $region106: #{forward.3} parent=103 // pred_check_branch
        %6251 = sbr.rel (%p6249) target = $region108
      $region107: #{forward.3} parent=103 // pred_region
        _
      $region108: #{forward.3} parent=103 // pred_fallthru
        _
    $region104: #{forward.3} parent=5 // pred_fallthru
      _
    %p6252 = scmp.le.s32.totalorder 2, %s27
    // Predicated region
    $region109: #{forward.3} parent=5 // pred_check
      %p6253 = pneg %p6252
    $region110: #{forward.3} parent=5 // pred_check_branch
      %6255 = sbr.rel (%p6253) target = $region112
    $region111: #{forward.3} parent=5 // pred_region
      %s6256 = ssub.s32 %s27, 2
      // Predicated region
      $region113: #{forward.3} parent=111 // pred_check
        %p6257 = pneg %p502
      $region114: #{forward.3} parent=111 // pred_check_branch
        %6259 = sbr.rel (%p6257) target = $region116
      $region115: #{forward.3} parent=111 // pred_region
        %p6260 = scmp.lt.s32.totalorder %s33, 1
        %s6261 = scalar_select %p6260, %s33, 1
        %s6262 = smul.addr %s6261, 3
        %s6263 = smul.addr %s6262, 8
        %s6264 = scalar_lea.vmem %s21, %s6263
      $region116: #{forward.3} parent=111 // pred_fallthru
        _
    $region112: #{forward.3} parent=5 // pred_fallthru
      _
  $region6: #{forward.3} parent=0 // loop_footer
    %s31 = sadd.s32 1, %s27
  $region7: #{forward.3} parent=0 // loop_footer_branch
    %26 = sbr.rel target = $region3
  $region8: #{forward.3} parent=0 // loop_exit
    _

</llo_original>
